<compile_context>
chip_gen: v7x
topology: tpu7x:2x2x1
jax: 0.10.0
libtpu: 0.0.40
codegen_flags: <defaults>
</compile_context>

<pallas_src>
import functools

import jax
import jax.numpy as jnp
from jax.experimental import pallas as pl
from jax.experimental.pallas import tpu as pltpu

EPS = 1e-5    # nn.BatchNorm3d default eps
LANES = 128   # TPU lane width
_VMEM_LIMIT = 32 * 1024 * 1024


# -----------------------------------------------------------------------------
# Pallas kernels
# -----------------------------------------------------------------------------
def _conv3_stats_kernel(x_ref, w_ref, y_ref, stats_ref, *, td, H, W, Cp):
    """3x3x3 conv as 27 shifted-tap MXU matmuls + per-tile BN partial sums.

    x_ref:     (td+2, H+2, W+2, Cp) f32   halo'd activation tile (zero-padded)
    w_ref:     (27, Cp, Cp)         bf16  per-tap (c_in, c_out) weight matrices
    y_ref:     (td, H, W, Cp)       f32   conv output tile
    stats_ref: (2, Cp)              f32   row0 = sum, row1 = sum of squares
    """
    rows = td * H * W
    acc = jnp.zeros((rows, Cp), jnp.float32)
    tap = 0
    for kd in range(3):
        for kh in range(3):
            for kw in range(3):
                patch = x_ref[kd:kd + td, kh:kh + H, kw:kw + W, :]
                patch = patch.reshape(rows, Cp).astype(jnp.bfloat16)
                acc = acc + jnp.dot(patch, w_ref[tap],
                                    preferred_element_type=jnp.float32)
                tap += 1
    y_ref[...] = acc.reshape(td, H, W, Cp)
    stats_ref[0:1, :] = jnp.sum(acc, axis=0, keepdims=True)
    stats_ref[1:2, :] = jnp.sum(acc * acc, axis=0, keepdims=True)


def _bn_relu_kernel(y_ref, scale_ref, shift_ref, out_ref):
    """Fused BN apply + ReLU.  y/out: (rp, Cp), scale/shift: (1, Cp)."""
    out_ref[...] = jnp.maximum(y_ref[...] * scale_ref[...] + shift_ref[...], 0.0)


def _bn_add_kernel(y_ref, scale_ref, shift_ref, res_ref, out_ref):
    """Fused BN apply + residual add.  y/res/out: (rp, Cp), scale/shift: (1, Cp)."""
    out_ref[...] = res_ref[...] + y_ref[...] * scale_ref[...] + shift_ref[...]


# -----------------------------------------------------------------------------
# pallas_call wrappers
# -----------------------------------------------------------------------------
def _conv_pass(x_blocked, w_taps, *, td, H, W, Cp):
    """Tiled conv over (batch, D-blocks); returns conv output + per-tile stats."""
    N, nd, tdp2, Hp, Wp, _ = x_blocked.shape
    D = nd * td
    kern = functools.partial(_conv3_stats_kernel, td=td, H=H, W=W, Cp=Cp)
    return pl.pallas_call(
        kern,
        out_shape=(jax.ShapeDtypeStruct((N, D, H, W, Cp), jnp.float32),
                   jax.ShapeDtypeStruct((N, nd, 2, Cp), jnp.float32)),
        grid=(N, nd),
        in_specs=[
            pl.BlockSpec((None, None, tdp2, Hp, Wp, Cp),
                         lambda n, d: (n, d, 0, 0, 0, 0)),
            pl.BlockSpec((27, Cp, Cp), lambda n, d: (0, 0, 0)),
        ],
        out_specs=(
            pl.BlockSpec((None, td, H, W, Cp), lambda n, d: (n, d, 0, 0, 0)),
            pl.BlockSpec((None, None, 2, Cp), lambda n, d: (n, d, 0, 0)),
        ),
        compiler_params=pltpu.CompilerParams(
            dimension_semantics=("parallel", "parallel"),
            vmem_limit_bytes=_VMEM_LIMIT),
    )(x_blocked, w_taps)


def _bn_pass(kernel, y_flat, scale, shift, extra=None, *, rp):
    """Row-tiled elementwise pass: BN apply fused with ReLU or residual add."""
    P, Cp = y_flat.shape
    T = P // rp
    row_spec = pl.BlockSpec((rp, Cp), lambda i: (i, 0))
    vec_spec = pl.BlockSpec((1, Cp), lambda i: (0, 0))
    args = [y_flat, scale, shift]
    in_specs = [row_spec, vec_spec, vec_spec]
    if extra is not None:
        args.append(extra)
        in_specs.append(row_spec)
    return pl.pallas_call(
        kernel,
        out_shape=jax.ShapeDtypeStruct((P, Cp), jnp.float32),
        grid=(T,),
        in_specs=in_specs,
        out_specs=row_spec,
        compiler_params=pltpu.CompilerParams(
            dimension_semantics=("parallel",),
            vmem_limit_bytes=_VMEM_LIMIT),
    )(*args)


# -----------------------------------------------------------------------------
# JAX glue: layout, halo blocking, spectral norm, BN stat finalize
# -----------------------------------------------------------------------------
def _round_up(n, m):
    return ((n + m - 1) // m) * m


def _pick_td(D, H, W, Cp, budget=8 * 1024 * 1024):
    """Largest divisor of D whose double-buffered conv-tile working set fits."""
    w_bytes = 2 * 27 * Cp * Cp * 2                         # bf16 taps x2 buffers
    for td in range(D, 0, -1):
        if D % td:
            continue
        in_b = 2 * (td + 2) * (H + 2) * (W + 2) * Cp * 4   # f32 halo tile x2
        out_b = 2 * td * H * W * Cp * 4                    # f32 conv tile x2
        acc_b = td * H * W * Cp * 4                        # f32 accumulator
        if w_bytes + in_b + out_b + acc_b <= budget:
            return td
    return 1


def _pick_rows(P, target=2048):
    """Largest divisor of P that is a multiple of 8 and <= target (else P)."""
    for rp in range(min(P, target), 7, -1):
        if P % rp == 0 and rp % 8 == 0:
            return rp
    return P


def _halo_block_d(x_ndhwc, td):
    """(N, D, H, W, Cp) -> (N, D//td, td+2, H+2, W+2, Cp).

    Zero-pads the volume by 1 and stores every td-plane block together with its
    D-halo so conv tiles are fetched with plain, non-overlapping BlockSpecs.
    Duplication factor is only (td+2)/td (vs. 27x for materialized im2col).
    """
    N, D, H, W, Cp = x_ndhwc.shape
    nd = D // td
    xp = jnp.pad(x_ndhwc, ((0, 0), (1, 1), (1, 1), (1, 1), (0, 0)))
    blocks = [jax.lax.slice_in_dim(xp, i * td, i * td + td + 2, axis=1)
              for i in range(nd)]
    return jnp.stack(blocks, axis=1)


def _spectral_normalize(w, n_iter=30):
    """W / sigma_max(W.reshape(C_out, -1)) — converged power iteration
    (fixed point of PyTorch's per-forward update) via lax.fori_loop."""
    c_out = w.shape[0]
    wm = w.reshape(c_out, -1).astype(jnp.float32)
    u0 = jax.random.normal(jax.random.PRNGKey(42), (c_out,), jnp.float32)
    u0 = u0 / (jnp.linalg.norm(u0) + 1e-12)

    def body(_, u):
        v = wm.T @ u
        v = v / (jnp.linalg.norm(v) + 1e-12)
        u = wm @ v
        return u / (jnp.linalg.norm(u) + 1e-12)

    u = jax.lax.fori_loop(0, n_iter, body, u0)
    v = wm.T @ u
    v = v / (jnp.linalg.norm(v) + 1e-12)
    sigma = u @ (wm @ v)
    return w / sigma


def _weights_to_taps(w, Cp):
    """(C_out, C_in, 3, 3, 3) -> (27, Cp, Cp) bf16 per-tap (c_in, c_out) mats."""
    c_out, c_in = w.shape[0], w.shape[1]
    taps = jnp.transpose(w, (2, 3, 4, 1, 0)).reshape(27, c_in, c_out)
    taps = jnp.pad(taps, ((0, 0), (0, Cp - c_in), (0, Cp - c_out)))
    return taps.astype(jnp.bfloat16)


def _pad_channels_vec(v, Cp):
    return jnp.pad(v.astype(jnp.float32), (0, Cp - v.shape[0]))


def _finalize_stats(stats, gamma_p, beta_p, count):
    """Per-tile (sum, sumsq) -> fused training-mode BN scale/shift (biased var)."""
    s = jnp.sum(stats[:, :, 0, :], axis=(0, 1))
    ssq = jnp.sum(stats[:, :, 1, :], axis=(0, 1))
    mean = s / count
    var = jnp.maximum(ssq / count - mean * mean, 0.0)
    inv_std = jax.lax.rsqrt(var + EPS)
    scale = gamma_p * inv_std
    shift = beta_p - mean * scale
    return scale.reshape(1, -1), shift.reshape(1, -1)


# -----------------------------------------------------------------------------
# Public forward
# -----------------------------------------------------------------------------
@jax.jit
def residual_block(x_ncdhw, w1, w2, gamma1, beta1, gamma2, beta2):
    """Forward of ResidualBlock.  x: (N, C, D, H, W) f32, returns same shape."""
    N, C, D, H, W = x_ncdhw.shape
    Cp = max(LANES, _round_up(C, LANES))      # lane-dense channel padding
    P = N * D * H * W

    # NCDHW -> NDHWC, pad channels (padded channels stay exactly zero end-to-end).
    x = jnp.transpose(x_ncdhw, (0, 2, 3, 4, 1))
    x = jnp.pad(x, ((0, 0), (0, 0), (0, 0), (0, 0), (0, Cp - C)))
    x_flat = x.reshape(P, Cp)

    w1t = _weights_to_taps(_spectral_normalize(w1), Cp)
    w2t = _weights_to_taps(_spectral_normalize(w2), Cp)
    g1 = _pad_channels_vec(gamma1, Cp)
    b1 = _pad_channels_vec(beta1, Cp)
    g2 = _pad_channels_vec(gamma2, Cp)
    b2 = _pad_channels_vec(beta2, Cp)

    td = _pick_td(D, H, W, Cp)
    rp = _pick_rows(P)

    # pass A: conv1 + BN1 partial stats
    y1, st1 = _conv_pass(_halo_block_d(x, td), w1t, td=td, H=H, W=W, Cp=Cp)
    scale1, shift1 = _finalize_stats(st1, g1, b1, P)

    # pass B: BN1 apply + ReLU (fused)
    h = _bn_pass(_bn_relu_kernel, y1.reshape(P, Cp), scale1, shift1, rp=rp)

    # pass C: conv2 + BN2 partial stats
    y2, st2 = _conv_pass(_halo_block_d(h.reshape(N, D, H, W, Cp), td), w2t,
                         td=td, H=H, W=W, Cp=Cp)
    scale2, shift2 = _finalize_stats(st2, g2, b2, P)

    # pass D: BN2 apply + residual add (fused)
    out_flat = _bn_pass(_bn_add_kernel, y2.reshape(P, Cp), scale2, shift2,
                        extra=x_flat, rp=rp)

    out = out_flat.reshape(N, D, H, W, Cp)[..., :C]
    return jnp.transpose(out, (0, 4, 1, 2, 3))


# -----------------------------------------------------------------------------
# Pure-JAX reference (same bf16-MXU / f32-accumulate precision policy)
# -----------------------------------------------------------------------------
def _reference(x, w1, w2, g1, b1, g2, b2):
    def conv(t, w):
        return jax.lax.conv_general_dilated(
            t.astype(jnp.bfloat16), w.astype(jnp.bfloat16),
            window_strides=(1, 1, 1), padding=((1, 1),) * 3,
            dimension_numbers=("NCDHW", "OIDHW", "NCDHW"),
            preferred_element_type=jnp.float32)

    def bn(t, g, b):
        mean = jnp.mean(t, axis=(0, 2, 3, 4), keepdims=True)
        var = jnp.mean((t - mean) ** 2, axis=(0, 2, 3, 4), keepdims=True)
        xn = (t - mean) * jax.lax.rsqrt(var + EPS)
        return xn * g.reshape(1, -1, 1, 1, 1) + b.reshape(1, -1, 1, 1, 1)

    h = jnp.maximum(bn(conv(x, _spectral_normalize(w1)), g1, b1), 0.0)
    h = bn(conv(h, _spectral_normalize(w2)), g2, b2)
    return x + h


# -----------------------------------------------------------------------------
if __name__ == "__main__":
    key = jax.random.PRNGKey(0)
    k_x, k_w1, k_w2 = jax.random.split(key, 3)

    # (N, C, D, H, W) — small shapes consistent with Conv3d/BatchNorm3d
    N, C, D, H, W = 2, 8, 4, 8, 8

    x = jax.random.normal(k_x, (N, C, D, H, W), jnp.float32)
    # Conv3d(in_features, in_features, 3, bias=False): (C_out, C_in, 3, 3, 3)
    w1 = 0.1 * jax.random.normal(k_w1, (C, C, 3, 3, 3), jnp.float32)
    w2 = 0.1 * jax.random.normal(k_w2, (C, C, 3, 3, 3), jnp.float32)
    # BatchNorm3d affine params (PyTorch default init)
    gamma1 = jnp.ones((C,), jnp.float32)
    beta1 = jnp.zeros((C,), jnp.float32)
    gamma2 = jnp.ones((C,), jnp.float32)
    beta2 = jnp.zeros((C,), jnp.float32)

    out = jax.block_until_ready(
        residual_block(x, w1, w2, gamma1, beta1, gamma2, beta2))
    ref = _reference(x, w1, w2, gamma1, beta1, gamma2, beta2)

    assert out.shape == x.shape and out.dtype == jnp.float32
    max_err = float(jnp.max(jnp.abs(out - ref)))
    assert jnp.allclose(out, ref, rtol=2e-2, atol=2e-2), (
        f"mismatch vs reference (max abs err {max_err:.2e})")

    print("KERNEL_OK")
</pallas_src>

<mosaic_0001>
module attributes {stable_mosaic.version = 11 : i64} {
  func.func @_bn_relu_kernel(%arg0: i32, %arg1: memref<512x128xf32, #tpu.memory_space<vmem>>, %arg2: memref<1x128xf32, #tpu.memory_space<vmem>>, %arg3: memref<1x128xf32, #tpu.memory_space<vmem>>, %arg4: memref<512x128xf32, #tpu.memory_space<vmem>>) attributes {dimension_semantics = [#tpu.dimension_semantics<parallel>], iteration_bounds = array<i64: 1>, scalar_prefetch = 0 : i64, scratch_operands = 0 : i64, tpu.core_type = #tpu.core_type<tc>, window_params = [{transform_indices = @transform_0, window_bounds = array<i64: 512, 128>}, {pipeline_mode = #tpu.pipeline_mode<synchronous>, transform_indices = @transform_1, window_bounds = array<i64: 1, 128>}, {pipeline_mode = #tpu.pipeline_mode<synchronous>, transform_indices = @transform_2, window_bounds = array<i64: 1, 128>}, {transform_indices = @transform_3, window_bounds = array<i64: 512, 128>}]} {
    %c0 = arith.constant 0 : index
    %c0_0 = arith.constant 0 : index
    %0 = vector.load %arg1[%c0, %c0_0] : memref<512x128xf32, #tpu.memory_space<vmem>>, vector<512x128xf32>
    %c0_1 = arith.constant 0 : index
    %c0_2 = arith.constant 0 : index
    %1 = vector.load %arg2[%c0_1, %c0_2] : memref<1x128xf32, #tpu.memory_space<vmem>>, vector<1x128xf32>
    %2 = vector.broadcast %1 : vector<1x128xf32> to vector<512x128xf32>
    %3 = arith.mulf %0, %2 : vector<512x128xf32>
    %c0_3 = arith.constant 0 : index
    %c0_4 = arith.constant 0 : index
    %4 = vector.load %arg3[%c0_3, %c0_4] : memref<1x128xf32, #tpu.memory_space<vmem>>, vector<1x128xf32>
    %5 = vector.broadcast %4 : vector<1x128xf32> to vector<512x128xf32>
    %6 = arith.addf %3, %5 : vector<512x128xf32>
    %cst = arith.constant 0.000000e+00 : f32
    %7 = vector.broadcast %cst : f32 to vector<512x128xf32>
    %8 = arith.maximumf %6, %7 : vector<512x128xf32>
    %c0_5 = arith.constant 0 : index
    %c0_6 = arith.constant 0 : index
    %9 = vector.load %arg4[%c0_5, %c0_6] : memref<512x128xf32, #tpu.memory_space<vmem>>, vector<512x128xf32>
    tpu.vector_store %arg4[%c0_5, %c0_6], %8 {strides = array<i32>} : memref<512x128xf32, #tpu.memory_space<vmem>>, vector<512x128xf32>,
    return
  }
  func.func @transform_0(%arg0: i32) -> (i32, i32) {
    %c0_i32 = arith.constant 0 : i32
    %c0_i32_0 = arith.constant 0 : i32
    return %arg0, %c0_i32 : i32, i32
  }
  func.func @transform_1(%arg0: i32) -> (i32, i32) {
    %c0_i32 = arith.constant 0 : i32
    %c0_i32_0 = arith.constant 0 : i32
    %c0_i32_1 = arith.constant 0 : i32
    return %c0_i32, %c0_i32_0 : i32, i32
  }
  func.func @transform_2(%arg0: i32) -> (i32, i32) {
    %c0_i32 = arith.constant 0 : i32
    %c0_i32_0 = arith.constant 0 : i32
    %c0_i32_1 = arith.constant 0 : i32
    return %c0_i32, %c0_i32_0 : i32, i32
  }
  func.func @transform_3(%arg0: i32) -> (i32, i32) {
    %c0_i32 = arith.constant 0 : i32
    %c0_i32_0 = arith.constant 0 : i32
    return %arg0, %c0_i32 : i32, i32
  }
}

module attributes {stable_mosaic.version = 11 : i64} {
  func.func @_conv3_stats_kernel(%arg0: i32, %arg1: i32, %arg2: memref<1x1x6x10x10x128xf32, #tpu.memory_space<vmem>>, %arg3: memref<27x128x128xbf16, #tpu.memory_space<vmem>>, %arg4: memref<1x4x8x8x128xf32, #tpu.memory_space<vmem>>, %arg5: memref<1x1x2x128xf32, #tpu.memory_space<vmem>>) attributes {dimension_semantics = [#tpu.dimension_semantics<parallel>, #tpu.dimension_semantics<parallel>], iteration_bounds = array<i64: 2, 1>, scalar_prefetch = 0 : i64, scratch_operands = 0 : i64, tpu.core_type = #tpu.core_type<tc>, window_params = [{transform_indices = @transform_0, window_bounds = array<i64: 1, 1, 6, 10, 10, 128>}, {pipeline_mode = #tpu.pipeline_mode<synchronous>, transform_indices = @transform_1, window_bounds = array<i64: 27, 128, 128>}, {transform_indices = @transform_2, window_bounds = array<i64: 1, 4, 8, 8, 128>}, {transform_indices = @transform_3, window_bounds = array<i64: 1, 1, 2, 128>}]} {
    %cst = arith.constant 0.000000e+00 : f32
    %0 = vector.broadcast %cst : f32 to vector<256x128xf32>
    %c0 = arith.constant 0 : index
    %c0_0 = arith.constant 0 : index
    %c0_1 = arith.constant 0 : index
    %c0_2 = arith.constant 0 : index
    %c0_3 = arith.constant 0 : index
    %c0_4 = arith.constant 0 : index
    %1 = vector.load %arg2[%c0, %c0_0, %c0_1, %c0_2, %c0_3, %c0_4] : memref<1x1x6x10x10x128xf32, #tpu.memory_space<vmem>>, vector<1x1x4x8x8x128xf32>
    %2 = vector.shape_cast %1 : vector<1x1x4x8x8x128xf32> to vector<4x8x8x128xf32>
    %3 = vector.shape_cast %2 : vector<4x8x8x128xf32> to vector<256x128xf32>
    %4 = arith.truncf %3 : vector<256x128xf32> to vector<256x128xbf16>
    %c0_5 = arith.constant 0 : index
    %c0_6 = arith.constant 0 : index
    %c0_7 = arith.constant 0 : index
    %5 = vector.load %arg3[%c0_5, %c0_6, %c0_7] : memref<27x128x128xbf16, #tpu.memory_space<vmem>>, vector<1x128x128xbf16>
    %6 = vector.shape_cast %5 : vector<1x128x128xbf16> to vector<128x128xbf16>
    %cst_8 = arith.constant dense<0.000000e+00> : vector<256x128xf32>
    %7 = tpu.matmul %4, %6, %cst_8 {dimension_numbers = #tpu.dot_dimension_numbers<[1], [0], [0], [1], [0, 0, 1, 1], [], []>} : vector<256x128xbf16>, vector<128x128xbf16>, vector<256x128xf32> -> vector<256x128xf32>
    %8 = arith.addf %0, %7 : vector<256x128xf32>
    %c0_9 = arith.constant 0 : index
    %c0_10 = arith.constant 0 : index
    %c0_11 = arith.constant 0 : index
    %c0_12 = arith.constant 0 : index
    %c1 = arith.constant 1 : index
    %c0_13 = arith.constant 0 : index
    %9 = vector.load %arg2[%c0_9, %c0_10, %c0_11, %c0_12, %c1, %c0_13] : memref<1x1x6x10x10x128xf32, #tpu.memory_space<vmem>>, vector<1x1x4x8x8x128xf32>
    %10 = vector.shape_cast %9 : vector<1x1x4x8x8x128xf32> to vector<4x8x8x128xf32>
    %11 = vector.shape_cast %10 : vector<4x8x8x128xf32> to vector<256x128xf32>
    %12 = arith.truncf %11 : vector<256x128xf32> to vector<256x128xbf16>
    %c1_14 = arith.constant 1 : index
    %c0_15 = arith.constant 0 : index
    %c0_16 = arith.constant 0 : index
    %13 = vector.load %arg3[%c1_14, %c0_15, %c0_16] : memref<27x128x128xbf16, #tpu.memory_space<vmem>>, vector<1x128x128xbf16>
    %14 = vector.shape_cast %13 : vector<1x128x128xbf16> to vector<128x128xbf16>
    %cst_17 = arith.constant dense<0.000000e+00> : vector<256x128xf32>
    %15 = tpu.matmul %12, %14, %cst_17 {dimension_numbers = #tpu.dot_dimension_numbers<[1], [0], [0], [1], [0, 0, 1, 1], [], []>} : vector<256x128xbf16>, vector<128x128xbf16>, vector<256x128xf32> -> vector<256x128xf32>
    %16 = arith.addf %8, %15 : vector<256x128xf32>
    %c0_18 = arith.constant 0 : index
    %c0_19 = arith.constant 0 : index
    %c0_20 = arith.constant 0 : index
    %c0_21 = arith.constant 0 : index
    %c2 = arith.constant 2 : index
    %c0_22 = arith.constant 0 : index
    %17 = vector.load %arg2[%c0_18, %c0_19, %c0_20, %c0_21, %c2, %c0_22] : memref<1x1x6x10x10x128xf32, #tpu.memory_space<vmem>>, vector<1x1x4x8x8x128xf32>
    %18 = vector.shape_cast %17 : vector<1x1x4x8x8x128xf32> to vector<4x8x8x128xf32>
    %19 = vector.shape_cast %18 : vector<4x8x8x128xf32> to vector<256x128xf32>
    %20 = arith.truncf %19 : vector<256x128xf32> to vector<256x128xbf16>
    %c2_23 = arith.constant 2 : index
    %c0_24 = arith.constant 0 : index
    %c0_25 = arith.constant 0 : index
    %21 = vector.load %arg3[%c2_23, %c0_24, %c0_25] : memref<27x128x128xbf16, #tpu.memory_space<vmem>>, vector<1x128x128xbf16>
    %22 = vector.shape_cast %21 : vector<1x128x128xbf16> to vector<128x128xbf16>
    %cst_26 = arith.constant dense<0.000000e+00> : vector<256x128xf32>
    %23 = tpu.matmul %20, %22, %cst_26 {dimension_numbers = #tpu.dot_dimension_numbers<[1], [0], [0], [1], [0, 0, 1, 1], [], []>} : vector<256x128xbf16>, vector<128x128xbf16>, vector<256x128xf32> -> vector<256x128xf32>
    %24 = arith.addf %16, %23 : vector<256x128xf32>
    %c0_27 = arith.constant 0 : index
    %c0_28 = arith.constant 0 : index
    %c0_29 = arith.constant 0 : index
    %c1_30 = arith.constant 1 : index
    %c0_31 = arith.constant 0 : index
    %c0_32 = arith.constant 0 : index
    %25 = vector.load %arg2[%c0_27, %c0_28, %c0_29, %c1_30, %c0_31, %c0_32] : memref<1x1x6x10x10x128xf32, #tpu.memory_space<vmem>>, vector<1x1x4x8x8x128xf32>
    %26 = vector.shape_cast %25 : vector<1x1x4x8x8x128xf32> to vector<4x8x8x128xf32>
    %27 = vector.shape_cast %26 : vector<4x8x8x128xf32> to vector<256x128xf32>
    %28 = arith.truncf %27 : vector<256x128xf32> to vector<256x128xbf16>
    %c3 = arith.constant 3 : index
    %c0_33 = arith.constant 0 : index
    %c0_34 = arith.constant 0 : index
    %29 = vector.load %arg3[%c3, %c0_33, %c0_34] : memref<27x128x128xbf16, #tpu.memory_space<vmem>>, vector<1x128x128xbf16>
    %30 = vector.shape_cast %29 : vector<1x128x128xbf16> to vector<128x128xbf16>
    %cst_35 = arith.constant dense<0.000000e+00> : vector<256x128xf32>
    %31 = tpu.matmul %28, %30, %cst_35 {dimension_numbers = #tpu.dot_dimension_numbers<[1], [0], [0], [1], [0, 0, 1, 1], [], []>} : vector<256x128xbf16>, vector<128x128xbf16>, vector<256x128xf32> -> vector<256x128xf32>
    %32 = arith.addf %24, %31 : vector<256x128xf32>
    %c0_36 = arith.constant 0 : index
    %c0_37 = arith.constant 0 : index
    %c0_38 = arith.constant 0 : index
    %c1_39 = arith.constant 1 : index
    %c1_40 = arith.constant 1 : index
    %c0_41 = arith.constant 0 : index
    %33 = vector.load %arg2[%c0_36, %c0_37, %c0_38, %c1_39, %c1_40, %c0_41] : memref<1x1x6x10x10x128xf32, #tpu.memory_space<vmem>>, vector<1x1x4x8x8x128xf32>
    %34 = vector.shape_cast %33 : vector<1x1x4x8x8x128xf32> to vector<4x8x8x128xf32>
    %35 = vector.shape_cast %34 : vector<4x8x8x128xf32> to vector<256x128xf32>
    %36 = arith.truncf %35 : vector<256x128xf32> to vector<256x128xbf16>
    %c4 = arith.constant 4 : index
    %c0_42 = arith.constant 0 : index
    %c0_43 = arith.constant 0 : index
    %37 = vector.load %arg3[%c4, %c0_42, %c0_43] : memref<27x128x128xbf16, #tpu.memory_space<vmem>>, vector<1x128x128xbf16>
    %38 = vector.shape_cast %37 : vector<1x128x128xbf16> to vector<128x128xbf16>
    %cst_44 = arith.constant dense<0.000000e+00> : vector<256x128xf32>
    %39 = tpu.matmul %36, %38, %cst_44 {dimension_numbers = #tpu.dot_dimension_numbers<[1], [0], [0], [1], [0, 0, 1, 1], [], []>} : vector<256x128xbf16>, vector<128x128xbf16>, vector<256x128xf32> -> vector<256x128xf32>
    %40 = arith.addf %32, %39 : vector<256x128xf32>
    %c0_45 = arith.constant 0 : index
    %c0_46 = arith.constant 0 : index
    %c0_47 = arith.constant 0 : index
    %c1_48 = arith.constant 1 : index
    %c2_49 = arith.constant 2 : index
    %c0_50 = arith.constant 0 : index
    %41 = vector.load %arg2[%c0_45, %c0_46, %c0_47, %c1_48, %c2_49, %c0_50] : memref<1x1x6x10x10x128xf32, #tpu.memory_space<vmem>>, vector<1x1x4x8x8x128xf32>
    %42 = vector.shape_cast %41 : vector<1x1x4x8x8x128xf32> to vector<4x8x8x128xf32>
    %43 = vector.shape_cast %42 : vector<4x8x8x128xf32> to vector<256x128xf32>
    %44 = arith.truncf %43 : vector<256x128xf32> to vector<256x128xbf16>
    %c5 = arith.constant 5 : index
    %c0_51 = arith.constant 0 : index
    %c0_52 = arith.constant 0 : index
    %45 = vector.load %arg3[%c5, %c0_51, %c0_52] : memref<27x128x128xbf16, #tpu.memory_space<vmem>>, vector<1x128x128xbf16>
    %46 = vector.shape_cast %45 : vector<1x128x128xbf16> to vector<128x128xbf16>
    %cst_53 = arith.constant dense<0.000000e+00> : vector<256x128xf32>
    %47 = tpu.matmul %44, %46, %cst_53 {dimension_numbers = #tpu.dot_dimension_numbers<[1], [0], [0], [1], [0, 0, 1, 1], [], []>} : vector<256x128xbf16>, vector<128x128xbf16>, vector<256x128xf32> -> vector<256x128xf32>
    %48 = arith.addf %40, %47 : vector<256x128xf32>
    %c0_54 = arith.constant 0 : index
    %c0_55 = arith.constant 0 : index
    %c0_56 = arith.constant 0 : index
    %c2_57 = arith.constant 2 : index
    %c0_58 = arith.constant 0 : index
    %c0_59 = arith.constant 0 : index
    %49 = vector.load %arg2[%c0_54, %c0_55, %c0_56, %c2_57, %c0_58, %c0_59] : memref<1x1x6x10x10x128xf32, #tpu.memory_space<vmem>>, vector<1x1x4x8x8x128xf32>
    %50 = vector.shape_cast %49 : vector<1x1x4x8x8x128xf32> to vector<4x8x8x128xf32>
    %51 = vector.shape_cast %50 : vector<4x8x8x128xf32> to vector<256x128xf32>
    %52 = arith.truncf %51 : vector<256x128xf32> to vector<256x128xbf16>
    %c6 = arith.constant 6 : index
    %c0_60 = arith.constant 0 : index
    %c0_61 = arith.constant 0 : index
    %53 = vector.load %arg3[%c6, %c0_60, %c0_61] : memref<27x128x128xbf16, #tpu.memory_space<vmem>>, vector<1x128x128xbf16>
    %54 = vector.shape_cast %53 : vector<1x128x128xbf16> to vector<128x128xbf16>
    %cst_62 = arith.constant dense<0.000000e+00> : vector<256x128xf32>
    %55 = tpu.matmul %52, %54, %cst_62 {dimension_numbers = #tpu.dot_dimension_numbers<[1], [0], [0], [1], [0, 0, 1, 1], [], []>} : vector<256x128xbf16>, vector<128x128xbf16>, vector<256x128xf32> -> vector<256x128xf32>
    %56 = arith.addf %48, %55 : vector<256x128xf32>
    %c0_63 = arith.constant 0 : index
    %c0_64 = arith.constant 0 : index
    %c0_65 = arith.constant 0 : index
    %c2_66 = arith.constant 2 : index
    %c1_67 = arith.constant 1 : index
    %c0_68 = arith.constant 0 : index
    %57 = vector.load %arg2[%c0_63, %c0_64, %c0_65, %c2_66, %c1_67, %c0_68] : memref<1x1x6x10x10x128xf32, #tpu.memory_space<vmem>>, vector<1x1x4x8x8x128xf32>
    %58 = vector.shape_cast %57 : vector<1x1x4x8x8x128xf32> to vector<4x8x8x128xf32>
    %59 = vector.shape_cast %58 : vector<4x8x8x128xf32> to vector<256x128xf32>
    %60 = arith.truncf %59 : vector<256x128xf32> to vector<256x128xbf16>
    %c7 = arith.constant 7 : index
    %c0_69 = arith.constant 0 : index
    %c0_70 = arith.constant 0 : index
    %61 = vector.load %arg3[%c7, %c0_69, %c0_70] : memref<27x128x128xbf16, #tpu.memory_space<vmem>>, vector<1x128x128xbf16>
    %62 = vector.shape_cast %61 : vector<1x128x128xbf16> to vector<128x128xbf16>
    %cst_71 = arith.constant dense<0.000000e+00> : vector<256x128xf32>
    %63 = tpu.matmul %60, %62, %cst_71 {dimension_numbers = #tpu.dot_dimension_numbers<[1], [0], [0], [1], [0, 0, 1, 1], [], []>} : vector<256x128xbf16>, vector<128x128xbf16>, vector<256x128xf32> -> vector<256x128xf32>
    %64 = arith.addf %56, %63 : vector<256x128xf32>
    %c0_72 = arith.constant 0 : index
    %c0_73 = arith.constant 0 : index
    %c0_74 = arith.constant 0 : index
    %c2_75 = arith.constant 2 : index
    %c2_76 = arith.constant 2 : index
    %c0_77 = arith.constant 0 : index
    %65 = vector.load %arg2[%c0_72, %c0_73, %c0_74, %c2_75, %c2_76, %c0_77] : memref<1x1x6x10x10x128xf32, #tpu.memory_space<vmem>>, vector<1x1x4x8x8x128xf32>
    %66 = vector.shape_cast %65 : vector<1x1x4x8x8x128xf32> to vector<4x8x8x128xf32>
    %67 = vector.shape_cast %66 : vector<4x8x8x128xf32> to vector<256x128xf32>
    %68 = arith.truncf %67 : vector<256x128xf32> to vector<256x128xbf16>
    %c8 = arith.constant 8 : index
    %c0_78 = arith.constant 0 : index
    %c0_79 = arith.constant 0 : index
    %69 = vector.load %arg3[%c8, %c0_78, %c0_79] : memref<27x128x128xbf16, #tpu.memory_space<vmem>>, vector<1x128x128xbf16>
    %70 = vector.shape_cast %69 : vector<1x128x128xbf16> to vector<128x128xbf16>
    %cst_80 = arith.constant dense<0.000000e+00> : vector<256x128xf32>
    %71 = tpu.matmul %68, %70, %cst_80 {dimension_numbers = #tpu.dot_dimension_numbers<[1], [0], [0], [1], [0, 0, 1, 1], [], []>} : vector<256x128xbf16>, vector<128x128xbf16>, vector<256x128xf32> -> vector<256x128xf32>
    %72 = arith.addf %64, %71 : vector<256x128xf32>
    %c0_81 = arith.constant 0 : index
    %c0_82 = arith.constant 0 : index
    %c1_83 = arith.constant 1 : index
    %c0_84 = arith.constant 0 : index
    %c0_85 = arith.constant 0 : index
    %c0_86 = arith.constant 0 : index
    %73 = vector.load %arg2[%c0_81, %c0_82, %c1_83, %c0_84, %c0_85, %c0_86] : memref<1x1x6x10x10x128xf32, #tpu.memory_space<vmem>>, vector<1x1x4x8x8x128xf32>
    %74 = vector.shape_cast %73 : vector<1x1x4x8x8x128xf32> to vector<4x8x8x128xf32>
    %75 = vector.shape_cast %74 : vector<4x8x8x128xf32> to vector<256x128xf32>
    %76 = arith.truncf %75 : vector<256x128xf32> to vector<256x128xbf16>
    %c9 = arith.constant 9 : index
    %c0_87 = arith.constant 0 : index
    %c0_88 = arith.constant 0 : index
    %77 = vector.load %arg3[%c9, %c0_87, %c0_88] : memref<27x128x128xbf16, #tpu.memory_space<vmem>>, vector<1x128x128xbf16>
    %78 = vector.shape_cast %77 : vector<1x128x128xbf16> to vector<128x128xbf16>
    %cst_89 = arith.constant dense<0.000000e+00> : vector<256x128xf32>
    %79 = tpu.matmul %76, %78, %cst_89 {dimension_numbers = #tpu.dot_dimension_numbers<[1], [0], [0], [1], [0, 0, 1, 1], [], []>} : vector<256x128xbf16>, vector<128x128xbf16>, vector<256x128xf32> -> vector<256x128xf32>
    %80 = arith.addf %72, %79 : vector<256x128xf32>
    %c0_90 = arith.constant 0 : index
    %c0_91 = arith.constant 0 : index
    %c1_92 = arith.constant 1 : index
    %c0_93 = arith.constant 0 : index
    %c1_94 = arith.constant 1 : index
    %c0_95 = arith.constant 0 : index
    %81 = vector.load %arg2[%c0_90, %c0_91, %c1_92, %c0_93, %c1_94, %c0_95] : memref<1x1x6x10x10x128xf32, #tpu.memory_space<vmem>>, vector<1x1x4x8x8x128xf32>
    %82 = vector.shape_cast %81 : vector<1x1x4x8x8x128xf32> to vector<4x8x8x128xf32>
    %83 = vector.shape_cast %82 : vector<4x8x8x128xf32> to vector<256x128xf32>
    %84 = arith.truncf %83 : vector<256x128xf32> to vector<256x128xbf16>
    %c10 = arith.constant 10 : index
    %c0_96 = arith.constant 0 : index
    %c0_97 = arith.constant 0 : index
    %85 = vector.load %arg3[%c10, %c0_96, %c0_97] : memref<27x128x128xbf16, #tpu.memory_space<vmem>>, vector<1x128x128xbf16>
    %86 = vector.shape_cast %85 : vector<1x128x128xbf16> to vector<128x128xbf16>
    %cst_98 = arith.constant dense<0.000000e+00> : vector<256x128xf32>
    %87 = tpu.matmul %84, %86, %cst_98 {dimension_numbers = #tpu.dot_dimension_numbers<[1], [0], [0], [1], [0, 0, 1, 1], [], []>} : vector<256x128xbf16>, vector<128x128xbf16>, vector<256x128xf32> -> vector<256x128xf32>
    %88 = arith.addf %80, %87 : vector<256x128xf32>
    %c0_99 = arith.constant 0 : index
    %c0_100 = arith.constant 0 : index
    %c1_101 = arith.constant 1 : index
    %c0_102 = arith.constant 0 : index
    %c2_103 = arith.constant 2 : index
    %c0_104 = arith.constant 0 : index
    %89 = vector.load %arg2[%c0_99, %c0_100, %c1_101, %c0_102, %c2_103, %c0_104] : memref<1x1x6x10x10x128xf32, #tpu.memory_space<vmem>>, vector<1x1x4x8x8x128xf32>
    %90 = vector.shape_cast %89 : vector<1x1x4x8x8x128xf32> to vector<4x8x8x128xf32>
    %91 = vector.shape_cast %90 : vector<4x8x8x128xf32> to vector<256x128xf32>
    %92 = arith.truncf %91 : vector<256x128xf32> to vector<256x128xbf16>
    %c11 = arith.constant 11 : index
    %c0_105 = arith.constant 0 : index
    %c0_106 = arith.constant 0 : index
    %93 = vector.load %arg3[%c11, %c0_105, %c0_106] : memref<27x128x128xbf16, #tpu.memory_space<vmem>>, vector<1x128x128xbf16>
    %94 = vector.shape_cast %93 : vector<1x128x128xbf16> to vector<128x128xbf16>
    %cst_107 = arith.constant dense<0.000000e+00> : vector<256x128xf32>
    %95 = tpu.matmul %92, %94, %cst_107 {dimension_numbers = #tpu.dot_dimension_numbers<[1], [0], [0], [1], [0, 0, 1, 1], [], []>} : vector<256x128xbf16>, vector<128x128xbf16>, vector<256x128xf32> -> vector<256x128xf32>
    %96 = arith.addf %88, %95 : vector<256x128xf32>
    %c0_108 = arith.constant 0 : index
    %c0_109 = arith.constant 0 : index
    %c1_110 = arith.constant 1 : index
    %c1_111 = arith.constant 1 : index
    %c0_112 = arith.constant 0 : index
    %c0_113 = arith.constant 0 : index
    %97 = vector.load %arg2[%c0_108, %c0_109, %c1_110, %c1_111, %c0_112, %c0_113] : memref<1x1x6x10x10x128xf32, #tpu.memory_space<vmem>>, vector<1x1x4x8x8x128xf32>
    %98 = vector.shape_cast %97 : vector<1x1x4x8x8x128xf32> to vector<4x8x8x128xf32>
    %99 = vector.shape_cast %98 : vector<4x8x8x128xf32> to vector<256x128xf32>
    %100 = arith.truncf %99 : vector<256x128xf32> to vector<256x128xbf16>
    %c12 = arith.constant 12 : index
    %c0_114 = arith.constant 0 : index
    %c0_115 = arith.constant 0 : index
    %101 = vector.load %arg3[%c12, %c0_114, %c0_115] : memref<27x128x128xbf16, #tpu.memory_space<vmem>>, vector<1x128x128xbf16>
    %102 = vector.shape_cast %101 : vector<1x128x128xbf16> to vector<128x128xbf16>
    %cst_116 = arith.constant dense<0.000000e+00> : vector<256x128xf32>
    %103 = tpu.matmul %100, %102, %cst_116 {dimension_numbers = #tpu.dot_dimension_numbers<[1], [0], [0], [1], [0, 0, 1, 1], [], []>} : vector<256x128xbf16>, vector<128x128xbf16>, vector<256x128xf32> -> vector<256x128xf32>
    %104 = arith.addf %96, %103 : vector<256x128xf32>
    %c0_117 = arith.constant 0 : index
    %c0_118 = arith.constant 0 : index
    %c1_119 = arith.constant 1 : index
    %c1_120 = arith.constant 1 : index
    %c1_121 = arith.constant 1 : index
    %c0_122 = arith.constant 0 : index
    %105 = vector.load %arg2[%c0_117, %c0_118, %c1_119, %c1_120, %c1_121, %c0_122] : memref<1x1x6x10x10x128xf32, #tpu.memory_space<vmem>>, vector<1x1x4x8x8x128xf32>
    %106 = vector.shape_cast %105 : vector<1x1x4x8x8x128xf32> to vector<4x8x8x128xf32>
    %107 = vector.shape_cast %106 : vector<4x8x8x128xf32> to vector<256x128xf32>
    %108 = arith.truncf %107 : vector<256x128xf32> to vector<256x128xbf16>
    %c13 = arith.constant 13 : index
    %c0_123 = arith.constant 0 : index
    %c0_124 = arith.constant 0 : index
    %109 = vector.load %arg3[%c13, %c0_123, %c0_124] : memref<27x128x128xbf16, #tpu.memory_space<vmem>>, vector<1x128x128xbf16>
    %110 = vector.shape_cast %109 : vector<1x128x128xbf16> to vector<128x128xbf16>
    %cst_125 = arith.constant dense<0.000000e+00> : vector<256x128xf32>
    %111 = tpu.matmul %108, %110, %cst_125 {dimension_numbers = #tpu.dot_dimension_numbers<[1], [0], [0], [1], [0, 0, 1, 1], [], []>} : vector<256x128xbf16>, vector<128x128xbf16>, vector<256x128xf32> -> vector<256x128xf32>
    %112 = arith.addf %104, %111 : vector<256x128xf32>
    %c0_126 = arith.constant 0 : index
    %c0_127 = arith.constant 0 : index
    %c1_128 = arith.constant 1 : index
    %c1_129 = arith.constant 1 : index
    %c2_130 = arith.constant 2 : index
    %c0_131 = arith.constant 0 : index
    %113 = vector.load %arg2[%c0_126, %c0_127, %c1_128, %c1_129, %c2_130, %c0_131] : memref<1x1x6x10x10x128xf32, #tpu.memory_space<vmem>>, vector<1x1x4x8x8x128xf32>
    %114 = vector.shape_cast %113 : vector<1x1x4x8x8x128xf32> to vector<4x8x8x128xf32>
    %115 = vector.shape_cast %114 : vector<4x8x8x128xf32> to vector<256x128xf32>
    %116 = arith.truncf %115 : vector<256x128xf32> to vector<256x128xbf16>
    %c14 = arith.constant 14 : index
    %c0_132 = arith.constant 0 : index
    %c0_133 = arith.constant 0 : index
    %117 = vector.load %arg3[%c14, %c0_132, %c0_133] : memref<27x128x128xbf16, #tpu.memory_space<vmem>>, vector<1x128x128xbf16>
    %118 = vector.shape_cast %117 : vector<1x128x128xbf16> to vector<128x128xbf16>
    %cst_134 = arith.constant dense<0.000000e+00> : vector<256x128xf32>
    %119 = tpu.matmul %116, %118, %cst_134 {dimension_numbers = #tpu.dot_dimension_numbers<[1], [0], [0], [1], [0, 0, 1, 1], [], []>} : vector<256x128xbf16>, vector<128x128xbf16>, vector<256x128xf32> -> vector<256x128xf32>
    %120 = arith.addf %112, %119 : vector<256x128xf32>
    %c0_135 = arith.constant 0 : index
    %c0_136 = arith.constant 0 : index
    %c1_137 = arith.constant 1 : index
    %c2_138 = arith.constant 2 : index
    %c0_139 = arith.constant 0 : index
    %c0_140 = arith.constant 0 : index
    %121 = vector.load %arg2[%c0_135, %c0_136, %c1_137, %c2_138, %c0_139, %c0_140] : memref<1x1x6x10x10x128xf32, #tpu.memory_space<vmem>>, vector<1x1x4x8x8x128xf32>
    %122 = vector.shape_cast %121 : vector<1x1x4x8x8x128xf32> to vector<4x8x8x128xf32>
    %123 = vector.shape_cast %122 : vector<4x8x8x128xf32> to vector<256x128xf32>
    %124 = arith.truncf %123 : vector<256x128xf32> to vector<256x128xbf16>
    %c15 = arith.constant 15 : index
    %c0_141 = arith.constant 0 : index
    %c0_142 = arith.constant 0 : index
    %125 = vector.load %arg3[%c15, %c0_141, %c0_142] : memref<27x128x128xbf16, #tpu.memory_space<vmem>>, vector<1x128x128xbf16>
    %126 = vector.shape_cast %125 : vector<1x128x128xbf16> to vector<128x128xbf16>
    %cst_143 = arith.constant dense<0.000000e+00> : vector<256x128xf32>
    %127 = tpu.matmul %124, %126, %cst_143 {dimension_numbers = #tpu.dot_dimension_numbers<[1], [0], [0], [1], [0, 0, 1, 1], [], []>} : vector<256x128xbf16>, vector<128x128xbf16>, vector<256x128xf32> -> vector<256x128xf32>
    %128 = arith.addf %120, %127 : vector<256x128xf32>
    %c0_144 = arith.constant 0 : index
    %c0_145 = arith.constant 0 : index
    %c1_146 = arith.constant 1 : index
    %c2_147 = arith.constant 2 : index
    %c1_148 = arith.constant 1 : index
    %c0_149 = arith.constant 0 : index
    %129 = vector.load %arg2[%c0_144, %c0_145, %c1_146, %c2_147, %c1_148, %c0_149] : memref<1x1x6x10x10x128xf32, #tpu.memory_space<vmem>>, vector<1x1x4x8x8x128xf32>
    %130 = vector.shape_cast %129 : vector<1x1x4x8x8x128xf32> to vector<4x8x8x128xf32>
    %131 = vector.shape_cast %130 : vector<4x8x8x128xf32> to vector<256x128xf32>
    %132 = arith.truncf %131 : vector<256x128xf32> to vector<256x128xbf16>
    %c16 = arith.constant 16 : index
    %c0_150 = arith.constant 0 : index
    %c0_151 = arith.constant 0 : index
    %133 = vector.load %arg3[%c16, %c0_150, %c0_151] : memref<27x128x128xbf16, #tpu.memory_space<vmem>>, vector<1x128x128xbf16>
    %134 = vector.shape_cast %133 : vector<1x128x128xbf16> to vector<128x128xbf16>
    %cst_152 = arith.constant dense<0.000000e+00> : vector<256x128xf32>
    %135 = tpu.matmul %132, %134, %cst_152 {dimension_numbers = #tpu.dot_dimension_numbers<[1], [0], [0], [1], [0, 0, 1, 1], [], []>} : vector<256x128xbf16>, vector<128x128xbf16>, vector<256x128xf32> -> vector<256x128xf32>
    %136 = arith.addf %128, %135 : vector<256x128xf32>
    %c0_153 = arith.constant 0 : index
    %c0_154 = arith.constant 0 : index
    %c1_155 = arith.constant 1 : index
    %c2_156 = arith.constant 2 : index
    %c2_157 = arith.constant 2 : index
    %c0_158 = arith.constant 0 : index
    %137 = vector.load %arg2[%c0_153, %c0_154, %c1_155, %c2_156, %c2_157, %c0_158] : memref<1x1x6x10x10x128xf32, #tpu.memory_space<vmem>>, vector<1x1x4x8x8x128xf32>
    %138 = vector.shape_cast %137 : vector<1x1x4x8x8x128xf32> to vector<4x8x8x128xf32>
    %139 = vector.shape_cast %138 : vector<4x8x8x128xf32> to vector<256x128xf32>
    %140 = arith.truncf %139 : vector<256x128xf32> to vector<256x128xbf16>
    %c17 = arith.constant 17 : index
    %c0_159 = arith.constant 0 : index
    %c0_160 = arith.constant 0 : index
    %141 = vector.load %arg3[%c17, %c0_159, %c0_160] : memref<27x128x128xbf16, #tpu.memory_space<vmem>>, vector<1x128x128xbf16>
    %142 = vector.shape_cast %141 : vector<1x128x128xbf16> to vector<128x128xbf16>
    %cst_161 = arith.constant dense<0.000000e+00> : vector<256x128xf32>
    %143 = tpu.matmul %140, %142, %cst_161 {dimension_numbers = #tpu.dot_dimension_numbers<[1], [0], [0], [1], [0, 0, 1, 1], [], []>} : vector<256x128xbf16>, vector<128x128xbf16>, vector<256x128xf32> -> vector<256x128xf32>
    %144 = arith.addf %136, %143 : vector<256x128xf32>
    %c0_162 = arith.constant 0 : index
    %c0_163 = arith.constant 0 : index
    %c2_164 = arith.constant 2 : index
    %c0_165 = arith.constant 0 : index
    %c0_166 = arith.constant 0 : index
    %c0_167 = arith.constant 0 : index
    %145 = vector.load %arg2[%c0_162, %c0_163, %c2_164, %c0_165, %c0_166, %c0_167] : memref<1x1x6x10x10x128xf32, #tpu.memory_space<vmem>>, vector<1x1x4x8x8x128xf32>
    %146 = vector.shape_cast %145 : vector<1x1x4x8x8x128xf32> to vector<4x8x8x128xf32>
    %147 = vector.shape_cast %146 : vector<4x8x8x128xf32> to vector<256x128xf32>
    %148 = arith.truncf %147 : vector<256x128xf32> to vector<256x128xbf16>
    %c18 = arith.constant 18 : index
    %c0_168 = arith.constant 0 : index
    %c0_169 = arith.constant 0 : index
    %149 = vector.load %arg3[%c18, %c0_168, %c0_169] : memref<27x128x128xbf16, #tpu.memory_space<vmem>>, vector<1x128x128xbf16>
    %150 = vector.shape_cast %149 : vector<1x128x128xbf16> to vector<128x128xbf16>
    %cst_170 = arith.constant dense<0.000000e+00> : vector<256x128xf32>
    %151 = tpu.matmul %148, %150, %cst_170 {dimension_numbers = #tpu.dot_dimension_numbers<[1], [0], [0], [1], [0, 0, 1, 1], [], []>} : vector<256x128xbf16>, vector<128x128xbf16>, vector<256x128xf32> -> vector<256x128xf32>
    %152 = arith.addf %144, %151 : vector<256x128xf32>
    %c0_171 = arith.constant 0 : index
    %c0_172 = arith.constant 0 : index
    %c2_173 = arith.constant 2 : index
    %c0_174 = arith.constant 0 : index
    %c1_175 = arith.constant 1 : index
    %c0_176 = arith.constant 0 : index
    %153 = vector.load %arg2[%c0_171, %c0_172, %c2_173, %c0_174, %c1_175, %c0_176] : memref<1x1x6x10x10x128xf32, #tpu.memory_space<vmem>>, vector<1x1x4x8x8x128xf32>
    %154 = vector.shape_cast %153 : vector<1x1x4x8x8x128xf32> to vector<4x8x8x128xf32>
    %155 = vector.shape_cast %154 : vector<4x8x8x128xf32> to vector<256x128xf32>
    %156 = arith.truncf %155 : vector<256x128xf32> to vector<256x128xbf16>
    %c19 = arith.constant 19 : index
    %c0_177 = arith.constant 0 : index
    %c0_178 = arith.constant 0 : index
    %157 = vector.load %arg3[%c19, %c0_177, %c0_178] : memref<27x128x128xbf16, #tpu.memory_space<vmem>>, vector<1x128x128xbf16>
    %158 = vector.shape_cast %157 : vector<1x128x128xbf16> to vector<128x128xbf16>
    %cst_179 = arith.constant dense<0.000000e+00> : vector<256x128xf32>
    %159 = tpu.matmul %156, %158, %cst_179 {dimension_numbers = #tpu.dot_dimension_numbers<[1], [0], [0], [1], [0, 0, 1, 1], [], []>} : vector<256x128xbf16>, vector<128x128xbf16>, vector<256x128xf32> -> vector<256x128xf32>
    %160 = arith.addf %152, %159 : vector<256x128xf32>
    %c0_180 = arith.constant 0 : index
    %c0_181 = arith.constant 0 : index
    %c2_182 = arith.constant 2 : index
    %c0_183 = arith.constant 0 : index
    %c2_184 = arith.constant 2 : index
    %c0_185 = arith.constant 0 : index
    %161 = vector.load %arg2[%c0_180, %c0_181, %c2_182, %c0_183, %c2_184, %c0_185] : memref<1x1x6x10x10x128xf32, #tpu.memory_space<vmem>>, vector<1x1x4x8x8x128xf32>
    %162 = vector.shape_cast %161 : vector<1x1x4x8x8x128xf32> to vector<4x8x8x128xf32>
    %163 = vector.shape_cast %162 : vector<4x8x8x128xf32> to vector<256x128xf32>
    %164 = arith.truncf %163 : vector<256x128xf32> to vector<256x128xbf16>
    %c20 = arith.constant 20 : index
    %c0_186 = arith.constant 0 : index
    %c0_187 = arith.constant 0 : index
    %165 = vector.load %arg3[%c20, %c0_186, %c0_187] : memref<27x128x128xbf16, #tpu.memory_space<vmem>>, vector<1x128x128xbf16>
    %166 = vector.shape_cast %165 : vector<1x128x128xbf16> to vector<128x128xbf16>
    %cst_188 = arith.constant dense<0.000000e+00> : vector<256x128xf32>
    %167 = tpu.matmul %164, %166, %cst_188 {dimension_numbers = #tpu.dot_dimension_numbers<[1], [0], [0], [1], [0, 0, 1, 1], [], []>} : vector<256x128xbf16>, vector<128x128xbf16>, vector<256x128xf32> -> vector<256x128xf32>
    %168 = arith.addf %160, %167 : vector<256x128xf32>
    %c0_189 = arith.constant 0 : index
    %c0_190 = arith.constant 0 : index
    %c2_191 = arith.constant 2 : index
    %c1_192 = arith.constant 1 : index
    %c0_193 = arith.constant 0 : index
    %c0_194 = arith.constant 0 : index
    %169 = vector.load %arg2[%c0_189, %c0_190, %c2_191, %c1_192, %c0_193, %c0_194] : memref<1x1x6x10x10x128xf32, #tpu.memory_space<vmem>>, vector<1x1x4x8x8x128xf32>
    %170 = vector.shape_cast %169 : vector<1x1x4x8x8x128xf32> to vector<4x8x8x128xf32>
    %171 = vector.shape_cast %170 : vector<4x8x8x128xf32> to vector<256x128xf32>
    %172 = arith.truncf %171 : vector<256x128xf32> to vector<256x128xbf16>
    %c21 = arith.constant 21 : index
    %c0_195 = arith.constant 0 : index
    %c0_196 = arith.constant 0 : index
    %173 = vector.load %arg3[%c21, %c0_195, %c0_196] : memref<27x128x128xbf16, #tpu.memory_space<vmem>>, vector<1x128x128xbf16>
    %174 = vector.shape_cast %173 : vector<1x128x128xbf16> to vector<128x128xbf16>
    %cst_197 = arith.constant dense<0.000000e+00> : vector<256x128xf32>
    %175 = tpu.matmul %172, %174, %cst_197 {dimension_numbers = #tpu.dot_dimension_numbers<[1], [0], [0], [1], [0, 0, 1, 1], [], []>} : vector<256x128xbf16>, vector<128x128xbf16>, vector<256x128xf32> -> vector<256x128xf32>
    %176 = arith.addf %168, %175 : vector<256x128xf32>
    %c0_198 = arith.constant 0 : index
    %c0_199 = arith.constant 0 : index
    %c2_200 = arith.constant 2 : index
    %c1_201 = arith.constant 1 : index
    %c1_202 = arith.constant 1 : index
    %c0_203 = arith.constant 0 : index
    %177 = vector.load %arg2[%c0_198, %c0_199, %c2_200, %c1_201, %c1_202, %c0_203] : memref<1x1x6x10x10x128xf32, #tpu.memory_space<vmem>>, vector<1x1x4x8x8x128xf32>
    %178 = vector.shape_cast %177 : vector<1x1x4x8x8x128xf32> to vector<4x8x8x128xf32>
    %179 = vector.shape_cast %178 : vector<4x8x8x128xf32> to vector<256x128xf32>
    %180 = arith.truncf %179 : vector<256x128xf32> to vector<256x128xbf16>
    %c22 = arith.constant 22 : index
    %c0_204 = arith.constant 0 : index
    %c0_205 = arith.constant 0 : index
    %181 = vector.load %arg3[%c22, %c0_204, %c0_205] : memref<27x128x128xbf16, #tpu.memory_space<vmem>>, vector<1x128x128xbf16>
    %182 = vector.shape_cast %181 : vector<1x128x128xbf16> to vector<128x128xbf16>
    %cst_206 = arith.constant dense<0.000000e+00> : vector<256x128xf32>
    %183 = tpu.matmul %180, %182, %cst_206 {dimension_numbers = #tpu.dot_dimension_numbers<[1], [0], [0], [1], [0, 0, 1, 1], [], []>} : vector<256x128xbf16>, vector<128x128xbf16>, vector<256x128xf32> -> vector<256x128xf32>
    %184 = arith.addf %176, %183 : vector<256x128xf32>
    %c0_207 = arith.constant 0 : index
    %c0_208 = arith.constant 0 : index
    %c2_209 = arith.constant 2 : index
    %c1_210 = arith.constant 1 : index
    %c2_211 = arith.constant 2 : index
    %c0_212 = arith.constant 0 : index
    %185 = vector.load %arg2[%c0_207, %c0_208, %c2_209, %c1_210, %c2_211, %c0_212] : memref<1x1x6x10x10x128xf32, #tpu.memory_space<vmem>>, vector<1x1x4x8x8x128xf32>
    %186 = vector.shape_cast %185 : vector<1x1x4x8x8x128xf32> to vector<4x8x8x128xf32>
    %187 = vector.shape_cast %186 : vector<4x8x8x128xf32> to vector<256x128xf32>
    %188 = arith.truncf %187 : vector<256x128xf32> to vector<256x128xbf16>
    %c23 = arith.constant 23 : index
    %c0_213 = arith.constant 0 : index
    %c0_214 = arith.constant 0 : index
    %189 = vector.load %arg3[%c23, %c0_213, %c0_214] : memref<27x128x128xbf16, #tpu.memory_space<vmem>>, vector<1x128x128xbf16>
    %190 = vector.shape_cast %189 : vector<1x128x128xbf16> to vector<128x128xbf16>
    %cst_215 = arith.constant dense<0.000000e+00> : vector<256x128xf32>
    %191 = tpu.matmul %188, %190, %cst_215 {dimension_numbers = #tpu.dot_dimension_numbers<[1], [0], [0], [1], [0, 0, 1, 1], [], []>} : vector<256x128xbf16>, vector<128x128xbf16>, vector<256x128xf32> -> vector<256x128xf32>
    %192 = arith.addf %184, %191 : vector<256x128xf32>
    %c0_216 = arith.constant 0 : index
    %c0_217 = arith.constant 0 : index
    %c2_218 = arith.constant 2 : index
    %c2_219 = arith.constant 2 : index
    %c0_220 = arith.constant 0 : index
    %c0_221 = arith.constant 0 : index
    %193 = vector.load %arg2[%c0_216, %c0_217, %c2_218, %c2_219, %c0_220, %c0_221] : memref<1x1x6x10x10x128xf32, #tpu.memory_space<vmem>>, vector<1x1x4x8x8x128xf32>
    %194 = vector.shape_cast %193 : vector<1x1x4x8x8x128xf32> to vector<4x8x8x128xf32>
    %195 = vector.shape_cast %194 : vector<4x8x8x128xf32> to vector<256x128xf32>
    %196 = arith.truncf %195 : vector<256x128xf32> to vector<256x128xbf16>
    %c24 = arith.constant 24 : index
    %c0_222 = arith.constant 0 : index
    %c0_223 = arith.constant 0 : index
    %197 = vector.load %arg3[%c24, %c0_222, %c0_223] : memref<27x128x128xbf16, #tpu.memory_space<vmem>>, vector<1x128x128xbf16>
    %198 = vector.shape_cast %197 : vector<1x128x128xbf16> to vector<128x128xbf16>
    %cst_224 = arith.constant dense<0.000000e+00> : vector<256x128xf32>
    %199 = tpu.matmul %196, %198, %cst_224 {dimension_numbers = #tpu.dot_dimension_numbers<[1], [0], [0], [1], [0, 0, 1, 1], [], []>} : vector<256x128xbf16>, vector<128x128xbf16>, vector<256x128xf32> -> vector<256x128xf32>
    %200 = arith.addf %192, %199 : vector<256x128xf32>
    %c0_225 = arith.constant 0 : index
    %c0_226 = arith.constant 0 : index
    %c2_227 = arith.constant 2 : index
    %c2_228 = arith.constant 2 : index
    %c1_229 = arith.constant 1 : index
    %c0_230 = arith.constant 0 : index
    %201 = vector.load %arg2[%c0_225, %c0_226, %c2_227, %c2_228, %c1_229, %c0_230] : memref<1x1x6x10x10x128xf32, #tpu.memory_space<vmem>>, vector<1x1x4x8x8x128xf32>
    %202 = vector.shape_cast %201 : vector<1x1x4x8x8x128xf32> to vector<4x8x8x128xf32>
    %203 = vector.shape_cast %202 : vector<4x8x8x128xf32> to vector<256x128xf32>
    %204 = arith.truncf %203 : vector<256x128xf32> to vector<256x128xbf16>
    %c25 = arith.constant 25 : index
    %c0_231 = arith.constant 0 : index
    %c0_232 = arith.constant 0 : index
    %205 = vector.load %arg3[%c25, %c0_231, %c0_232] : memref<27x128x128xbf16, #tpu.memory_space<vmem>>, vector<1x128x128xbf16>
    %206 = vector.shape_cast %205 : vector<1x128x128xbf16> to vector<128x128xbf16>
    %cst_233 = arith.constant dense<0.000000e+00> : vector<256x128xf32>
    %207 = tpu.matmul %204, %206, %cst_233 {dimension_numbers = #tpu.dot_dimension_numbers<[1], [0], [0], [1], [0, 0, 1, 1], [], []>} : vector<256x128xbf16>, vector<128x128xbf16>, vector<256x128xf32> -> vector<256x128xf32>
    %208 = arith.addf %200, %207 : vector<256x128xf32>
    %c0_234 = arith.constant 0 : index
    %c0_235 = arith.constant 0 : index
    %c2_236 = arith.constant 2 : index
    %c2_237 = arith.constant 2 : index
    %c2_238 = arith.constant 2 : index
    %c0_239 = arith.constant 0 : index
    %209 = vector.load %arg2[%c0_234, %c0_235, %c2_236, %c2_237, %c2_238, %c0_239] : memref<1x1x6x10x10x128xf32, #tpu.memory_space<vmem>>, vector<1x1x4x8x8x128xf32>
    %210 = vector.shape_cast %209 : vector<1x1x4x8x8x128xf32> to vector<4x8x8x128xf32>
    %211 = vector.shape_cast %210 : vector<4x8x8x128xf32> to vector<256x128xf32>
    %212 = arith.truncf %211 : vector<256x128xf32> to vector<256x128xbf16>
    %c26 = arith.constant 26 : index
    %c0_240 = arith.constant 0 : index
    %c0_241 = arith.constant 0 : index
    %213 = vector.load %arg3[%c26, %c0_240, %c0_241] : memref<27x128x128xbf16, #tpu.memory_space<vmem>>, vector<1x128x128xbf16>
    %214 = vector.shape_cast %213 : vector<1x128x128xbf16> to vector<128x128xbf16>
    %cst_242 = arith.constant dense<0.000000e+00> : vector<256x128xf32>
    %215 = tpu.matmul %212, %214, %cst_242 {dimension_numbers = #tpu.dot_dimension_numbers<[1], [0], [0], [1], [0, 0, 1, 1], [], []>} : vector<256x128xbf16>, vector<128x128xbf16>, vector<256x128xf32> -> vector<256x128xf32>
    %216 = arith.addf %208, %215 : vector<256x128xf32>
    %217 = vector.shape_cast %216 : vector<256x128xf32> to vector<4x8x8x128xf32>
    %c0_243 = arith.constant 0 : index
    %c0_244 = arith.constant 0 : index
    %c0_245 = arith.constant 0 : index
    %c0_246 = arith.constant 0 : index
    %c0_247 = arith.constant 0 : index
    %218 = vector.load %arg4[%c0_243, %c0_244, %c0_245, %c0_246, %c0_247] : memref<1x4x8x8x128xf32, #tpu.memory_space<vmem>>, vector<1x4x8x8x128xf32>
    %219 = vector.shape_cast %218 : vector<1x4x8x8x128xf32> to vector<4x8x8x128xf32>
    %220 = vector.shape_cast %217 : vector<4x8x8x128xf32> to vector<1x4x8x8x128xf32>
    tpu.vector_store %arg4[%c0_243, %c0_244, %c0_245, %c0_246, %c0_247], %220 {strides = array<i32>} : memref<1x4x8x8x128xf32, #tpu.memory_space<vmem>>, vector<1x4x8x8x128xf32>,
    %cst_248 = arith.constant dense<0.000000e+00> : vector<128xf32>
    %221 = vector.multi_reduction <add>, %216, %cst_248 [0] : vector<256x128xf32> to vector<128xf32>
    %222 = vector.shape_cast %221 : vector<128xf32> to vector<1x128xf32>
    %c0_249 = arith.constant 0 : index
    %c0_250 = arith.constant 0 : index
    %c0_251 = arith.constant 0 : index
    %c0_252 = arith.constant 0 : index
    %223 = vector.load %arg5[%c0_249, %c0_250, %c0_251, %c0_252] : memref<1x1x2x128xf32, #tpu.memory_space<vmem>>, vector<1x1x1x128xf32>
    %224 = vector.shape_cast %223 : vector<1x1x1x128xf32> to vector<1x128xf32>
    %225 = vector.shape_cast %222 : vector<1x128xf32> to vector<1x1x1x128xf32>
    tpu.vector_store %arg5[%c0_249, %c0_250, %c0_251, %c0_252], %225 {strides = array<i32>} : memref<1x1x2x128xf32, #tpu.memory_space<vmem>>, vector<1x1x1x128xf32>,
    %226 = arith.mulf %216, %216 : vector<256x128xf32>
    %cst_253 = arith.constant dense<0.000000e+00> : vector<128xf32>
    %227 = vector.multi_reduction <add>, %226, %cst_253 [0] : vector<256x128xf32> to vector<128xf32>
    %228 = vector.shape_cast %227 : vector<128xf32> to vector<1x128xf32>
    %c0_254 = arith.constant 0 : index
    %c0_255 = arith.constant 0 : index
    %c1_256 = arith.constant 1 : index
    %c0_257 = arith.constant 0 : index
    %229 = vector.load %arg5[%c0_254, %c0_255, %c1_256, %c0_257] : memref<1x1x2x128xf32, #tpu.memory_space<vmem>>, vector<1x1x1x128xf32>
    %230 = vector.shape_cast %229 : vector<1x1x1x128xf32> to vector<1x128xf32>
    %231 = vector.shape_cast %228 : vector<1x128xf32> to vector<1x1x1x128xf32>
    tpu.vector_store %arg5[%c0_254, %c0_255, %c1_256, %c0_257], %231 {strides = array<i32>} : memref<1x1x2x128xf32, #tpu.memory_space<vmem>>, vector<1x1x1x128xf32>,
    return
  }
  func.func @transform_0(%arg0: i32, %arg1: i32) -> (i32, i32, i32, i32, i32, i32) {
    %c0_i32 = arith.constant 0 : i32
    %c0_i32_0 = arith.constant 0 : i32
    %c0_i32_1 = arith.constant 0 : i32
    %c0_i32_2 = arith.constant 0 : i32
    %c0_i32_3 = arith.constant 0 : i32
    return %arg0, %arg1, %c0_i32, %c0_i32_0, %c0_i32_1, %c0_i32_2 : i32, i32, i32, i32, i32, i32
  }
  func.func @transform_1(%arg0: i32, %arg1: i32) -> (i32, i32, i32) {
    %c0_i32 = arith.constant 0 : i32
    %c0_i32_0 = arith.constant 0 : i32
    %c0_i32_1 = arith.constant 0 : i32
    %c0_i32_2 = arith.constant 0 : i32
    return %c0_i32, %c0_i32_0, %c0_i32_1 : i32, i32, i32
  }
  func.func @transform_2(%arg0: i32, %arg1: i32) -> (i32, i32, i32, i32, i32) {
    %c0_i32 = arith.constant 0 : i32
    %c0_i32_0 = arith.constant 0 : i32
    %c0_i32_1 = arith.constant 0 : i32
    %c0_i32_2 = arith.constant 0 : i32
    return %arg0, %arg1, %c0_i32, %c0_i32_0, %c0_i32_1 : i32, i32, i32, i32, i32
  }
  func.func @transform_3(%arg0: i32, %arg1: i32) -> (i32, i32, i32, i32) {
    %c0_i32 = arith.constant 0 : i32
    %c0_i32_0 = arith.constant 0 : i32
    %c0_i32_1 = arith.constant 0 : i32
    return %arg0, %arg1, %c0_i32, %c0_i32_0 : i32, i32, i32, i32
  }
}

module attributes {stable_mosaic.version = 11 : i64} {
  func.func @_bn_add_kernel(%arg0: i32, %arg1: memref<512x128xf32, #tpu.memory_space<vmem>>, %arg2: memref<1x128xf32, #tpu.memory_space<vmem>>, %arg3: memref<1x128xf32, #tpu.memory_space<vmem>>, %arg4: memref<512x128xf32, #tpu.memory_space<vmem>>, %arg5: memref<512x128xf32, #tpu.memory_space<vmem>>) attributes {dimension_semantics = [#tpu.dimension_semantics<parallel>], iteration_bounds = array<i64: 1>, scalar_prefetch = 0 : i64, scratch_operands = 0 : i64, tpu.core_type = #tpu.core_type<tc>, window_params = [{transform_indices = @transform_0, window_bounds = array<i64: 512, 128>}, {pipeline_mode = #tpu.pipeline_mode<synchronous>, transform_indices = @transform_1, window_bounds = array<i64: 1, 128>}, {pipeline_mode = #tpu.pipeline_mode<synchronous>, transform_indices = @transform_2, window_bounds = array<i64: 1, 128>}, {transform_indices = @transform_3, window_bounds = array<i64: 512, 128>}, {transform_indices = @transform_4, window_bounds = array<i64: 512, 128>}]} {
    %c0 = arith.constant 0 : index
    %c0_0 = arith.constant 0 : index
    %0 = vector.load %arg4[%c0, %c0_0] : memref<512x128xf32, #tpu.memory_space<vmem>>, vector<512x128xf32>
    %c0_1 = arith.constant 0 : index
    %c0_2 = arith.constant 0 : index
    %1 = vector.load %arg1[%c0_1, %c0_2] : memref<512x128xf32, #tpu.memory_space<vmem>>, vector<512x128xf32>
    %c0_3 = arith.constant 0 : index
    %c0_4 = arith.constant 0 : index
    %2 = vector.load %arg2[%c0_3, %c0_4] : memref<1x128xf32, #tpu.memory_space<vmem>>, vector<1x128xf32>
    %3 = vector.broadcast %2 : vector<1x128xf32> to vector<512x128xf32>
    %4 = arith.mulf %1, %3 : vector<512x128xf32>
    %5 = arith.addf %0, %4 : vector<512x128xf32>
    %c0_5 = arith.constant 0 : index
    %c0_6 = arith.constant 0 : index
    %6 = vector.load %arg3[%c0_5, %c0_6] : memref<1x128xf32, #tpu.memory_space<vmem>>, vector<1x128xf32>
    %7 = vector.broadcast %6 : vector<1x128xf32> to vector<512x128xf32>
    %8 = arith.addf %5, %7 : vector<512x128xf32>
    %c0_7 = arith.constant 0 : index
    %c0_8 = arith.constant 0 : index
    %9 = vector.load %arg5[%c0_7, %c0_8] : memref<512x128xf32, #tpu.memory_space<vmem>>, vector<512x128xf32>
    tpu.vector_store %arg5[%c0_7, %c0_8], %8 {strides = array<i32>} : memref<512x128xf32, #tpu.memory_space<vmem>>, vector<512x128xf32>,
    return
  }
  func.func @transform_0(%arg0: i32) -> (i32, i32) {
    %c0_i32 = arith.constant 0 : i32
    %c0_i32_0 = arith.constant 0 : i32
    return %arg0, %c0_i32 : i32, i32
  }
  func.func @transform_1(%arg0: i32) -> (i32, i32) {
    %c0_i32 = arith.constant 0 : i32
    %c0_i32_0 = arith.constant 0 : i32
    %c0_i32_1 = arith.constant 0 : i32
    return %c0_i32, %c0_i32_0 : i32, i32
  }
  func.func @transform_2(%arg0: i32) -> (i32, i32) {
    %c0_i32 = arith.constant 0 : i32
    %c0_i32_0 = arith.constant 0 : i32
    %c0_i32_1 = arith.constant 0 : i32
    return %c0_i32, %c0_i32_0 : i32, i32
  }
  func.func @transform_3(%arg0: i32) -> (i32, i32) {
    %c0_i32 = arith.constant 0 : i32
    %c0_i32_0 = arith.constant 0 : i32
    return %arg0, %c0_i32 : i32, i32
  }
  func.func @transform_4(%arg0: i32) -> (i32, i32) {
    %c0_i32 = arith.constant 0 : i32
    %c0_i32_0 = arith.constant 0 : i32
    return %arg0, %c0_i32 : i32, i32
  }
}

</mosaic_0001>

<llo_original>
// kernel: residual_block.5
$region0: #{residual_block.5}
  #allocation0 [shape = 'u32[]', space=smem, size = 0x4, offset = 0x4, fixed_abs, tag = 'smem constant byte address 0x4 - core index']
  #allocation1 [shape = 'u32[144,128]{1,0:T(1,128)}', space=vmem, size = 0x12000, scoped, tag = 'internal scratch']
  %s0 = inlined_call_operand.vmem [shape: f32[512,128], index: 0, kind: input, shape index: {}]
  %s1 = inlined_call_operand.vmem [shape: f32[1,128], index: 1, kind: input, shape index: {}]
  %s2 = inlined_call_operand.vmem [shape: f32[1,128], index: 2, kind: input, shape index: {}]
  %s3 = inlined_call_operand.vmem [shape: f32[512,128], index: 3, kind: output, shape index: {}]
  %s4 = sld [smem:[#allocation0]]
  $region22: #{residual_block.5} parent=0
    _
  %s6 = ssub.s32 1, %s4
  %s7 = scalar_select 0, %s6, %s4
  // Predicated region
  $region2: #{residual_block.5} parent=0 // pred_check
    _
  $region3: #{residual_block.5} parent=0 // pred_check_branch
    %9 = sbr.rel (0) target = $region5
  $region4: #{residual_block.5} parent=0 // pred_region
    _
  $region5: #{residual_block.5} parent=0 // pred_fallthru
    _
  // Predicated region
  $region6: #{residual_block.5} parent=0 // pred_check
    _
  $region7: #{residual_block.5} parent=0 // pred_check_branch
    %11 = sbr.rel (0) target = $region9
  $region8: #{residual_block.5} parent=0 // pred_region
    _
  $region9: #{residual_block.5} parent=0 // pred_fallthru
    _
  // Predicated region
  $region10: #{residual_block.5} parent=0 // pred_check
    _
  $region11: #{residual_block.5} parent=0 // pred_check_branch
    %13 = sbr.rel (0) target = $region13
  $region12: #{residual_block.5} parent=0 // pred_region
    _
  $region13: #{residual_block.5} parent=0 // pred_fallthru
    _
  %v14 = vld [vmem:[%s0] sm:$0xff]
  %v15 = vld [vmem:[%s0 + $0x8] sm:$0xff]
  %v16 = vld [vmem:[%s0 + $0x10] sm:$0xff]
  %v17 = vld [vmem:[%s0 + $0x18] sm:$0xff]
  %v18 = vld [vmem:[%s0 + $0x20] sm:$0xff]
  %v19 = vld [vmem:[%s0 + $0x28] sm:$0xff]
  %v20 = vld [vmem:[%s0 + $0x30] sm:$0xff]
  %v21 = vld [vmem:[%s0 + $0x38] sm:$0xff]
  %v22 = vld [vmem:[%s0 + $0x40] sm:$0xff]
  %v23 = vld [vmem:[%s0 + $0x48] sm:$0xff]
  %v24 = vld [vmem:[%s0 + $0x50] sm:$0xff]
  %v25 = vld [vmem:[%s0 + $0x58] sm:$0xff]
  %v26 = vld [vmem:[%s0 + $0x60] sm:$0xff]
  %v27 = vld [vmem:[%s0 + $0x68] sm:$0xff]
  %v28 = vld [vmem:[%s0 + $0x70] sm:$0xff]
  %v29 = vld [vmem:[%s0 + $0x78] sm:$0xff]
  %v30 = vld [vmem:[%s0 + $0x80] sm:$0xff]
  %v31 = vld [vmem:[%s0 + $0x88] sm:$0xff]
  %v32 = vld [vmem:[%s0 + $0x90] sm:$0xff]
  %v33 = vld [vmem:[%s0 + $0x98] sm:$0xff]
  %v34 = vld [vmem:[%s0 + $0xa0] sm:$0xff]
  %v35 = vld [vmem:[%s0 + $0xa8] sm:$0xff]
  %v36 = vld [vmem:[%s0 + $0xb0] sm:$0xff]
  %v37 = vld [vmem:[%s0 + $0xb8] sm:$0xff]
  %v38 = vld [vmem:[%s0 + $0xc0] sm:$0xff]
  %v39 = vld [vmem:[%s0 + $0xc8] sm:$0xff]
  %v40 = vld [vmem:[%s0 + $0xd0] sm:$0xff]
  %v41 = vld [vmem:[%s0 + $0xd8] sm:$0xff]
  %v42 = vld [vmem:[%s0 + $0xe0] sm:$0xff]
  %v43 = vld [vmem:[%s0 + $0xe8] sm:$0xff]
  %v44 = vld [vmem:[%s0 + $0xf0] sm:$0xff]
  %v45 = vld [vmem:[%s0 + $0xf8] sm:$0xff]
  %v46 = vld [vmem:[%s0 + $0x100] sm:$0xff]
  %v47 = vld [vmem:[%s0 + $0x108] sm:$0xff]
  %v48 = vld [vmem:[%s0 + $0x110] sm:$0xff]
  %v49 = vld [vmem:[%s0 + $0x118] sm:$0xff]
  %v50 = vld [vmem:[%s0 + $0x120] sm:$0xff]
  %v51 = vld [vmem:[%s0 + $0x128] sm:$0xff]
  %v52 = vld [vmem:[%s0 + $0x130] sm:$0xff]
  %v53 = vld [vmem:[%s0 + $0x138] sm:$0xff]
  %v54 = vld [vmem:[%s0 + $0x140] sm:$0xff]
  %v55 = vld [vmem:[%s0 + $0x148] sm:$0xff]
  %v56 = vld [vmem:[%s0 + $0x150] sm:$0xff]
  %v57 = vld [vmem:[%s0 + $0x158] sm:$0xff]
  %v58 = vld [vmem:[%s0 + $0x160] sm:$0xff]
  %v59 = vld [vmem:[%s0 + $0x168] sm:$0xff]
  %v60 = vld [vmem:[%s0 + $0x170] sm:$0xff]
  %v61 = vld [vmem:[%s0 + $0x178] sm:$0xff]
  %v62 = vld [vmem:[%s0 + $0x180] sm:$0xff]
  %v63 = vld [vmem:[%s0 + $0x188] sm:$0xff]
  %v64 = vld [vmem:[%s0 + $0x190] sm:$0xff]
  %v65 = vld [vmem:[%s0 + $0x198] sm:$0xff]
  %v66 = vld [vmem:[%s0 + $0x1a0] sm:$0xff]
  %v67 = vld [vmem:[%s0 + $0x1a8] sm:$0xff]
  %v68 = vld [vmem:[%s0 + $0x1b0] sm:$0xff]
  %v69 = vld [vmem:[%s0 + $0x1b8] sm:$0xff]
  %v70 = vld [vmem:[%s0 + $0x1c0] sm:$0xff]
  %v71 = vld [vmem:[%s0 + $0x1c8] sm:$0xff]
  %v72 = vld [vmem:[%s0 + $0x1d0] sm:$0xff]
  %v73 = vld [vmem:[%s0 + $0x1d8] sm:$0xff]
  %v74 = vld [vmem:[%s0 + $0x1e0] sm:$0xff]
  %v75 = vld [vmem:[%s0 + $0x1e8] sm:$0xff]
  %v76 = vld [vmem:[%s0 + $0x1f0] sm:$0xff]
  %v77 = vld [vmem:[%s0 + $0x1f8] sm:$0xff]
  %v78 = vld [vmem:[%s1] sm:$0x1]
  %v80 = vlaneseq
  %v81 = vshrl.u32 %v80, 7
  %v82 = vsub.s32 0, %v81
  %v83 = vrot.slane %v78, %v82
  %v85 = vmul.f32 %v14, %v83
  %v86 = vmul.f32 %v15, %v83
  %v87 = vmul.f32 %v16, %v83
  %v88 = vmul.f32 %v17, %v83
  %v89 = vmul.f32 %v18, %v83
  %v90 = vmul.f32 %v19, %v83
  %v91 = vmul.f32 %v20, %v83
  %v92 = vmul.f32 %v21, %v83
  %v93 = vmul.f32 %v22, %v83
  %v94 = vmul.f32 %v23, %v83
  %v95 = vmul.f32 %v24, %v83
  %v96 = vmul.f32 %v25, %v83
  %v97 = vmul.f32 %v26, %v83
  %v98 = vmul.f32 %v27, %v83
  %v99 = vmul.f32 %v28, %v83
  %v100 = vmul.f32 %v29, %v83
  %v101 = vmul.f32 %v30, %v83
  %v102 = vmul.f32 %v31, %v83
  %v103 = vmul.f32 %v32, %v83
  %v104 = vmul.f32 %v33, %v83
  %v105 = vmul.f32 %v34, %v83
  %v106 = vmul.f32 %v35, %v83
  %v107 = vmul.f32 %v36, %v83
  %v108 = vmul.f32 %v37, %v83
  %v109 = vmul.f32 %v38, %v83
  %v110 = vmul.f32 %v39, %v83
  %v111 = vmul.f32 %v40, %v83
  %v112 = vmul.f32 %v41, %v83
  %v113 = vmul.f32 %v42, %v83
  %v114 = vmul.f32 %v43, %v83
  %v115 = vmul.f32 %v44, %v83
  %v116 = vmul.f32 %v45, %v83
  %v117 = vmul.f32 %v46, %v83
  %v118 = vmul.f32 %v47, %v83
  %v119 = vmul.f32 %v48, %v83
  %v120 = vmul.f32 %v49, %v83
  %v121 = vmul.f32 %v50, %v83
  %v122 = vmul.f32 %v51, %v83
  %v123 = vmul.f32 %v52, %v83
  %v124 = vmul.f32 %v53, %v83
  %v125 = vmul.f32 %v54, %v83
  %v126 = vmul.f32 %v55, %v83
  %v127 = vmul.f32 %v56, %v83
  %v128 = vmul.f32 %v57, %v83
  %v129 = vmul.f32 %v58, %v83
  %v130 = vmul.f32 %v59, %v83
  %v131 = vmul.f32 %v60, %v83
  %v132 = vmul.f32 %v61, %v83
  %v133 = vmul.f32 %v62, %v83
  %v134 = vmul.f32 %v63, %v83
  %v135 = vmul.f32 %v64, %v83
  %v136 = vmul.f32 %v65, %v83
  %v137 = vmul.f32 %v66, %v83
  %v138 = vmul.f32 %v67, %v83
  %v139 = vmul.f32 %v68, %v83
  %v140 = vmul.f32 %v69, %v83
  %v141 = vmul.f32 %v70, %v83
  %v142 = vmul.f32 %v71, %v83
  %v143 = vmul.f32 %v72, %v83
  %v144 = vmul.f32 %v73, %v83
  %v145 = vmul.f32 %v74, %v83
  %v146 = vmul.f32 %v75, %v83
  %v147 = vmul.f32 %v76, %v83
  %v148 = vmul.f32 %v77, %v83
  %v149 = vld [vmem:[%s2] sm:$0x1]
  %v151 = vlaneseq
  %v152 = vshrl.u32 %v151, 7
  %v153 = vsub.s32 0, %v152
  %v154 = vrot.slane %v149, %v153
  %v156 = vadd.f32 %v85, %v154
  %v157 = vadd.f32 %v86, %v154
  %v158 = vadd.f32 %v87, %v154
  %v159 = vadd.f32 %v88, %v154
  %v160 = vadd.f32 %v89, %v154
  %v161 = vadd.f32 %v90, %v154
  %v162 = vadd.f32 %v91, %v154
  %v163 = vadd.f32 %v92, %v154
  %v164 = vadd.f32 %v93, %v154
  %v165 = vadd.f32 %v94, %v154
  %v166 = vadd.f32 %v95, %v154
  %v167 = vadd.f32 %v96, %v154
  %v168 = vadd.f32 %v97, %v154
  %v169 = vadd.f32 %v98, %v154
  %v170 = vadd.f32 %v99, %v154
  %v171 = vadd.f32 %v100, %v154
  %v172 = vadd.f32 %v101, %v154
  %v173 = vadd.f32 %v102, %v154
  %v174 = vadd.f32 %v103, %v154
  %v175 = vadd.f32 %v104, %v154
  %v176 = vadd.f32 %v105, %v154
  %v177 = vadd.f32 %v106, %v154
  %v178 = vadd.f32 %v107, %v154
  %v179 = vadd.f32 %v108, %v154
  %v180 = vadd.f32 %v109, %v154
  %v181 = vadd.f32 %v110, %v154
  %v182 = vadd.f32 %v111, %v154
  %v183 = vadd.f32 %v112, %v154
  %v184 = vadd.f32 %v113, %v154
  %v185 = vadd.f32 %v114, %v154
  %v186 = vadd.f32 %v115, %v154
  %v187 = vadd.f32 %v116, %v154
  %v188 = vadd.f32 %v117, %v154
  %v189 = vadd.f32 %v118, %v154
  %v190 = vadd.f32 %v119, %v154
  %v191 = vadd.f32 %v120, %v154
  %v192 = vadd.f32 %v121, %v154
  %v193 = vadd.f32 %v122, %v154
  %v194 = vadd.f32 %v123, %v154
  %v195 = vadd.f32 %v124, %v154
  %v196 = vadd.f32 %v125, %v154
  %v197 = vadd.f32 %v126, %v154
  %v198 = vadd.f32 %v127, %v154
  %v199 = vadd.f32 %v128, %v154
  %v200 = vadd.f32 %v129, %v154
  %v201 = vadd.f32 %v130, %v154
  %v202 = vadd.f32 %v131, %v154
  %v203 = vadd.f32 %v132, %v154
  %v204 = vadd.f32 %v133, %v154
  %v205 = vadd.f32 %v134, %v154
  %v206 = vadd.f32 %v135, %v154
  %v207 = vadd.f32 %v136, %v154
  %v208 = vadd.f32 %v137, %v154
  %v209 = vadd.f32 %v138, %v154
  %v210 = vadd.f32 %v139, %v154
  %v211 = vadd.f32 %v140, %v154
  %v212 = vadd.f32 %v141, %v154
  %v213 = vadd.f32 %v142, %v154
  %v214 = vadd.f32 %v143, %v154
  %v215 = vadd.f32 %v144, %v154
  %v216 = vadd.f32 %v145, %v154
  %v217 = vadd.f32 %v146, %v154
  %v218 = vadd.f32 %v147, %v154
  %v219 = vadd.f32 %v148, %v154
  %v220 = vmax.f32 %v156, 0.0
  %v221 = vmax.f32 %v157, 0.0
  %v222 = vmax.f32 %v158, 0.0
  %v223 = vmax.f32 %v159, 0.0
  %v224 = vmax.f32 %v160, 0.0
  %v225 = vmax.f32 %v161, 0.0
  %v226 = vmax.f32 %v162, 0.0
  %v227 = vmax.f32 %v163, 0.0
  %v228 = vmax.f32 %v164, 0.0
  %v229 = vmax.f32 %v165, 0.0
  %v230 = vmax.f32 %v166, 0.0
  %v231 = vmax.f32 %v167, 0.0
  %v232 = vmax.f32 %v168, 0.0
  %v233 = vmax.f32 %v169, 0.0
  %v234 = vmax.f32 %v170, 0.0
  %v235 = vmax.f32 %v171, 0.0
  %v236 = vmax.f32 %v172, 0.0
  %v237 = vmax.f32 %v173, 0.0
  %v238 = vmax.f32 %v174, 0.0
  %v239 = vmax.f32 %v175, 0.0
  %v240 = vmax.f32 %v176, 0.0
  %v241 = vmax.f32 %v177, 0.0
  %v242 = vmax.f32 %v178, 0.0
  %v243 = vmax.f32 %v179, 0.0
  %v244 = vmax.f32 %v180, 0.0
  %v245 = vmax.f32 %v181, 0.0
  %v246 = vmax.f32 %v182, 0.0
  %v247 = vmax.f32 %v183, 0.0
  %v248 = vmax.f32 %v184, 0.0
  %v249 = vmax.f32 %v185, 0.0
  %v250 = vmax.f32 %v186, 0.0
  %v251 = vmax.f32 %v187, 0.0
  %v252 = vmax.f32 %v188, 0.0
  %v253 = vmax.f32 %v189, 0.0
  %v254 = vmax.f32 %v190, 0.0
  %v255 = vmax.f32 %v191, 0.0
  %v256 = vmax.f32 %v192, 0.0
  %v257 = vmax.f32 %v193, 0.0
  %v258 = vmax.f32 %v194, 0.0
  %v259 = vmax.f32 %v195, 0.0
  %v260 = vmax.f32 %v196, 0.0
  %v261 = vmax.f32 %v197, 0.0
  %v262 = vmax.f32 %v198, 0.0
  %v263 = vmax.f32 %v199, 0.0
  %v264 = vmax.f32 %v200, 0.0
  %v265 = vmax.f32 %v201, 0.0
  %v266 = vmax.f32 %v202, 0.0
  %v267 = vmax.f32 %v203, 0.0
  %v268 = vmax.f32 %v204, 0.0
  %v269 = vmax.f32 %v205, 0.0
  %v270 = vmax.f32 %v206, 0.0
  %v271 = vmax.f32 %v207, 0.0
  %v272 = vmax.f32 %v208, 0.0
  %v273 = vmax.f32 %v209, 0.0
  %v274 = vmax.f32 %v210, 0.0
  %v275 = vmax.f32 %v211, 0.0
  %v276 = vmax.f32 %v212, 0.0
  %v277 = vmax.f32 %v213, 0.0
  %v278 = vmax.f32 %v214, 0.0
  %v279 = vmax.f32 %v215, 0.0
  %v280 = vmax.f32 %v216, 0.0
  %v281 = vmax.f32 %v217, 0.0
  %v282 = vmax.f32 %v218, 0.0
  %v283 = vmax.f32 %v219, 0.0
  %284 = vst [vmem:[%s3] sm:$0xff] %v220
  %285 = vst [vmem:[%s3 + $0x8] sm:$0xff] %v221
  %286 = vst [vmem:[%s3 + $0x10] sm:$0xff] %v222
  %287 = vst [vmem:[%s3 + $0x18] sm:$0xff] %v223
  %288 = vst [vmem:[%s3 + $0x20] sm:$0xff] %v224
  %289 = vst [vmem:[%s3 + $0x28] sm:$0xff] %v225
  %290 = vst [vmem:[%s3 + $0x30] sm:$0xff] %v226
  %291 = vst [vmem:[%s3 + $0x38] sm:$0xff] %v227
  %292 = vst [vmem:[%s3 + $0x40] sm:$0xff] %v228
  %293 = vst [vmem:[%s3 + $0x48] sm:$0xff] %v229
  %294 = vst [vmem:[%s3 + $0x50] sm:$0xff] %v230
  %295 = vst [vmem:[%s3 + $0x58] sm:$0xff] %v231
  %296 = vst [vmem:[%s3 + $0x60] sm:$0xff] %v232
  %297 = vst [vmem:[%s3 + $0x68] sm:$0xff] %v233
  %298 = vst [vmem:[%s3 + $0x70] sm:$0xff] %v234
  %299 = vst [vmem:[%s3 + $0x78] sm:$0xff] %v235
  %300 = vst [vmem:[%s3 + $0x80] sm:$0xff] %v236
  %301 = vst [vmem:[%s3 + $0x88] sm:$0xff] %v237
  %302 = vst [vmem:[%s3 + $0x90] sm:$0xff] %v238
  %303 = vst [vmem:[%s3 + $0x98] sm:$0xff] %v239
  %304 = vst [vmem:[%s3 + $0xa0] sm:$0xff] %v240
  %305 = vst [vmem:[%s3 + $0xa8] sm:$0xff] %v241
  %306 = vst [vmem:[%s3 + $0xb0] sm:$0xff] %v242
  %307 = vst [vmem:[%s3 + $0xb8] sm:$0xff] %v243
  %308 = vst [vmem:[%s3 + $0xc0] sm:$0xff] %v244
  %309 = vst [vmem:[%s3 + $0xc8] sm:$0xff] %v245
  %310 = vst [vmem:[%s3 + $0xd0] sm:$0xff] %v246
  %311 = vst [vmem:[%s3 + $0xd8] sm:$0xff] %v247
  %312 = vst [vmem:[%s3 + $0xe0] sm:$0xff] %v248
  %313 = vst [vmem:[%s3 + $0xe8] sm:$0xff] %v249
  %314 = vst [vmem:[%s3 + $0xf0] sm:$0xff] %v250
  %315 = vst [vmem:[%s3 + $0xf8] sm:$0xff] %v251
  %316 = vst [vmem:[%s3 + $0x100] sm:$0xff] %v252
  %317 = vst [vmem:[%s3 + $0x108] sm:$0xff] %v253
  %318 = vst [vmem:[%s3 + $0x110] sm:$0xff] %v254
  %319 = vst [vmem:[%s3 + $0x118] sm:$0xff] %v255
  %320 = vst [vmem:[%s3 + $0x120] sm:$0xff] %v256
  %321 = vst [vmem:[%s3 + $0x128] sm:$0xff] %v257
  %322 = vst [vmem:[%s3 + $0x130] sm:$0xff] %v258
  %323 = vst [vmem:[%s3 + $0x138] sm:$0xff] %v259
  %324 = vst [vmem:[%s3 + $0x140] sm:$0xff] %v260
  %325 = vst [vmem:[%s3 + $0x148] sm:$0xff] %v261
  %326 = vst [vmem:[%s3 + $0x150] sm:$0xff] %v262
  %327 = vst [vmem:[%s3 + $0x158] sm:$0xff] %v263
  %328 = vst [vmem:[%s3 + $0x160] sm:$0xff] %v264
  %329 = vst [vmem:[%s3 + $0x168] sm:$0xff] %v265
  %330 = vst [vmem:[%s3 + $0x170] sm:$0xff] %v266
  %331 = vst [vmem:[%s3 + $0x178] sm:$0xff] %v267
  %332 = vst [vmem:[%s3 + $0x180] sm:$0xff] %v268
  %333 = vst [vmem:[%s3 + $0x188] sm:$0xff] %v269
  %334 = vst [vmem:[%s3 + $0x190] sm:$0xff] %v270
  %335 = vst [vmem:[%s3 + $0x198] sm:$0xff] %v271
  %336 = vst [vmem:[%s3 + $0x1a0] sm:$0xff] %v272
  %337 = vst [vmem:[%s3 + $0x1a8] sm:$0xff] %v273
  %338 = vst [vmem:[%s3 + $0x1b0] sm:$0xff] %v274
  %339 = vst [vmem:[%s3 + $0x1b8] sm:$0xff] %v275
  %340 = vst [vmem:[%s3 + $0x1c0] sm:$0xff] %v276
  %341 = vst [vmem:[%s3 + $0x1c8] sm:$0xff] %v277
  %342 = vst [vmem:[%s3 + $0x1d0] sm:$0xff] %v278
  %343 = vst [vmem:[%s3 + $0x1d8] sm:$0xff] %v279
  %344 = vst [vmem:[%s3 + $0x1e0] sm:$0xff] %v280
  %345 = vst [vmem:[%s3 + $0x1e8] sm:$0xff] %v281
  %346 = vst [vmem:[%s3 + $0x1f0] sm:$0xff] %v282
  %347 = vst [vmem:[%s3 + $0x1f8] sm:$0xff] %v283
  // Predicated region
  $region14: #{residual_block.5} parent=0 // pred_check
    _
  $region15: #{residual_block.5} parent=0 // pred_check_branch
    %349 = sbr.rel (0) target = $region17
  $region16: #{residual_block.5} parent=0 // pred_region
    _
  $region17: #{residual_block.5} parent=0 // pred_fallthru
    _
  // Predicated region
  $region18: #{residual_block.5} parent=0 // pred_check
    _
  $region19: #{residual_block.5} parent=0 // pred_check_branch
    %351 = sbr.rel (0) target = $region21
  $region20: #{residual_block.5} parent=0 // pred_region
    _
  $region21: #{residual_block.5} parent=0 // pred_fallthru
    _

// kernel: residual_block.7
$region0: #{residual_block.7}
  #allocation0 [shape = 'u32[]', space=smem, size = 0x4, offset = 0x4, fixed_abs, tag = 'smem constant byte address 0x4 - core index']
  #allocation1 [shape = 'u32[144,128]{1,0:T(1,128)}', space=vmem, size = 0x12000, scoped, tag = 'internal scratch']
  %s0 = inlined_call_operand.vmem [shape: f32[512,128], index: 0, kind: input, shape index: {}]
  %s1 = inlined_call_operand.vmem [shape: f32[1,128], index: 1, kind: input, shape index: {}]
  %s2 = inlined_call_operand.vmem [shape: f32[1,128], index: 2, kind: input, shape index: {}]
  %s3 = inlined_call_operand.vmem [shape: f32[512,128], index: 3, kind: input, shape index: {}]
  %s4 = inlined_call_operand.vmem [shape: f32[512,128], index: 4, kind: output, shape index: {}]
  %s5 = sld [smem:[#allocation0]]
  $region26: #{residual_block.7} parent=0
    _
  %s7 = ssub.s32 1, %s5
  %s8 = scalar_select 0, %s7, %s5
  // Predicated region
  $region2: #{residual_block.7} parent=0 // pred_check
    _
  $region3: #{residual_block.7} parent=0 // pred_check_branch
    %10 = sbr.rel (0) target = $region5
  $region4: #{residual_block.7} parent=0 // pred_region
    _
  $region5: #{residual_block.7} parent=0 // pred_fallthru
    _
  // Predicated region
  $region6: #{residual_block.7} parent=0 // pred_check
    _
  $region7: #{residual_block.7} parent=0 // pred_check_branch
    %12 = sbr.rel (0) target = $region9
  $region8: #{residual_block.7} parent=0 // pred_region
    _
  $region9: #{residual_block.7} parent=0 // pred_fallthru
    _
  // Predicated region
  $region10: #{residual_block.7} parent=0 // pred_check
    _
  $region11: #{residual_block.7} parent=0 // pred_check_branch
    %14 = sbr.rel (0) target = $region13
  $region12: #{residual_block.7} parent=0 // pred_region
    _
  $region13: #{residual_block.7} parent=0 // pred_fallthru
    _
  // Predicated region
  $region14: #{residual_block.7} parent=0 // pred_check
    _
  $region15: #{residual_block.7} parent=0 // pred_check_branch
    %16 = sbr.rel (0) target = $region17
  $region16: #{residual_block.7} parent=0 // pred_region
    _
  $region17: #{residual_block.7} parent=0 // pred_fallthru
    _
  %v17 = vld [vmem:[%s3] sm:$0xff]
  %v18 = vld [vmem:[%s3 + $0x8] sm:$0xff]
  %v19 = vld [vmem:[%s3 + $0x10] sm:$0xff]
  %v20 = vld [vmem:[%s3 + $0x18] sm:$0xff]
  %v21 = vld [vmem:[%s3 + $0x20] sm:$0xff]
  %v22 = vld [vmem:[%s3 + $0x28] sm:$0xff]
  %v23 = vld [vmem:[%s3 + $0x30] sm:$0xff]
  %v24 = vld [vmem:[%s3 + $0x38] sm:$0xff]
  %v25 = vld [vmem:[%s3 + $0x40] sm:$0xff]
  %v26 = vld [vmem:[%s3 + $0x48] sm:$0xff]
  %v27 = vld [vmem:[%s3 + $0x50] sm:$0xff]
  %v28 = vld [vmem:[%s3 + $0x58] sm:$0xff]
  %v29 = vld [vmem:[%s3 + $0x60] sm:$0xff]
  %v30 = vld [vmem:[%s3 + $0x68] sm:$0xff]
  %v31 = vld [vmem:[%s3 + $0x70] sm:$0xff]
  %v32 = vld [vmem:[%s3 + $0x78] sm:$0xff]
  %v33 = vld [vmem:[%s3 + $0x80] sm:$0xff]
  %v34 = vld [vmem:[%s3 + $0x88] sm:$0xff]
  %v35 = vld [vmem:[%s3 + $0x90] sm:$0xff]
  %v36 = vld [vmem:[%s3 + $0x98] sm:$0xff]
  %v37 = vld [vmem:[%s3 + $0xa0] sm:$0xff]
  %v38 = vld [vmem:[%s3 + $0xa8] sm:$0xff]
  %v39 = vld [vmem:[%s3 + $0xb0] sm:$0xff]
  %v40 = vld [vmem:[%s3 + $0xb8] sm:$0xff]
  %v41 = vld [vmem:[%s3 + $0xc0] sm:$0xff]
  %v42 = vld [vmem:[%s3 + $0xc8] sm:$0xff]
  %v43 = vld [vmem:[%s3 + $0xd0] sm:$0xff]
  %v44 = vld [vmem:[%s3 + $0xd8] sm:$0xff]
  %v45 = vld [vmem:[%s3 + $0xe0] sm:$0xff]
  %v46 = vld [vmem:[%s3 + $0xe8] sm:$0xff]
  %v47 = vld [vmem:[%s3 + $0xf0] sm:$0xff]
  %v48 = vld [vmem:[%s3 + $0xf8] sm:$0xff]
  %v49 = vld [vmem:[%s3 + $0x100] sm:$0xff]
  %v50 = vld [vmem:[%s3 + $0x108] sm:$0xff]
  %v51 = vld [vmem:[%s3 + $0x110] sm:$0xff]
  %v52 = vld [vmem:[%s3 + $0x118] sm:$0xff]
  %v53 = vld [vmem:[%s3 + $0x120] sm:$0xff]
  %v54 = vld [vmem:[%s3 + $0x128] sm:$0xff]
  %v55 = vld [vmem:[%s3 + $0x130] sm:$0xff]
  %v56 = vld [vmem:[%s3 + $0x138] sm:$0xff]
  %v57 = vld [vmem:[%s3 + $0x140] sm:$0xff]
  %v58 = vld [vmem:[%s3 + $0x148] sm:$0xff]
  %v59 = vld [vmem:[%s3 + $0x150] sm:$0xff]
  %v60 = vld [vmem:[%s3 + $0x158] sm:$0xff]
  %v61 = vld [vmem:[%s3 + $0x160] sm:$0xff]
  %v62 = vld [vmem:[%s3 + $0x168] sm:$0xff]
  %v63 = vld [vmem:[%s3 + $0x170] sm:$0xff]
  %v64 = vld [vmem:[%s3 + $0x178] sm:$0xff]
  %v65 = vld [vmem:[%s3 + $0x180] sm:$0xff]
  %v66 = vld [vmem:[%s3 + $0x188] sm:$0xff]
  %v67 = vld [vmem:[%s3 + $0x190] sm:$0xff]
  %v68 = vld [vmem:[%s3 + $0x198] sm:$0xff]
  %v69 = vld [vmem:[%s3 + $0x1a0] sm:$0xff]
  %v70 = vld [vmem:[%s3 + $0x1a8] sm:$0xff]
  %v71 = vld [vmem:[%s3 + $0x1b0] sm:$0xff]
  %v72 = vld [vmem:[%s3 + $0x1b8] sm:$0xff]
  %v73 = vld [vmem:[%s3 + $0x1c0] sm:$0xff]
  %v74 = vld [vmem:[%s3 + $0x1c8] sm:$0xff]
  %v75 = vld [vmem:[%s3 + $0x1d0] sm:$0xff]
  %v76 = vld [vmem:[%s3 + $0x1d8] sm:$0xff]
  %v77 = vld [vmem:[%s3 + $0x1e0] sm:$0xff]
  %v78 = vld [vmem:[%s3 + $0x1e8] sm:$0xff]
  %v79 = vld [vmem:[%s3 + $0x1f0] sm:$0xff]
  %v80 = vld [vmem:[%s3 + $0x1f8] sm:$0xff]
  %v81 = vld [vmem:[%s0] sm:$0xff]
  %v82 = vld [vmem:[%s0 + $0x8] sm:$0xff]
  %v83 = vld [vmem:[%s0 + $0x10] sm:$0xff]
  %v84 = vld [vmem:[%s0 + $0x18] sm:$0xff]
  %v85 = vld [vmem:[%s0 + $0x20] sm:$0xff]
  %v86 = vld [vmem:[%s0 + $0x28] sm:$0xff]
  %v87 = vld [vmem:[%s0 + $0x30] sm:$0xff]
  %v88 = vld [vmem:[%s0 + $0x38] sm:$0xff]
  %v89 = vld [vmem:[%s0 + $0x40] sm:$0xff]
  %v90 = vld [vmem:[%s0 + $0x48] sm:$0xff]
  %v91 = vld [vmem:[%s0 + $0x50] sm:$0xff]
  %v92 = vld [vmem:[%s0 + $0x58] sm:$0xff]
  %v93 = vld [vmem:[%s0 + $0x60] sm:$0xff]
  %v94 = vld [vmem:[%s0 + $0x68] sm:$0xff]
  %v95 = vld [vmem:[%s0 + $0x70] sm:$0xff]
  %v96 = vld [vmem:[%s0 + $0x78] sm:$0xff]
  %v97 = vld [vmem:[%s0 + $0x80] sm:$0xff]
  %v98 = vld [vmem:[%s0 + $0x88] sm:$0xff]
  %v99 = vld [vmem:[%s0 + $0x90] sm:$0xff]
  %v100 = vld [vmem:[%s0 + $0x98] sm:$0xff]
  %v101 = vld [vmem:[%s0 + $0xa0] sm:$0xff]
  %v102 = vld [vmem:[%s0 + $0xa8] sm:$0xff]
  %v103 = vld [vmem:[%s0 + $0xb0] sm:$0xff]
  %v104 = vld [vmem:[%s0 + $0xb8] sm:$0xff]
  %v105 = vld [vmem:[%s0 + $0xc0] sm:$0xff]
  %v106 = vld [vmem:[%s0 + $0xc8] sm:$0xff]
  %v107 = vld [vmem:[%s0 + $0xd0] sm:$0xff]
  %v108 = vld [vmem:[%s0 + $0xd8] sm:$0xff]
  %v109 = vld [vmem:[%s0 + $0xe0] sm:$0xff]
  %v110 = vld [vmem:[%s0 + $0xe8] sm:$0xff]
  %v111 = vld [vmem:[%s0 + $0xf0] sm:$0xff]
  %v112 = vld [vmem:[%s0 + $0xf8] sm:$0xff]
  %v113 = vld [vmem:[%s0 + $0x100] sm:$0xff]
  %v114 = vld [vmem:[%s0 + $0x108] sm:$0xff]
  %v115 = vld [vmem:[%s0 + $0x110] sm:$0xff]
  %v116 = vld [vmem:[%s0 + $0x118] sm:$0xff]
  %v117 = vld [vmem:[%s0 + $0x120] sm:$0xff]
  %v118 = vld [vmem:[%s0 + $0x128] sm:$0xff]
  %v119 = vld [vmem:[%s0 + $0x130] sm:$0xff]
  %v120 = vld [vmem:[%s0 + $0x138] sm:$0xff]
  %v121 = vld [vmem:[%s0 + $0x140] sm:$0xff]
  %v122 = vld [vmem:[%s0 + $0x148] sm:$0xff]
  %v123 = vld [vmem:[%s0 + $0x150] sm:$0xff]
  %v124 = vld [vmem:[%s0 + $0x158] sm:$0xff]
  %v125 = vld [vmem:[%s0 + $0x160] sm:$0xff]
  %v126 = vld [vmem:[%s0 + $0x168] sm:$0xff]
  %v127 = vld [vmem:[%s0 + $0x170] sm:$0xff]
  %v128 = vld [vmem:[%s0 + $0x178] sm:$0xff]
  %v129 = vld [vmem:[%s0 + $0x180] sm:$0xff]
  %v130 = vld [vmem:[%s0 + $0x188] sm:$0xff]
  %v131 = vld [vmem:[%s0 + $0x190] sm:$0xff]
  %v132 = vld [vmem:[%s0 + $0x198] sm:$0xff]
  %v133 = vld [vmem:[%s0 + $0x1a0] sm:$0xff]
  %v134 = vld [vmem:[%s0 + $0x1a8] sm:$0xff]
  %v135 = vld [vmem:[%s0 + $0x1b0] sm:$0xff]
  %v136 = vld [vmem:[%s0 + $0x1b8] sm:$0xff]
  %v137 = vld [vmem:[%s0 + $0x1c0] sm:$0xff]
  %v138 = vld [vmem:[%s0 + $0x1c8] sm:$0xff]
  %v139 = vld [vmem:[%s0 + $0x1d0] sm:$0xff]
  %v140 = vld [vmem:[%s0 + $0x1d8] sm:$0xff]
  %v141 = vld [vmem:[%s0 + $0x1e0] sm:$0xff]
  %v142 = vld [vmem:[%s0 + $0x1e8] sm:$0xff]
  %v143 = vld [vmem:[%s0 + $0x1f0] sm:$0xff]
  %v144 = vld [vmem:[%s0 + $0x1f8] sm:$0xff]
  %v145 = vld [vmem:[%s1] sm:$0x1]
  %v147 = vlaneseq
  %v148 = vshrl.u32 %v147, 7
  %v149 = vsub.s32 0, %v148
  %v150 = vrot.slane %v145, %v149
  %v152 = vmul.f32 %v81, %v150
  %v153 = vmul.f32 %v82, %v150
  %v154 = vmul.f32 %v83, %v150
  %v155 = vmul.f32 %v84, %v150
  %v156 = vmul.f32 %v85, %v150
  %v157 = vmul.f32 %v86, %v150
  %v158 = vmul.f32 %v87, %v150
  %v159 = vmul.f32 %v88, %v150
  %v160 = vmul.f32 %v89, %v150
  %v161 = vmul.f32 %v90, %v150
  %v162 = vmul.f32 %v91, %v150
  %v163 = vmul.f32 %v92, %v150
  %v164 = vmul.f32 %v93, %v150
  %v165 = vmul.f32 %v94, %v150
  %v166 = vmul.f32 %v95, %v150
  %v167 = vmul.f32 %v96, %v150
  %v168 = vmul.f32 %v97, %v150
  %v169 = vmul.f32 %v98, %v150
  %v170 = vmul.f32 %v99, %v150
  %v171 = vmul.f32 %v100, %v150
  %v172 = vmul.f32 %v101, %v150
  %v173 = vmul.f32 %v102, %v150
  %v174 = vmul.f32 %v103, %v150
  %v175 = vmul.f32 %v104, %v150
  %v176 = vmul.f32 %v105, %v150
  %v177 = vmul.f32 %v106, %v150
  %v178 = vmul.f32 %v107, %v150
  %v179 = vmul.f32 %v108, %v150
  %v180 = vmul.f32 %v109, %v150
  %v181 = vmul.f32 %v110, %v150
  %v182 = vmul.f32 %v111, %v150
  %v183 = vmul.f32 %v112, %v150
  %v184 = vmul.f32 %v113, %v150
  %v185 = vmul.f32 %v114, %v150
  %v186 = vmul.f32 %v115, %v150
  %v187 = vmul.f32 %v116, %v150
  %v188 = vmul.f32 %v117, %v150
  %v189 = vmul.f32 %v118, %v150
  %v190 = vmul.f32 %v119, %v150
  %v191 = vmul.f32 %v120, %v150
  %v192 = vmul.f32 %v121, %v150
  %v193 = vmul.f32 %v122, %v150
  %v194 = vmul.f32 %v123, %v150
  %v195 = vmul.f32 %v124, %v150
  %v196 = vmul.f32 %v125, %v150
  %v197 = vmul.f32 %v126, %v150
  %v198 = vmul.f32 %v127, %v150
  %v199 = vmul.f32 %v128, %v150
  %v200 = vmul.f32 %v129, %v150
  %v201 = vmul.f32 %v130, %v150
  %v202 = vmul.f32 %v131, %v150
  %v203 = vmul.f32 %v132, %v150
  %v204 = vmul.f32 %v133, %v150
  %v205 = vmul.f32 %v134, %v150
  %v206 = vmul.f32 %v135, %v150
  %v207 = vmul.f32 %v136, %v150
  %v208 = vmul.f32 %v137, %v150
  %v209 = vmul.f32 %v138, %v150
  %v210 = vmul.f32 %v139, %v150
  %v211 = vmul.f32 %v140, %v150
  %v212 = vmul.f32 %v141, %v150
  %v213 = vmul.f32 %v142, %v150
  %v214 = vmul.f32 %v143, %v150
  %v215 = vmul.f32 %v144, %v150
  %v216 = vadd.f32 %v17, %v152
  %v217 = vadd.f32 %v18, %v153
  %v218 = vadd.f32 %v19, %v154
  %v219 = vadd.f32 %v20, %v155
  %v220 = vadd.f32 %v21, %v156
  %v221 = vadd.f32 %v22, %v157
  %v222 = vadd.f32 %v23, %v158
  %v223 = vadd.f32 %v24, %v159
  %v224 = vadd.f32 %v25, %v160
  %v225 = vadd.f32 %v26, %v161
  %v226 = vadd.f32 %v27, %v162
  %v227 = vadd.f32 %v28, %v163
  %v228 = vadd.f32 %v29, %v164
  %v229 = vadd.f32 %v30, %v165
  %v230 = vadd.f32 %v31, %v166
  %v231 = vadd.f32 %v32, %v167
  %v232 = vadd.f32 %v33, %v168
  %v233 = vadd.f32 %v34, %v169
  %v234 = vadd.f32 %v35, %v170
  %v235 = vadd.f32 %v36, %v171
  %v236 = vadd.f32 %v37, %v172
  %v237 = vadd.f32 %v38, %v173
  %v238 = vadd.f32 %v39, %v174
  %v239 = vadd.f32 %v40, %v175
  %v240 = vadd.f32 %v41, %v176
  %v241 = vadd.f32 %v42, %v177
  %v242 = vadd.f32 %v43, %v178
  %v243 = vadd.f32 %v44, %v179
  %v244 = vadd.f32 %v45, %v180
  %v245 = vadd.f32 %v46, %v181
  %v246 = vadd.f32 %v47, %v182
  %v247 = vadd.f32 %v48, %v183
  %v248 = vadd.f32 %v49, %v184
  %v249 = vadd.f32 %v50, %v185
  %v250 = vadd.f32 %v51, %v186
  %v251 = vadd.f32 %v52, %v187
  %v252 = vadd.f32 %v53, %v188
  %v253 = vadd.f32 %v54, %v189
  %v254 = vadd.f32 %v55, %v190
  %v255 = vadd.f32 %v56, %v191
  %v256 = vadd.f32 %v57, %v192
  %v257 = vadd.f32 %v58, %v193
  %v258 = vadd.f32 %v59, %v194
  %v259 = vadd.f32 %v60, %v195
  %v260 = vadd.f32 %v61, %v196
  %v261 = vadd.f32 %v62, %v197
  %v262 = vadd.f32 %v63, %v198
  %v263 = vadd.f32 %v64, %v199
  %v264 = vadd.f32 %v65, %v200
  %v265 = vadd.f32 %v66, %v201
  %v266 = vadd.f32 %v67, %v202
  %v267 = vadd.f32 %v68, %v203
  %v268 = vadd.f32 %v69, %v204
  %v269 = vadd.f32 %v70, %v205
  %v270 = vadd.f32 %v71, %v206
  %v271 = vadd.f32 %v72, %v207
  %v272 = vadd.f32 %v73, %v208
  %v273 = vadd.f32 %v74, %v209
  %v274 = vadd.f32 %v75, %v210
  %v275 = vadd.f32 %v76, %v211
  %v276 = vadd.f32 %v77, %v212
  %v277 = vadd.f32 %v78, %v213
  %v278 = vadd.f32 %v79, %v214
  %v279 = vadd.f32 %v80, %v215
  %v280 = vld [vmem:[%s2] sm:$0x1]
  %v282 = vlaneseq
  %v283 = vshrl.u32 %v282, 7
  %v284 = vsub.s32 0, %v283
  %v285 = vrot.slane %v280, %v284
  %v287 = vadd.f32 %v216, %v285
  %v288 = vadd.f32 %v217, %v285
  %v289 = vadd.f32 %v218, %v285
  %v290 = vadd.f32 %v219, %v285
  %v291 = vadd.f32 %v220, %v285
  %v292 = vadd.f32 %v221, %v285
  %v293 = vadd.f32 %v222, %v285
  %v294 = vadd.f32 %v223, %v285
  %v295 = vadd.f32 %v224, %v285
  %v296 = vadd.f32 %v225, %v285
  %v297 = vadd.f32 %v226, %v285
  %v298 = vadd.f32 %v227, %v285
  %v299 = vadd.f32 %v228, %v285
  %v300 = vadd.f32 %v229, %v285
  %v301 = vadd.f32 %v230, %v285
  %v302 = vadd.f32 %v231, %v285
  %v303 = vadd.f32 %v232, %v285
  %v304 = vadd.f32 %v233, %v285
  %v305 = vadd.f32 %v234, %v285
  %v306 = vadd.f32 %v235, %v285
  %v307 = vadd.f32 %v236, %v285
  %v308 = vadd.f32 %v237, %v285
  %v309 = vadd.f32 %v238, %v285
  %v310 = vadd.f32 %v239, %v285
  %v311 = vadd.f32 %v240, %v285
  %v312 = vadd.f32 %v241, %v285
  %v313 = vadd.f32 %v242, %v285
  %v314 = vadd.f32 %v243, %v285
  %v315 = vadd.f32 %v244, %v285
  %v316 = vadd.f32 %v245, %v285
  %v317 = vadd.f32 %v246, %v285
  %v318 = vadd.f32 %v247, %v285
  %v319 = vadd.f32 %v248, %v285
  %v320 = vadd.f32 %v249, %v285
  %v321 = vadd.f32 %v250, %v285
  %v322 = vadd.f32 %v251, %v285
  %v323 = vadd.f32 %v252, %v285
  %v324 = vadd.f32 %v253, %v285
  %v325 = vadd.f32 %v254, %v285
  %v326 = vadd.f32 %v255, %v285
  %v327 = vadd.f32 %v256, %v285
  %v328 = vadd.f32 %v257, %v285
  %v329 = vadd.f32 %v258, %v285
  %v330 = vadd.f32 %v259, %v285
  %v331 = vadd.f32 %v260, %v285
  %v332 = vadd.f32 %v261, %v285
  %v333 = vadd.f32 %v262, %v285
  %v334 = vadd.f32 %v263, %v285
  %v335 = vadd.f32 %v264, %v285
  %v336 = vadd.f32 %v265, %v285
  %v337 = vadd.f32 %v266, %v285
  %v338 = vadd.f32 %v267, %v285
  %v339 = vadd.f32 %v268, %v285
  %v340 = vadd.f32 %v269, %v285
  %v341 = vadd.f32 %v270, %v285
  %v342 = vadd.f32 %v271, %v285
  %v343 = vadd.f32 %v272, %v285
  %v344 = vadd.f32 %v273, %v285
  %v345 = vadd.f32 %v274, %v285
  %v346 = vadd.f32 %v275, %v285
  %v347 = vadd.f32 %v276, %v285
  %v348 = vadd.f32 %v277, %v285
  %v349 = vadd.f32 %v278, %v285
  %v350 = vadd.f32 %v279, %v285
  %351 = vst [vmem:[%s4] sm:$0xff] %v287
  %352 = vst [vmem:[%s4 + $0x8] sm:$0xff] %v288
  %353 = vst [vmem:[%s4 + $0x10] sm:$0xff] %v289
  %354 = vst [vmem:[%s4 + $0x18] sm:$0xff] %v290
  %355 = vst [vmem:[%s4 + $0x20] sm:$0xff] %v291
  %356 = vst [vmem:[%s4 + $0x28] sm:$0xff] %v292
  %357 = vst [vmem:[%s4 + $0x30] sm:$0xff] %v293
  %358 = vst [vmem:[%s4 + $0x38] sm:$0xff] %v294
  %359 = vst [vmem:[%s4 + $0x40] sm:$0xff] %v295
  %360 = vst [vmem:[%s4 + $0x48] sm:$0xff] %v296
  %361 = vst [vmem:[%s4 + $0x50] sm:$0xff] %v297
  %362 = vst [vmem:[%s4 + $0x58] sm:$0xff] %v298
  %363 = vst [vmem:[%s4 + $0x60] sm:$0xff] %v299
  %364 = vst [vmem:[%s4 + $0x68] sm:$0xff] %v300
  %365 = vst [vmem:[%s4 + $0x70] sm:$0xff] %v301
  %366 = vst [vmem:[%s4 + $0x78] sm:$0xff] %v302
  %367 = vst [vmem:[%s4 + $0x80] sm:$0xff] %v303
  %368 = vst [vmem:[%s4 + $0x88] sm:$0xff] %v304
  %369 = vst [vmem:[%s4 + $0x90] sm:$0xff] %v305
  %370 = vst [vmem:[%s4 + $0x98] sm:$0xff] %v306
  %371 = vst [vmem:[%s4 + $0xa0] sm:$0xff] %v307
  %372 = vst [vmem:[%s4 + $0xa8] sm:$0xff] %v308
  %373 = vst [vmem:[%s4 + $0xb0] sm:$0xff] %v309
  %374 = vst [vmem:[%s4 + $0xb8] sm:$0xff] %v310
  %375 = vst [vmem:[%s4 + $0xc0] sm:$0xff] %v311
  %376 = vst [vmem:[%s4 + $0xc8] sm:$0xff] %v312
  %377 = vst [vmem:[%s4 + $0xd0] sm:$0xff] %v313
  %378 = vst [vmem:[%s4 + $0xd8] sm:$0xff] %v314
  %379 = vst [vmem:[%s4 + $0xe0] sm:$0xff] %v315
  %380 = vst [vmem:[%s4 + $0xe8] sm:$0xff] %v316
  %381 = vst [vmem:[%s4 + $0xf0] sm:$0xff] %v317
  %382 = vst [vmem:[%s4 + $0xf8] sm:$0xff] %v318
  %383 = vst [vmem:[%s4 + $0x100] sm:$0xff] %v319
  %384 = vst [vmem:[%s4 + $0x108] sm:$0xff] %v320
  %385 = vst [vmem:[%s4 + $0x110] sm:$0xff] %v321
  %386 = vst [vmem:[%s4 + $0x118] sm:$0xff] %v322
  %387 = vst [vmem:[%s4 + $0x120] sm:$0xff] %v323
  %388 = vst [vmem:[%s4 + $0x128] sm:$0xff] %v324
  %389 = vst [vmem:[%s4 + $0x130] sm:$0xff] %v325
  %390 = vst [vmem:[%s4 + $0x138] sm:$0xff] %v326
  %391 = vst [vmem:[%s4 + $0x140] sm:$0xff] %v327
  %392 = vst [vmem:[%s4 + $0x148] sm:$0xff] %v328
  %393 = vst [vmem:[%s4 + $0x150] sm:$0xff] %v329
  %394 = vst [vmem:[%s4 + $0x158] sm:$0xff] %v330
  %395 = vst [vmem:[%s4 + $0x160] sm:$0xff] %v331
  %396 = vst [vmem:[%s4 + $0x168] sm:$0xff] %v332
  %397 = vst [vmem:[%s4 + $0x170] sm:$0xff] %v333
  %398 = vst [vmem:[%s4 + $0x178] sm:$0xff] %v334
  %399 = vst [vmem:[%s4 + $0x180] sm:$0xff] %v335
  %400 = vst [vmem:[%s4 + $0x188] sm:$0xff] %v336
  %401 = vst [vmem:[%s4 + $0x190] sm:$0xff] %v337
  %402 = vst [vmem:[%s4 + $0x198] sm:$0xff] %v338
  %403 = vst [vmem:[%s4 + $0x1a0] sm:$0xff] %v339
  %404 = vst [vmem:[%s4 + $0x1a8] sm:$0xff] %v340
  %405 = vst [vmem:[%s4 + $0x1b0] sm:$0xff] %v341
  %406 = vst [vmem:[%s4 + $0x1b8] sm:$0xff] %v342
  %407 = vst [vmem:[%s4 + $0x1c0] sm:$0xff] %v343
  %408 = vst [vmem:[%s4 + $0x1c8] sm:$0xff] %v344
  %409 = vst [vmem:[%s4 + $0x1d0] sm:$0xff] %v345
  %410 = vst [vmem:[%s4 + $0x1d8] sm:$0xff] %v346
  %411 = vst [vmem:[%s4 + $0x1e0] sm:$0xff] %v347
  %412 = vst [vmem:[%s4 + $0x1e8] sm:$0xff] %v348
  %413 = vst [vmem:[%s4 + $0x1f0] sm:$0xff] %v349
  %414 = vst [vmem:[%s4 + $0x1f8] sm:$0xff] %v350
  // Predicated region
  $region18: #{residual_block.7} parent=0 // pred_check
    _
  $region19: #{residual_block.7} parent=0 // pred_check_branch
    %416 = sbr.rel (0) target = $region21
  $region20: #{residual_block.7} parent=0 // pred_region
    _
  $region21: #{residual_block.7} parent=0 // pred_fallthru
    _
  // Predicated region
  $region22: #{residual_block.7} parent=0 // pred_check
    _
  $region23: #{residual_block.7} parent=0 // pred_check_branch
    %418 = sbr.rel (0) target = $region25
  $region24: #{residual_block.7} parent=0 // pred_region
    _
  $region25: #{residual_block.7} parent=0 // pred_fallthru
    _

// kernel: residual_block.4
$region0: #{residual_block.4}
  #allocation0 [shape = 'u32[]', space=smem, size = 0x4, offset = 0x4, fixed_abs, tag = 'smem constant byte address 0x4 - core index']
  #allocation1 [shape = 'u32[144,128]{1,0:T(1,128)}', space=vmem, size = 0x12000, scoped, tag = 'internal scratch']
  %s0 = inlined_call_operand.vmem [shape: f32[2,1,6,10,10,128], index: 0, kind: input, shape index: {}]
  %s1 = inlined_call_operand.vmem [shape: bf16[27,128,128], index: 1, kind: input, shape index: {}]
  %s2 = inlined_call_operand.vmem [shape: f32[2,4,8,8,128], index: 2, kind: output, shape index: {0}]
  %s3 = inlined_call_operand.vmem [shape: f32[2,1,2,128], index: 3, kind: output, shape index: {1}]
  %4 = xla_tuple %s2, %s3
  %s5 = sld [smem:[#allocation0]]
  $region49: #{residual_block.4} parent=0
    _
  %s7 = ssub.s32 1, %s5
  %s8 = scalar_select 0, %s7, %s5
  loop: start=0, step=1, limit=4
  $region2: #{residual_block.4} parent=0 // loop_pre_header
    _
  $region3: #{residual_block.4} parent=0 // loop_header
    %s10 = sphi 0, %s14
    %p11 = scmp.ge.s32.totalorder %s10, 4
    %s17 = sphi 0, %s29
    %s18 = sphi 0, %s25
    %s19 = sphi 0, %s17
    %s20 = sphi 0, %s18
    %s21 = sphi 0, %s19
    %s22 = sphi 0, %s20
    %s34 = sphi 0, %s36
    %s37 = sphi 0, %s34
    %s38 = sphi 0, %s37
    %s54 = sphi 0, %s38
    %s58 = sphi 0, %s58
    %s60 = sphi 0, %s58
    %s61 = sphi 0, %s60
    %s75 = sphi 0, %s61
    %s83 = sphi 0, %s85
    %s86 = sphi 0, %s83
    %s87 = sphi 0, %s86
    %s103 = sphi 0, %s87
    %s111 = sphi 0, %s113
    %s114 = sphi 0, %s111
    %s115 = sphi 0, %s114
    %s131 = sphi 0, %s115
  $region4: #{residual_block.4} parent=0 // loop_header_branch
    %13 = sbr.rel (%p11) target = $region8
  $region5: #{residual_block.4} parent=0 // loop_body
    %s15 = ssub.s32 %s10, 1
    %s16 = ssub.s32 %s10, 2
    %s23 = sadd.s32 1, %s18
    %p24 = scmp.ge.s32.totalorder %s23, 1
    %s25 = scalar_select %p24, 0, %s23
    %s26 = sadd.s32 1, %s17
    %s27 = scalar_select %p24, %s26, %s17
    %p28 = scmp.ge.s32.totalorder %s27, 2
    %s29 = scalar_select %p28, 0, %s27
    %s30 = ssub.s32 %s17, %s29
    %s31 = ssub.s32 %s18, %s25
    %s32 = sor.u32 %s30, %s31
    %p33 = scmp.eq.s32.totalorder %s32, 0
    %s35 = sadd.s32 %s34, 1
    %s36 = scalar_select %p33, %s34, %s35
    %p39 = pneg %p33
    %p40 = scmp.eq.s32.totalorder %s10, 1
    %p41 = por %p39, %p40
    %p42 = scmp.ne.s32.totalorder %s34, %s37
    %p43 = scmp.eq.s32.totalorder %s10, 0
    %p44 = por %p42, %p43
    %p45 = scmp.ne.s32.totalorder %s34, %s37
    %p46 = scmp.eq.s32.totalorder %s15, 1
    %p47 = por %p45, %p46
    %p48 = scmp.ne.s32.totalorder %s37, %s38
    %p49 = scmp.eq.s32.totalorder %s15, 0
    %p50 = por %p48, %p49
    %p51 = scmp.ne.s32.totalorder %s37, %s38
    %p52 = scmp.eq.s32.totalorder %s16, 1
    %p53 = por %p51, %p52
    %p55 = scmp.ne.s32.totalorder %s38, %s54
    %p56 = scmp.eq.s32.totalorder %s16, 0
    %p57 = por %p55, %p56
    %s59 = sadd.s32 %s58, 1
    %p62 = scmp.eq.s32.totalorder %s10, 1
    %p63 = scmp.ne.s32.totalorder %s58, %s60
    %p64 = scmp.eq.s32.totalorder %s10, 0
    %p65 = por %p63, %p64
    %p66 = scmp.ne.s32.totalorder %s58, %s60
    %p67 = scmp.eq.s32.totalorder %s15, 1
    %p68 = por %p66, %p67
    %p69 = scmp.ne.s32.totalorder %s60, %s61
    %p70 = scmp.eq.s32.totalorder %s15, 0
    %p71 = por %p69, %p70
    %p72 = scmp.ne.s32.totalorder %s60, %s61
    %p73 = scmp.eq.s32.totalorder %s16, 1
    %p74 = por %p72, %p73
    %p76 = scmp.ne.s32.totalorder %s61, %s75
    %p77 = scmp.eq.s32.totalorder %s16, 0
    %p78 = por %p76, %p77
    %s79 = ssub.s32 %s17, %s29
    %s80 = ssub.s32 %s18, %s25
    %s81 = sor.u32 %s79, %s80
    %p82 = scmp.eq.s32.totalorder %s81, 0
    %s84 = sadd.s32 %s83, 1
    %s85 = scalar_select %p82, %s83, %s84
    %p88 = pneg %p82
    %p89 = scmp.eq.s32.totalorder %s10, 1
    %p90 = por %p88, %p89
    %p91 = scmp.ne.s32.totalorder %s83, %s86
    %p92 = scmp.eq.s32.totalorder %s10, 0
    %p93 = por %p91, %p92
    %p94 = scmp.ne.s32.totalorder %s83, %s86
    %p95 = scmp.eq.s32.totalorder %s15, 1
    %p96 = por %p94, %p95
    %p97 = scmp.ne.s32.totalorder %s86, %s87
    %p98 = scmp.eq.s32.totalorder %s15, 0
    %p99 = por %p97, %p98
    %p100 = scmp.ne.s32.totalorder %s86, %s87
    %p101 = scmp.eq.s32.totalorder %s16, 1
    %p102 = por %p100, %p101
    %p104 = scmp.ne.s32.totalorder %s87, %s103
    %p105 = scmp.eq.s32.totalorder %s16, 0
    %p106 = por %p104, %p105
    %s107 = ssub.s32 %s17, %s29
    %s108 = ssub.s32 %s18, %s25
    %s109 = sor.u32 %s107, %s108
    %p110 = scmp.eq.s32.totalorder %s109, 0
    %s112 = sadd.s32 %s111, 1
    %s113 = scalar_select %p110, %s111, %s112
    %p116 = pneg %p110
    %p117 = scmp.eq.s32.totalorder %s10, 1
    %p118 = por %p116, %p117
    %p119 = scmp.ne.s32.totalorder %s111, %s114
    %p120 = scmp.eq.s32.totalorder %s10, 0
    %p121 = por %p119, %p120
    %p122 = scmp.ne.s32.totalorder %s111, %s114
    %p123 = scmp.eq.s32.totalorder %s15, 1
    %p124 = por %p122, %p123
    %p125 = scmp.ne.s32.totalorder %s114, %s115
    %p126 = scmp.eq.s32.totalorder %s15, 0
    %p127 = por %p125, %p126
    %p128 = scmp.ne.s32.totalorder %s114, %s115
    %p129 = scmp.eq.s32.totalorder %s16, 1
    %p130 = por %p128, %p129
    %p132 = scmp.ne.s32.totalorder %s115, %s131
    %p133 = scmp.eq.s32.totalorder %s16, 0
    %p134 = por %p132, %p133
    %p135 = scmp.le.s32.totalorder 1, %s10
    %p136 = scmp.lt.s32.totalorder %s10, 3
    %p137 = pnand %p135, %p136
    %p138 = pneg %p137
    // Predicated region
    $region9: #{residual_block.4} parent=5 // pred_check
      _
    $region10: #{residual_block.4} parent=5 // pred_check_branch
      %140 = sbr.rel (%p137) target = $region12
    $region11: #{residual_block.4} parent=5 // pred_region
      %s141 = ssub.s32 %s10, 1
      // Predicated region
      $region13: #{residual_block.4} parent=11 // pred_check
        %p142 = pneg %p71
      $region14: #{residual_block.4} parent=11 // pred_check_branch
        %144 = sbr.rel (%p142) target = $region16
      $region15: #{residual_block.4} parent=11 // pred_region
        _
      $region16: #{residual_block.4} parent=11 // pred_fallthru
        _
    $region12: #{residual_block.4} parent=5 // pred_fallthru
      _
    %p145 = scmp.lt.s32.totalorder %s10, 2
    // Predicated region
    $region17: #{residual_block.4} parent=5 // pred_check
      %p146 = pneg %p145
    $region18: #{residual_block.4} parent=5 // pred_check_branch
      %148 = sbr.rel (%p146) target = $region20
    $region19: #{residual_block.4} parent=5 // pred_region
      // Predicated region
      $region21: #{residual_block.4} parent=19 // pred_check
        %p149 = pneg %p44
      $region22: #{residual_block.4} parent=19 // pred_check_branch
        %151 = sbr.rel (%p149) target = $region24
      $region23: #{residual_block.4} parent=19 // pred_region
        %p152 = scmp.lt.s32.totalorder %s17, 1
        %s153 = scalar_select %p152, %s17, 1
        %p154 = scmp.lt.s32.totalorder %s18, 0
        %s155 = scalar_select %p154, %s18, 0
        %s156 = smul.addr %s155, 120
        %s157 = smul.addr %s153, 120
        %s158 = sadd.s32 %s156, %s157
        %s159 = smul.addr %s158, 8
        %s160 = scalar_lea.vmem %s0, %s159
      $region24: #{residual_block.4} parent=19 // pred_fallthru
        _
    $region20: #{residual_block.4} parent=5 // pred_fallthru
      _
    %p161 = scmp.le.s32.totalorder 1, %s10
    %p162 = scmp.lt.s32.totalorder %s10, 3
    %p163 = pnand %p161, %p162
    %p164 = pneg %p163
    // Predicated region
    $region25: #{residual_block.4} parent=5 // pred_check
      _
    $region26: #{residual_block.4} parent=5 // pred_check_branch
      %166 = sbr.rel (%p163) target = $region28
    $region27: #{residual_block.4} parent=5 // pred_region
      %s167 = ssub.s32 %s10, 1
      %p168 = scmp.lt.s32.totalorder %s19, 1
      %s169 = scalar_select %p168, %s19, 1
      %p170 = scmp.lt.s32.totalorder %s20, 0
      %s171 = scalar_select %p170, %s20, 0
      %s172 = smul.addr %s171, 120
      %s173 = smul.addr %s169, 120
      %s174 = sadd.s32 %s172, %s173
      %s175 = smul.addr %s174, 8
      %s176 = scalar_lea.vmem %s0, %s175
      %p177 = pneg %p50
      %p178 = pneg %p47
      %p179 = pneg %p71
      %p180 = pneg %p68
      %p181 = pneg %p99
      %p182 = pneg %p96
      %s183 = smul.u32 4, %s20
      %p184 = scmp.lt.s32.totalorder %s19, 1
      %s185 = scalar_select %p184, %s19, 1
      %p186 = scmp.lt.s32.totalorder %s183, 3
      %s187 = scalar_select %p186, %s183, 3
      %s188 = smul.addr %s187, 8
      %s189 = smul.addr %s185, 32
      %s190 = sadd.s32 %s188, %s189
      %s191 = smul.addr %s190, 8
      %s192 = scalar_lea.vmem %s2, %s191
      %p193 = pneg %p127
      %p194 = pneg %p124
      %p195 = scmp.lt.s32.totalorder %s19, 1
      %s196 = scalar_select %p195, %s19, 1
      %p197 = scmp.lt.s32.totalorder %s20, 0
      %s198 = scalar_select %p197, %s20, 0
      %s199 = sadd.s32 %s198, %s196
      %s200 = smul.addr %s199, 2
      %s201 = scalar_lea.vmem %s3, %s200
      %p202 = scmp.lt.s32.totalorder %s19, 1
      %s203 = scalar_select %p202, %s19, 1
      %p204 = scmp.lt.s32.totalorder %s20, 0
      %s205 = scalar_select %p204, %s20, 0
      %s206 = smul.addr %s205, 120
      %s207 = smul.addr %s203, 120
      %s208 = sadd.s32 %s206, %s207
      %s209 = smul.addr %s208, 8
      %s210 = scalar_lea.vmem %s0, %s209
      %s211 = smul.u32 4, %s20
      %p212 = scmp.lt.s32.totalorder %s19, 1
      %s213 = scalar_select %p212, %s19, 1
      %p214 = scmp.lt.s32.totalorder %s211, 3
      %s215 = scalar_select %p214, %s211, 3
      %s216 = smul.addr %s215, 8
      %s217 = smul.addr %s213, 32
      %s218 = sadd.s32 %s216, %s217
      %s219 = smul.addr %s218, 8
      %s220 = scalar_lea.vmem %s2, %s219
      %s221 = smul.u32 4, %s20
      %p222 = scmp.lt.s32.totalorder %s19, 1
      %s223 = scalar_select %p222, %s19, 1
      %p224 = scmp.lt.s32.totalorder %s20, 0
      %s225 = scalar_select %p224, %s20, 0
      %s226 = sadd.s32 %s225, %s223
      %s227 = smul.addr %s226, 2
      %s228 = scalar_lea.vmem %s3, %s227
      %v230 = vld [vmem:[%s210] sm:$0xff]
      %v231 = vld [vmem:[%s210 + $0x10] sm:$0xff]
      %v232 = vld [vmem:[%s210 + $0x20] sm:$0xff]
      %v233 = vld [vmem:[%s210 + $0x30] sm:$0xff]
      %v234 = vld [vmem:[%s210 + $0x40] sm:$0xff]
      %v235 = vld [vmem:[%s210 + $0x50] sm:$0xff]
      %v236 = vld [vmem:[%s210 + $0x60] sm:$0xff]
      %v237 = vld [vmem:[%s210 + $0x70] sm:$0xff]
      %v238 = vld [vmem:[%s210 + $0xa0] sm:$0xff]
      %v239 = vld [vmem:[%s210 + $0xb0] sm:$0xff]
      %v240 = vld [vmem:[%s210 + $0xc0] sm:$0xff]
      %v241 = vld [vmem:[%s210 + $0xd0] sm:$0xff]
      %v242 = vld [vmem:[%s210 + $0xe0] sm:$0xff]
      %v243 = vld [vmem:[%s210 + $0xf0] sm:$0xff]
      %v244 = vld [vmem:[%s210 + $0x100] sm:$0xff]
      %v245 = vld [vmem:[%s210 + $0x110] sm:$0xff]
      %v246 = vld [vmem:[%s210 + $0x140] sm:$0xff]
      %v247 = vld [vmem:[%s210 + $0x150] sm:$0xff]
      %v248 = vld [vmem:[%s210 + $0x160] sm:$0xff]
      %v249 = vld [vmem:[%s210 + $0x170] sm:$0xff]
      %v250 = vld [vmem:[%s210 + $0x180] sm:$0xff]
      %v251 = vld [vmem:[%s210 + $0x190] sm:$0xff]
      %v252 = vld [vmem:[%s210 + $0x1a0] sm:$0xff]
      %v253 = vld [vmem:[%s210 + $0x1b0] sm:$0xff]
      %v254 = vld [vmem:[%s210 + $0x1e0] sm:$0xff]
      %v255 = vld [vmem:[%s210 + $0x1f0] sm:$0xff]
      %v256 = vld [vmem:[%s210 + $0x200] sm:$0xff]
      %v257 = vld [vmem:[%s210 + $0x210] sm:$0xff]
      %v258 = vld [vmem:[%s210 + $0x220] sm:$0xff]
      %v259 = vld [vmem:[%s210 + $0x230] sm:$0xff]
      %v260 = vld [vmem:[%s210 + $0x240] sm:$0xff]
      %v261 = vld [vmem:[%s210 + $0x250] sm:$0xff]
      %v262 = vpack.c.bf16 %v231, %v230
      %v263 = vpack.c.bf16 %v233, %v232
      %v264 = vpack.c.bf16 %v235, %v234
      %v265 = vpack.c.bf16 %v237, %v236
      %v266 = vpack.c.bf16 %v239, %v238
      %v267 = vpack.c.bf16 %v241, %v240
      %v268 = vpack.c.bf16 %v243, %v242
      %v269 = vpack.c.bf16 %v245, %v244
      %v270 = vpack.c.bf16 %v247, %v246
      %v271 = vpack.c.bf16 %v249, %v248
      %v272 = vpack.c.bf16 %v251, %v250
      %v273 = vpack.c.bf16 %v253, %v252
      %v274 = vpack.c.bf16 %v255, %v254
      %v275 = vpack.c.bf16 %v257, %v256
      %v276 = vpack.c.bf16 %v259, %v258
      %v277 = vpack.c.bf16 %v261, %v260
      %v278 = vld [vmem:[%s1] sm:$0xf]
      %v279 = vld [vmem:[%s1 + $0x4] sm:$0xf]
      %v280 = vld [vmem:[%s1 + $0x8] sm:$0xf]
      %v281 = vld [vmem:[%s1 + $0xc] sm:$0xf]
      %v282 = vld [vmem:[%s1 + $0x10] sm:$0xf]
      %v283 = vld [vmem:[%s1 + $0x14] sm:$0xf]
      %v284 = vld [vmem:[%s1 + $0x18] sm:$0xf]
      %v285 = vld [vmem:[%s1 + $0x1c] sm:$0xf]
      %v286 = vld [vmem:[%s1 + $0x20] sm:$0xf]
      %v287 = vld [vmem:[%s1 + $0x24] sm:$0xf]
      %v288 = vld [vmem:[%s1 + $0x28] sm:$0xf]
      %v289 = vld [vmem:[%s1 + $0x2c] sm:$0xf]
      %v290 = vld [vmem:[%s1 + $0x30] sm:$0xf]
      %v291 = vld [vmem:[%s1 + $0x34] sm:$0xf]
      %v292 = vld [vmem:[%s1 + $0x38] sm:$0xf]
      %v293 = vld [vmem:[%s1 + $0x3c] sm:$0xf]
      %v294 = vld [vmem:[%s210 + $0x1] sm:$0xff]
      %v295 = vld [vmem:[%s210 + $0x11] sm:$0xff]
      %v296 = vld [vmem:[%s210 + $0x21] sm:$0xff]
      %v297 = vld [vmem:[%s210 + $0x31] sm:$0xff]
      %v298 = vld [vmem:[%s210 + $0x41] sm:$0xff]
      %v299 = vld [vmem:[%s210 + $0x51] sm:$0xff]
      %v300 = vld [vmem:[%s210 + $0x61] sm:$0xff]
      %v301 = vld [vmem:[%s210 + $0x71] sm:$0xff]
      %v302 = vld [vmem:[%s210 + $0xa1] sm:$0xff]
      %v303 = vld [vmem:[%s210 + $0xb1] sm:$0xff]
      %v304 = vld [vmem:[%s210 + $0xc1] sm:$0xff]
      %v305 = vld [vmem:[%s210 + $0xd1] sm:$0xff]
      %v306 = vld [vmem:[%s210 + $0xe1] sm:$0xff]
      %v307 = vld [vmem:[%s210 + $0xf1] sm:$0xff]
      %v308 = vld [vmem:[%s210 + $0x101] sm:$0xff]
      %v309 = vld [vmem:[%s210 + $0x111] sm:$0xff]
      %v310 = vld [vmem:[%s210 + $0x141] sm:$0xff]
      %v311 = vld [vmem:[%s210 + $0x151] sm:$0xff]
      %v312 = vld [vmem:[%s210 + $0x161] sm:$0xff]
      %v313 = vld [vmem:[%s210 + $0x171] sm:$0xff]
      %v314 = vld [vmem:[%s210 + $0x181] sm:$0xff]
      %v315 = vld [vmem:[%s210 + $0x191] sm:$0xff]
      %v316 = vld [vmem:[%s210 + $0x1a1] sm:$0xff]
      %v317 = vld [vmem:[%s210 + $0x1b1] sm:$0xff]
      %v318 = vld [vmem:[%s210 + $0x1e1] sm:$0xff]
      %v319 = vld [vmem:[%s210 + $0x1f1] sm:$0xff]
      %v320 = vld [vmem:[%s210 + $0x201] sm:$0xff]
      %v321 = vld [vmem:[%s210 + $0x211] sm:$0xff]
      %v322 = vld [vmem:[%s210 + $0x221] sm:$0xff]
      %v323 = vld [vmem:[%s210 + $0x231] sm:$0xff]
      %v324 = vld [vmem:[%s210 + $0x241] sm:$0xff]
      %v325 = vld [vmem:[%s210 + $0x251] sm:$0xff]
      %v326 = vpack.c.bf16 %v295, %v294
      %v327 = vpack.c.bf16 %v297, %v296
      %v328 = vpack.c.bf16 %v299, %v298
      %v329 = vpack.c.bf16 %v301, %v300
      %v330 = vpack.c.bf16 %v303, %v302
      %v331 = vpack.c.bf16 %v305, %v304
      %v332 = vpack.c.bf16 %v307, %v306
      %v333 = vpack.c.bf16 %v309, %v308
      %v334 = vpack.c.bf16 %v311, %v310
      %v335 = vpack.c.bf16 %v313, %v312
      %v336 = vpack.c.bf16 %v315, %v314
      %v337 = vpack.c.bf16 %v317, %v316
      %v338 = vpack.c.bf16 %v319, %v318
      %v339 = vpack.c.bf16 %v321, %v320
      %v340 = vpack.c.bf16 %v323, %v322
      %v341 = vpack.c.bf16 %v325, %v324
      %s342 = scalar_lea.vmem %s1, 64
      %v343 = vld [vmem:[%s342] sm:$0xf]
      %v344 = vld [vmem:[%s342 + $0x4] sm:$0xf]
      %v345 = vld [vmem:[%s342 + $0x8] sm:$0xf]
      %v346 = vld [vmem:[%s342 + $0xc] sm:$0xf]
      %v347 = vld [vmem:[%s342 + $0x10] sm:$0xf]
      %v348 = vld [vmem:[%s342 + $0x14] sm:$0xf]
      %v349 = vld [vmem:[%s342 + $0x18] sm:$0xf]
      %v350 = vld [vmem:[%s342 + $0x1c] sm:$0xf]
      %v351 = vld [vmem:[%s342 + $0x20] sm:$0xf]
      %v352 = vld [vmem:[%s342 + $0x24] sm:$0xf]
      %v353 = vld [vmem:[%s342 + $0x28] sm:$0xf]
      %v354 = vld [vmem:[%s342 + $0x2c] sm:$0xf]
      %v355 = vld [vmem:[%s342 + $0x30] sm:$0xf]
      %v356 = vld [vmem:[%s342 + $0x34] sm:$0xf]
      %v357 = vld [vmem:[%s342 + $0x38] sm:$0xf]
      %v358 = vld [vmem:[%s342 + $0x3c] sm:$0xf]
      %v375 = vunpack.c.l.b16 %v343
      %v376 = vunpack.c.l.b16 %v344
      %v377 = vunpack.c.l.b16 %v345
      %v378 = vunpack.c.l.b16 %v346
      %v379 = vunpack.c.l.b16 %v347
      %v380 = vunpack.c.l.b16 %v348
      %v381 = vunpack.c.l.b16 %v349
      %v382 = vunpack.c.l.b16 %v350
      %v383 = vunpack.c.l.b16 %v351
      %v384 = vunpack.c.l.b16 %v352
      %v385 = vunpack.c.l.b16 %v353
      %v386 = vunpack.c.l.b16 %v354
      %v387 = vunpack.c.l.b16 %v355
      %v388 = vunpack.c.l.b16 %v356
      %v389 = vunpack.c.l.b16 %v357
      %v390 = vunpack.c.l.b16 %v358
      %v391 = vpack.c.b16 %v376, %v375
      %v392 = vpack.c.b16 %v378, %v377
      %v393 = vpack.c.b16 %v380, %v379
      %v394 = vpack.c.b16 %v382, %v381
      %v395 = vpack.c.b16 %v384, %v383
      %v396 = vpack.c.b16 %v386, %v385
      %v397 = vpack.c.b16 %v388, %v387
      %v398 = vpack.c.b16 %v390, %v389
      %407 = vmatprep.subr.bf16.mxu0 0
      %408 = vmatpush1.bf16.msra.mxu0 %v391
      %409 = vmatprep.subr.bf16.mxu0 0
      %410 = vmatpush1.bf16.msra.mxu0 %v392
      %411 = vmatprep.subr.bf16.mxu0 0
      %412 = vmatpush1.bf16.msra.mxu0 %v393
      %413 = vmatprep.subr.bf16.mxu0 0
      %414 = vmatpush1.bf16.msra.mxu0 %v394
      %415 = vmatprep.subr.bf16.mxu0 0
      %416 = vmatpush1.bf16.msra.mxu0 %v395
      %417 = vmatprep.subr.bf16.mxu0 0
      %418 = vmatpush1.bf16.msra.mxu0 %v396
      %419 = vmatprep.subr.bf16.mxu0 0
      %420 = vmatpush1.bf16.msra.mxu0 %v397
      %421 = vmatprep.subr.bf16.mxu0 0
      %422 = vmatpush1.bf16.msra.mxu0 %v398
      %423 = vmatprep.subr.bf16.mxu0 0
      %424 = vmatpush1.bf16.msra.mxu0 0
      %425 = vmatprep.subr.bf16.mxu0 0
      %426 = vmatpush1.bf16.msra.mxu0 0
      %427 = vmatprep.subr.bf16.mxu0 0
      %428 = vmatpush1.bf16.msra.mxu0 0
      %429 = vmatprep.subr.bf16.mxu0 0
      %430 = vmatpush1.bf16.msra.mxu0 0
      %431 = vmatprep.subr.bf16.mxu0 0
      %432 = vmatpush1.bf16.msra.mxu0 0
      %433 = vmatprep.subr.bf16.mxu0 0
      %434 = vmatpush1.bf16.msra.mxu0 0
      %435 = vmatprep.subr.bf16.mxu0 0
      %436 = vmatpush1.bf16.msra.mxu0 0
      %437 = vmatprep.subr.bf16.mxu0 0
      %438 = vmatpush1.bf16.msra.mxu0 0
      %439 = vmatprep.mubr.bf16.mxu0 0
      %440 = vmatmul.mubr.bf16.gmra.mrb[0].mxu0 %v326
      %v441 = vpop.f32.mrb[0].mxu0
      %v442 = vadd.f32 0.0, %v441
      %v443 = vpop.f32.mrb[0].mxu0
      %v444 = vpop.f32.mrb[0].mxu0
      %v445 = vadd.f32 0.0, %v444
      %v446 = vpop.f32.mrb[0].mxu0
      %447 = vmatprep.mubr.bf16.mxu0 0
      %448 = vmatmul.mubr.bf16.gmra.mrb[0].mxu0 %v327
      %v449 = vpop.f32.mrb[0].mxu0
      %v450 = vadd.f32 0.0, %v449
      %v451 = vpop.f32.mrb[0].mxu0
      %v452 = vpop.f32.mrb[0].mxu0
      %v453 = vadd.f32 0.0, %v452
      %v454 = vpop.f32.mrb[0].mxu0
      %455 = vmatprep.mubr.bf16.mxu0 0
      %456 = vmatmul.mubr.bf16.gmra.mrb[0].mxu0 %v328
      %v457 = vpop.f32.mrb[0].mxu0
      %v458 = vadd.f32 0.0, %v457
      %v459 = vpop.f32.mrb[0].mxu0
      %v460 = vpop.f32.mrb[0].mxu0
      %v461 = vadd.f32 0.0, %v460
      %v462 = vpop.f32.mrb[0].mxu0
      %463 = vmatprep.mubr.bf16.mxu0 0
      %464 = vmatmul.mubr.bf16.gmra.mrb[0].mxu0 %v329
      %v465 = vpop.f32.mrb[0].mxu0
      %v466 = vadd.f32 0.0, %v465
      %v467 = vpop.f32.mrb[0].mxu0
      %v468 = vpop.f32.mrb[0].mxu0
      %v469 = vadd.f32 0.0, %v468
      %v470 = vpop.f32.mrb[0].mxu0
      %471 = vmatprep.mubr.bf16.mxu0 0
      %472 = vmatmul.mubr.bf16.gmra.mrb[0].mxu0 %v330
      %v473 = vpop.f32.mrb[0].mxu0
      %v474 = vadd.f32 0.0, %v473
      %v475 = vpop.f32.mrb[0].mxu0
      %v476 = vpop.f32.mrb[0].mxu0
      %v477 = vadd.f32 0.0, %v476
      %v478 = vpop.f32.mrb[0].mxu0
      %479 = vmatprep.mubr.bf16.mxu0 0
      %480 = vmatmul.mubr.bf16.gmra.mrb[0].mxu0 %v331
      %v481 = vpop.f32.mrb[0].mxu0
      %v482 = vadd.f32 0.0, %v481
      %v483 = vpop.f32.mrb[0].mxu0
      %v484 = vpop.f32.mrb[0].mxu0
      %v485 = vadd.f32 0.0, %v484
      %v486 = vpop.f32.mrb[0].mxu0
      %487 = vmatprep.mubr.bf16.mxu0 0
      %488 = vmatmul.mubr.bf16.gmra.mrb[0].mxu0 %v332
      %v489 = vpop.f32.mrb[0].mxu0
      %v490 = vadd.f32 0.0, %v489
      %v491 = vpop.f32.mrb[0].mxu0
      %v492 = vpop.f32.mrb[0].mxu0
      %v493 = vadd.f32 0.0, %v492
      %v494 = vpop.f32.mrb[0].mxu0
      %495 = vmatprep.mubr.bf16.mxu0 0
      %496 = vmatmul.mubr.bf16.gmra.mrb[0].mxu0 %v333
      %v497 = vpop.f32.mrb[0].mxu0
      %v498 = vadd.f32 0.0, %v497
      %v499 = vpop.f32.mrb[0].mxu0
      %v500 = vpop.f32.mrb[0].mxu0
      %v501 = vadd.f32 0.0, %v500
      %v502 = vpop.f32.mrb[0].mxu0
      %503 = vmatprep.mubr.bf16.mxu0 0
      %504 = vmatmul.mubr.bf16.gmra.mrb[0].mxu0 %v334
      %v505 = vpop.f32.mrb[0].mxu0
      %v506 = vadd.f32 0.0, %v505
      %v507 = vpop.f32.mrb[0].mxu0
      %v508 = vpop.f32.mrb[0].mxu0
      %v509 = vadd.f32 0.0, %v508
      %v510 = vpop.f32.mrb[0].mxu0
      %511 = vmatprep.mubr.bf16.mxu0 0
      %512 = vmatmul.mubr.bf16.gmra.mrb[0].mxu0 %v335
      %v513 = vpop.f32.mrb[0].mxu0
      %v514 = vadd.f32 0.0, %v513
      %v515 = vpop.f32.mrb[0].mxu0
      %v516 = vpop.f32.mrb[0].mxu0
      %v517 = vadd.f32 0.0, %v516
      %v518 = vpop.f32.mrb[0].mxu0
      %519 = vmatprep.mubr.bf16.mxu0 0
      %520 = vmatmul.mubr.bf16.gmra.mrb[0].mxu0 %v336
      %v521 = vpop.f32.mrb[0].mxu0
      %v522 = vadd.f32 0.0, %v521
      %v523 = vpop.f32.mrb[0].mxu0
      %v524 = vpop.f32.mrb[0].mxu0
      %v525 = vadd.f32 0.0, %v524
      %v526 = vpop.f32.mrb[0].mxu0
      %527 = vmatprep.mubr.bf16.mxu0 0
      %528 = vmatmul.mubr.bf16.gmra.mrb[0].mxu0 %v337
      %v529 = vpop.f32.mrb[0].mxu0
      %v530 = vadd.f32 0.0, %v529
      %v531 = vpop.f32.mrb[0].mxu0
      %v532 = vpop.f32.mrb[0].mxu0
      %v533 = vadd.f32 0.0, %v532
      %v534 = vpop.f32.mrb[0].mxu0
      %535 = vmatprep.mubr.bf16.mxu0 0
      %536 = vmatmul.mubr.bf16.gmra.mrb[0].mxu0 %v338
      %v537 = vpop.f32.mrb[0].mxu0
      %v538 = vadd.f32 0.0, %v537
      %v539 = vpop.f32.mrb[0].mxu0
      %v540 = vpop.f32.mrb[0].mxu0
      %v541 = vadd.f32 0.0, %v540
      %v542 = vpop.f32.mrb[0].mxu0
      %543 = vmatprep.mubr.bf16.mxu0 0
      %544 = vmatmul.mubr.bf16.gmra.mrb[0].mxu0 %v339
      %v545 = vpop.f32.mrb[0].mxu0
      %v546 = vadd.f32 0.0, %v545
      %v547 = vpop.f32.mrb[0].mxu0
      %v548 = vpop.f32.mrb[0].mxu0
      %v549 = vadd.f32 0.0, %v548
      %v550 = vpop.f32.mrb[0].mxu0
      %551 = vmatprep.mubr.bf16.mxu0 0
      %552 = vmatmul.mubr.bf16.gmra.mrb[0].mxu0 %v340
      %v553 = vpop.f32.mrb[0].mxu0
      %v554 = vadd.f32 0.0, %v553
      %v555 = vpop.f32.mrb[0].mxu0
      %v556 = vpop.f32.mrb[0].mxu0
      %v557 = vadd.f32 0.0, %v556
      %v558 = vpop.f32.mrb[0].mxu0
      %559 = vmatprep.mubr.bf16.mxu0 0
      %560 = vmatmul.mubr.bf16.gmra.mrb[0].mxu0 %v341
      %v561 = vpop.f32.mrb[0].mxu0
      %v562 = vadd.f32 0.0, %v561
      %v563 = vpop.f32.mrb[0].mxu0
      %v564 = vpop.f32.mrb[0].mxu0
      %v565 = vadd.f32 0.0, %v564
      %v566 = vpop.f32.mrb[0].mxu0
      %567 = vdwg.mxu0
      %v584 = vunpack.c.l.b16 %v278
      %v585 = vunpack.c.l.b16 %v279
      %v586 = vunpack.c.l.b16 %v280
      %v587 = vunpack.c.l.b16 %v281
      %v588 = vunpack.c.l.b16 %v282
      %v589 = vunpack.c.l.b16 %v283
      %v590 = vunpack.c.l.b16 %v284
      %v591 = vunpack.c.l.b16 %v285
      %v592 = vunpack.c.l.b16 %v286
      %v593 = vunpack.c.l.b16 %v287
      %v594 = vunpack.c.l.b16 %v288
      %v595 = vunpack.c.l.b16 %v289
      %v596 = vunpack.c.l.b16 %v290
      %v597 = vunpack.c.l.b16 %v291
      %v598 = vunpack.c.l.b16 %v292
      %v599 = vunpack.c.l.b16 %v293
      %v600 = vpack.c.b16 %v585, %v584
      %v601 = vpack.c.b16 %v587, %v586
      %v602 = vpack.c.b16 %v589, %v588
      %v603 = vpack.c.b16 %v591, %v590
      %v604 = vpack.c.b16 %v593, %v592
      %v605 = vpack.c.b16 %v595, %v594
      %v606 = vpack.c.b16 %v597, %v596
      %v607 = vpack.c.b16 %v599, %v598
      %616 = vmatprep.subr.bf16.mxu0 0
      %617 = vmatpush1.bf16.msra.mxu0 %v600
      %618 = vmatprep.subr.bf16.mxu0 0
      %619 = vmatpush1.bf16.msra.mxu0 %v601
      %620 = vmatprep.subr.bf16.mxu0 0
      %621 = vmatpush1.bf16.msra.mxu0 %v602
      %622 = vmatprep.subr.bf16.mxu0 0
      %623 = vmatpush1.bf16.msra.mxu0 %v603
      %624 = vmatprep.subr.bf16.mxu0 0
      %625 = vmatpush1.bf16.msra.mxu0 %v604
      %626 = vmatprep.subr.bf16.mxu0 0
      %627 = vmatpush1.bf16.msra.mxu0 %v605
      %628 = vmatprep.subr.bf16.mxu0 0
      %629 = vmatpush1.bf16.msra.mxu0 %v606
      %630 = vmatprep.subr.bf16.mxu0 0
      %631 = vmatpush1.bf16.msra.mxu0 %v607
      %632 = vmatprep.subr.bf16.mxu0 0
      %633 = vmatpush1.bf16.msra.mxu0 0
      %634 = vmatprep.subr.bf16.mxu0 0
      %635 = vmatpush1.bf16.msra.mxu0 0
      %636 = vmatprep.subr.bf16.mxu0 0
      %637 = vmatpush1.bf16.msra.mxu0 0
      %638 = vmatprep.subr.bf16.mxu0 0
      %639 = vmatpush1.bf16.msra.mxu0 0
      %640 = vmatprep.subr.bf16.mxu0 0
      %641 = vmatpush1.bf16.msra.mxu0 0
      %642 = vmatprep.subr.bf16.mxu0 0
      %643 = vmatpush1.bf16.msra.mxu0 0
      %644 = vmatprep.subr.bf16.mxu0 0
      %645 = vmatpush1.bf16.msra.mxu0 0
      %646 = vmatprep.subr.bf16.mxu0 0
      %647 = vmatpush1.bf16.msra.mxu0 0
      %648 = vmatprep.mubr.bf16.mxu0 0
      %649 = vmatmul.mubr.bf16.gmra.mrb[0].mxu0 %v262
      %v650 = vpop.f32.mrb[0].mxu0
      %v651 = vadd.f32 %v442, %v650
      %v652 = vpop.f32.mrb[0].mxu0
      %v653 = vpop.f32.mrb[0].mxu0
      %v654 = vadd.f32 %v445, %v653
      %v655 = vpop.f32.mrb[0].mxu0
      %656 = vmatprep.mubr.bf16.mxu0 0
      %657 = vmatmul.mubr.bf16.gmra.mrb[0].mxu0 %v263
      %v658 = vpop.f32.mrb[0].mxu0
      %v659 = vadd.f32 %v450, %v658
      %v660 = vpop.f32.mrb[0].mxu0
      %v661 = vpop.f32.mrb[0].mxu0
      %v662 = vadd.f32 %v453, %v661
      %v663 = vpop.f32.mrb[0].mxu0
      %664 = vmatprep.mubr.bf16.mxu0 0
      %665 = vmatmul.mubr.bf16.gmra.mrb[0].mxu0 %v264
      %v666 = vpop.f32.mrb[0].mxu0
      %v667 = vadd.f32 %v458, %v666
      %v668 = vpop.f32.mrb[0].mxu0
      %v669 = vpop.f32.mrb[0].mxu0
      %v670 = vadd.f32 %v461, %v669
      %v671 = vpop.f32.mrb[0].mxu0
      %672 = vmatprep.mubr.bf16.mxu0 0
      %673 = vmatmul.mubr.bf16.gmra.mrb[0].mxu0 %v265
      %v674 = vpop.f32.mrb[0].mxu0
      %v675 = vadd.f32 %v466, %v674
      %v676 = vpop.f32.mrb[0].mxu0
      %v677 = vpop.f32.mrb[0].mxu0
      %v678 = vadd.f32 %v469, %v677
      %v679 = vpop.f32.mrb[0].mxu0
      %680 = vmatprep.mubr.bf16.mxu0 0
      %681 = vmatmul.mubr.bf16.gmra.mrb[0].mxu0 %v266
      %v682 = vpop.f32.mrb[0].mxu0
      %v683 = vadd.f32 %v474, %v682
      %v684 = vpop.f32.mrb[0].mxu0
      %v685 = vpop.f32.mrb[0].mxu0
      %v686 = vadd.f32 %v477, %v685
      %v687 = vpop.f32.mrb[0].mxu0
      %688 = vmatprep.mubr.bf16.mxu0 0
      %689 = vmatmul.mubr.bf16.gmra.mrb[0].mxu0 %v267
      %v690 = vpop.f32.mrb[0].mxu0
      %v691 = vadd.f32 %v482, %v690
      %v692 = vpop.f32.mrb[0].mxu0
      %v693 = vpop.f32.mrb[0].mxu0
      %v694 = vadd.f32 %v485, %v693
      %v695 = vpop.f32.mrb[0].mxu0
      %696 = vmatprep.mubr.bf16.mxu0 0
      %697 = vmatmul.mubr.bf16.gmra.mrb[0].mxu0 %v268
      %v698 = vpop.f32.mrb[0].mxu0
      %v699 = vadd.f32 %v490, %v698
      %v700 = vpop.f32.mrb[0].mxu0
      %v701 = vpop.f32.mrb[0].mxu0
      %v702 = vadd.f32 %v493, %v701
      %v703 = vpop.f32.mrb[0].mxu0
      %704 = vmatprep.mubr.bf16.mxu0 0
      %705 = vmatmul.mubr.bf16.gmra.mrb[0].mxu0 %v269
      %v706 = vpop.f32.mrb[0].mxu0
      %v707 = vadd.f32 %v498, %v706
      %v708 = vpop.f32.mrb[0].mxu0
      %v709 = vpop.f32.mrb[0].mxu0
      %v710 = vadd.f32 %v501, %v709
      %v711 = vpop.f32.mrb[0].mxu0
      %712 = vmatprep.mubr.bf16.mxu0 0
      %713 = vmatmul.mubr.bf16.gmra.mrb[0].mxu0 %v270
      %v714 = vpop.f32.mrb[0].mxu0
      %v715 = vadd.f32 %v506, %v714
      %v716 = vpop.f32.mrb[0].mxu0
      %v717 = vpop.f32.mrb[0].mxu0
      %v718 = vadd.f32 %v509, %v717
      %v719 = vpop.f32.mrb[0].mxu0
      %720 = vmatprep.mubr.bf16.mxu0 0
      %721 = vmatmul.mubr.bf16.gmra.mrb[0].mxu0 %v271
      %v722 = vpop.f32.mrb[0].mxu0
      %v723 = vadd.f32 %v514, %v722
      %v724 = vpop.f32.mrb[0].mxu0
      %v725 = vpop.f32.mrb[0].mxu0
      %v726 = vadd.f32 %v517, %v725
      %v727 = vpop.f32.mrb[0].mxu0
      %728 = vmatprep.mubr.bf16.mxu0 0
      %729 = vmatmul.mubr.bf16.gmra.mrb[0].mxu0 %v272
      %v730 = vpop.f32.mrb[0].mxu0
      %v731 = vadd.f32 %v522, %v730
      %v732 = vpop.f32.mrb[0].mxu0
      %v733 = vpop.f32.mrb[0].mxu0
      %v734 = vadd.f32 %v525, %v733
      %v735 = vpop.f32.mrb[0].mxu0
      %736 = vmatprep.mubr.bf16.mxu0 0
      %737 = vmatmul.mubr.bf16.gmra.mrb[0].mxu0 %v273
      %v738 = vpop.f32.mrb[0].mxu0
      %v739 = vadd.f32 %v530, %v738
      %v740 = vpop.f32.mrb[0].mxu0
      %v741 = vpop.f32.mrb[0].mxu0
      %v742 = vadd.f32 %v533, %v741
      %v743 = vpop.f32.mrb[0].mxu0
      %744 = vmatprep.mubr.bf16.mxu0 0
      %745 = vmatmul.mubr.bf16.gmra.mrb[0].mxu0 %v274
      %v746 = vpop.f32.mrb[0].mxu0
      %v747 = vadd.f32 %v538, %v746
      %v748 = vpop.f32.mrb[0].mxu0
      %v749 = vpop.f32.mrb[0].mxu0
      %v750 = vadd.f32 %v541, %v749
      %v751 = vpop.f32.mrb[0].mxu0
      %752 = vmatprep.mubr.bf16.mxu0 0
      %753 = vmatmul.mubr.bf16.gmra.mrb[0].mxu0 %v275
      %v754 = vpop.f32.mrb[0].mxu0
      %v755 = vadd.f32 %v546, %v754
      %v756 = vpop.f32.mrb[0].mxu0
      %v757 = vpop.f32.mrb[0].mxu0
      %v758 = vadd.f32 %v549, %v757
      %v759 = vpop.f32.mrb[0].mxu0
      %760 = vmatprep.mubr.bf16.mxu0 0
      %761 = vmatmul.mubr.bf16.gmra.mrb[0].mxu0 %v276
      %v762 = vpop.f32.mrb[0].mxu0
      %v763 = vadd.f32 %v554, %v762
      %v764 = vpop.f32.mrb[0].mxu0
      %v765 = vpop.f32.mrb[0].mxu0
      %v766 = vadd.f32 %v557, %v765
      %v767 = vpop.f32.mrb[0].mxu0
      %768 = vmatprep.mubr.bf16.mxu0 0
      %769 = vmatmul.mubr.bf16.gmra.mrb[0].mxu0 %v277
      %v770 = vpop.f32.mrb[0].mxu0
      %v771 = vadd.f32 %v562, %v770
      %v772 = vpop.f32.mrb[0].mxu0
      %v773 = vpop.f32.mrb[0].mxu0
      %v774 = vadd.f32 %v565, %v773
      %v775 = vpop.f32.mrb[0].mxu0
      %776 = vdwg.mxu0
      %v777 = vld [vmem:[%s210 + $0x2] sm:$0xff]
      %v778 = vld [vmem:[%s210 + $0x12] sm:$0xff]
      %v779 = vld [vmem:[%s210 + $0x22] sm:$0xff]
      %v780 = vld [vmem:[%s210 + $0x32] sm:$0xff]
      %v781 = vld [vmem:[%s210 + $0x42] sm:$0xff]
      %v782 = vld [vmem:[%s210 + $0x52] sm:$0xff]
      %v783 = vld [vmem:[%s210 + $0x62] sm:$0xff]
      %v784 = vld [vmem:[%s210 + $0x72] sm:$0xff]
      %v785 = vld [vmem:[%s210 + $0xa2] sm:$0xff]
      %v786 = vld [vmem:[%s210 + $0xb2] sm:$0xff]
      %v787 = vld [vmem:[%s210 + $0xc2] sm:$0xff]
      %v788 = vld [vmem:[%s210 + $0xd2] sm:$0xff]
      %v789 = vld [vmem:[%s210 + $0xe2] sm:$0xff]
      %v790 = vld [vmem:[%s210 + $0xf2] sm:$0xff]
      %v791 = vld [vmem:[%s210 + $0x102] sm:$0xff]
      %v792 = vld [vmem:[%s210 + $0x112] sm:$0xff]
      %v793 = vld [vmem:[%s210 + $0x142] sm:$0xff]
      %v794 = vld [vmem:[%s210 + $0x152] sm:$0xff]
      %v795 = vld [vmem:[%s210 + $0x162] sm:$0xff]
      %v796 = vld [vmem:[%s210 + $0x172] sm:$0xff]
      %v797 = vld [vmem:[%s210 + $0x182] sm:$0xff]
      %v798 = vld [vmem:[%s210 + $0x192] sm:$0xff]
      %v799 = vld [vmem:[%s210 + $0x1a2] sm:$0xff]
      %v800 = vld [vmem:[%s210 + $0x1b2] sm:$0xff]
      %v801 = vld [vmem:[%s210 + $0x1e2] sm:$0xff]
      %v802 = vld [vmem:[%s210 + $0x1f2] sm:$0xff]
      %v803 = vld [vmem:[%s210 + $0x202] sm:$0xff]
      %v804 = vld [vmem:[%s210 + $0x212] sm:$0xff]
      %v805 = vld [vmem:[%s210 + $0x222] sm:$0xff]
      %v806 = vld [vmem:[%s210 + $0x232] sm:$0xff]
      %v807 = vld [vmem:[%s210 + $0x242] sm:$0xff]
      %v808 = vld [vmem:[%s210 + $0x252] sm:$0xff]
      %v809 = vpack.c.bf16 %v778, %v777
      %v810 = vpack.c.bf16 %v780, %v779
      %v811 = vpack.c.bf16 %v782, %v781
      %v812 = vpack.c.bf16 %v784, %v783
      %v813 = vpack.c.bf16 %v786, %v785
      %v814 = vpack.c.bf16 %v788, %v787
      %v815 = vpack.c.bf16 %v790, %v789
      %v816 = vpack.c.bf16 %v792, %v791
      %v817 = vpack.c.bf16 %v794, %v793
      %v818 = vpack.c.bf16 %v796, %v795
      %v819 = vpack.c.bf16 %v798, %v797
      %v820 = vpack.c.bf16 %v800, %v799
      %v821 = vpack.c.bf16 %v802, %v801
      %v822 = vpack.c.bf16 %v804, %v803
      %v823 = vpack.c.bf16 %v806, %v805
      %v824 = vpack.c.bf16 %v808, %v807
      %s825 = scalar_lea.vmem %s1, 128
      %v826 = vld [vmem:[%s825] sm:$0xf]
      %v827 = vld [vmem:[%s825 + $0x4] sm:$0xf]
      %v828 = vld [vmem:[%s825 + $0x8] sm:$0xf]
      %v829 = vld [vmem:[%s825 + $0xc] sm:$0xf]
      %v830 = vld [vmem:[%s825 + $0x10] sm:$0xf]
      %v831 = vld [vmem:[%s825 + $0x14] sm:$0xf]
      %v832 = vld [vmem:[%s825 + $0x18] sm:$0xf]
      %v833 = vld [vmem:[%s825 + $0x1c] sm:$0xf]
      %v834 = vld [vmem:[%s825 + $0x20] sm:$0xf]
      %v835 = vld [vmem:[%s825 + $0x24] sm:$0xf]
      %v836 = vld [vmem:[%s825 + $0x28] sm:$0xf]
      %v837 = vld [vmem:[%s825 + $0x2c] sm:$0xf]
      %v838 = vld [vmem:[%s825 + $0x30] sm:$0xf]
      %v839 = vld [vmem:[%s825 + $0x34] sm:$0xf]
      %v840 = vld [vmem:[%s825 + $0x38] sm:$0xf]
      %v841 = vld [vmem:[%s825 + $0x3c] sm:$0xf]
      %v858 = vunpack.c.l.b16 %v826
      %v859 = vunpack.c.l.b16 %v827
      %v860 = vunpack.c.l.b16 %v828
      %v861 = vunpack.c.l.b16 %v829
      %v862 = vunpack.c.l.b16 %v830
      %v863 = vunpack.c.l.b16 %v831
      %v864 = vunpack.c.l.b16 %v832
      %v865 = vunpack.c.l.b16 %v833
      %v866 = vunpack.c.l.b16 %v834
      %v867 = vunpack.c.l.b16 %v835
      %v868 = vunpack.c.l.b16 %v836
      %v869 = vunpack.c.l.b16 %v837
      %v870 = vunpack.c.l.b16 %v838
      %v871 = vunpack.c.l.b16 %v839
      %v872 = vunpack.c.l.b16 %v840
      %v873 = vunpack.c.l.b16 %v841
      %v874 = vpack.c.b16 %v859, %v858
      %v875 = vpack.c.b16 %v861, %v860
      %v876 = vpack.c.b16 %v863, %v862
      %v877 = vpack.c.b16 %v865, %v864
      %v878 = vpack.c.b16 %v867, %v866
      %v879 = vpack.c.b16 %v869, %v868
      %v880 = vpack.c.b16 %v871, %v870
      %v881 = vpack.c.b16 %v873, %v872
      %890 = vmatprep.subr.bf16.mxu0 0
      %891 = vmatpush1.bf16.msra.mxu0 %v874
      %892 = vmatprep.subr.bf16.mxu0 0
      %893 = vmatpush1.bf16.msra.mxu0 %v875
      %894 = vmatprep.subr.bf16.mxu0 0
      %895 = vmatpush1.bf16.msra.mxu0 %v876
      %896 = vmatprep.subr.bf16.mxu0 0
      %897 = vmatpush1.bf16.msra.mxu0 %v877
      %898 = vmatprep.subr.bf16.mxu0 0
      %899 = vmatpush1.bf16.msra.mxu0 %v878
      %900 = vmatprep.subr.bf16.mxu0 0
      %901 = vmatpush1.bf16.msra.mxu0 %v879
      %902 = vmatprep.subr.bf16.mxu0 0
      %903 = vmatpush1.bf16.msra.mxu0 %v880
      %904 = vmatprep.subr.bf16.mxu0 0
      %905 = vmatpush1.bf16.msra.mxu0 %v881
      %906 = vmatprep.subr.bf16.mxu0 0
      %907 = vmatpush1.bf16.msra.mxu0 0
      %908 = vmatprep.subr.bf16.mxu0 0
      %909 = vmatpush1.bf16.msra.mxu0 0
      %910 = vmatprep.subr.bf16.mxu0 0
      %911 = vmatpush1.bf16.msra.mxu0 0
      %912 = vmatprep.subr.bf16.mxu0 0
      %913 = vmatpush1.bf16.msra.mxu0 0
      %914 = vmatprep.subr.bf16.mxu0 0
      %915 = vmatpush1.bf16.msra.mxu0 0
      %916 = vmatprep.subr.bf16.mxu0 0
      %917 = vmatpush1.bf16.msra.mxu0 0
      %918 = vmatprep.subr.bf16.mxu0 0
      %919 = vmatpush1.bf16.msra.mxu0 0
      %920 = vmatprep.subr.bf16.mxu0 0
      %921 = vmatpush1.bf16.msra.mxu0 0
      %922 = vmatprep.mubr.bf16.mxu0 0
      %923 = vmatmul.mubr.bf16.gmra.mrb[0].mxu0 %v809
      %v924 = vpop.f32.mrb[0].mxu0
      %v925 = vadd.f32 0.0, %v924
      %v926 = vpop.f32.mrb[0].mxu0
      %v927 = vpop.f32.mrb[0].mxu0
      %v928 = vadd.f32 0.0, %v927
      %v929 = vpop.f32.mrb[0].mxu0
      %930 = vmatprep.mubr.bf16.mxu0 0
      %931 = vmatmul.mubr.bf16.gmra.mrb[0].mxu0 %v810
      %v932 = vpop.f32.mrb[0].mxu0
      %v933 = vadd.f32 0.0, %v932
      %v934 = vpop.f32.mrb[0].mxu0
      %v935 = vpop.f32.mrb[0].mxu0
      %v936 = vadd.f32 0.0, %v935
      %v937 = vpop.f32.mrb[0].mxu0
      %938 = vmatprep.mubr.bf16.mxu0 0
      %939 = vmatmul.mubr.bf16.gmra.mrb[0].mxu0 %v811
      %v940 = vpop.f32.mrb[0].mxu0
      %v941 = vadd.f32 0.0, %v940
      %v942 = vpop.f32.mrb[0].mxu0
      %v943 = vpop.f32.mrb[0].mxu0
      %v944 = vadd.f32 0.0, %v943
      %v945 = vpop.f32.mrb[0].mxu0
      %946 = vmatprep.mubr.bf16.mxu0 0
      %947 = vmatmul.mubr.bf16.gmra.mrb[0].mxu0 %v812
      %v948 = vpop.f32.mrb[0].mxu0
      %v949 = vadd.f32 0.0, %v948
      %v950 = vpop.f32.mrb[0].mxu0
      %v951 = vpop.f32.mrb[0].mxu0
      %v952 = vadd.f32 0.0, %v951
      %v953 = vpop.f32.mrb[0].mxu0
      %954 = vmatprep.mubr.bf16.mxu0 0
      %955 = vmatmul.mubr.bf16.gmra.mrb[0].mxu0 %v813
      %v956 = vpop.f32.mrb[0].mxu0
      %v957 = vadd.f32 0.0, %v956
      %v958 = vpop.f32.mrb[0].mxu0
      %v959 = vpop.f32.mrb[0].mxu0
      %v960 = vadd.f32 0.0, %v959
      %v961 = vpop.f32.mrb[0].mxu0
      %962 = vmatprep.mubr.bf16.mxu0 0
      %963 = vmatmul.mubr.bf16.gmra.mrb[0].mxu0 %v814
      %v964 = vpop.f32.mrb[0].mxu0
      %v965 = vadd.f32 0.0, %v964
      %v966 = vpop.f32.mrb[0].mxu0
      %v967 = vpop.f32.mrb[0].mxu0
      %v968 = vadd.f32 0.0, %v967
      %v969 = vpop.f32.mrb[0].mxu0
      %970 = vmatprep.mubr.bf16.mxu0 0
      %971 = vmatmul.mubr.bf16.gmra.mrb[0].mxu0 %v815
      %v972 = vpop.f32.mrb[0].mxu0
      %v973 = vadd.f32 0.0, %v972
      %v974 = vpop.f32.mrb[0].mxu0
      %v975 = vpop.f32.mrb[0].mxu0
      %v976 = vadd.f32 0.0, %v975
      %v977 = vpop.f32.mrb[0].mxu0
      %978 = vmatprep.mubr.bf16.mxu0 0
      %979 = vmatmul.mubr.bf16.gmra.mrb[0].mxu0 %v816
      %v980 = vpop.f32.mrb[0].mxu0
      %v981 = vadd.f32 0.0, %v980
      %v982 = vpop.f32.mrb[0].mxu0
      %v983 = vpop.f32.mrb[0].mxu0
      %v984 = vadd.f32 0.0, %v983
      %v985 = vpop.f32.mrb[0].mxu0
      %986 = vmatprep.mubr.bf16.mxu0 0
      %987 = vmatmul.mubr.bf16.gmra.mrb[0].mxu0 %v817
      %v988 = vpop.f32.mrb[0].mxu0
      %v989 = vadd.f32 0.0, %v988
      %v990 = vpop.f32.mrb[0].mxu0
      %v991 = vpop.f32.mrb[0].mxu0
      %v992 = vadd.f32 0.0, %v991
      %v993 = vpop.f32.mrb[0].mxu0
      %994 = vmatprep.mubr.bf16.mxu0 0
      %995 = vmatmul.mubr.bf16.gmra.mrb[0].mxu0 %v818
      %v996 = vpop.f32.mrb[0].mxu0
      %v997 = vadd.f32 0.0, %v996
      %v998 = vpop.f32.mrb[0].mxu0
      %v999 = vpop.f32.mrb[0].mxu0
      %v1000 = vadd.f32 0.0, %v999
      %v1001 = vpop.f32.mrb[0].mxu0
      %1002 = vmatprep.mubr.bf16.mxu0 0
      %1003 = vmatmul.mubr.bf16.gmra.mrb[0].mxu0 %v819
      %v1004 = vpop.f32.mrb[0].mxu0
      %v1005 = vadd.f32 0.0, %v1004
      %v1006 = vpop.f32.mrb[0].mxu0
      %v1007 = vpop.f32.mrb[0].mxu0
      %v1008 = vadd.f32 0.0, %v1007
      %v1009 = vpop.f32.mrb[0].mxu0
      %1010 = vmatprep.mubr.bf16.mxu0 0
      %1011 = vmatmul.mubr.bf16.gmra.mrb[0].mxu0 %v820
      %v1012 = vpop.f32.mrb[0].mxu0
      %v1013 = vadd.f32 0.0, %v1012
      %v1014 = vpop.f32.mrb[0].mxu0
      %v1015 = vpop.f32.mrb[0].mxu0
      %v1016 = vadd.f32 0.0, %v1015
      %v1017 = vpop.f32.mrb[0].mxu0
      %1018 = vmatprep.mubr.bf16.mxu0 0
      %1019 = vmatmul.mubr.bf16.gmra.mrb[0].mxu0 %v821
      %v1020 = vpop.f32.mrb[0].mxu0
      %v1021 = vadd.f32 0.0, %v1020
      %v1022 = vpop.f32.mrb[0].mxu0
      %v1023 = vpop.f32.mrb[0].mxu0
      %v1024 = vadd.f32 0.0, %v1023
      %v1025 = vpop.f32.mrb[0].mxu0
      %1026 = vmatprep.mubr.bf16.mxu0 0
      %1027 = vmatmul.mubr.bf16.gmra.mrb[0].mxu0 %v822
      %v1028 = vpop.f32.mrb[0].mxu0
      %v1029 = vadd.f32 0.0, %v1028
      %v1030 = vpop.f32.mrb[0].mxu0
      %v1031 = vpop.f32.mrb[0].mxu0
      %v1032 = vadd.f32 0.0, %v1031
      %v1033 = vpop.f32.mrb[0].mxu0
      %1034 = vmatprep.mubr.bf16.mxu0 0
      %1035 = vmatmul.mubr.bf16.gmra.mrb[0].mxu0 %v823
      %v1036 = vpop.f32.mrb[0].mxu0
      %v1037 = vadd.f32 0.0, %v1036
      %v1038 = vpop.f32.mrb[0].mxu0
      %v1039 = vpop.f32.mrb[0].mxu0
      %v1040 = vadd.f32 0.0, %v1039
      %v1041 = vpop.f32.mrb[0].mxu0
      %1042 = vmatprep.mubr.bf16.mxu0 0
      %1043 = vmatmul.mubr.bf16.gmra.mrb[0].mxu0 %v824
      %v1044 = vpop.f32.mrb[0].mxu0
      %v1045 = vadd.f32 0.0, %v1044
      %v1046 = vpop.f32.mrb[0].mxu0
      %v1047 = vpop.f32.mrb[0].mxu0
      %v1048 = vadd.f32 0.0, %v1047
      %v1049 = vpop.f32.mrb[0].mxu0
      %1050 = vdwg.mxu0
      %v1051 = vadd.f32 %v651, %v925
      %v1052 = vadd.f32 %v654, %v928
      %v1053 = vadd.f32 %v659, %v933
      %v1054 = vadd.f32 %v662, %v936
      %v1055 = vadd.f32 %v667, %v941
      %v1056 = vadd.f32 %v670, %v944
      %v1057 = vadd.f32 %v675, %v949
      %v1058 = vadd.f32 %v678, %v952
      %v1059 = vadd.f32 %v683, %v957
      %v1060 = vadd.f32 %v686, %v960
      %v1061 = vadd.f32 %v691, %v965
      %v1062 = vadd.f32 %v694, %v968
      %v1063 = vadd.f32 %v699, %v973
      %v1064 = vadd.f32 %v702, %v976
      %v1065 = vadd.f32 %v707, %v981
      %v1066 = vadd.f32 %v710, %v984
      %v1067 = vadd.f32 %v715, %v989
      %v1068 = vadd.f32 %v718, %v992
      %v1069 = vadd.f32 %v723, %v997
      %v1070 = vadd.f32 %v726, %v1000
      %v1071 = vadd.f32 %v731, %v1005
      %v1072 = vadd.f32 %v734, %v1008
      %v1073 = vadd.f32 %v739, %v1013
      %v1074 = vadd.f32 %v742, %v1016
      %v1075 = vadd.f32 %v747, %v1021
      %v1076 = vadd.f32 %v750, %v1024
      %v1077 = vadd.f32 %v755, %v1029
      %v1078 = vadd.f32 %v758, %v1032
      %v1079 = vadd.f32 %v763, %v1037
      %v1080 = vadd.f32 %v766, %v1040
      %v1081 = vadd.f32 %v771, %v1045
      %v1082 = vadd.f32 %v774, %v1048
      %s1083 = scalar_lea.vmem %s210, 16
      %v1084 = vld [vmem:[%s1083] sm:$0xff]
      %v1085 = vld [vmem:[%s1083 + $0x10] sm:$0xff]
      %v1086 = vld [vmem:[%s1083 + $0x20] sm:$0xff]
      %v1087 = vld [vmem:[%s1083 + $0x30] sm:$0xff]
      %v1088 = vld [vmem:[%s1083 + $0x40] sm:$0xff]
      %v1089 = vld [vmem:[%s1083 + $0x50] sm:$0xff]
      %v1090 = vld [vmem:[%s1083 + $0x60] sm:$0xff]
      %v1091 = vld [vmem:[%s1083 + $0x70] sm:$0xff]
      %v1092 = vld [vmem:[%s1083 + $0xa0] sm:$0xff]
      %v1093 = vld [vmem:[%s1083 + $0xb0] sm:$0xff]
      %v1094 = vld [vmem:[%s1083 + $0xc0] sm:$0xff]
      %v1095 = vld [vmem:[%s1083 + $0xd0] sm:$0xff]
      %v1096 = vld [vmem:[%s1083 + $0xe0] sm:$0xff]
      %v1097 = vld [vmem:[%s1083 + $0xf0] sm:$0xff]
      %v1098 = vld [vmem:[%s1083 + $0x100] sm:$0xff]
      %v1099 = vld [vmem:[%s1083 + $0x110] sm:$0xff]
      %v1100 = vld [vmem:[%s1083 + $0x140] sm:$0xff]
      %v1101 = vld [vmem:[%s1083 + $0x150] sm:$0xff]
      %v1102 = vld [vmem:[%s1083 + $0x160] sm:$0xff]
      %v1103 = vld [vmem:[%s1083 + $0x170] sm:$0xff]
      %v1104 = vld [vmem:[%s1083 + $0x180] sm:$0xff]
      %v1105 = vld [vmem:[%s1083 + $0x190] sm:$0xff]
      %v1106 = vld [vmem:[%s1083 + $0x1a0] sm:$0xff]
      %v1107 = vld [vmem:[%s1083 + $0x1b0] sm:$0xff]
      %v1108 = vld [vmem:[%s1083 + $0x1e0] sm:$0xff]
      %v1109 = vld [vmem:[%s1083 + $0x1f0] sm:$0xff]
      %v1110 = vld [vmem:[%s1083 + $0x200] sm:$0xff]
      %v1111 = vld [vmem:[%s1083 + $0x210] sm:$0xff]
      %v1112 = vld [vmem:[%s1083 + $0x220] sm:$0xff]
      %v1113 = vld [vmem:[%s1083 + $0x230] sm:$0xff]
      %v1114 = vld [vmem:[%s1083 + $0x240] sm:$0xff]
      %v1115 = vld [vmem:[%s1083 + $0x250] sm:$0xff]
      %v1116 = vpack.c.bf16 %v1085, %v1084
      %v1117 = vpack.c.bf16 %v1087, %v1086
      %v1118 = vpack.c.bf16 %v1089, %v1088
      %v1119 = vpack.c.bf16 %v1091, %v1090
      %v1120 = vpack.c.bf16 %v1093, %v1092
      %v1121 = vpack.c.bf16 %v1095, %v1094
      %v1122 = vpack.c.bf16 %v1097, %v1096
      %v1123 = vpack.c.bf16 %v1099, %v1098
      %v1124 = vpack.c.bf16 %v1101, %v1100
      %v1125 = vpack.c.bf16 %v1103, %v1102
      %v1126 = vpack.c.bf16 %v1105, %v1104
      %v1127 = vpack.c.bf16 %v1107, %v1106
      %v1128 = vpack.c.bf16 %v1109, %v1108
      %v1129 = vpack.c.bf16 %v1111, %v1110
      %v1130 = vpack.c.bf16 %v1113, %v1112
      %v1131 = vpack.c.bf16 %v1115, %v1114
      %s1132 = scalar_lea.vmem %s1, 192
      %v1133 = vld [vmem:[%s1132] sm:$0xf]
      %v1134 = vld [vmem:[%s1132 + $0x4] sm:$0xf]
      %v1135 = vld [vmem:[%s1132 + $0x8] sm:$0xf]
      %v1136 = vld [vmem:[%s1132 + $0xc] sm:$0xf]
      %v1137 = vld [vmem:[%s1132 + $0x10] sm:$0xf]
      %v1138 = vld [vmem:[%s1132 + $0x14] sm:$0xf]
      %v1139 = vld [vmem:[%s1132 + $0x18] sm:$0xf]
      %v1140 = vld [vmem:[%s1132 + $0x1c] sm:$0xf]
      %v1141 = vld [vmem:[%s1132 + $0x20] sm:$0xf]
      %v1142 = vld [vmem:[%s1132 + $0x24] sm:$0xf]
      %v1143 = vld [vmem:[%s1132 + $0x28] sm:$0xf]
      %v1144 = vld [vmem:[%s1132 + $0x2c] sm:$0xf]
      %v1145 = vld [vmem:[%s1132 + $0x30] sm:$0xf]
      %v1146 = vld [vmem:[%s1132 + $0x34] sm:$0xf]
      %v1147 = vld [vmem:[%s1132 + $0x38] sm:$0xf]
      %v1148 = vld [vmem:[%s1132 + $0x3c] sm:$0xf]
      %v1165 = vunpack.c.l.b16 %v1133
      %v1166 = vunpack.c.l.b16 %v1134
      %v1167 = vunpack.c.l.b16 %v1135
      %v1168 = vunpack.c.l.b16 %v1136
      %v1169 = vunpack.c.l.b16 %v1137
      %v1170 = vunpack.c.l.b16 %v1138
      %v1171 = vunpack.c.l.b16 %v1139
      %v1172 = vunpack.c.l.b16 %v1140
      %v1173 = vunpack.c.l.b16 %v1141
      %v1174 = vunpack.c.l.b16 %v1142
      %v1175 = vunpack.c.l.b16 %v1143
      %v1176 = vunpack.c.l.b16 %v1144
      %v1177 = vunpack.c.l.b16 %v1145
      %v1178 = vunpack.c.l.b16 %v1146
      %v1179 = vunpack.c.l.b16 %v1147
      %v1180 = vunpack.c.l.b16 %v1148
      %v1181 = vpack.c.b16 %v1166, %v1165
      %v1182 = vpack.c.b16 %v1168, %v1167
      %v1183 = vpack.c.b16 %v1170, %v1169
      %v1184 = vpack.c.b16 %v1172, %v1171
      %v1185 = vpack.c.b16 %v1174, %v1173
      %v1186 = vpack.c.b16 %v1176, %v1175
      %v1187 = vpack.c.b16 %v1178, %v1177
      %v1188 = vpack.c.b16 %v1180, %v1179
      %1197 = vmatprep.subr.bf16.mxu0 0
      %1198 = vmatpush1.bf16.msra.mxu0 %v1181
      %1199 = vmatprep.subr.bf16.mxu0 0
      %1200 = vmatpush1.bf16.msra.mxu0 %v1182
      %1201 = vmatprep.subr.bf16.mxu0 0
      %1202 = vmatpush1.bf16.msra.mxu0 %v1183
      %1203 = vmatprep.subr.bf16.mxu0 0
      %1204 = vmatpush1.bf16.msra.mxu0 %v1184
      %1205 = vmatprep.subr.bf16.mxu0 0
      %1206 = vmatpush1.bf16.msra.mxu0 %v1185
      %1207 = vmatprep.subr.bf16.mxu0 0
      %1208 = vmatpush1.bf16.msra.mxu0 %v1186
      %1209 = vmatprep.subr.bf16.mxu0 0
      %1210 = vmatpush1.bf16.msra.mxu0 %v1187
      %1211 = vmatprep.subr.bf16.mxu0 0
      %1212 = vmatpush1.bf16.msra.mxu0 %v1188
      %1213 = vmatprep.subr.bf16.mxu0 0
      %1214 = vmatpush1.bf16.msra.mxu0 0
      %1215 = vmatprep.subr.bf16.mxu0 0
      %1216 = vmatpush1.bf16.msra.mxu0 0
      %1217 = vmatprep.subr.bf16.mxu0 0
      %1218 = vmatpush1.bf16.msra.mxu0 0
      %1219 = vmatprep.subr.bf16.mxu0 0
      %1220 = vmatpush1.bf16.msra.mxu0 0
      %1221 = vmatprep.subr.bf16.mxu0 0
      %1222 = vmatpush1.bf16.msra.mxu0 0
      %1223 = vmatprep.subr.bf16.mxu0 0
      %1224 = vmatpush1.bf16.msra.mxu0 0
      %1225 = vmatprep.subr.bf16.mxu0 0
      %1226 = vmatpush1.bf16.msra.mxu0 0
      %1227 = vmatprep.subr.bf16.mxu0 0
      %1228 = vmatpush1.bf16.msra.mxu0 0
      %1229 = vmatprep.mubr.bf16.mxu0 0
      %1230 = vmatmul.mubr.bf16.gmra.mrb[0].mxu0 %v1116
      %v1231 = vpop.f32.mrb[0].mxu0
      %v1232 = vadd.f32 0.0, %v1231
      %v1233 = vpop.f32.mrb[0].mxu0
      %v1234 = vpop.f32.mrb[0].mxu0
      %v1235 = vadd.f32 0.0, %v1234
      %v1236 = vpop.f32.mrb[0].mxu0
      %1237 = vmatprep.mubr.bf16.mxu0 0
      %1238 = vmatmul.mubr.bf16.gmra.mrb[0].mxu0 %v1117
      %v1239 = vpop.f32.mrb[0].mxu0
      %v1240 = vadd.f32 0.0, %v1239
      %v1241 = vpop.f32.mrb[0].mxu0
      %v1242 = vpop.f32.mrb[0].mxu0
      %v1243 = vadd.f32 0.0, %v1242
      %v1244 = vpop.f32.mrb[0].mxu0
      %1245 = vmatprep.mubr.bf16.mxu0 0
      %1246 = vmatmul.mubr.bf16.gmra.mrb[0].mxu0 %v1118
      %v1247 = vpop.f32.mrb[0].mxu0
      %v1248 = vadd.f32 0.0, %v1247
      %v1249 = vpop.f32.mrb[0].mxu0
      %v1250 = vpop.f32.mrb[0].mxu0
      %v1251 = vadd.f32 0.0, %v1250
      %v1252 = vpop.f32.mrb[0].mxu0
      %1253 = vmatprep.mubr.bf16.mxu0 0
      %1254 = vmatmul.mubr.bf16.gmra.mrb[0].mxu0 %v1119
      %v1255 = vpop.f32.mrb[0].mxu0
      %v1256 = vadd.f32 0.0, %v1255
      %v1257 = vpop.f32.mrb[0].mxu0
      %v1258 = vpop.f32.mrb[0].mxu0
      %v1259 = vadd.f32 0.0, %v1258
      %v1260 = vpop.f32.mrb[0].mxu0
      %1261 = vmatprep.mubr.bf16.mxu0 0
      %1262 = vmatmul.mubr.bf16.gmra.mrb[0].mxu0 %v1120
      %v1263 = vpop.f32.mrb[0].mxu0
      %v1264 = vadd.f32 0.0, %v1263
      %v1265 = vpop.f32.mrb[0].mxu0
      %v1266 = vpop.f32.mrb[0].mxu0
      %v1267 = vadd.f32 0.0, %v1266
      %v1268 = vpop.f32.mrb[0].mxu0
      %1269 = vmatprep.mubr.bf16.mxu0 0
      %1270 = vmatmul.mubr.bf16.gmra.mrb[0].mxu0 %v1121
      %v1271 = vpop.f32.mrb[0].mxu0
      %v1272 = vadd.f32 0.0, %v1271
      %v1273 = vpop.f32.mrb[0].mxu0
      %v1274 = vpop.f32.mrb[0].mxu0
      %v1275 = vadd.f32 0.0, %v1274
      %v1276 = vpop.f32.mrb[0].mxu0
      %1277 = vmatprep.mubr.bf16.mxu0 0
      %1278 = vmatmul.mubr.bf16.gmra.mrb[0].mxu0 %v1122
      %v1279 = vpop.f32.mrb[0].mxu0
      %v1280 = vadd.f32 0.0, %v1279
      %v1281 = vpop.f32.mrb[0].mxu0
      %v1282 = vpop.f32.mrb[0].mxu0
      %v1283 = vadd.f32 0.0, %v1282
      %v1284 = vpop.f32.mrb[0].mxu0
      %1285 = vmatprep.mubr.bf16.mxu0 0
      %1286 = vmatmul.mubr.bf16.gmra.mrb[0].mxu0 %v1123
      %v1287 = vpop.f32.mrb[0].mxu0
      %v1288 = vadd.f32 0.0, %v1287
      %v1289 = vpop.f32.mrb[0].mxu0
      %v1290 = vpop.f32.mrb[0].mxu0
      %v1291 = vadd.f32 0.0, %v1290
      %v1292 = vpop.f32.mrb[0].mxu0
      %1293 = vmatprep.mubr.bf16.mxu0 0
      %1294 = vmatmul.mubr.bf16.gmra.mrb[0].mxu0 %v1124
      %v1295 = vpop.f32.mrb[0].mxu0
      %v1296 = vadd.f32 0.0, %v1295
      %v1297 = vpop.f32.mrb[0].mxu0
      %v1298 = vpop.f32.mrb[0].mxu0
      %v1299 = vadd.f32 0.0, %v1298
      %v1300 = vpop.f32.mrb[0].mxu0
      %1301 = vmatprep.mubr.bf16.mxu0 0
      %1302 = vmatmul.mubr.bf16.gmra.mrb[0].mxu0 %v1125
      %v1303 = vpop.f32.mrb[0].mxu0
      %v1304 = vadd.f32 0.0, %v1303
      %v1305 = vpop.f32.mrb[0].mxu0
      %v1306 = vpop.f32.mrb[0].mxu0
      %v1307 = vadd.f32 0.0, %v1306
      %v1308 = vpop.f32.mrb[0].mxu0
      %1309 = vmatprep.mubr.bf16.mxu0 0
      %1310 = vmatmul.mubr.bf16.gmra.mrb[0].mxu0 %v1126
      %v1311 = vpop.f32.mrb[0].mxu0
      %v1312 = vadd.f32 0.0, %v1311
      %v1313 = vpop.f32.mrb[0].mxu0
      %v1314 = vpop.f32.mrb[0].mxu0
      %v1315 = vadd.f32 0.0, %v1314
      %v1316 = vpop.f32.mrb[0].mxu0
      %1317 = vmatprep.mubr.bf16.mxu0 0
      %1318 = vmatmul.mubr.bf16.gmra.mrb[0].mxu0 %v1127
      %v1319 = vpop.f32.mrb[0].mxu0
      %v1320 = vadd.f32 0.0, %v1319
      %v1321 = vpop.f32.mrb[0].mxu0
      %v1322 = vpop.f32.mrb[0].mxu0
      %v1323 = vadd.f32 0.0, %v1322
      %v1324 = vpop.f32.mrb[0].mxu0
      %1325 = vmatprep.mubr.bf16.mxu0 0
      %1326 = vmatmul.mubr.bf16.gmra.mrb[0].mxu0 %v1128
      %v1327 = vpop.f32.mrb[0].mxu0
      %v1328 = vadd.f32 0.0, %v1327
      %v1329 = vpop.f32.mrb[0].mxu0
      %v1330 = vpop.f32.mrb[0].mxu0
      %v1331 = vadd.f32 0.0, %v1330
      %v1332 = vpop.f32.mrb[0].mxu0
      %1333 = vmatprep.mubr.bf16.mxu0 0
      %1334 = vmatmul.mubr.bf16.gmra.mrb[0].mxu0 %v1129
      %v1335 = vpop.f32.mrb[0].mxu0
      %v1336 = vadd.f32 0.0, %v1335
      %v1337 = vpop.f32.mrb[0].mxu0
      %v1338 = vpop.f32.mrb[0].mxu0
      %v1339 = vadd.f32 0.0, %v1338
      %v1340 = vpop.f32.mrb[0].mxu0
      %1341 = vmatprep.mubr.bf16.mxu0 0
      %1342 = vmatmul.mubr.bf16.gmra.mrb[0].mxu0 %v1130
      %v1343 = vpop.f32.mrb[0].mxu0
      %v1344 = vadd.f32 0.0, %v1343
      %v1345 = vpop.f32.mrb[0].mxu0
      %v1346 = vpop.f32.mrb[0].mxu0
      %v1347 = vadd.f32 0.0, %v1346
      %v1348 = vpop.f32.mrb[0].mxu0
      %1349 = vmatprep.mubr.bf16.mxu0 0
      %1350 = vmatmul.mubr.bf16.gmra.mrb[0].mxu0 %v1131
      %v1351 = vpop.f32.mrb[0].mxu0
      %v1352 = vadd.f32 0.0, %v1351
      %v1353 = vpop.f32.mrb[0].mxu0
      %v1354 = vpop.f32.mrb[0].mxu0
      %v1355 = vadd.f32 0.0, %v1354
      %v1356 = vpop.f32.mrb[0].mxu0
      %1357 = vdwg.mxu0
      %v1358 = vadd.f32 %v1051, %v1232
      %v1359 = vadd.f32 %v1052, %v1235
      %v1360 = vadd.f32 %v1053, %v1240
      %v1361 = vadd.f32 %v1054, %v1243
      %v1362 = vadd.f32 %v1055, %v1248
      %v1363 = vadd.f32 %v1056, %v1251
      %v1364 = vadd.f32 %v1057, %v1256
      %v1365 = vadd.f32 %v1058, %v1259
      %v1366 = vadd.f32 %v1059, %v1264
      %v1367 = vadd.f32 %v1060, %v1267
      %v1368 = vadd.f32 %v1061, %v1272
      %v1369 = vadd.f32 %v1062, %v1275
      %v1370 = vadd.f32 %v1063, %v1280
      %v1371 = vadd.f32 %v1064, %v1283
      %v1372 = vadd.f32 %v1065, %v1288
      %v1373 = vadd.f32 %v1066, %v1291
      %v1374 = vadd.f32 %v1067, %v1296
      %v1375 = vadd.f32 %v1068, %v1299
      %v1376 = vadd.f32 %v1069, %v1304
      %v1377 = vadd.f32 %v1070, %v1307
      %v1378 = vadd.f32 %v1071, %v1312
      %v1379 = vadd.f32 %v1072, %v1315
      %v1380 = vadd.f32 %v1073, %v1320
      %v1381 = vadd.f32 %v1074, %v1323
      %v1382 = vadd.f32 %v1075, %v1328
      %v1383 = vadd.f32 %v1076, %v1331
      %v1384 = vadd.f32 %v1077, %v1336
      %v1385 = vadd.f32 %v1078, %v1339
      %v1386 = vadd.f32 %v1079, %v1344
      %v1387 = vadd.f32 %v1080, %v1347
      %v1388 = vadd.f32 %v1081, %v1352
      %v1389 = vadd.f32 %v1082, %v1355
      %v1390 = vld [vmem:[%s1083 + $0x1] sm:$0xff]
      %v1391 = vld [vmem:[%s1083 + $0x11] sm:$0xff]
      %v1392 = vld [vmem:[%s1083 + $0x21] sm:$0xff]
      %v1393 = vld [vmem:[%s1083 + $0x31] sm:$0xff]
      %v1394 = vld [vmem:[%s1083 + $0x41] sm:$0xff]
      %v1395 = vld [vmem:[%s1083 + $0x51] sm:$0xff]
      %v1396 = vld [vmem:[%s1083 + $0x61] sm:$0xff]
      %v1397 = vld [vmem:[%s1083 + $0x71] sm:$0xff]
      %v1398 = vld [vmem:[%s1083 + $0xa1] sm:$0xff]
      %v1399 = vld [vmem:[%s1083 + $0xb1] sm:$0xff]
      %v1400 = vld [vmem:[%s1083 + $0xc1] sm:$0xff]
      %v1401 = vld [vmem:[%s1083 + $0xd1] sm:$0xff]
      %v1402 = vld [vmem:[%s1083 + $0xe1] sm:$0xff]
      %v1403 = vld [vmem:[%s1083 + $0xf1] sm:$0xff]
      %v1404 = vld [vmem:[%s1083 + $0x101] sm:$0xff]
      %v1405 = vld [vmem:[%s1083 + $0x111] sm:$0xff]
      %v1406 = vld [vmem:[%s1083 + $0x141] sm:$0xff]
      %v1407 = vld [vmem:[%s1083 + $0x151] sm:$0xff]
      %v1408 = vld [vmem:[%s1083 + $0x161] sm:$0xff]
      %v1409 = vld [vmem:[%s1083 + $0x171] sm:$0xff]
      %v1410 = vld [vmem:[%s1083 + $0x181] sm:$0xff]
      %v1411 = vld [vmem:[%s1083 + $0x191] sm:$0xff]
      %v1412 = vld [vmem:[%s1083 + $0x1a1] sm:$0xff]
      %v1413 = vld [vmem:[%s1083 + $0x1b1] sm:$0xff]
      %v1414 = vld [vmem:[%s1083 + $0x1e1] sm:$0xff]
      %v1415 = vld [vmem:[%s1083 + $0x1f1] sm:$0xff]
      %v1416 = vld [vmem:[%s1083 + $0x201] sm:$0xff]
      %v1417 = vld [vmem:[%s1083 + $0x211] sm:$0xff]
      %v1418 = vld [vmem:[%s1083 + $0x221] sm:$0xff]
      %v1419 = vld [vmem:[%s1083 + $0x231] sm:$0xff]
      %v1420 = vld [vmem:[%s1083 + $0x241] sm:$0xff]
      %v1421 = vld [vmem:[%s1083 + $0x251] sm:$0xff]
      %v1422 = vpack.c.bf16 %v1391, %v1390
      %v1423 = vpack.c.bf16 %v1393, %v1392
      %v1424 = vpack.c.bf16 %v1395, %v1394
      %v1425 = vpack.c.bf16 %v1397, %v1396
      %v1426 = vpack.c.bf16 %v1399, %v1398
      %v1427 = vpack.c.bf16 %v1401, %v1400
      %v1428 = vpack.c.bf16 %v1403, %v1402
      %v1429 = vpack.c.bf16 %v1405, %v1404
      %v1430 = vpack.c.bf16 %v1407, %v1406
      %v1431 = vpack.c.bf16 %v1409, %v1408
      %v1432 = vpack.c.bf16 %v1411, %v1410
      %v1433 = vpack.c.bf16 %v1413, %v1412
      %v1434 = vpack.c.bf16 %v1415, %v1414
      %v1435 = vpack.c.bf16 %v1417, %v1416
      %v1436 = vpack.c.bf16 %v1419, %v1418
      %v1437 = vpack.c.bf16 %v1421, %v1420
      %s1438 = scalar_lea.vmem %s1, 256
      %v1439 = vld [vmem:[%s1438] sm:$0xf]
      %v1440 = vld [vmem:[%s1438 + $0x4] sm:$0xf]
      %v1441 = vld [vmem:[%s1438 + $0x8] sm:$0xf]
      %v1442 = vld [vmem:[%s1438 + $0xc] sm:$0xf]
      %v1443 = vld [vmem:[%s1438 + $0x10] sm:$0xf]
      %v1444 = vld [vmem:[%s1438 + $0x14] sm:$0xf]
      %v1445 = vld [vmem:[%s1438 + $0x18] sm:$0xf]
      %v1446 = vld [vmem:[%s1438 + $0x1c] sm:$0xf]
      %v1447 = vld [vmem:[%s1438 + $0x20] sm:$0xf]
      %v1448 = vld [vmem:[%s1438 + $0x24] sm:$0xf]
      %v1449 = vld [vmem:[%s1438 + $0x28] sm:$0xf]
      %v1450 = vld [vmem:[%s1438 + $0x2c] sm:$0xf]
      %v1451 = vld [vmem:[%s1438 + $0x30] sm:$0xf]
      %v1452 = vld [vmem:[%s1438 + $0x34] sm:$0xf]
      %v1453 = vld [vmem:[%s1438 + $0x38] sm:$0xf]
      %v1454 = vld [vmem:[%s1438 + $0x3c] sm:$0xf]
      %v1471 = vunpack.c.l.b16 %v1439
      %v1472 = vunpack.c.l.b16 %v1440
      %v1473 = vunpack.c.l.b16 %v1441
      %v1474 = vunpack.c.l.b16 %v1442
      %v1475 = vunpack.c.l.b16 %v1443
      %v1476 = vunpack.c.l.b16 %v1444
      %v1477 = vunpack.c.l.b16 %v1445
      %v1478 = vunpack.c.l.b16 %v1446
      %v1479 = vunpack.c.l.b16 %v1447
      %v1480 = vunpack.c.l.b16 %v1448
      %v1481 = vunpack.c.l.b16 %v1449
      %v1482 = vunpack.c.l.b16 %v1450
      %v1483 = vunpack.c.l.b16 %v1451
      %v1484 = vunpack.c.l.b16 %v1452
      %v1485 = vunpack.c.l.b16 %v1453
      %v1486 = vunpack.c.l.b16 %v1454
      %v1487 = vpack.c.b16 %v1472, %v1471
      %v1488 = vpack.c.b16 %v1474, %v1473
      %v1489 = vpack.c.b16 %v1476, %v1475
      %v1490 = vpack.c.b16 %v1478, %v1477
      %v1491 = vpack.c.b16 %v1480, %v1479
      %v1492 = vpack.c.b16 %v1482, %v1481
      %v1493 = vpack.c.b16 %v1484, %v1483
      %v1494 = vpack.c.b16 %v1486, %v1485
      %1503 = vmatprep.subr.bf16.mxu0 0
      %1504 = vmatpush1.bf16.msra.mxu0 %v1487
      %1505 = vmatprep.subr.bf16.mxu0 0
      %1506 = vmatpush1.bf16.msra.mxu0 %v1488
      %1507 = vmatprep.subr.bf16.mxu0 0
      %1508 = vmatpush1.bf16.msra.mxu0 %v1489
      %1509 = vmatprep.subr.bf16.mxu0 0
      %1510 = vmatpush1.bf16.msra.mxu0 %v1490
      %1511 = vmatprep.subr.bf16.mxu0 0
      %1512 = vmatpush1.bf16.msra.mxu0 %v1491
      %1513 = vmatprep.subr.bf16.mxu0 0
      %1514 = vmatpush1.bf16.msra.mxu0 %v1492
      %1515 = vmatprep.subr.bf16.mxu0 0
      %1516 = vmatpush1.bf16.msra.mxu0 %v1493
      %1517 = vmatprep.subr.bf16.mxu0 0
      %1518 = vmatpush1.bf16.msra.mxu0 %v1494
      %1519 = vmatprep.subr.bf16.mxu0 0
      %1520 = vmatpush1.bf16.msra.mxu0 0
      %1521 = vmatprep.subr.bf16.mxu0 0
      %1522 = vmatpush1.bf16.msra.mxu0 0
      %1523 = vmatprep.subr.bf16.mxu0 0
      %1524 = vmatpush1.bf16.msra.mxu0 0
      %1525 = vmatprep.subr.bf16.mxu0 0
      %1526 = vmatpush1.bf16.msra.mxu0 0
      %1527 = vmatprep.subr.bf16.mxu0 0
      %1528 = vmatpush1.bf16.msra.mxu0 0
      %1529 = vmatprep.subr.bf16.mxu0 0
      %1530 = vmatpush1.bf16.msra.mxu0 0
      %1531 = vmatprep.subr.bf16.mxu0 0
      %1532 = vmatpush1.bf16.msra.mxu0 0
      %1533 = vmatprep.subr.bf16.mxu0 0
      %1534 = vmatpush1.bf16.msra.mxu0 0
      %1535 = vmatprep.mubr.bf16.mxu0 0
      %1536 = vmatmul.mubr.bf16.gmra.mrb[0].mxu0 %v1422
      %v1537 = vpop.f32.mrb[0].mxu0
      %v1538 = vadd.f32 0.0, %v1537
      %v1539 = vpop.f32.mrb[0].mxu0
      %v1540 = vpop.f32.mrb[0].mxu0
      %v1541 = vadd.f32 0.0, %v1540
      %v1542 = vpop.f32.mrb[0].mxu0
      %1543 = vmatprep.mubr.bf16.mxu0 0
      %1544 = vmatmul.mubr.bf16.gmra.mrb[0].mxu0 %v1423
      %v1545 = vpop.f32.mrb[0].mxu0
      %v1546 = vadd.f32 0.0, %v1545
      %v1547 = vpop.f32.mrb[0].mxu0
      %v1548 = vpop.f32.mrb[0].mxu0
      %v1549 = vadd.f32 0.0, %v1548
      %v1550 = vpop.f32.mrb[0].mxu0
      %1551 = vmatprep.mubr.bf16.mxu0 0
      %1552 = vmatmul.mubr.bf16.gmra.mrb[0].mxu0 %v1424
      %v1553 = vpop.f32.mrb[0].mxu0
      %v1554 = vadd.f32 0.0, %v1553
      %v1555 = vpop.f32.mrb[0].mxu0
      %v1556 = vpop.f32.mrb[0].mxu0
      %v1557 = vadd.f32 0.0, %v1556
      %v1558 = vpop.f32.mrb[0].mxu0
      %1559 = vmatprep.mubr.bf16.mxu0 0
      %1560 = vmatmul.mubr.bf16.gmra.mrb[0].mxu0 %v1425
      %v1561 = vpop.f32.mrb[0].mxu0
      %v1562 = vadd.f32 0.0, %v1561
      %v1563 = vpop.f32.mrb[0].mxu0
      %v1564 = vpop.f32.mrb[0].mxu0
      %v1565 = vadd.f32 0.0, %v1564
      %v1566 = vpop.f32.mrb[0].mxu0
      %1567 = vmatprep.mubr.bf16.mxu0 0
      %1568 = vmatmul.mubr.bf16.gmra.mrb[0].mxu0 %v1426
      %v1569 = vpop.f32.mrb[0].mxu0
      %v1570 = vadd.f32 0.0, %v1569
      %v1571 = vpop.f32.mrb[0].mxu0
      %v1572 = vpop.f32.mrb[0].mxu0
      %v1573 = vadd.f32 0.0, %v1572
      %v1574 = vpop.f32.mrb[0].mxu0
      %1575 = vmatprep.mubr.bf16.mxu0 0
      %1576 = vmatmul.mubr.bf16.gmra.mrb[0].mxu0 %v1427
      %v1577 = vpop.f32.mrb[0].mxu0
      %v1578 = vadd.f32 0.0, %v1577
      %v1579 = vpop.f32.mrb[0].mxu0
      %v1580 = vpop.f32.mrb[0].mxu0
      %v1581 = vadd.f32 0.0, %v1580
      %v1582 = vpop.f32.mrb[0].mxu0
      %1583 = vmatprep.mubr.bf16.mxu0 0
      %1584 = vmatmul.mubr.bf16.gmra.mrb[0].mxu0 %v1428
      %v1585 = vpop.f32.mrb[0].mxu0
      %v1586 = vadd.f32 0.0, %v1585
      %v1587 = vpop.f32.mrb[0].mxu0
      %v1588 = vpop.f32.mrb[0].mxu0
      %v1589 = vadd.f32 0.0, %v1588
      %v1590 = vpop.f32.mrb[0].mxu0
      %1591 = vmatprep.mubr.bf16.mxu0 0
      %1592 = vmatmul.mubr.bf16.gmra.mrb[0].mxu0 %v1429
      %v1593 = vpop.f32.mrb[0].mxu0
      %v1594 = vadd.f32 0.0, %v1593
      %v1595 = vpop.f32.mrb[0].mxu0
      %v1596 = vpop.f32.mrb[0].mxu0
      %v1597 = vadd.f32 0.0, %v1596
      %v1598 = vpop.f32.mrb[0].mxu0
      %1599 = vmatprep.mubr.bf16.mxu0 0
      %1600 = vmatmul.mubr.bf16.gmra.mrb[0].mxu0 %v1430
      %v1601 = vpop.f32.mrb[0].mxu0
      %v1602 = vadd.f32 0.0, %v1601
      %v1603 = vpop.f32.mrb[0].mxu0
      %v1604 = vpop.f32.mrb[0].mxu0
      %v1605 = vadd.f32 0.0, %v1604
      %v1606 = vpop.f32.mrb[0].mxu0
      %1607 = vmatprep.mubr.bf16.mxu0 0
      %1608 = vmatmul.mubr.bf16.gmra.mrb[0].mxu0 %v1431
      %v1609 = vpop.f32.mrb[0].mxu0
      %v1610 = vadd.f32 0.0, %v1609
      %v1611 = vpop.f32.mrb[0].mxu0
      %v1612 = vpop.f32.mrb[0].mxu0
      %v1613 = vadd.f32 0.0, %v1612
      %v1614 = vpop.f32.mrb[0].mxu0
      %1615 = vmatprep.mubr.bf16.mxu0 0
      %1616 = vmatmul.mubr.bf16.gmra.mrb[0].mxu0 %v1432
      %v1617 = vpop.f32.mrb[0].mxu0
      %v1618 = vadd.f32 0.0, %v1617
      %v1619 = vpop.f32.mrb[0].mxu0
      %v1620 = vpop.f32.mrb[0].mxu0
      %v1621 = vadd.f32 0.0, %v1620
      %v1622 = vpop.f32.mrb[0].mxu0
      %1623 = vmatprep.mubr.bf16.mxu0 0
      %1624 = vmatmul.mubr.bf16.gmra.mrb[0].mxu0 %v1433
      %v1625 = vpop.f32.mrb[0].mxu0
      %v1626 = vadd.f32 0.0, %v1625
      %v1627 = vpop.f32.mrb[0].mxu0
      %v1628 = vpop.f32.mrb[0].mxu0
      %v1629 = vadd.f32 0.0, %v1628
      %v1630 = vpop.f32.mrb[0].mxu0
      %1631 = vmatprep.mubr.bf16.mxu0 0
      %1632 = vmatmul.mubr.bf16.gmra.mrb[0].mxu0 %v1434
      %v1633 = vpop.f32.mrb[0].mxu0
      %v1634 = vadd.f32 0.0, %v1633
      %v1635 = vpop.f32.mrb[0].mxu0
      %v1636 = vpop.f32.mrb[0].mxu0
      %v1637 = vadd.f32 0.0, %v1636
      %v1638 = vpop.f32.mrb[0].mxu0
      %1639 = vmatprep.mubr.bf16.mxu0 0
      %1640 = vmatmul.mubr.bf16.gmra.mrb[0].mxu0 %v1435
      %v1641 = vpop.f32.mrb[0].mxu0
      %v1642 = vadd.f32 0.0, %v1641
      %v1643 = vpop.f32.mrb[0].mxu0
      %v1644 = vpop.f32.mrb[0].mxu0
      %v1645 = vadd.f32 0.0, %v1644
      %v1646 = vpop.f32.mrb[0].mxu0
      %1647 = vmatprep.mubr.bf16.mxu0 0
      %1648 = vmatmul.mubr.bf16.gmra.mrb[0].mxu0 %v1436
      %v1649 = vpop.f32.mrb[0].mxu0
      %v1650 = vadd.f32 0.0, %v1649
      %v1651 = vpop.f32.mrb[0].mxu0
      %v1652 = vpop.f32.mrb[0].mxu0
      %v1653 = vadd.f32 0.0, %v1652
      %v1654 = vpop.f32.mrb[0].mxu0
      %1655 = vmatprep.mubr.bf16.mxu0 0
      %1656 = vmatmul.mubr.bf16.gmra.mrb[0].mxu0 %v1437
      %v1657 = vpop.f32.mrb[0].mxu0
      %v1658 = vadd.f32 0.0, %v1657
      %v1659 = vpop.f32.mrb[0].mxu0
      %v1660 = vpop.f32.mrb[0].mxu0
      %v1661 = vadd.f32 0.0, %v1660
      %v1662 = vpop.f32.mrb[0].mxu0
      %1663 = vdwg.mxu0
      %v1664 = vadd.f32 %v1358, %v1538
      %v1665 = vadd.f32 %v1359, %v1541
      %v1666 = vadd.f32 %v1360, %v1546
      %v1667 = vadd.f32 %v1361, %v1549
      %v1668 = vadd.f32 %v1362, %v1554
      %v1669 = vadd.f32 %v1363, %v1557
      %v1670 = vadd.f32 %v1364, %v1562
      %v1671 = vadd.f32 %v1365, %v1565
      %v1672 = vadd.f32 %v1366, %v1570
      %v1673 = vadd.f32 %v1367, %v1573
      %v1674 = vadd.f32 %v1368, %v1578
      %v1675 = vadd.f32 %v1369, %v1581
      %v1676 = vadd.f32 %v1370, %v1586
      %v1677 = vadd.f32 %v1371, %v1589
      %v1678 = vadd.f32 %v1372, %v1594
      %v1679 = vadd.f32 %v1373, %v1597
      %v1680 = vadd.f32 %v1374, %v1602
      %v1681 = vadd.f32 %v1375, %v1605
      %v1682 = vadd.f32 %v1376, %v1610
      %v1683 = vadd.f32 %v1377, %v1613
      %v1684 = vadd.f32 %v1378, %v1618
      %v1685 = vadd.f32 %v1379, %v1621
      %v1686 = vadd.f32 %v1380, %v1626
      %v1687 = vadd.f32 %v1381, %v1629
      %v1688 = vadd.f32 %v1382, %v1634
      %v1689 = vadd.f32 %v1383, %v1637
      %v1690 = vadd.f32 %v1384, %v1642
      %v1691 = vadd.f32 %v1385, %v1645
      %v1692 = vadd.f32 %v1386, %v1650
      %v1693 = vadd.f32 %v1387, %v1653
      %v1694 = vadd.f32 %v1388, %v1658
      %v1695 = vadd.f32 %v1389, %v1661
      %v1696 = vld [vmem:[%s1083 + $0x2] sm:$0xff]
      %v1697 = vld [vmem:[%s1083 + $0x12] sm:$0xff]
      %v1698 = vld [vmem:[%s1083 + $0x22] sm:$0xff]
      %v1699 = vld [vmem:[%s1083 + $0x32] sm:$0xff]
      %v1700 = vld [vmem:[%s1083 + $0x42] sm:$0xff]
      %v1701 = vld [vmem:[%s1083 + $0x52] sm:$0xff]
      %v1702 = vld [vmem:[%s1083 + $0x62] sm:$0xff]
      %v1703 = vld [vmem:[%s1083 + $0x72] sm:$0xff]
      %v1704 = vld [vmem:[%s1083 + $0xa2] sm:$0xff]
      %v1705 = vld [vmem:[%s1083 + $0xb2] sm:$0xff]
      %v1706 = vld [vmem:[%s1083 + $0xc2] sm:$0xff]
      %v1707 = vld [vmem:[%s1083 + $0xd2] sm:$0xff]
      %v1708 = vld [vmem:[%s1083 + $0xe2] sm:$0xff]
      %v1709 = vld [vmem:[%s1083 + $0xf2] sm:$0xff]
      %v1710 = vld [vmem:[%s1083 + $0x102] sm:$0xff]
      %v1711 = vld [vmem:[%s1083 + $0x112] sm:$0xff]
      %v1712 = vld [vmem:[%s1083 + $0x142] sm:$0xff]
      %v1713 = vld [vmem:[%s1083 + $0x152] sm:$0xff]
      %v1714 = vld [vmem:[%s1083 + $0x162] sm:$0xff]
      %v1715 = vld [vmem:[%s1083 + $0x172] sm:$0xff]
      %v1716 = vld [vmem:[%s1083 + $0x182] sm:$0xff]
      %v1717 = vld [vmem:[%s1083 + $0x192] sm:$0xff]
      %v1718 = vld [vmem:[%s1083 + $0x1a2] sm:$0xff]
      %v1719 = vld [vmem:[%s1083 + $0x1b2] sm:$0xff]
      %v1720 = vld [vmem:[%s1083 + $0x1e2] sm:$0xff]
      %v1721 = vld [vmem:[%s1083 + $0x1f2] sm:$0xff]
      %v1722 = vld [vmem:[%s1083 + $0x202] sm:$0xff]
      %v1723 = vld [vmem:[%s1083 + $0x212] sm:$0xff]
      %v1724 = vld [vmem:[%s1083 + $0x222] sm:$0xff]
      %v1725 = vld [vmem:[%s1083 + $0x232] sm:$0xff]
      %v1726 = vld [vmem:[%s1083 + $0x242] sm:$0xff]
      %v1727 = vld [vmem:[%s1083 + $0x252] sm:$0xff]
      %v1728 = vpack.c.bf16 %v1697, %v1696
      %v1729 = vpack.c.bf16 %v1699, %v1698
      %v1730 = vpack.c.bf16 %v1701, %v1700
      %v1731 = vpack.c.bf16 %v1703, %v1702
      %v1732 = vpack.c.bf16 %v1705, %v1704
      %v1733 = vpack.c.bf16 %v1707, %v1706
      %v1734 = vpack.c.bf16 %v1709, %v1708
      %v1735 = vpack.c.bf16 %v1711, %v1710
      %v1736 = vpack.c.bf16 %v1713, %v1712
      %v1737 = vpack.c.bf16 %v1715, %v1714
      %v1738 = vpack.c.bf16 %v1717, %v1716
      %v1739 = vpack.c.bf16 %v1719, %v1718
      %v1740 = vpack.c.bf16 %v1721, %v1720
      %v1741 = vpack.c.bf16 %v1723, %v1722
      %v1742 = vpack.c.bf16 %v1725, %v1724
      %v1743 = vpack.c.bf16 %v1727, %v1726
      %s1744 = scalar_lea.vmem %s1, 320
      %v1745 = vld [vmem:[%s1744] sm:$0xf]
      %v1746 = vld [vmem:[%s1744 + $0x4] sm:$0xf]
      %v1747 = vld [vmem:[%s1744 + $0x8] sm:$0xf]
      %v1748 = vld [vmem:[%s1744 + $0xc] sm:$0xf]
      %v1749 = vld [vmem:[%s1744 + $0x10] sm:$0xf]
      %v1750 = vld [vmem:[%s1744 + $0x14] sm:$0xf]
      %v1751 = vld [vmem:[%s1744 + $0x18] sm:$0xf]
      %v1752 = vld [vmem:[%s1744 + $0x1c] sm:$0xf]
      %v1753 = vld [vmem:[%s1744 + $0x20] sm:$0xf]
      %v1754 = vld [vmem:[%s1744 + $0x24] sm:$0xf]
      %v1755 = vld [vmem:[%s1744 + $0x28] sm:$0xf]
      %v1756 = vld [vmem:[%s1744 + $0x2c] sm:$0xf]
      %v1757 = vld [vmem:[%s1744 + $0x30] sm:$0xf]
      %v1758 = vld [vmem:[%s1744 + $0x34] sm:$0xf]
      %v1759 = vld [vmem:[%s1744 + $0x38] sm:$0xf]
      %v1760 = vld [vmem:[%s1744 + $0x3c] sm:$0xf]
      %v1777 = vunpack.c.l.b16 %v1745
      %v1778 = vunpack.c.l.b16 %v1746
      %v1779 = vunpack.c.l.b16 %v1747
      %v1780 = vunpack.c.l.b16 %v1748
      %v1781 = vunpack.c.l.b16 %v1749
      %v1782 = vunpack.c.l.b16 %v1750
      %v1783 = vunpack.c.l.b16 %v1751
      %v1784 = vunpack.c.l.b16 %v1752
      %v1785 = vunpack.c.l.b16 %v1753
      %v1786 = vunpack.c.l.b16 %v1754
      %v1787 = vunpack.c.l.b16 %v1755
      %v1788 = vunpack.c.l.b16 %v1756
      %v1789 = vunpack.c.l.b16 %v1757
      %v1790 = vunpack.c.l.b16 %v1758
      %v1791 = vunpack.c.l.b16 %v1759
      %v1792 = vunpack.c.l.b16 %v1760
      %v1793 = vpack.c.b16 %v1778, %v1777
      %v1794 = vpack.c.b16 %v1780, %v1779
      %v1795 = vpack.c.b16 %v1782, %v1781
      %v1796 = vpack.c.b16 %v1784, %v1783
      %v1797 = vpack.c.b16 %v1786, %v1785
      %v1798 = vpack.c.b16 %v1788, %v1787
      %v1799 = vpack.c.b16 %v1790, %v1789
      %v1800 = vpack.c.b16 %v1792, %v1791
      %1809 = vmatprep.subr.bf16.mxu0 0
      %1810 = vmatpush1.bf16.msra.mxu0 %v1793
      %1811 = vmatprep.subr.bf16.mxu0 0
      %1812 = vmatpush1.bf16.msra.mxu0 %v1794
      %1813 = vmatprep.subr.bf16.mxu0 0
      %1814 = vmatpush1.bf16.msra.mxu0 %v1795
      %1815 = vmatprep.subr.bf16.mxu0 0
      %1816 = vmatpush1.bf16.msra.mxu0 %v1796
      %1817 = vmatprep.subr.bf16.mxu0 0
      %1818 = vmatpush1.bf16.msra.mxu0 %v1797
      %1819 = vmatprep.subr.bf16.mxu0 0
      %1820 = vmatpush1.bf16.msra.mxu0 %v1798
      %1821 = vmatprep.subr.bf16.mxu0 0
      %1822 = vmatpush1.bf16.msra.mxu0 %v1799
      %1823 = vmatprep.subr.bf16.mxu0 0
      %1824 = vmatpush1.bf16.msra.mxu0 %v1800
      %1825 = vmatprep.subr.bf16.mxu0 0
      %1826 = vmatpush1.bf16.msra.mxu0 0
      %1827 = vmatprep.subr.bf16.mxu0 0
      %1828 = vmatpush1.bf16.msra.mxu0 0
      %1829 = vmatprep.subr.bf16.mxu0 0
      %1830 = vmatpush1.bf16.msra.mxu0 0
      %1831 = vmatprep.subr.bf16.mxu0 0
      %1832 = vmatpush1.bf16.msra.mxu0 0
      %1833 = vmatprep.subr.bf16.mxu0 0
      %1834 = vmatpush1.bf16.msra.mxu0 0
      %1835 = vmatprep.subr.bf16.mxu0 0
      %1836 = vmatpush1.bf16.msra.mxu0 0
      %1837 = vmatprep.subr.bf16.mxu0 0
      %1838 = vmatpush1.bf16.msra.mxu0 0
      %1839 = vmatprep.subr.bf16.mxu0 0
      %1840 = vmatpush1.bf16.msra.mxu0 0
      %1841 = vmatprep.mubr.bf16.mxu0 0
      %1842 = vmatmul.mubr.bf16.gmra.mrb[0].mxu0 %v1728
      %v1843 = vpop.f32.mrb[0].mxu0
      %v1844 = vadd.f32 0.0, %v1843
      %v1845 = vpop.f32.mrb[0].mxu0
      %v1846 = vpop.f32.mrb[0].mxu0
      %v1847 = vadd.f32 0.0, %v1846
      %v1848 = vpop.f32.mrb[0].mxu0
      %1849 = vmatprep.mubr.bf16.mxu0 0
      %1850 = vmatmul.mubr.bf16.gmra.mrb[0].mxu0 %v1729
      %v1851 = vpop.f32.mrb[0].mxu0
      %v1852 = vadd.f32 0.0, %v1851
      %v1853 = vpop.f32.mrb[0].mxu0
      %v1854 = vpop.f32.mrb[0].mxu0
      %v1855 = vadd.f32 0.0, %v1854
      %v1856 = vpop.f32.mrb[0].mxu0
      %1857 = vmatprep.mubr.bf16.mxu0 0
      %1858 = vmatmul.mubr.bf16.gmra.mrb[0].mxu0 %v1730
      %v1859 = vpop.f32.mrb[0].mxu0
      %v1860 = vadd.f32 0.0, %v1859
      %v1861 = vpop.f32.mrb[0].mxu0
      %v1862 = vpop.f32.mrb[0].mxu0
      %v1863 = vadd.f32 0.0, %v1862
      %v1864 = vpop.f32.mrb[0].mxu0
      %1865 = vmatprep.mubr.bf16.mxu0 0
      %1866 = vmatmul.mubr.bf16.gmra.mrb[0].mxu0 %v1731
      %v1867 = vpop.f32.mrb[0].mxu0
      %v1868 = vadd.f32 0.0, %v1867
      %v1869 = vpop.f32.mrb[0].mxu0
      %v1870 = vpop.f32.mrb[0].mxu0
      %v1871 = vadd.f32 0.0, %v1870
      %v1872 = vpop.f32.mrb[0].mxu0
      %1873 = vmatprep.mubr.bf16.mxu0 0
      %1874 = vmatmul.mubr.bf16.gmra.mrb[0].mxu0 %v1732
      %v1875 = vpop.f32.mrb[0].mxu0
      %v1876 = vadd.f32 0.0, %v1875
      %v1877 = vpop.f32.mrb[0].mxu0
      %v1878 = vpop.f32.mrb[0].mxu0
      %v1879 = vadd.f32 0.0, %v1878
      %v1880 = vpop.f32.mrb[0].mxu0
      %1881 = vmatprep.mubr.bf16.mxu0 0
      %1882 = vmatmul.mubr.bf16.gmra.mrb[0].mxu0 %v1733
      %v1883 = vpop.f32.mrb[0].mxu0
      %v1884 = vadd.f32 0.0, %v1883
      %v1885 = vpop.f32.mrb[0].mxu0
      %v1886 = vpop.f32.mrb[0].mxu0
      %v1887 = vadd.f32 0.0, %v1886
      %v1888 = vpop.f32.mrb[0].mxu0
      %1889 = vmatprep.mubr.bf16.mxu0 0
      %1890 = vmatmul.mubr.bf16.gmra.mrb[0].mxu0 %v1734
      %v1891 = vpop.f32.mrb[0].mxu0
      %v1892 = vadd.f32 0.0, %v1891
      %v1893 = vpop.f32.mrb[0].mxu0
      %v1894 = vpop.f32.mrb[0].mxu0
      %v1895 = vadd.f32 0.0, %v1894
      %v1896 = vpop.f32.mrb[0].mxu0
      %1897 = vmatprep.mubr.bf16.mxu0 0
      %1898 = vmatmul.mubr.bf16.gmra.mrb[0].mxu0 %v1735
      %v1899 = vpop.f32.mrb[0].mxu0
      %v1900 = vadd.f32 0.0, %v1899
      %v1901 = vpop.f32.mrb[0].mxu0
      %v1902 = vpop.f32.mrb[0].mxu0
      %v1903 = vadd.f32 0.0, %v1902
      %v1904 = vpop.f32.mrb[0].mxu0
      %1905 = vmatprep.mubr.bf16.mxu0 0
      %1906 = vmatmul.mubr.bf16.gmra.mrb[0].mxu0 %v1736
      %v1907 = vpop.f32.mrb[0].mxu0
      %v1908 = vadd.f32 0.0, %v1907
      %v1909 = vpop.f32.mrb[0].mxu0
      %v1910 = vpop.f32.mrb[0].mxu0
      %v1911 = vadd.f32 0.0, %v1910
      %v1912 = vpop.f32.mrb[0].mxu0
      %1913 = vmatprep.mubr.bf16.mxu0 0
      %1914 = vmatmul.mubr.bf16.gmra.mrb[0].mxu0 %v1737
      %v1915 = vpop.f32.mrb[0].mxu0
      %v1916 = vadd.f32 0.0, %v1915
      %v1917 = vpop.f32.mrb[0].mxu0
      %v1918 = vpop.f32.mrb[0].mxu0
      %v1919 = vadd.f32 0.0, %v1918
      %v1920 = vpop.f32.mrb[0].mxu0
      %1921 = vmatprep.mubr.bf16.mxu0 0
      %1922 = vmatmul.mubr.bf16.gmra.mrb[0].mxu0 %v1738
      %v1923 = vpop.f32.mrb[0].mxu0
      %v1924 = vadd.f32 0.0, %v1923
      %v1925 = vpop.f32.mrb[0].mxu0
      %v1926 = vpop.f32.mrb[0].mxu0
      %v1927 = vadd.f32 0.0, %v1926
      %v1928 = vpop.f32.mrb[0].mxu0
      %1929 = vmatprep.mubr.bf16.mxu0 0
      %1930 = vmatmul.mubr.bf16.gmra.mrb[0].mxu0 %v1739
      %v1931 = vpop.f32.mrb[0].mxu0
      %v1932 = vadd.f32 0.0, %v1931
      %v1933 = vpop.f32.mrb[0].mxu0
      %v1934 = vpop.f32.mrb[0].mxu0
      %v1935 = vadd.f32 0.0, %v1934
      %v1936 = vpop.f32.mrb[0].mxu0
      %1937 = vmatprep.mubr.bf16.mxu0 0
      %1938 = vmatmul.mubr.bf16.gmra.mrb[0].mxu0 %v1740
      %v1939 = vpop.f32.mrb[0].mxu0
      %v1940 = vadd.f32 0.0, %v1939
      %v1941 = vpop.f32.mrb[0].mxu0
      %v1942 = vpop.f32.mrb[0].mxu0
      %v1943 = vadd.f32 0.0, %v1942
      %v1944 = vpop.f32.mrb[0].mxu0
      %1945 = vmatprep.mubr.bf16.mxu0 0
      %1946 = vmatmul.mubr.bf16.gmra.mrb[0].mxu0 %v1741
      %v1947 = vpop.f32.mrb[0].mxu0
      %v1948 = vadd.f32 0.0, %v1947
      %v1949 = vpop.f32.mrb[0].mxu0
      %v1950 = vpop.f32.mrb[0].mxu0
      %v1951 = vadd.f32 0.0, %v1950
      %v1952 = vpop.f32.mrb[0].mxu0
      %1953 = vmatprep.mubr.bf16.mxu0 0
      %1954 = vmatmul.mubr.bf16.gmra.mrb[0].mxu0 %v1742
      %v1955 = vpop.f32.mrb[0].mxu0
      %v1956 = vadd.f32 0.0, %v1955
      %v1957 = vpop.f32.mrb[0].mxu0
      %v1958 = vpop.f32.mrb[0].mxu0
      %v1959 = vadd.f32 0.0, %v1958
      %v1960 = vpop.f32.mrb[0].mxu0
      %1961 = vmatprep.mubr.bf16.mxu0 0
      %1962 = vmatmul.mubr.bf16.gmra.mrb[0].mxu0 %v1743
      %v1963 = vpop.f32.mrb[0].mxu0
      %v1964 = vadd.f32 0.0, %v1963
      %v1965 = vpop.f32.mrb[0].mxu0
      %v1966 = vpop.f32.mrb[0].mxu0
      %v1967 = vadd.f32 0.0, %v1966
      %v1968 = vpop.f32.mrb[0].mxu0
      %1969 = vdwg.mxu0
      %v1970 = vadd.f32 %v1664, %v1844
      %v1971 = vadd.f32 %v1665, %v1847
      %v1972 = vadd.f32 %v1666, %v1852
      %v1973 = vadd.f32 %v1667, %v1855
      %v1974 = vadd.f32 %v1668, %v1860
      %v1975 = vadd.f32 %v1669, %v1863
      %v1976 = vadd.f32 %v1670, %v1868
      %v1977 = vadd.f32 %v1671, %v1871
      %v1978 = vadd.f32 %v1672, %v1876
      %v1979 = vadd.f32 %v1673, %v1879
      %v1980 = vadd.f32 %v1674, %v1884
      %v1981 = vadd.f32 %v1675, %v1887
      %v1982 = vadd.f32 %v1676, %v1892
      %v1983 = vadd.f32 %v1677, %v1895
      %v1984 = vadd.f32 %v1678, %v1900
      %v1985 = vadd.f32 %v1679, %v1903
      %v1986 = vadd.f32 %v1680, %v1908
      %v1987 = vadd.f32 %v1681, %v1911
      %v1988 = vadd.f32 %v1682, %v1916
      %v1989 = vadd.f32 %v1683, %v1919
      %v1990 = vadd.f32 %v1684, %v1924
      %v1991 = vadd.f32 %v1685, %v1927
      %v1992 = vadd.f32 %v1686, %v1932
      %v1993 = vadd.f32 %v1687, %v1935
      %v1994 = vadd.f32 %v1688, %v1940
      %v1995 = vadd.f32 %v1689, %v1943
      %v1996 = vadd.f32 %v1690, %v1948
      %v1997 = vadd.f32 %v1691, %v1951
      %v1998 = vadd.f32 %v1692, %v1956
      %v1999 = vadd.f32 %v1693, %v1959
      %v2000 = vadd.f32 %v1694, %v1964
      %v2001 = vadd.f32 %v1695, %v1967
      %s2002 = scalar_lea.vmem %s210, 32
      %v2003 = vld [vmem:[%s2002] sm:$0xff]
      %v2004 = vld [vmem:[%s2002 + $0x10] sm:$0xff]
      %v2005 = vld [vmem:[%s2002 + $0x20] sm:$0xff]
      %v2006 = vld [vmem:[%s2002 + $0x30] sm:$0xff]
      %v2007 = vld [vmem:[%s2002 + $0x40] sm:$0xff]
      %v2008 = vld [vmem:[%s2002 + $0x50] sm:$0xff]
      %v2009 = vld [vmem:[%s2002 + $0x60] sm:$0xff]
      %v2010 = vld [vmem:[%s2002 + $0x70] sm:$0xff]
      %v2011 = vld [vmem:[%s2002 + $0xa0] sm:$0xff]
      %v2012 = vld [vmem:[%s2002 + $0xb0] sm:$0xff]
      %v2013 = vld [vmem:[%s2002 + $0xc0] sm:$0xff]
      %v2014 = vld [vmem:[%s2002 + $0xd0] sm:$0xff]
      %v2015 = vld [vmem:[%s2002 + $0xe0] sm:$0xff]
      %v2016 = vld [vmem:[%s2002 + $0xf0] sm:$0xff]
      %v2017 = vld [vmem:[%s2002 + $0x100] sm:$0xff]
      %v2018 = vld [vmem:[%s2002 + $0x110] sm:$0xff]
      %v2019 = vld [vmem:[%s2002 + $0x140] sm:$0xff]
      %v2020 = vld [vmem:[%s2002 + $0x150] sm:$0xff]
      %v2021 = vld [vmem:[%s2002 + $0x160] sm:$0xff]
      %v2022 = vld [vmem:[%s2002 + $0x170] sm:$0xff]
      %v2023 = vld [vmem:[%s2002 + $0x180] sm:$0xff]
      %v2024 = vld [vmem:[%s2002 + $0x190] sm:$0xff]
      %v2025 = vld [vmem:[%s2002 + $0x1a0] sm:$0xff]
      %v2026 = vld [vmem:[%s2002 + $0x1b0] sm:$0xff]
      %v2027 = vld [vmem:[%s2002 + $0x1e0] sm:$0xff]
      %v2028 = vld [vmem:[%s2002 + $0x1f0] sm:$0xff]
      %v2029 = vld [vmem:[%s2002 + $0x200] sm:$0xff]
      %v2030 = vld [vmem:[%s2002 + $0x210] sm:$0xff]
      %v2031 = vld [vmem:[%s2002 + $0x220] sm:$0xff]
      %v2032 = vld [vmem:[%s2002 + $0x230] sm:$0xff]
      %v2033 = vld [vmem:[%s2002 + $0x240] sm:$0xff]
      %v2034 = vld [vmem:[%s2002 + $0x250] sm:$0xff]
      %v2035 = vpack.c.bf16 %v2004, %v2003
      %v2036 = vpack.c.bf16 %v2006, %v2005
      %v2037 = vpack.c.bf16 %v2008, %v2007
      %v2038 = vpack.c.bf16 %v2010, %v2009
      %v2039 = vpack.c.bf16 %v2012, %v2011
      %v2040 = vpack.c.bf16 %v2014, %v2013
      %v2041 = vpack.c.bf16 %v2016, %v2015
      %v2042 = vpack.c.bf16 %v2018, %v2017
      %v2043 = vpack.c.bf16 %v2020, %v2019
      %v2044 = vpack.c.bf16 %v2022, %v2021
      %v2045 = vpack.c.bf16 %v2024, %v2023
      %v2046 = vpack.c.bf16 %v2026, %v2025
      %v2047 = vpack.c.bf16 %v2028, %v2027
      %v2048 = vpack.c.bf16 %v2030, %v2029
      %v2049 = vpack.c.bf16 %v2032, %v2031
      %v2050 = vpack.c.bf16 %v2034, %v2033
      %s2051 = scalar_lea.vmem %s1, 384
      %v2052 = vld [vmem:[%s2051] sm:$0xf]
      %v2053 = vld [vmem:[%s2051 + $0x4] sm:$0xf]
      %v2054 = vld [vmem:[%s2051 + $0x8] sm:$0xf]
      %v2055 = vld [vmem:[%s2051 + $0xc] sm:$0xf]
      %v2056 = vld [vmem:[%s2051 + $0x10] sm:$0xf]
      %v2057 = vld [vmem:[%s2051 + $0x14] sm:$0xf]
      %v2058 = vld [vmem:[%s2051 + $0x18] sm:$0xf]
      %v2059 = vld [vmem:[%s2051 + $0x1c] sm:$0xf]
      %v2060 = vld [vmem:[%s2051 + $0x20] sm:$0xf]
      %v2061 = vld [vmem:[%s2051 + $0x24] sm:$0xf]
      %v2062 = vld [vmem:[%s2051 + $0x28] sm:$0xf]
      %v2063 = vld [vmem:[%s2051 + $0x2c] sm:$0xf]
      %v2064 = vld [vmem:[%s2051 + $0x30] sm:$0xf]
      %v2065 = vld [vmem:[%s2051 + $0x34] sm:$0xf]
      %v2066 = vld [vmem:[%s2051 + $0x38] sm:$0xf]
      %v2067 = vld [vmem:[%s2051 + $0x3c] sm:$0xf]
      %v2084 = vunpack.c.l.b16 %v2052
      %v2085 = vunpack.c.l.b16 %v2053
      %v2086 = vunpack.c.l.b16 %v2054
      %v2087 = vunpack.c.l.b16 %v2055
      %v2088 = vunpack.c.l.b16 %v2056
      %v2089 = vunpack.c.l.b16 %v2057
      %v2090 = vunpack.c.l.b16 %v2058
      %v2091 = vunpack.c.l.b16 %v2059
      %v2092 = vunpack.c.l.b16 %v2060
      %v2093 = vunpack.c.l.b16 %v2061
      %v2094 = vunpack.c.l.b16 %v2062
      %v2095 = vunpack.c.l.b16 %v2063
      %v2096 = vunpack.c.l.b16 %v2064
      %v2097 = vunpack.c.l.b16 %v2065
      %v2098 = vunpack.c.l.b16 %v2066
      %v2099 = vunpack.c.l.b16 %v2067
      %v2100 = vpack.c.b16 %v2085, %v2084
      %v2101 = vpack.c.b16 %v2087, %v2086
      %v2102 = vpack.c.b16 %v2089, %v2088
      %v2103 = vpack.c.b16 %v2091, %v2090
      %v2104 = vpack.c.b16 %v2093, %v2092
      %v2105 = vpack.c.b16 %v2095, %v2094
      %v2106 = vpack.c.b16 %v2097, %v2096
      %v2107 = vpack.c.b16 %v2099, %v2098
      %2116 = vmatprep.subr.bf16.mxu0 0
      %2117 = vmatpush1.bf16.msra.mxu0 %v2100
      %2118 = vmatprep.subr.bf16.mxu0 0
      %2119 = vmatpush1.bf16.msra.mxu0 %v2101
      %2120 = vmatprep.subr.bf16.mxu0 0
      %2121 = vmatpush1.bf16.msra.mxu0 %v2102
      %2122 = vmatprep.subr.bf16.mxu0 0
      %2123 = vmatpush1.bf16.msra.mxu0 %v2103
      %2124 = vmatprep.subr.bf16.mxu0 0
      %2125 = vmatpush1.bf16.msra.mxu0 %v2104
      %2126 = vmatprep.subr.bf16.mxu0 0
      %2127 = vmatpush1.bf16.msra.mxu0 %v2105
      %2128 = vmatprep.subr.bf16.mxu0 0
      %2129 = vmatpush1.bf16.msra.mxu0 %v2106
      %2130 = vmatprep.subr.bf16.mxu0 0
      %2131 = vmatpush1.bf16.msra.mxu0 %v2107
      %2132 = vmatprep.subr.bf16.mxu0 0
      %2133 = vmatpush1.bf16.msra.mxu0 0
      %2134 = vmatprep.subr.bf16.mxu0 0
      %2135 = vmatpush1.bf16.msra.mxu0 0
      %2136 = vmatprep.subr.bf16.mxu0 0
      %2137 = vmatpush1.bf16.msra.mxu0 0
      %2138 = vmatprep.subr.bf16.mxu0 0
      %2139 = vmatpush1.bf16.msra.mxu0 0
      %2140 = vmatprep.subr.bf16.mxu0 0
      %2141 = vmatpush1.bf16.msra.mxu0 0
      %2142 = vmatprep.subr.bf16.mxu0 0
      %2143 = vmatpush1.bf16.msra.mxu0 0
      %2144 = vmatprep.subr.bf16.mxu0 0
      %2145 = vmatpush1.bf16.msra.mxu0 0
      %2146 = vmatprep.subr.bf16.mxu0 0
      %2147 = vmatpush1.bf16.msra.mxu0 0
      %2148 = vmatprep.mubr.bf16.mxu0 0
      %2149 = vmatmul.mubr.bf16.gmra.mrb[0].mxu0 %v2035
      %v2150 = vpop.f32.mrb[0].mxu0
      %v2151 = vadd.f32 0.0, %v2150
      %v2152 = vpop.f32.mrb[0].mxu0
      %v2153 = vpop.f32.mrb[0].mxu0
      %v2154 = vadd.f32 0.0, %v2153
      %v2155 = vpop.f32.mrb[0].mxu0
      %2156 = vmatprep.mubr.bf16.mxu0 0
      %2157 = vmatmul.mubr.bf16.gmra.mrb[0].mxu0 %v2036
      %v2158 = vpop.f32.mrb[0].mxu0
      %v2159 = vadd.f32 0.0, %v2158
      %v2160 = vpop.f32.mrb[0].mxu0
      %v2161 = vpop.f32.mrb[0].mxu0
      %v2162 = vadd.f32 0.0, %v2161
      %v2163 = vpop.f32.mrb[0].mxu0
      %2164 = vmatprep.mubr.bf16.mxu0 0
      %2165 = vmatmul.mubr.bf16.gmra.mrb[0].mxu0 %v2037
      %v2166 = vpop.f32.mrb[0].mxu0
      %v2167 = vadd.f32 0.0, %v2166
      %v2168 = vpop.f32.mrb[0].mxu0
      %v2169 = vpop.f32.mrb[0].mxu0
      %v2170 = vadd.f32 0.0, %v2169
      %v2171 = vpop.f32.mrb[0].mxu0
      %2172 = vmatprep.mubr.bf16.mxu0 0
      %2173 = vmatmul.mubr.bf16.gmra.mrb[0].mxu0 %v2038
      %v2174 = vpop.f32.mrb[0].mxu0
      %v2175 = vadd.f32 0.0, %v2174
      %v2176 = vpop.f32.mrb[0].mxu0
      %v2177 = vpop.f32.mrb[0].mxu0
      %v2178 = vadd.f32 0.0, %v2177
      %v2179 = vpop.f32.mrb[0].mxu0
      %2180 = vmatprep.mubr.bf16.mxu0 0
      %2181 = vmatmul.mubr.bf16.gmra.mrb[0].mxu0 %v2039
      %v2182 = vpop.f32.mrb[0].mxu0
      %v2183 = vadd.f32 0.0, %v2182
      %v2184 = vpop.f32.mrb[0].mxu0
      %v2185 = vpop.f32.mrb[0].mxu0
      %v2186 = vadd.f32 0.0, %v2185
      %v2187 = vpop.f32.mrb[0].mxu0
      %2188 = vmatprep.mubr.bf16.mxu0 0
      %2189 = vmatmul.mubr.bf16.gmra.mrb[0].mxu0 %v2040
      %v2190 = vpop.f32.mrb[0].mxu0
      %v2191 = vadd.f32 0.0, %v2190
      %v2192 = vpop.f32.mrb[0].mxu0
      %v2193 = vpop.f32.mrb[0].mxu0
      %v2194 = vadd.f32 0.0, %v2193
      %v2195 = vpop.f32.mrb[0].mxu0
      %2196 = vmatprep.mubr.bf16.mxu0 0
      %2197 = vmatmul.mubr.bf16.gmra.mrb[0].mxu0 %v2041
      %v2198 = vpop.f32.mrb[0].mxu0
      %v2199 = vadd.f32 0.0, %v2198
      %v2200 = vpop.f32.mrb[0].mxu0
      %v2201 = vpop.f32.mrb[0].mxu0
      %v2202 = vadd.f32 0.0, %v2201
      %v2203 = vpop.f32.mrb[0].mxu0
      %2204 = vmatprep.mubr.bf16.mxu0 0
      %2205 = vmatmul.mubr.bf16.gmra.mrb[0].mxu0 %v2042
      %v2206 = vpop.f32.mrb[0].mxu0
      %v2207 = vadd.f32 0.0, %v2206
      %v2208 = vpop.f32.mrb[0].mxu0
      %v2209 = vpop.f32.mrb[0].mxu0
      %v2210 = vadd.f32 0.0, %v2209
      %v2211 = vpop.f32.mrb[0].mxu0
      %2212 = vmatprep.mubr.bf16.mxu0 0
      %2213 = vmatmul.mubr.bf16.gmra.mrb[0].mxu0 %v2043
      %v2214 = vpop.f32.mrb[0].mxu0
      %v2215 = vadd.f32 0.0, %v2214
      %v2216 = vpop.f32.mrb[0].mxu0
      %v2217 = vpop.f32.mrb[0].mxu0
      %v2218 = vadd.f32 0.0, %v2217
      %v2219 = vpop.f32.mrb[0].mxu0
      %2220 = vmatprep.mubr.bf16.mxu0 0
      %2221 = vmatmul.mubr.bf16.gmra.mrb[0].mxu0 %v2044
      %v2222 = vpop.f32.mrb[0].mxu0
      %v2223 = vadd.f32 0.0, %v2222
      %v2224 = vpop.f32.mrb[0].mxu0
      %v2225 = vpop.f32.mrb[0].mxu0
      %v2226 = vadd.f32 0.0, %v2225
      %v2227 = vpop.f32.mrb[0].mxu0
      %2228 = vmatprep.mubr.bf16.mxu0 0
      %2229 = vmatmul.mubr.bf16.gmra.mrb[0].mxu0 %v2045
      %v2230 = vpop.f32.mrb[0].mxu0
      %v2231 = vadd.f32 0.0, %v2230
      %v2232 = vpop.f32.mrb[0].mxu0
      %v2233 = vpop.f32.mrb[0].mxu0
      %v2234 = vadd.f32 0.0, %v2233
      %v2235 = vpop.f32.mrb[0].mxu0
      %2236 = vmatprep.mubr.bf16.mxu0 0
      %2237 = vmatmul.mubr.bf16.gmra.mrb[0].mxu0 %v2046
      %v2238 = vpop.f32.mrb[0].mxu0
      %v2239 = vadd.f32 0.0, %v2238
      %v2240 = vpop.f32.mrb[0].mxu0
      %v2241 = vpop.f32.mrb[0].mxu0
      %v2242 = vadd.f32 0.0, %v2241
      %v2243 = vpop.f32.mrb[0].mxu0
      %2244 = vmatprep.mubr.bf16.mxu0 0
      %2245 = vmatmul.mubr.bf16.gmra.mrb[0].mxu0 %v2047
      %v2246 = vpop.f32.mrb[0].mxu0
      %v2247 = vadd.f32 0.0, %v2246
      %v2248 = vpop.f32.mrb[0].mxu0
      %v2249 = vpop.f32.mrb[0].mxu0
      %v2250 = vadd.f32 0.0, %v2249
      %v2251 = vpop.f32.mrb[0].mxu0
      %2252 = vmatprep.mubr.bf16.mxu0 0
      %2253 = vmatmul.mubr.bf16.gmra.mrb[0].mxu0 %v2048
      %v2254 = vpop.f32.mrb[0].mxu0
      %v2255 = vadd.f32 0.0, %v2254
      %v2256 = vpop.f32.mrb[0].mxu0
      %v2257 = vpop.f32.mrb[0].mxu0
      %v2258 = vadd.f32 0.0, %v2257
      %v2259 = vpop.f32.mrb[0].mxu0
      %2260 = vmatprep.mubr.bf16.mxu0 0
      %2261 = vmatmul.mubr.bf16.gmra.mrb[0].mxu0 %v2049
      %v2262 = vpop.f32.mrb[0].mxu0
      %v2263 = vadd.f32 0.0, %v2262
      %v2264 = vpop.f32.mrb[0].mxu0
      %v2265 = vpop.f32.mrb[0].mxu0
      %v2266 = vadd.f32 0.0, %v2265
      %v2267 = vpop.f32.mrb[0].mxu0
      %2268 = vmatprep.mubr.bf16.mxu0 0
      %2269 = vmatmul.mubr.bf16.gmra.mrb[0].mxu0 %v2050
      %v2270 = vpop.f32.mrb[0].mxu0
      %v2271 = vadd.f32 0.0, %v2270
      %v2272 = vpop.f32.mrb[0].mxu0
      %v2273 = vpop.f32.mrb[0].mxu0
      %v2274 = vadd.f32 0.0, %v2273
      %v2275 = vpop.f32.mrb[0].mxu0
      %2276 = vdwg.mxu0
      %v2277 = vadd.f32 %v1970, %v2151
      %v2278 = vadd.f32 %v1971, %v2154
      %v2279 = vadd.f32 %v1972, %v2159
      %v2280 = vadd.f32 %v1973, %v2162
      %v2281 = vadd.f32 %v1974, %v2167
      %v2282 = vadd.f32 %v1975, %v2170
      %v2283 = vadd.f32 %v1976, %v2175
      %v2284 = vadd.f32 %v1977, %v2178
      %v2285 = vadd.f32 %v1978, %v2183
      %v2286 = vadd.f32 %v1979, %v2186
      %v2287 = vadd.f32 %v1980, %v2191
      %v2288 = vadd.f32 %v1981, %v2194
      %v2289 = vadd.f32 %v1982, %v2199
      %v2290 = vadd.f32 %v1983, %v2202
      %v2291 = vadd.f32 %v1984, %v2207
      %v2292 = vadd.f32 %v1985, %v2210
      %v2293 = vadd.f32 %v1986, %v2215
      %v2294 = vadd.f32 %v1987, %v2218
      %v2295 = vadd.f32 %v1988, %v2223
      %v2296 = vadd.f32 %v1989, %v2226
      %v2297 = vadd.f32 %v1990, %v2231
      %v2298 = vadd.f32 %v1991, %v2234
      %v2299 = vadd.f32 %v1992, %v2239
      %v2300 = vadd.f32 %v1993, %v2242
      %v2301 = vadd.f32 %v1994, %v2247
      %v2302 = vadd.f32 %v1995, %v2250
      %v2303 = vadd.f32 %v1996, %v2255
      %v2304 = vadd.f32 %v1997, %v2258
      %v2305 = vadd.f32 %v1998, %v2263
      %v2306 = vadd.f32 %v1999, %v2266
      %v2307 = vadd.f32 %v2000, %v2271
      %v2308 = vadd.f32 %v2001, %v2274
      %v2309 = vld [vmem:[%s2002 + $0x1] sm:$0xff]
      %v2310 = vld [vmem:[%s2002 + $0x11] sm:$0xff]
      %v2311 = vld [vmem:[%s2002 + $0x21] sm:$0xff]
      %v2312 = vld [vmem:[%s2002 + $0x31] sm:$0xff]
      %v2313 = vld [vmem:[%s2002 + $0x41] sm:$0xff]
      %v2314 = vld [vmem:[%s2002 + $0x51] sm:$0xff]
      %v2315 = vld [vmem:[%s2002 + $0x61] sm:$0xff]
      %v2316 = vld [vmem:[%s2002 + $0x71] sm:$0xff]
      %v2317 = vld [vmem:[%s2002 + $0xa1] sm:$0xff]
      %v2318 = vld [vmem:[%s2002 + $0xb1] sm:$0xff]
      %v2319 = vld [vmem:[%s2002 + $0xc1] sm:$0xff]
      %v2320 = vld [vmem:[%s2002 + $0xd1] sm:$0xff]
      %v2321 = vld [vmem:[%s2002 + $0xe1] sm:$0xff]
      %v2322 = vld [vmem:[%s2002 + $0xf1] sm:$0xff]
      %v2323 = vld [vmem:[%s2002 + $0x101] sm:$0xff]
      %v2324 = vld [vmem:[%s2002 + $0x111] sm:$0xff]
      %v2325 = vld [vmem:[%s2002 + $0x141] sm:$0xff]
      %v2326 = vld [vmem:[%s2002 + $0x151] sm:$0xff]
      %v2327 = vld [vmem:[%s2002 + $0x161] sm:$0xff]
      %v2328 = vld [vmem:[%s2002 + $0x171] sm:$0xff]
      %v2329 = vld [vmem:[%s2002 + $0x181] sm:$0xff]
      %v2330 = vld [vmem:[%s2002 + $0x191] sm:$0xff]
      %v2331 = vld [vmem:[%s2002 + $0x1a1] sm:$0xff]
      %v2332 = vld [vmem:[%s2002 + $0x1b1] sm:$0xff]
      %v2333 = vld [vmem:[%s2002 + $0x1e1] sm:$0xff]
      %v2334 = vld [vmem:[%s2002 + $0x1f1] sm:$0xff]
      %v2335 = vld [vmem:[%s2002 + $0x201] sm:$0xff]
      %v2336 = vld [vmem:[%s2002 + $0x211] sm:$0xff]
      %v2337 = vld [vmem:[%s2002 + $0x221] sm:$0xff]
      %v2338 = vld [vmem:[%s2002 + $0x231] sm:$0xff]
      %v2339 = vld [vmem:[%s2002 + $0x241] sm:$0xff]
      %v2340 = vld [vmem:[%s2002 + $0x251] sm:$0xff]
      %v2341 = vpack.c.bf16 %v2310, %v2309
      %v2342 = vpack.c.bf16 %v2312, %v2311
      %v2343 = vpack.c.bf16 %v2314, %v2313
      %v2344 = vpack.c.bf16 %v2316, %v2315
      %v2345 = vpack.c.bf16 %v2318, %v2317
      %v2346 = vpack.c.bf16 %v2320, %v2319
      %v2347 = vpack.c.bf16 %v2322, %v2321
      %v2348 = vpack.c.bf16 %v2324, %v2323
      %v2349 = vpack.c.bf16 %v2326, %v2325
      %v2350 = vpack.c.bf16 %v2328, %v2327
      %v2351 = vpack.c.bf16 %v2330, %v2329
      %v2352 = vpack.c.bf16 %v2332, %v2331
      %v2353 = vpack.c.bf16 %v2334, %v2333
      %v2354 = vpack.c.bf16 %v2336, %v2335
      %v2355 = vpack.c.bf16 %v2338, %v2337
      %v2356 = vpack.c.bf16 %v2340, %v2339
      %s2357 = scalar_lea.vmem %s1, 448
      %v2358 = vld [vmem:[%s2357] sm:$0xf]
      %v2359 = vld [vmem:[%s2357 + $0x4] sm:$0xf]
      %v2360 = vld [vmem:[%s2357 + $0x8] sm:$0xf]
      %v2361 = vld [vmem:[%s2357 + $0xc] sm:$0xf]
      %v2362 = vld [vmem:[%s2357 + $0x10] sm:$0xf]
      %v2363 = vld [vmem:[%s2357 + $0x14] sm:$0xf]
      %v2364 = vld [vmem:[%s2357 + $0x18] sm:$0xf]
      %v2365 = vld [vmem:[%s2357 + $0x1c] sm:$0xf]
      %v2366 = vld [vmem:[%s2357 + $0x20] sm:$0xf]
      %v2367 = vld [vmem:[%s2357 + $0x24] sm:$0xf]
      %v2368 = vld [vmem:[%s2357 + $0x28] sm:$0xf]
      %v2369 = vld [vmem:[%s2357 + $0x2c] sm:$0xf]
      %v2370 = vld [vmem:[%s2357 + $0x30] sm:$0xf]
      %v2371 = vld [vmem:[%s2357 + $0x34] sm:$0xf]
      %v2372 = vld [vmem:[%s2357 + $0x38] sm:$0xf]
      %v2373 = vld [vmem:[%s2357 + $0x3c] sm:$0xf]
      %v2390 = vunpack.c.l.b16 %v2358
      %v2391 = vunpack.c.l.b16 %v2359
      %v2392 = vunpack.c.l.b16 %v2360
      %v2393 = vunpack.c.l.b16 %v2361
      %v2394 = vunpack.c.l.b16 %v2362
      %v2395 = vunpack.c.l.b16 %v2363
      %v2396 = vunpack.c.l.b16 %v2364
      %v2397 = vunpack.c.l.b16 %v2365
      %v2398 = vunpack.c.l.b16 %v2366
      %v2399 = vunpack.c.l.b16 %v2367
      %v2400 = vunpack.c.l.b16 %v2368
      %v2401 = vunpack.c.l.b16 %v2369
      %v2402 = vunpack.c.l.b16 %v2370
      %v2403 = vunpack.c.l.b16 %v2371
      %v2404 = vunpack.c.l.b16 %v2372
      %v2405 = vunpack.c.l.b16 %v2373
      %v2406 = vpack.c.b16 %v2391, %v2390
      %v2407 = vpack.c.b16 %v2393, %v2392
      %v2408 = vpack.c.b16 %v2395, %v2394
      %v2409 = vpack.c.b16 %v2397, %v2396
      %v2410 = vpack.c.b16 %v2399, %v2398
      %v2411 = vpack.c.b16 %v2401, %v2400
      %v2412 = vpack.c.b16 %v2403, %v2402
      %v2413 = vpack.c.b16 %v2405, %v2404
      %2422 = vmatprep.subr.bf16.mxu0 0
      %2423 = vmatpush1.bf16.msra.mxu0 %v2406
      %2424 = vmatprep.subr.bf16.mxu0 0
      %2425 = vmatpush1.bf16.msra.mxu0 %v2407
      %2426 = vmatprep.subr.bf16.mxu0 0
      %2427 = vmatpush1.bf16.msra.mxu0 %v2408
      %2428 = vmatprep.subr.bf16.mxu0 0
      %2429 = vmatpush1.bf16.msra.mxu0 %v2409
      %2430 = vmatprep.subr.bf16.mxu0 0
      %2431 = vmatpush1.bf16.msra.mxu0 %v2410
      %2432 = vmatprep.subr.bf16.mxu0 0
      %2433 = vmatpush1.bf16.msra.mxu0 %v2411
      %2434 = vmatprep.subr.bf16.mxu0 0
      %2435 = vmatpush1.bf16.msra.mxu0 %v2412
      %2436 = vmatprep.subr.bf16.mxu0 0
      %2437 = vmatpush1.bf16.msra.mxu0 %v2413
      %2438 = vmatprep.subr.bf16.mxu0 0
      %2439 = vmatpush1.bf16.msra.mxu0 0
      %2440 = vmatprep.subr.bf16.mxu0 0
      %2441 = vmatpush1.bf16.msra.mxu0 0
      %2442 = vmatprep.subr.bf16.mxu0 0
      %2443 = vmatpush1.bf16.msra.mxu0 0
      %2444 = vmatprep.subr.bf16.mxu0 0
      %2445 = vmatpush1.bf16.msra.mxu0 0
      %2446 = vmatprep.subr.bf16.mxu0 0
      %2447 = vmatpush1.bf16.msra.mxu0 0
      %2448 = vmatprep.subr.bf16.mxu0 0
      %2449 = vmatpush1.bf16.msra.mxu0 0
      %2450 = vmatprep.subr.bf16.mxu0 0
      %2451 = vmatpush1.bf16.msra.mxu0 0
      %2452 = vmatprep.subr.bf16.mxu0 0
      %2453 = vmatpush1.bf16.msra.mxu0 0
      %2454 = vmatprep.mubr.bf16.mxu0 0
      %2455 = vmatmul.mubr.bf16.gmra.mrb[0].mxu0 %v2341
      %v2456 = vpop.f32.mrb[0].mxu0
      %v2457 = vadd.f32 0.0, %v2456
      %v2458 = vpop.f32.mrb[0].mxu0
      %v2459 = vpop.f32.mrb[0].mxu0
      %v2460 = vadd.f32 0.0, %v2459
      %v2461 = vpop.f32.mrb[0].mxu0
      %2462 = vmatprep.mubr.bf16.mxu0 0
      %2463 = vmatmul.mubr.bf16.gmra.mrb[0].mxu0 %v2342
      %v2464 = vpop.f32.mrb[0].mxu0
      %v2465 = vadd.f32 0.0, %v2464
      %v2466 = vpop.f32.mrb[0].mxu0
      %v2467 = vpop.f32.mrb[0].mxu0
      %v2468 = vadd.f32 0.0, %v2467
      %v2469 = vpop.f32.mrb[0].mxu0
      %2470 = vmatprep.mubr.bf16.mxu0 0
      %2471 = vmatmul.mubr.bf16.gmra.mrb[0].mxu0 %v2343
      %v2472 = vpop.f32.mrb[0].mxu0
      %v2473 = vadd.f32 0.0, %v2472
      %v2474 = vpop.f32.mrb[0].mxu0
      %v2475 = vpop.f32.mrb[0].mxu0
      %v2476 = vadd.f32 0.0, %v2475
      %v2477 = vpop.f32.mrb[0].mxu0
      %2478 = vmatprep.mubr.bf16.mxu0 0
      %2479 = vmatmul.mubr.bf16.gmra.mrb[0].mxu0 %v2344
      %v2480 = vpop.f32.mrb[0].mxu0
      %v2481 = vadd.f32 0.0, %v2480
      %v2482 = vpop.f32.mrb[0].mxu0
      %v2483 = vpop.f32.mrb[0].mxu0
      %v2484 = vadd.f32 0.0, %v2483
      %v2485 = vpop.f32.mrb[0].mxu0
      %2486 = vmatprep.mubr.bf16.mxu0 0
      %2487 = vmatmul.mubr.bf16.gmra.mrb[0].mxu0 %v2345
      %v2488 = vpop.f32.mrb[0].mxu0
      %v2489 = vadd.f32 0.0, %v2488
      %v2490 = vpop.f32.mrb[0].mxu0
      %v2491 = vpop.f32.mrb[0].mxu0
      %v2492 = vadd.f32 0.0, %v2491
      %v2493 = vpop.f32.mrb[0].mxu0
      %2494 = vmatprep.mubr.bf16.mxu0 0
      %2495 = vmatmul.mubr.bf16.gmra.mrb[0].mxu0 %v2346
      %v2496 = vpop.f32.mrb[0].mxu0
      %v2497 = vadd.f32 0.0, %v2496
      %v2498 = vpop.f32.mrb[0].mxu0
      %v2499 = vpop.f32.mrb[0].mxu0
      %v2500 = vadd.f32 0.0, %v2499
      %v2501 = vpop.f32.mrb[0].mxu0
      %2502 = vmatprep.mubr.bf16.mxu0 0
      %2503 = vmatmul.mubr.bf16.gmra.mrb[0].mxu0 %v2347
      %v2504 = vpop.f32.mrb[0].mxu0
      %v2505 = vadd.f32 0.0, %v2504
      %v2506 = vpop.f32.mrb[0].mxu0
      %v2507 = vpop.f32.mrb[0].mxu0
      %v2508 = vadd.f32 0.0, %v2507
      %v2509 = vpop.f32.mrb[0].mxu0
      %2510 = vmatprep.mubr.bf16.mxu0 0
      %2511 = vmatmul.mubr.bf16.gmra.mrb[0].mxu0 %v2348
      %v2512 = vpop.f32.mrb[0].mxu0
      %v2513 = vadd.f32 0.0, %v2512
      %v2514 = vpop.f32.mrb[0].mxu0
      %v2515 = vpop.f32.mrb[0].mxu0
      %v2516 = vadd.f32 0.0, %v2515
      %v2517 = vpop.f32.mrb[0].mxu0
      %2518 = vmatprep.mubr.bf16.mxu0 0
      %2519 = vmatmul.mubr.bf16.gmra.mrb[0].mxu0 %v2349
      %v2520 = vpop.f32.mrb[0].mxu0
      %v2521 = vadd.f32 0.0, %v2520
      %v2522 = vpop.f32.mrb[0].mxu0
      %v2523 = vpop.f32.mrb[0].mxu0
      %v2524 = vadd.f32 0.0, %v2523
      %v2525 = vpop.f32.mrb[0].mxu0
      %2526 = vmatprep.mubr.bf16.mxu0 0
      %2527 = vmatmul.mubr.bf16.gmra.mrb[0].mxu0 %v2350
      %v2528 = vpop.f32.mrb[0].mxu0
      %v2529 = vadd.f32 0.0, %v2528
      %v2530 = vpop.f32.mrb[0].mxu0
      %v2531 = vpop.f32.mrb[0].mxu0
      %v2532 = vadd.f32 0.0, %v2531
      %v2533 = vpop.f32.mrb[0].mxu0
      %2534 = vmatprep.mubr.bf16.mxu0 0
      %2535 = vmatmul.mubr.bf16.gmra.mrb[0].mxu0 %v2351
      %v2536 = vpop.f32.mrb[0].mxu0
      %v2537 = vadd.f32 0.0, %v2536
      %v2538 = vpop.f32.mrb[0].mxu0
      %v2539 = vpop.f32.mrb[0].mxu0
      %v2540 = vadd.f32 0.0, %v2539
      %v2541 = vpop.f32.mrb[0].mxu0
      %2542 = vmatprep.mubr.bf16.mxu0 0
      %2543 = vmatmul.mubr.bf16.gmra.mrb[0].mxu0 %v2352
      %v2544 = vpop.f32.mrb[0].mxu0
      %v2545 = vadd.f32 0.0, %v2544
      %v2546 = vpop.f32.mrb[0].mxu0
      %v2547 = vpop.f32.mrb[0].mxu0
      %v2548 = vadd.f32 0.0, %v2547
      %v2549 = vpop.f32.mrb[0].mxu0
      %2550 = vmatprep.mubr.bf16.mxu0 0
      %2551 = vmatmul.mubr.bf16.gmra.mrb[0].mxu0 %v2353
      %v2552 = vpop.f32.mrb[0].mxu0
      %v2553 = vadd.f32 0.0, %v2552
      %v2554 = vpop.f32.mrb[0].mxu0
      %v2555 = vpop.f32.mrb[0].mxu0
      %v2556 = vadd.f32 0.0, %v2555
      %v2557 = vpop.f32.mrb[0].mxu0
      %2558 = vmatprep.mubr.bf16.mxu0 0
      %2559 = vmatmul.mubr.bf16.gmra.mrb[0].mxu0 %v2354
      %v2560 = vpop.f32.mrb[0].mxu0
      %v2561 = vadd.f32 0.0, %v2560
      %v2562 = vpop.f32.mrb[0].mxu0
      %v2563 = vpop.f32.mrb[0].mxu0
      %v2564 = vadd.f32 0.0, %v2563
      %v2565 = vpop.f32.mrb[0].mxu0
      %2566 = vmatprep.mubr.bf16.mxu0 0
      %2567 = vmatmul.mubr.bf16.gmra.mrb[0].mxu0 %v2355
      %v2568 = vpop.f32.mrb[0].mxu0
      %v2569 = vadd.f32 0.0, %v2568
      %v2570 = vpop.f32.mrb[0].mxu0
      %v2571 = vpop.f32.mrb[0].mxu0
      %v2572 = vadd.f32 0.0, %v2571
      %v2573 = vpop.f32.mrb[0].mxu0
      %2574 = vmatprep.mubr.bf16.mxu0 0
      %2575 = vmatmul.mubr.bf16.gmra.mrb[0].mxu0 %v2356
      %v2576 = vpop.f32.mrb[0].mxu0
      %v2577 = vadd.f32 0.0, %v2576
      %v2578 = vpop.f32.mrb[0].mxu0
      %v2579 = vpop.f32.mrb[0].mxu0
      %v2580 = vadd.f32 0.0, %v2579
      %v2581 = vpop.f32.mrb[0].mxu0
      %2582 = vdwg.mxu0
      %v2583 = vadd.f32 %v2277, %v2457
      %v2584 = vadd.f32 %v2278, %v2460
      %v2585 = vadd.f32 %v2279, %v2465
      %v2586 = vadd.f32 %v2280, %v2468
      %v2587 = vadd.f32 %v2281, %v2473
      %v2588 = vadd.f32 %v2282, %v2476
      %v2589 = vadd.f32 %v2283, %v2481
      %v2590 = vadd.f32 %v2284, %v2484
      %v2591 = vadd.f32 %v2285, %v2489
      %v2592 = vadd.f32 %v2286, %v2492
      %v2593 = vadd.f32 %v2287, %v2497
      %v2594 = vadd.f32 %v2288, %v2500
      %v2595 = vadd.f32 %v2289, %v2505
      %v2596 = vadd.f32 %v2290, %v2508
      %v2597 = vadd.f32 %v2291, %v2513
      %v2598 = vadd.f32 %v2292, %v2516
      %v2599 = vadd.f32 %v2293, %v2521
      %v2600 = vadd.f32 %v2294, %v2524
      %v2601 = vadd.f32 %v2295, %v2529
      %v2602 = vadd.f32 %v2296, %v2532
      %v2603 = vadd.f32 %v2297, %v2537
      %v2604 = vadd.f32 %v2298, %v2540
      %v2605 = vadd.f32 %v2299, %v2545
      %v2606 = vadd.f32 %v2300, %v2548
      %v2607 = vadd.f32 %v2301, %v2553
      %v2608 = vadd.f32 %v2302, %v2556
      %v2609 = vadd.f32 %v2303, %v2561
      %v2610 = vadd.f32 %v2304, %v2564
      %v2611 = vadd.f32 %v2305, %v2569
      %v2612 = vadd.f32 %v2306, %v2572
      %v2613 = vadd.f32 %v2307, %v2577
      %v2614 = vadd.f32 %v2308, %v2580
      %v2615 = vld [vmem:[%s2002 + $0x2] sm:$0xff]
      %v2616 = vld [vmem:[%s2002 + $0x12] sm:$0xff]
      %v2617 = vld [vmem:[%s2002 + $0x22] sm:$0xff]
      %v2618 = vld [vmem:[%s2002 + $0x32] sm:$0xff]
      %v2619 = vld [vmem:[%s2002 + $0x42] sm:$0xff]
      %v2620 = vld [vmem:[%s2002 + $0x52] sm:$0xff]
      %v2621 = vld [vmem:[%s2002 + $0x62] sm:$0xff]
      %v2622 = vld [vmem:[%s2002 + $0x72] sm:$0xff]
      %v2623 = vld [vmem:[%s2002 + $0xa2] sm:$0xff]
      %v2624 = vld [vmem:[%s2002 + $0xb2] sm:$0xff]
      %v2625 = vld [vmem:[%s2002 + $0xc2] sm:$0xff]
      %v2626 = vld [vmem:[%s2002 + $0xd2] sm:$0xff]
      %v2627 = vld [vmem:[%s2002 + $0xe2] sm:$0xff]
      %v2628 = vld [vmem:[%s2002 + $0xf2] sm:$0xff]
      %v2629 = vld [vmem:[%s2002 + $0x102] sm:$0xff]
      %v2630 = vld [vmem:[%s2002 + $0x112] sm:$0xff]
      %v2631 = vld [vmem:[%s2002 + $0x142] sm:$0xff]
      %v2632 = vld [vmem:[%s2002 + $0x152] sm:$0xff]
      %v2633 = vld [vmem:[%s2002 + $0x162] sm:$0xff]
      %v2634 = vld [vmem:[%s2002 + $0x172] sm:$0xff]
      %v2635 = vld [vmem:[%s2002 + $0x182] sm:$0xff]
      %v2636 = vld [vmem:[%s2002 + $0x192] sm:$0xff]
      %v2637 = vld [vmem:[%s2002 + $0x1a2] sm:$0xff]
      %v2638 = vld [vmem:[%s2002 + $0x1b2] sm:$0xff]
      %v2639 = vld [vmem:[%s2002 + $0x1e2] sm:$0xff]
      %v2640 = vld [vmem:[%s2002 + $0x1f2] sm:$0xff]
      %v2641 = vld [vmem:[%s2002 + $0x202] sm:$0xff]
      %v2642 = vld [vmem:[%s2002 + $0x212] sm:$0xff]
      %v2643 = vld [vmem:[%s2002 + $0x222] sm:$0xff]
      %v2644 = vld [vmem:[%s2002 + $0x232] sm:$0xff]
      %v2645 = vld [vmem:[%s2002 + $0x242] sm:$0xff]
      %v2646 = vld [vmem:[%s2002 + $0x252] sm:$0xff]
      %v2647 = vpack.c.bf16 %v2616, %v2615
      %v2648 = vpack.c.bf16 %v2618, %v2617
      %v2649 = vpack.c.bf16 %v2620, %v2619
      %v2650 = vpack.c.bf16 %v2622, %v2621
      %v2651 = vpack.c.bf16 %v2624, %v2623
      %v2652 = vpack.c.bf16 %v2626, %v2625
      %v2653 = vpack.c.bf16 %v2628, %v2627
      %v2654 = vpack.c.bf16 %v2630, %v2629
      %v2655 = vpack.c.bf16 %v2632, %v2631
      %v2656 = vpack.c.bf16 %v2634, %v2633
      %v2657 = vpack.c.bf16 %v2636, %v2635
      %v2658 = vpack.c.bf16 %v2638, %v2637
      %v2659 = vpack.c.bf16 %v2640, %v2639
      %v2660 = vpack.c.bf16 %v2642, %v2641
      %v2661 = vpack.c.bf16 %v2644, %v2643
      %v2662 = vpack.c.bf16 %v2646, %v2645
      %s2663 = scalar_lea.vmem %s1, 512
      %v2664 = vld [vmem:[%s2663] sm:$0xf]
      %v2665 = vld [vmem:[%s2663 + $0x4] sm:$0xf]
      %v2666 = vld [vmem:[%s2663 + $0x8] sm:$0xf]
      %v2667 = vld [vmem:[%s2663 + $0xc] sm:$0xf]
      %v2668 = vld [vmem:[%s2663 + $0x10] sm:$0xf]
      %v2669 = vld [vmem:[%s2663 + $0x14] sm:$0xf]
      %v2670 = vld [vmem:[%s2663 + $0x18] sm:$0xf]
      %v2671 = vld [vmem:[%s2663 + $0x1c] sm:$0xf]
      %v2672 = vld [vmem:[%s2663 + $0x20] sm:$0xf]
      %v2673 = vld [vmem:[%s2663 + $0x24] sm:$0xf]
      %v2674 = vld [vmem:[%s2663 + $0x28] sm:$0xf]
      %v2675 = vld [vmem:[%s2663 + $0x2c] sm:$0xf]
      %v2676 = vld [vmem:[%s2663 + $0x30] sm:$0xf]
      %v2677 = vld [vmem:[%s2663 + $0x34] sm:$0xf]
      %v2678 = vld [vmem:[%s2663 + $0x38] sm:$0xf]
      %v2679 = vld [vmem:[%s2663 + $0x3c] sm:$0xf]
      %v2696 = vunpack.c.l.b16 %v2664
      %v2697 = vunpack.c.l.b16 %v2665
      %v2698 = vunpack.c.l.b16 %v2666
      %v2699 = vunpack.c.l.b16 %v2667
      %v2700 = vunpack.c.l.b16 %v2668
      %v2701 = vunpack.c.l.b16 %v2669
      %v2702 = vunpack.c.l.b16 %v2670
      %v2703 = vunpack.c.l.b16 %v2671
      %v2704 = vunpack.c.l.b16 %v2672
      %v2705 = vunpack.c.l.b16 %v2673
      %v2706 = vunpack.c.l.b16 %v2674
      %v2707 = vunpack.c.l.b16 %v2675
      %v2708 = vunpack.c.l.b16 %v2676
      %v2709 = vunpack.c.l.b16 %v2677
      %v2710 = vunpack.c.l.b16 %v2678
      %v2711 = vunpack.c.l.b16 %v2679
      %v2712 = vpack.c.b16 %v2697, %v2696
      %v2713 = vpack.c.b16 %v2699, %v2698
      %v2714 = vpack.c.b16 %v2701, %v2700
      %v2715 = vpack.c.b16 %v2703, %v2702
      %v2716 = vpack.c.b16 %v2705, %v2704
      %v2717 = vpack.c.b16 %v2707, %v2706
      %v2718 = vpack.c.b16 %v2709, %v2708
      %v2719 = vpack.c.b16 %v2711, %v2710
      %2728 = vmatprep.subr.bf16.mxu0 0
      %2729 = vmatpush1.bf16.msra.mxu0 %v2712
      %2730 = vmatprep.subr.bf16.mxu0 0
      %2731 = vmatpush1.bf16.msra.mxu0 %v2713
      %2732 = vmatprep.subr.bf16.mxu0 0
      %2733 = vmatpush1.bf16.msra.mxu0 %v2714
      %2734 = vmatprep.subr.bf16.mxu0 0
      %2735 = vmatpush1.bf16.msra.mxu0 %v2715
      %2736 = vmatprep.subr.bf16.mxu0 0
      %2737 = vmatpush1.bf16.msra.mxu0 %v2716
      %2738 = vmatprep.subr.bf16.mxu0 0
      %2739 = vmatpush1.bf16.msra.mxu0 %v2717
      %2740 = vmatprep.subr.bf16.mxu0 0
      %2741 = vmatpush1.bf16.msra.mxu0 %v2718
      %2742 = vmatprep.subr.bf16.mxu0 0
      %2743 = vmatpush1.bf16.msra.mxu0 %v2719
      %2744 = vmatprep.subr.bf16.mxu0 0
      %2745 = vmatpush1.bf16.msra.mxu0 0
      %2746 = vmatprep.subr.bf16.mxu0 0
      %2747 = vmatpush1.bf16.msra.mxu0 0
      %2748 = vmatprep.subr.bf16.mxu0 0
      %2749 = vmatpush1.bf16.msra.mxu0 0
      %2750 = vmatprep.subr.bf16.mxu0 0
      %2751 = vmatpush1.bf16.msra.mxu0 0
      %2752 = vmatprep.subr.bf16.mxu0 0
      %2753 = vmatpush1.bf16.msra.mxu0 0
      %2754 = vmatprep.subr.bf16.mxu0 0
      %2755 = vmatpush1.bf16.msra.mxu0 0
      %2756 = vmatprep.subr.bf16.mxu0 0
      %2757 = vmatpush1.bf16.msra.mxu0 0
      %2758 = vmatprep.subr.bf16.mxu0 0
      %2759 = vmatpush1.bf16.msra.mxu0 0
      %2760 = vmatprep.mubr.bf16.mxu0 0
      %2761 = vmatmul.mubr.bf16.gmra.mrb[0].mxu0 %v2647
      %v2762 = vpop.f32.mrb[0].mxu0
      %v2763 = vadd.f32 0.0, %v2762
      %v2764 = vpop.f32.mrb[0].mxu0
      %v2765 = vpop.f32.mrb[0].mxu0
      %v2766 = vadd.f32 0.0, %v2765
      %v2767 = vpop.f32.mrb[0].mxu0
      %2768 = vmatprep.mubr.bf16.mxu0 0
      %2769 = vmatmul.mubr.bf16.gmra.mrb[0].mxu0 %v2648
      %v2770 = vpop.f32.mrb[0].mxu0
      %v2771 = vadd.f32 0.0, %v2770
      %v2772 = vpop.f32.mrb[0].mxu0
      %v2773 = vpop.f32.mrb[0].mxu0
      %v2774 = vadd.f32 0.0, %v2773
      %v2775 = vpop.f32.mrb[0].mxu0
      %2776 = vmatprep.mubr.bf16.mxu0 0
      %2777 = vmatmul.mubr.bf16.gmra.mrb[0].mxu0 %v2649
      %v2778 = vpop.f32.mrb[0].mxu0
      %v2779 = vadd.f32 0.0, %v2778
      %v2780 = vpop.f32.mrb[0].mxu0
      %v2781 = vpop.f32.mrb[0].mxu0
      %v2782 = vadd.f32 0.0, %v2781
      %v2783 = vpop.f32.mrb[0].mxu0
      %2784 = vmatprep.mubr.bf16.mxu0 0
      %2785 = vmatmul.mubr.bf16.gmra.mrb[0].mxu0 %v2650
      %v2786 = vpop.f32.mrb[0].mxu0
      %v2787 = vadd.f32 0.0, %v2786
      %v2788 = vpop.f32.mrb[0].mxu0
      %v2789 = vpop.f32.mrb[0].mxu0
      %v2790 = vadd.f32 0.0, %v2789
      %v2791 = vpop.f32.mrb[0].mxu0
      %2792 = vmatprep.mubr.bf16.mxu0 0
      %2793 = vmatmul.mubr.bf16.gmra.mrb[0].mxu0 %v2651
      %v2794 = vpop.f32.mrb[0].mxu0
      %v2795 = vadd.f32 0.0, %v2794
      %v2796 = vpop.f32.mrb[0].mxu0
      %v2797 = vpop.f32.mrb[0].mxu0
      %v2798 = vadd.f32 0.0, %v2797
      %v2799 = vpop.f32.mrb[0].mxu0
      %2800 = vmatprep.mubr.bf16.mxu0 0
      %2801 = vmatmul.mubr.bf16.gmra.mrb[0].mxu0 %v2652
      %v2802 = vpop.f32.mrb[0].mxu0
      %v2803 = vadd.f32 0.0, %v2802
      %v2804 = vpop.f32.mrb[0].mxu0
      %v2805 = vpop.f32.mrb[0].mxu0
      %v2806 = vadd.f32 0.0, %v2805
      %v2807 = vpop.f32.mrb[0].mxu0
      %2808 = vmatprep.mubr.bf16.mxu0 0
      %2809 = vmatmul.mubr.bf16.gmra.mrb[0].mxu0 %v2653
      %v2810 = vpop.f32.mrb[0].mxu0
      %v2811 = vadd.f32 0.0, %v2810
      %v2812 = vpop.f32.mrb[0].mxu0
      %v2813 = vpop.f32.mrb[0].mxu0
      %v2814 = vadd.f32 0.0, %v2813
      %v2815 = vpop.f32.mrb[0].mxu0
      %2816 = vmatprep.mubr.bf16.mxu0 0
      %2817 = vmatmul.mubr.bf16.gmra.mrb[0].mxu0 %v2654
      %v2818 = vpop.f32.mrb[0].mxu0
      %v2819 = vadd.f32 0.0, %v2818
      %v2820 = vpop.f32.mrb[0].mxu0
      %v2821 = vpop.f32.mrb[0].mxu0
      %v2822 = vadd.f32 0.0, %v2821
      %v2823 = vpop.f32.mrb[0].mxu0
      %2824 = vmatprep.mubr.bf16.mxu0 0
      %2825 = vmatmul.mubr.bf16.gmra.mrb[0].mxu0 %v2655
      %v2826 = vpop.f32.mrb[0].mxu0
      %v2827 = vadd.f32 0.0, %v2826
      %v2828 = vpop.f32.mrb[0].mxu0
      %v2829 = vpop.f32.mrb[0].mxu0
      %v2830 = vadd.f32 0.0, %v2829
      %v2831 = vpop.f32.mrb[0].mxu0
      %2832 = vmatprep.mubr.bf16.mxu0 0
      %2833 = vmatmul.mubr.bf16.gmra.mrb[0].mxu0 %v2656
      %v2834 = vpop.f32.mrb[0].mxu0
      %v2835 = vadd.f32 0.0, %v2834
      %v2836 = vpop.f32.mrb[0].mxu0
      %v2837 = vpop.f32.mrb[0].mxu0
      %v2838 = vadd.f32 0.0, %v2837
      %v2839 = vpop.f32.mrb[0].mxu0
      %2840 = vmatprep.mubr.bf16.mxu0 0
      %2841 = vmatmul.mubr.bf16.gmra.mrb[0].mxu0 %v2657
      %v2842 = vpop.f32.mrb[0].mxu0
      %v2843 = vadd.f32 0.0, %v2842
      %v2844 = vpop.f32.mrb[0].mxu0
      %v2845 = vpop.f32.mrb[0].mxu0
      %v2846 = vadd.f32 0.0, %v2845
      %v2847 = vpop.f32.mrb[0].mxu0
      %2848 = vmatprep.mubr.bf16.mxu0 0
      %2849 = vmatmul.mubr.bf16.gmra.mrb[0].mxu0 %v2658
      %v2850 = vpop.f32.mrb[0].mxu0
      %v2851 = vadd.f32 0.0, %v2850
      %v2852 = vpop.f32.mrb[0].mxu0
      %v2853 = vpop.f32.mrb[0].mxu0
      %v2854 = vadd.f32 0.0, %v2853
      %v2855 = vpop.f32.mrb[0].mxu0
      %2856 = vmatprep.mubr.bf16.mxu0 0
      %2857 = vmatmul.mubr.bf16.gmra.mrb[0].mxu0 %v2659
      %v2858 = vpop.f32.mrb[0].mxu0
      %v2859 = vadd.f32 0.0, %v2858
      %v2860 = vpop.f32.mrb[0].mxu0
      %v2861 = vpop.f32.mrb[0].mxu0
      %v2862 = vadd.f32 0.0, %v2861
      %v2863 = vpop.f32.mrb[0].mxu0
      %2864 = vmatprep.mubr.bf16.mxu0 0
      %2865 = vmatmul.mubr.bf16.gmra.mrb[0].mxu0 %v2660
      %v2866 = vpop.f32.mrb[0].mxu0
      %v2867 = vadd.f32 0.0, %v2866
      %v2868 = vpop.f32.mrb[0].mxu0
      %v2869 = vpop.f32.mrb[0].mxu0
      %v2870 = vadd.f32 0.0, %v2869
      %v2871 = vpop.f32.mrb[0].mxu0
      %2872 = vmatprep.mubr.bf16.mxu0 0
      %2873 = vmatmul.mubr.bf16.gmra.mrb[0].mxu0 %v2661
      %v2874 = vpop.f32.mrb[0].mxu0
      %v2875 = vadd.f32 0.0, %v2874
      %v2876 = vpop.f32.mrb[0].mxu0
      %v2877 = vpop.f32.mrb[0].mxu0
      %v2878 = vadd.f32 0.0, %v2877
      %v2879 = vpop.f32.mrb[0].mxu0
      %2880 = vmatprep.mubr.bf16.mxu0 0
      %2881 = vmatmul.mubr.bf16.gmra.mrb[0].mxu0 %v2662
      %v2882 = vpop.f32.mrb[0].mxu0
      %v2883 = vadd.f32 0.0, %v2882
      %v2884 = vpop.f32.mrb[0].mxu0
      %v2885 = vpop.f32.mrb[0].mxu0
      %v2886 = vadd.f32 0.0, %v2885
      %v2887 = vpop.f32.mrb[0].mxu0
      %2888 = vdwg.mxu0
      %v2889 = vadd.f32 %v2583, %v2763
      %v2890 = vadd.f32 %v2584, %v2766
      %v2891 = vadd.f32 %v2585, %v2771
      %v2892 = vadd.f32 %v2586, %v2774
      %v2893 = vadd.f32 %v2587, %v2779
      %v2894 = vadd.f32 %v2588, %v2782
      %v2895 = vadd.f32 %v2589, %v2787
      %v2896 = vadd.f32 %v2590, %v2790
      %v2897 = vadd.f32 %v2591, %v2795
      %v2898 = vadd.f32 %v2592, %v2798
      %v2899 = vadd.f32 %v2593, %v2803
      %v2900 = vadd.f32 %v2594, %v2806
      %v2901 = vadd.f32 %v2595, %v2811
      %v2902 = vadd.f32 %v2596, %v2814
      %v2903 = vadd.f32 %v2597, %v2819
      %v2904 = vadd.f32 %v2598, %v2822
      %v2905 = vadd.f32 %v2599, %v2827
      %v2906 = vadd.f32 %v2600, %v2830
      %v2907 = vadd.f32 %v2601, %v2835
      %v2908 = vadd.f32 %v2602, %v2838
      %v2909 = vadd.f32 %v2603, %v2843
      %v2910 = vadd.f32 %v2604, %v2846
      %v2911 = vadd.f32 %v2605, %v2851
      %v2912 = vadd.f32 %v2606, %v2854
      %v2913 = vadd.f32 %v2607, %v2859
      %v2914 = vadd.f32 %v2608, %v2862
      %v2915 = vadd.f32 %v2609, %v2867
      %v2916 = vadd.f32 %v2610, %v2870
      %v2917 = vadd.f32 %v2611, %v2875
      %v2918 = vadd.f32 %v2612, %v2878
      %v2919 = vadd.f32 %v2613, %v2883
      %v2920 = vadd.f32 %v2614, %v2886
      %s2921 = scalar_lea.vmem %s210, 160
      %v2922 = vld [vmem:[%s2921] sm:$0xff]
      %v2923 = vld [vmem:[%s2921 + $0x10] sm:$0xff]
      %v2924 = vld [vmem:[%s2921 + $0x20] sm:$0xff]
      %v2925 = vld [vmem:[%s2921 + $0x30] sm:$0xff]
      %v2926 = vld [vmem:[%s2921 + $0x40] sm:$0xff]
      %v2927 = vld [vmem:[%s2921 + $0x50] sm:$0xff]
      %v2928 = vld [vmem:[%s2921 + $0x60] sm:$0xff]
      %v2929 = vld [vmem:[%s2921 + $0x70] sm:$0xff]
      %v2930 = vld [vmem:[%s2921 + $0xa0] sm:$0xff]
      %v2931 = vld [vmem:[%s2921 + $0xb0] sm:$0xff]
      %v2932 = vld [vmem:[%s2921 + $0xc0] sm:$0xff]
      %v2933 = vld [vmem:[%s2921 + $0xd0] sm:$0xff]
      %v2934 = vld [vmem:[%s2921 + $0xe0] sm:$0xff]
      %v2935 = vld [vmem:[%s2921 + $0xf0] sm:$0xff]
      %v2936 = vld [vmem:[%s2921 + $0x100] sm:$0xff]
      %v2937 = vld [vmem:[%s2921 + $0x110] sm:$0xff]
      %v2938 = vld [vmem:[%s2921 + $0x140] sm:$0xff]
      %v2939 = vld [vmem:[%s2921 + $0x150] sm:$0xff]
      %v2940 = vld [vmem:[%s2921 + $0x160] sm:$0xff]
      %v2941 = vld [vmem:[%s2921 + $0x170] sm:$0xff]
      %v2942 = vld [vmem:[%s2921 + $0x180] sm:$0xff]
      %v2943 = vld [vmem:[%s2921 + $0x190] sm:$0xff]
      %v2944 = vld [vmem:[%s2921 + $0x1a0] sm:$0xff]
      %v2945 = vld [vmem:[%s2921 + $0x1b0] sm:$0xff]
      %v2946 = vld [vmem:[%s2921 + $0x1e0] sm:$0xff]
      %v2947 = vld [vmem:[%s2921 + $0x1f0] sm:$0xff]
      %v2948 = vld [vmem:[%s2921 + $0x200] sm:$0xff]
      %v2949 = vld [vmem:[%s2921 + $0x210] sm:$0xff]
      %v2950 = vld [vmem:[%s2921 + $0x220] sm:$0xff]
      %v2951 = vld [vmem:[%s2921 + $0x230] sm:$0xff]
      %v2952 = vld [vmem:[%s2921 + $0x240] sm:$0xff]
      %v2953 = vld [vmem:[%s2921 + $0x250] sm:$0xff]
      %v2954 = vpack.c.bf16 %v2923, %v2922
      %v2955 = vpack.c.bf16 %v2925, %v2924
      %v2956 = vpack.c.bf16 %v2927, %v2926
      %v2957 = vpack.c.bf16 %v2929, %v2928
      %v2958 = vpack.c.bf16 %v2931, %v2930
      %v2959 = vpack.c.bf16 %v2933, %v2932
      %v2960 = vpack.c.bf16 %v2935, %v2934
      %v2961 = vpack.c.bf16 %v2937, %v2936
      %v2962 = vpack.c.bf16 %v2939, %v2938
      %v2963 = vpack.c.bf16 %v2941, %v2940
      %v2964 = vpack.c.bf16 %v2943, %v2942
      %v2965 = vpack.c.bf16 %v2945, %v2944
      %v2966 = vpack.c.bf16 %v2947, %v2946
      %v2967 = vpack.c.bf16 %v2949, %v2948
      %v2968 = vpack.c.bf16 %v2951, %v2950
      %v2969 = vpack.c.bf16 %v2953, %v2952
      %s2970 = scalar_lea.vmem %s1, 576
      %v2971 = vld [vmem:[%s2970] sm:$0xf]
      %v2972 = vld [vmem:[%s2970 + $0x4] sm:$0xf]
      %v2973 = vld [vmem:[%s2970 + $0x8] sm:$0xf]
      %v2974 = vld [vmem:[%s2970 + $0xc] sm:$0xf]
      %v2975 = vld [vmem:[%s2970 + $0x10] sm:$0xf]
      %v2976 = vld [vmem:[%s2970 + $0x14] sm:$0xf]
      %v2977 = vld [vmem:[%s2970 + $0x18] sm:$0xf]
      %v2978 = vld [vmem:[%s2970 + $0x1c] sm:$0xf]
      %v2979 = vld [vmem:[%s2970 + $0x20] sm:$0xf]
      %v2980 = vld [vmem:[%s2970 + $0x24] sm:$0xf]
      %v2981 = vld [vmem:[%s2970 + $0x28] sm:$0xf]
      %v2982 = vld [vmem:[%s2970 + $0x2c] sm:$0xf]
      %v2983 = vld [vmem:[%s2970 + $0x30] sm:$0xf]
      %v2984 = vld [vmem:[%s2970 + $0x34] sm:$0xf]
      %v2985 = vld [vmem:[%s2970 + $0x38] sm:$0xf]
      %v2986 = vld [vmem:[%s2970 + $0x3c] sm:$0xf]
      %v3003 = vunpack.c.l.b16 %v2971
      %v3004 = vunpack.c.l.b16 %v2972
      %v3005 = vunpack.c.l.b16 %v2973
      %v3006 = vunpack.c.l.b16 %v2974
      %v3007 = vunpack.c.l.b16 %v2975
      %v3008 = vunpack.c.l.b16 %v2976
      %v3009 = vunpack.c.l.b16 %v2977
      %v3010 = vunpack.c.l.b16 %v2978
      %v3011 = vunpack.c.l.b16 %v2979
      %v3012 = vunpack.c.l.b16 %v2980
      %v3013 = vunpack.c.l.b16 %v2981
      %v3014 = vunpack.c.l.b16 %v2982
      %v3015 = vunpack.c.l.b16 %v2983
      %v3016 = vunpack.c.l.b16 %v2984
      %v3017 = vunpack.c.l.b16 %v2985
      %v3018 = vunpack.c.l.b16 %v2986
      %v3019 = vpack.c.b16 %v3004, %v3003
      %v3020 = vpack.c.b16 %v3006, %v3005
      %v3021 = vpack.c.b16 %v3008, %v3007
      %v3022 = vpack.c.b16 %v3010, %v3009
      %v3023 = vpack.c.b16 %v3012, %v3011
      %v3024 = vpack.c.b16 %v3014, %v3013
      %v3025 = vpack.c.b16 %v3016, %v3015
      %v3026 = vpack.c.b16 %v3018, %v3017
      %3035 = vmatprep.subr.bf16.mxu0 0
      %3036 = vmatpush1.bf16.msra.mxu0 %v3019
      %3037 = vmatprep.subr.bf16.mxu0 0
      %3038 = vmatpush1.bf16.msra.mxu0 %v3020
      %3039 = vmatprep.subr.bf16.mxu0 0
      %3040 = vmatpush1.bf16.msra.mxu0 %v3021
      %3041 = vmatprep.subr.bf16.mxu0 0
      %3042 = vmatpush1.bf16.msra.mxu0 %v3022
      %3043 = vmatprep.subr.bf16.mxu0 0
      %3044 = vmatpush1.bf16.msra.mxu0 %v3023
      %3045 = vmatprep.subr.bf16.mxu0 0
      %3046 = vmatpush1.bf16.msra.mxu0 %v3024
      %3047 = vmatprep.subr.bf16.mxu0 0
      %3048 = vmatpush1.bf16.msra.mxu0 %v3025
      %3049 = vmatprep.subr.bf16.mxu0 0
      %3050 = vmatpush1.bf16.msra.mxu0 %v3026
      %3051 = vmatprep.subr.bf16.mxu0 0
      %3052 = vmatpush1.bf16.msra.mxu0 0
      %3053 = vmatprep.subr.bf16.mxu0 0
      %3054 = vmatpush1.bf16.msra.mxu0 0
      %3055 = vmatprep.subr.bf16.mxu0 0
      %3056 = vmatpush1.bf16.msra.mxu0 0
      %3057 = vmatprep.subr.bf16.mxu0 0
      %3058 = vmatpush1.bf16.msra.mxu0 0
      %3059 = vmatprep.subr.bf16.mxu0 0
      %3060 = vmatpush1.bf16.msra.mxu0 0
      %3061 = vmatprep.subr.bf16.mxu0 0
      %3062 = vmatpush1.bf16.msra.mxu0 0
      %3063 = vmatprep.subr.bf16.mxu0 0
      %3064 = vmatpush1.bf16.msra.mxu0 0
      %3065 = vmatprep.subr.bf16.mxu0 0
      %3066 = vmatpush1.bf16.msra.mxu0 0
      %3067 = vmatprep.mubr.bf16.mxu0 0
      %3068 = vmatmul.mubr.bf16.gmra.mrb[0].mxu0 %v2954
      %v3069 = vpop.f32.mrb[0].mxu0
      %v3070 = vadd.f32 0.0, %v3069
      %v3071 = vpop.f32.mrb[0].mxu0
      %v3072 = vpop.f32.mrb[0].mxu0
      %v3073 = vadd.f32 0.0, %v3072
      %v3074 = vpop.f32.mrb[0].mxu0
      %3075 = vmatprep.mubr.bf16.mxu0 0
      %3076 = vmatmul.mubr.bf16.gmra.mrb[0].mxu0 %v2955
      %v3077 = vpop.f32.mrb[0].mxu0
      %v3078 = vadd.f32 0.0, %v3077
      %v3079 = vpop.f32.mrb[0].mxu0
      %v3080 = vpop.f32.mrb[0].mxu0
      %v3081 = vadd.f32 0.0, %v3080
      %v3082 = vpop.f32.mrb[0].mxu0
      %3083 = vmatprep.mubr.bf16.mxu0 0
      %3084 = vmatmul.mubr.bf16.gmra.mrb[0].mxu0 %v2956
      %v3085 = vpop.f32.mrb[0].mxu0
      %v3086 = vadd.f32 0.0, %v3085
      %v3087 = vpop.f32.mrb[0].mxu0
      %v3088 = vpop.f32.mrb[0].mxu0
      %v3089 = vadd.f32 0.0, %v3088
      %v3090 = vpop.f32.mrb[0].mxu0
      %3091 = vmatprep.mubr.bf16.mxu0 0
      %3092 = vmatmul.mubr.bf16.gmra.mrb[0].mxu0 %v2957
      %v3093 = vpop.f32.mrb[0].mxu0
      %v3094 = vadd.f32 0.0, %v3093
      %v3095 = vpop.f32.mrb[0].mxu0
      %v3096 = vpop.f32.mrb[0].mxu0
      %v3097 = vadd.f32 0.0, %v3096
      %v3098 = vpop.f32.mrb[0].mxu0
      %3099 = vmatprep.mubr.bf16.mxu0 0
      %3100 = vmatmul.mubr.bf16.gmra.mrb[0].mxu0 %v2958
      %v3101 = vpop.f32.mrb[0].mxu0
      %v3102 = vadd.f32 0.0, %v3101
      %v3103 = vpop.f32.mrb[0].mxu0
      %v3104 = vpop.f32.mrb[0].mxu0
      %v3105 = vadd.f32 0.0, %v3104
      %v3106 = vpop.f32.mrb[0].mxu0
      %3107 = vmatprep.mubr.bf16.mxu0 0
      %3108 = vmatmul.mubr.bf16.gmra.mrb[0].mxu0 %v2959
      %v3109 = vpop.f32.mrb[0].mxu0
      %v3110 = vadd.f32 0.0, %v3109
      %v3111 = vpop.f32.mrb[0].mxu0
      %v3112 = vpop.f32.mrb[0].mxu0
      %v3113 = vadd.f32 0.0, %v3112
      %v3114 = vpop.f32.mrb[0].mxu0
      %3115 = vmatprep.mubr.bf16.mxu0 0
      %3116 = vmatmul.mubr.bf16.gmra.mrb[0].mxu0 %v2960
      %v3117 = vpop.f32.mrb[0].mxu0
      %v3118 = vadd.f32 0.0, %v3117
      %v3119 = vpop.f32.mrb[0].mxu0
      %v3120 = vpop.f32.mrb[0].mxu0
      %v3121 = vadd.f32 0.0, %v3120
      %v3122 = vpop.f32.mrb[0].mxu0
      %3123 = vmatprep.mubr.bf16.mxu0 0
      %3124 = vmatmul.mubr.bf16.gmra.mrb[0].mxu0 %v2961
      %v3125 = vpop.f32.mrb[0].mxu0
      %v3126 = vadd.f32 0.0, %v3125
      %v3127 = vpop.f32.mrb[0].mxu0
      %v3128 = vpop.f32.mrb[0].mxu0
      %v3129 = vadd.f32 0.0, %v3128
      %v3130 = vpop.f32.mrb[0].mxu0
      %3131 = vmatprep.mubr.bf16.mxu0 0
      %3132 = vmatmul.mubr.bf16.gmra.mrb[0].mxu0 %v2962
      %v3133 = vpop.f32.mrb[0].mxu0
      %v3134 = vadd.f32 0.0, %v3133
      %v3135 = vpop.f32.mrb[0].mxu0
      %v3136 = vpop.f32.mrb[0].mxu0
      %v3137 = vadd.f32 0.0, %v3136
      %v3138 = vpop.f32.mrb[0].mxu0
      %3139 = vmatprep.mubr.bf16.mxu0 0
      %3140 = vmatmul.mubr.bf16.gmra.mrb[0].mxu0 %v2963
      %v3141 = vpop.f32.mrb[0].mxu0
      %v3142 = vadd.f32 0.0, %v3141
      %v3143 = vpop.f32.mrb[0].mxu0
      %v3144 = vpop.f32.mrb[0].mxu0
      %v3145 = vadd.f32 0.0, %v3144
      %v3146 = vpop.f32.mrb[0].mxu0
      %3147 = vmatprep.mubr.bf16.mxu0 0
      %3148 = vmatmul.mubr.bf16.gmra.mrb[0].mxu0 %v2964
      %v3149 = vpop.f32.mrb[0].mxu0
      %v3150 = vadd.f32 0.0, %v3149
      %v3151 = vpop.f32.mrb[0].mxu0
      %v3152 = vpop.f32.mrb[0].mxu0
      %v3153 = vadd.f32 0.0, %v3152
      %v3154 = vpop.f32.mrb[0].mxu0
      %3155 = vmatprep.mubr.bf16.mxu0 0
      %3156 = vmatmul.mubr.bf16.gmra.mrb[0].mxu0 %v2965
      %v3157 = vpop.f32.mrb[0].mxu0
      %v3158 = vadd.f32 0.0, %v3157
      %v3159 = vpop.f32.mrb[0].mxu0
      %v3160 = vpop.f32.mrb[0].mxu0
      %v3161 = vadd.f32 0.0, %v3160
      %v3162 = vpop.f32.mrb[0].mxu0
      %3163 = vmatprep.mubr.bf16.mxu0 0
      %3164 = vmatmul.mubr.bf16.gmra.mrb[0].mxu0 %v2966
      %v3165 = vpop.f32.mrb[0].mxu0
      %v3166 = vadd.f32 0.0, %v3165
      %v3167 = vpop.f32.mrb[0].mxu0
      %v3168 = vpop.f32.mrb[0].mxu0
      %v3169 = vadd.f32 0.0, %v3168
      %v3170 = vpop.f32.mrb[0].mxu0
      %3171 = vmatprep.mubr.bf16.mxu0 0
      %3172 = vmatmul.mubr.bf16.gmra.mrb[0].mxu0 %v2967
      %v3173 = vpop.f32.mrb[0].mxu0
      %v3174 = vadd.f32 0.0, %v3173
      %v3175 = vpop.f32.mrb[0].mxu0
      %v3176 = vpop.f32.mrb[0].mxu0
      %v3177 = vadd.f32 0.0, %v3176
      %v3178 = vpop.f32.mrb[0].mxu0
      %3179 = vmatprep.mubr.bf16.mxu0 0
      %3180 = vmatmul.mubr.bf16.gmra.mrb[0].mxu0 %v2968
      %v3181 = vpop.f32.mrb[0].mxu0
      %v3182 = vadd.f32 0.0, %v3181
      %v3183 = vpop.f32.mrb[0].mxu0
      %v3184 = vpop.f32.mrb[0].mxu0
      %v3185 = vadd.f32 0.0, %v3184
      %v3186 = vpop.f32.mrb[0].mxu0
      %3187 = vmatprep.mubr.bf16.mxu0 0
      %3188 = vmatmul.mubr.bf16.gmra.mrb[0].mxu0 %v2969
      %v3189 = vpop.f32.mrb[0].mxu0
      %v3190 = vadd.f32 0.0, %v3189
      %v3191 = vpop.f32.mrb[0].mxu0
      %v3192 = vpop.f32.mrb[0].mxu0
      %v3193 = vadd.f32 0.0, %v3192
      %v3194 = vpop.f32.mrb[0].mxu0
      %3195 = vdwg.mxu0
      %v3196 = vadd.f32 %v2889, %v3070
      %v3197 = vadd.f32 %v2890, %v3073
      %v3198 = vadd.f32 %v2891, %v3078
      %v3199 = vadd.f32 %v2892, %v3081
      %v3200 = vadd.f32 %v2893, %v3086
      %v3201 = vadd.f32 %v2894, %v3089
      %v3202 = vadd.f32 %v2895, %v3094
      %v3203 = vadd.f32 %v2896, %v3097
      %v3204 = vadd.f32 %v2897, %v3102
      %v3205 = vadd.f32 %v2898, %v3105
      %v3206 = vadd.f32 %v2899, %v3110
      %v3207 = vadd.f32 %v2900, %v3113
      %v3208 = vadd.f32 %v2901, %v3118
      %v3209 = vadd.f32 %v2902, %v3121
      %v3210 = vadd.f32 %v2903, %v3126
      %v3211 = vadd.f32 %v2904, %v3129
      %v3212 = vadd.f32 %v2905, %v3134
      %v3213 = vadd.f32 %v2906, %v3137
      %v3214 = vadd.f32 %v2907, %v3142
      %v3215 = vadd.f32 %v2908, %v3145
      %v3216 = vadd.f32 %v2909, %v3150
      %v3217 = vadd.f32 %v2910, %v3153
      %v3218 = vadd.f32 %v2911, %v3158
      %v3219 = vadd.f32 %v2912, %v3161
      %v3220 = vadd.f32 %v2913, %v3166
      %v3221 = vadd.f32 %v2914, %v3169
      %v3222 = vadd.f32 %v2915, %v3174
      %v3223 = vadd.f32 %v2916, %v3177
      %v3224 = vadd.f32 %v2917, %v3182
      %v3225 = vadd.f32 %v2918, %v3185
      %v3226 = vadd.f32 %v2919, %v3190
      %v3227 = vadd.f32 %v2920, %v3193
      %v3228 = vld [vmem:[%s2921 + $0x1] sm:$0xff]
      %v3229 = vld [vmem:[%s2921 + $0x11] sm:$0xff]
      %v3230 = vld [vmem:[%s2921 + $0x21] sm:$0xff]
      %v3231 = vld [vmem:[%s2921 + $0x31] sm:$0xff]
      %v3232 = vld [vmem:[%s2921 + $0x41] sm:$0xff]
      %v3233 = vld [vmem:[%s2921 + $0x51] sm:$0xff]
      %v3234 = vld [vmem:[%s2921 + $0x61] sm:$0xff]
      %v3235 = vld [vmem:[%s2921 + $0x71] sm:$0xff]
      %v3236 = vld [vmem:[%s2921 + $0xa1] sm:$0xff]
      %v3237 = vld [vmem:[%s2921 + $0xb1] sm:$0xff]
      %v3238 = vld [vmem:[%s2921 + $0xc1] sm:$0xff]
      %v3239 = vld [vmem:[%s2921 + $0xd1] sm:$0xff]
      %v3240 = vld [vmem:[%s2921 + $0xe1] sm:$0xff]
      %v3241 = vld [vmem:[%s2921 + $0xf1] sm:$0xff]
      %v3242 = vld [vmem:[%s2921 + $0x101] sm:$0xff]
      %v3243 = vld [vmem:[%s2921 + $0x111] sm:$0xff]
      %v3244 = vld [vmem:[%s2921 + $0x141] sm:$0xff]
      %v3245 = vld [vmem:[%s2921 + $0x151] sm:$0xff]
      %v3246 = vld [vmem:[%s2921 + $0x161] sm:$0xff]
      %v3247 = vld [vmem:[%s2921 + $0x171] sm:$0xff]
      %v3248 = vld [vmem:[%s2921 + $0x181] sm:$0xff]
      %v3249 = vld [vmem:[%s2921 + $0x191] sm:$0xff]
      %v3250 = vld [vmem:[%s2921 + $0x1a1] sm:$0xff]
      %v3251 = vld [vmem:[%s2921 + $0x1b1] sm:$0xff]
      %v3252 = vld [vmem:[%s2921 + $0x1e1] sm:$0xff]
      %v3253 = vld [vmem:[%s2921 + $0x1f1] sm:$0xff]
      %v3254 = vld [vmem:[%s2921 + $0x201] sm:$0xff]
      %v3255 = vld [vmem:[%s2921 + $0x211] sm:$0xff]
      %v3256 = vld [vmem:[%s2921 + $0x221] sm:$0xff]
      %v3257 = vld [vmem:[%s2921 + $0x231] sm:$0xff]
      %v3258 = vld [vmem:[%s2921 + $0x241] sm:$0xff]
      %v3259 = vld [vmem:[%s2921 + $0x251] sm:$0xff]
      %v3260 = vpack.c.bf16 %v3229, %v3228
      %v3261 = vpack.c.bf16 %v3231, %v3230
      %v3262 = vpack.c.bf16 %v3233, %v3232
      %v3263 = vpack.c.bf16 %v3235, %v3234
      %v3264 = vpack.c.bf16 %v3237, %v3236
      %v3265 = vpack.c.bf16 %v3239, %v3238
      %v3266 = vpack.c.bf16 %v3241, %v3240
      %v3267 = vpack.c.bf16 %v3243, %v3242
      %v3268 = vpack.c.bf16 %v3245, %v3244
      %v3269 = vpack.c.bf16 %v3247, %v3246
      %v3270 = vpack.c.bf16 %v3249, %v3248
      %v3271 = vpack.c.bf16 %v3251, %v3250
      %v3272 = vpack.c.bf16 %v3253, %v3252
      %v3273 = vpack.c.bf16 %v3255, %v3254
      %v3274 = vpack.c.bf16 %v3257, %v3256
      %v3275 = vpack.c.bf16 %v3259, %v3258
      %s3276 = scalar_lea.vmem %s1, 640
      %v3277 = vld [vmem:[%s3276] sm:$0xf]
      %v3278 = vld [vmem:[%s3276 + $0x4] sm:$0xf]
      %v3279 = vld [vmem:[%s3276 + $0x8] sm:$0xf]
      %v3280 = vld [vmem:[%s3276 + $0xc] sm:$0xf]
      %v3281 = vld [vmem:[%s3276 + $0x10] sm:$0xf]
      %v3282 = vld [vmem:[%s3276 + $0x14] sm:$0xf]
      %v3283 = vld [vmem:[%s3276 + $0x18] sm:$0xf]
      %v3284 = vld [vmem:[%s3276 + $0x1c] sm:$0xf]
      %v3285 = vld [vmem:[%s3276 + $0x20] sm:$0xf]
      %v3286 = vld [vmem:[%s3276 + $0x24] sm:$0xf]
      %v3287 = vld [vmem:[%s3276 + $0x28] sm:$0xf]
      %v3288 = vld [vmem:[%s3276 + $0x2c] sm:$0xf]
      %v3289 = vld [vmem:[%s3276 + $0x30] sm:$0xf]
      %v3290 = vld [vmem:[%s3276 + $0x34] sm:$0xf]
      %v3291 = vld [vmem:[%s3276 + $0x38] sm:$0xf]
      %v3292 = vld [vmem:[%s3276 + $0x3c] sm:$0xf]
      %v3309 = vunpack.c.l.b16 %v3277
      %v3310 = vunpack.c.l.b16 %v3278
      %v3311 = vunpack.c.l.b16 %v3279
      %v3312 = vunpack.c.l.b16 %v3280
      %v3313 = vunpack.c.l.b16 %v3281
      %v3314 = vunpack.c.l.b16 %v3282
      %v3315 = vunpack.c.l.b16 %v3283
      %v3316 = vunpack.c.l.b16 %v3284
      %v3317 = vunpack.c.l.b16 %v3285
      %v3318 = vunpack.c.l.b16 %v3286
      %v3319 = vunpack.c.l.b16 %v3287
      %v3320 = vunpack.c.l.b16 %v3288
      %v3321 = vunpack.c.l.b16 %v3289
      %v3322 = vunpack.c.l.b16 %v3290
      %v3323 = vunpack.c.l.b16 %v3291
      %v3324 = vunpack.c.l.b16 %v3292
      %v3325 = vpack.c.b16 %v3310, %v3309
      %v3326 = vpack.c.b16 %v3312, %v3311
      %v3327 = vpack.c.b16 %v3314, %v3313
      %v3328 = vpack.c.b16 %v3316, %v3315
      %v3329 = vpack.c.b16 %v3318, %v3317
      %v3330 = vpack.c.b16 %v3320, %v3319
      %v3331 = vpack.c.b16 %v3322, %v3321
      %v3332 = vpack.c.b16 %v3324, %v3323
      %3341 = vmatprep.subr.bf16.mxu0 0
      %3342 = vmatpush1.bf16.msra.mxu0 %v3325
      %3343 = vmatprep.subr.bf16.mxu0 0
      %3344 = vmatpush1.bf16.msra.mxu0 %v3326
      %3345 = vmatprep.subr.bf16.mxu0 0
      %3346 = vmatpush1.bf16.msra.mxu0 %v3327
      %3347 = vmatprep.subr.bf16.mxu0 0
      %3348 = vmatpush1.bf16.msra.mxu0 %v3328
      %3349 = vmatprep.subr.bf16.mxu0 0
      %3350 = vmatpush1.bf16.msra.mxu0 %v3329
      %3351 = vmatprep.subr.bf16.mxu0 0
      %3352 = vmatpush1.bf16.msra.mxu0 %v3330
      %3353 = vmatprep.subr.bf16.mxu0 0
      %3354 = vmatpush1.bf16.msra.mxu0 %v3331
      %3355 = vmatprep.subr.bf16.mxu0 0
      %3356 = vmatpush1.bf16.msra.mxu0 %v3332
      %3357 = vmatprep.subr.bf16.mxu0 0
      %3358 = vmatpush1.bf16.msra.mxu0 0
      %3359 = vmatprep.subr.bf16.mxu0 0
      %3360 = vmatpush1.bf16.msra.mxu0 0
      %3361 = vmatprep.subr.bf16.mxu0 0
      %3362 = vmatpush1.bf16.msra.mxu0 0
      %3363 = vmatprep.subr.bf16.mxu0 0
      %3364 = vmatpush1.bf16.msra.mxu0 0
      %3365 = vmatprep.subr.bf16.mxu0 0
      %3366 = vmatpush1.bf16.msra.mxu0 0
      %3367 = vmatprep.subr.bf16.mxu0 0
      %3368 = vmatpush1.bf16.msra.mxu0 0
      %3369 = vmatprep.subr.bf16.mxu0 0
      %3370 = vmatpush1.bf16.msra.mxu0 0
      %3371 = vmatprep.subr.bf16.mxu0 0
      %3372 = vmatpush1.bf16.msra.mxu0 0
      %3373 = vmatprep.mubr.bf16.mxu0 0
      %3374 = vmatmul.mubr.bf16.gmra.mrb[0].mxu0 %v3260
      %v3375 = vpop.f32.mrb[0].mxu0
      %v3376 = vadd.f32 0.0, %v3375
      %v3377 = vpop.f32.mrb[0].mxu0
      %v3378 = vpop.f32.mrb[0].mxu0
      %v3379 = vadd.f32 0.0, %v3378
      %v3380 = vpop.f32.mrb[0].mxu0
      %3381 = vmatprep.mubr.bf16.mxu0 0
      %3382 = vmatmul.mubr.bf16.gmra.mrb[0].mxu0 %v3261
      %v3383 = vpop.f32.mrb[0].mxu0
      %v3384 = vadd.f32 0.0, %v3383
      %v3385 = vpop.f32.mrb[0].mxu0
      %v3386 = vpop.f32.mrb[0].mxu0
      %v3387 = vadd.f32 0.0, %v3386
      %v3388 = vpop.f32.mrb[0].mxu0
      %3389 = vmatprep.mubr.bf16.mxu0 0
      %3390 = vmatmul.mubr.bf16.gmra.mrb[0].mxu0 %v3262
      %v3391 = vpop.f32.mrb[0].mxu0
      %v3392 = vadd.f32 0.0, %v3391
      %v3393 = vpop.f32.mrb[0].mxu0
      %v3394 = vpop.f32.mrb[0].mxu0
      %v3395 = vadd.f32 0.0, %v3394
      %v3396 = vpop.f32.mrb[0].mxu0
      %3397 = vmatprep.mubr.bf16.mxu0 0
      %3398 = vmatmul.mubr.bf16.gmra.mrb[0].mxu0 %v3263
      %v3399 = vpop.f32.mrb[0].mxu0
      %v3400 = vadd.f32 0.0, %v3399
      %v3401 = vpop.f32.mrb[0].mxu0
      %v3402 = vpop.f32.mrb[0].mxu0
      %v3403 = vadd.f32 0.0, %v3402
      %v3404 = vpop.f32.mrb[0].mxu0
      %3405 = vmatprep.mubr.bf16.mxu0 0
      %3406 = vmatmul.mubr.bf16.gmra.mrb[0].mxu0 %v3264
      %v3407 = vpop.f32.mrb[0].mxu0
      %v3408 = vadd.f32 0.0, %v3407
      %v3409 = vpop.f32.mrb[0].mxu0
      %v3410 = vpop.f32.mrb[0].mxu0
      %v3411 = vadd.f32 0.0, %v3410
      %v3412 = vpop.f32.mrb[0].mxu0
      %3413 = vmatprep.mubr.bf16.mxu0 0
      %3414 = vmatmul.mubr.bf16.gmra.mrb[0].mxu0 %v3265
      %v3415 = vpop.f32.mrb[0].mxu0
      %v3416 = vadd.f32 0.0, %v3415
      %v3417 = vpop.f32.mrb[0].mxu0
      %v3418 = vpop.f32.mrb[0].mxu0
      %v3419 = vadd.f32 0.0, %v3418
      %v3420 = vpop.f32.mrb[0].mxu0
      %3421 = vmatprep.mubr.bf16.mxu0 0
      %3422 = vmatmul.mubr.bf16.gmra.mrb[0].mxu0 %v3266
      %v3423 = vpop.f32.mrb[0].mxu0
      %v3424 = vadd.f32 0.0, %v3423
      %v3425 = vpop.f32.mrb[0].mxu0
      %v3426 = vpop.f32.mrb[0].mxu0
      %v3427 = vadd.f32 0.0, %v3426
      %v3428 = vpop.f32.mrb[0].mxu0
      %3429 = vmatprep.mubr.bf16.mxu0 0
      %3430 = vmatmul.mubr.bf16.gmra.mrb[0].mxu0 %v3267
      %v3431 = vpop.f32.mrb[0].mxu0
      %v3432 = vadd.f32 0.0, %v3431
      %v3433 = vpop.f32.mrb[0].mxu0
      %v3434 = vpop.f32.mrb[0].mxu0
      %v3435 = vadd.f32 0.0, %v3434
      %v3436 = vpop.f32.mrb[0].mxu0
      %3437 = vmatprep.mubr.bf16.mxu0 0
      %3438 = vmatmul.mubr.bf16.gmra.mrb[0].mxu0 %v3268
      %v3439 = vpop.f32.mrb[0].mxu0
      %v3440 = vadd.f32 0.0, %v3439
      %v3441 = vpop.f32.mrb[0].mxu0
      %v3442 = vpop.f32.mrb[0].mxu0
      %v3443 = vadd.f32 0.0, %v3442
      %v3444 = vpop.f32.mrb[0].mxu0
      %3445 = vmatprep.mubr.bf16.mxu0 0
      %3446 = vmatmul.mubr.bf16.gmra.mrb[0].mxu0 %v3269
      %v3447 = vpop.f32.mrb[0].mxu0
      %v3448 = vadd.f32 0.0, %v3447
      %v3449 = vpop.f32.mrb[0].mxu0
      %v3450 = vpop.f32.mrb[0].mxu0
      %v3451 = vadd.f32 0.0, %v3450
      %v3452 = vpop.f32.mrb[0].mxu0
      %3453 = vmatprep.mubr.bf16.mxu0 0
      %3454 = vmatmul.mubr.bf16.gmra.mrb[0].mxu0 %v3270
      %v3455 = vpop.f32.mrb[0].mxu0
      %v3456 = vadd.f32 0.0, %v3455
      %v3457 = vpop.f32.mrb[0].mxu0
      %v3458 = vpop.f32.mrb[0].mxu0
      %v3459 = vadd.f32 0.0, %v3458
      %v3460 = vpop.f32.mrb[0].mxu0
      %3461 = vmatprep.mubr.bf16.mxu0 0
      %3462 = vmatmul.mubr.bf16.gmra.mrb[0].mxu0 %v3271
      %v3463 = vpop.f32.mrb[0].mxu0
      %v3464 = vadd.f32 0.0, %v3463
      %v3465 = vpop.f32.mrb[0].mxu0
      %v3466 = vpop.f32.mrb[0].mxu0
      %v3467 = vadd.f32 0.0, %v3466
      %v3468 = vpop.f32.mrb[0].mxu0
      %3469 = vmatprep.mubr.bf16.mxu0 0
      %3470 = vmatmul.mubr.bf16.gmra.mrb[0].mxu0 %v3272
      %v3471 = vpop.f32.mrb[0].mxu0
      %v3472 = vadd.f32 0.0, %v3471
      %v3473 = vpop.f32.mrb[0].mxu0
      %v3474 = vpop.f32.mrb[0].mxu0
      %v3475 = vadd.f32 0.0, %v3474
      %v3476 = vpop.f32.mrb[0].mxu0
      %3477 = vmatprep.mubr.bf16.mxu0 0
      %3478 = vmatmul.mubr.bf16.gmra.mrb[0].mxu0 %v3273
      %v3479 = vpop.f32.mrb[0].mxu0
      %v3480 = vadd.f32 0.0, %v3479
      %v3481 = vpop.f32.mrb[0].mxu0
      %v3482 = vpop.f32.mrb[0].mxu0
      %v3483 = vadd.f32 0.0, %v3482
      %v3484 = vpop.f32.mrb[0].mxu0
      %3485 = vmatprep.mubr.bf16.mxu0 0
      %3486 = vmatmul.mubr.bf16.gmra.mrb[0].mxu0 %v3274
      %v3487 = vpop.f32.mrb[0].mxu0
      %v3488 = vadd.f32 0.0, %v3487
      %v3489 = vpop.f32.mrb[0].mxu0
      %v3490 = vpop.f32.mrb[0].mxu0
      %v3491 = vadd.f32 0.0, %v3490
      %v3492 = vpop.f32.mrb[0].mxu0
      %3493 = vmatprep.mubr.bf16.mxu0 0
      %3494 = vmatmul.mubr.bf16.gmra.mrb[0].mxu0 %v3275
      %v3495 = vpop.f32.mrb[0].mxu0
      %v3496 = vadd.f32 0.0, %v3495
      %v3497 = vpop.f32.mrb[0].mxu0
      %v3498 = vpop.f32.mrb[0].mxu0
      %v3499 = vadd.f32 0.0, %v3498
      %v3500 = vpop.f32.mrb[0].mxu0
      %3501 = vdwg.mxu0
      %v3502 = vadd.f32 %v3196, %v3376
      %v3503 = vadd.f32 %v3197, %v3379
      %v3504 = vadd.f32 %v3198, %v3384
      %v3505 = vadd.f32 %v3199, %v3387
      %v3506 = vadd.f32 %v3200, %v3392
      %v3507 = vadd.f32 %v3201, %v3395
      %v3508 = vadd.f32 %v3202, %v3400
      %v3509 = vadd.f32 %v3203, %v3403
      %v3510 = vadd.f32 %v3204, %v3408
      %v3511 = vadd.f32 %v3205, %v3411
      %v3512 = vadd.f32 %v3206, %v3416
      %v3513 = vadd.f32 %v3207, %v3419
      %v3514 = vadd.f32 %v3208, %v3424
      %v3515 = vadd.f32 %v3209, %v3427
      %v3516 = vadd.f32 %v3210, %v3432
      %v3517 = vadd.f32 %v3211, %v3435
      %v3518 = vadd.f32 %v3212, %v3440
      %v3519 = vadd.f32 %v3213, %v3443
      %v3520 = vadd.f32 %v3214, %v3448
      %v3521 = vadd.f32 %v3215, %v3451
      %v3522 = vadd.f32 %v3216, %v3456
      %v3523 = vadd.f32 %v3217, %v3459
      %v3524 = vadd.f32 %v3218, %v3464
      %v3525 = vadd.f32 %v3219, %v3467
      %v3526 = vadd.f32 %v3220, %v3472
      %v3527 = vadd.f32 %v3221, %v3475
      %v3528 = vadd.f32 %v3222, %v3480
      %v3529 = vadd.f32 %v3223, %v3483
      %v3530 = vadd.f32 %v3224, %v3488
      %v3531 = vadd.f32 %v3225, %v3491
      %v3532 = vadd.f32 %v3226, %v3496
      %v3533 = vadd.f32 %v3227, %v3499
      %v3534 = vld [vmem:[%s2921 + $0x2] sm:$0xff]
      %v3535 = vld [vmem:[%s2921 + $0x12] sm:$0xff]
      %v3536 = vld [vmem:[%s2921 + $0x22] sm:$0xff]
      %v3537 = vld [vmem:[%s2921 + $0x32] sm:$0xff]
      %v3538 = vld [vmem:[%s2921 + $0x42] sm:$0xff]
      %v3539 = vld [vmem:[%s2921 + $0x52] sm:$0xff]
      %v3540 = vld [vmem:[%s2921 + $0x62] sm:$0xff]
      %v3541 = vld [vmem:[%s2921 + $0x72] sm:$0xff]
      %v3542 = vld [vmem:[%s2921 + $0xa2] sm:$0xff]
      %v3543 = vld [vmem:[%s2921 + $0xb2] sm:$0xff]
      %v3544 = vld [vmem:[%s2921 + $0xc2] sm:$0xff]
      %v3545 = vld [vmem:[%s2921 + $0xd2] sm:$0xff]
      %v3546 = vld [vmem:[%s2921 + $0xe2] sm:$0xff]
      %v3547 = vld [vmem:[%s2921 + $0xf2] sm:$0xff]
      %v3548 = vld [vmem:[%s2921 + $0x102] sm:$0xff]
      %v3549 = vld [vmem:[%s2921 + $0x112] sm:$0xff]
      %v3550 = vld [vmem:[%s2921 + $0x142] sm:$0xff]
      %v3551 = vld [vmem:[%s2921 + $0x152] sm:$0xff]
      %v3552 = vld [vmem:[%s2921 + $0x162] sm:$0xff]
      %v3553 = vld [vmem:[%s2921 + $0x172] sm:$0xff]
      %v3554 = vld [vmem:[%s2921 + $0x182] sm:$0xff]
      %v3555 = vld [vmem:[%s2921 + $0x192] sm:$0xff]
      %v3556 = vld [vmem:[%s2921 + $0x1a2] sm:$0xff]
      %v3557 = vld [vmem:[%s2921 + $0x1b2] sm:$0xff]
      %v3558 = vld [vmem:[%s2921 + $0x1e2] sm:$0xff]
      %v3559 = vld [vmem:[%s2921 + $0x1f2] sm:$0xff]
      %v3560 = vld [vmem:[%s2921 + $0x202] sm:$0xff]
      %v3561 = vld [vmem:[%s2921 + $0x212] sm:$0xff]
      %v3562 = vld [vmem:[%s2921 + $0x222] sm:$0xff]
      %v3563 = vld [vmem:[%s2921 + $0x232] sm:$0xff]
      %v3564 = vld [vmem:[%s2921 + $0x242] sm:$0xff]
      %v3565 = vld [vmem:[%s2921 + $0x252] sm:$0xff]
      %v3566 = vpack.c.bf16 %v3535, %v3534
      %v3567 = vpack.c.bf16 %v3537, %v3536
      %v3568 = vpack.c.bf16 %v3539, %v3538
      %v3569 = vpack.c.bf16 %v3541, %v3540
      %v3570 = vpack.c.bf16 %v3543, %v3542
      %v3571 = vpack.c.bf16 %v3545, %v3544
      %v3572 = vpack.c.bf16 %v3547, %v3546
      %v3573 = vpack.c.bf16 %v3549, %v3548
      %v3574 = vpack.c.bf16 %v3551, %v3550
      %v3575 = vpack.c.bf16 %v3553, %v3552
      %v3576 = vpack.c.bf16 %v3555, %v3554
      %v3577 = vpack.c.bf16 %v3557, %v3556
      %v3578 = vpack.c.bf16 %v3559, %v3558
      %v3579 = vpack.c.bf16 %v3561, %v3560
      %v3580 = vpack.c.bf16 %v3563, %v3562
      %v3581 = vpack.c.bf16 %v3565, %v3564
      %s3582 = scalar_lea.vmem %s1, 704
      %v3583 = vld [vmem:[%s3582] sm:$0xf]
      %v3584 = vld [vmem:[%s3582 + $0x4] sm:$0xf]
      %v3585 = vld [vmem:[%s3582 + $0x8] sm:$0xf]
      %v3586 = vld [vmem:[%s3582 + $0xc] sm:$0xf]
      %v3587 = vld [vmem:[%s3582 + $0x10] sm:$0xf]
      %v3588 = vld [vmem:[%s3582 + $0x14] sm:$0xf]
      %v3589 = vld [vmem:[%s3582 + $0x18] sm:$0xf]
      %v3590 = vld [vmem:[%s3582 + $0x1c] sm:$0xf]
      %v3591 = vld [vmem:[%s3582 + $0x20] sm:$0xf]
      %v3592 = vld [vmem:[%s3582 + $0x24] sm:$0xf]
      %v3593 = vld [vmem:[%s3582 + $0x28] sm:$0xf]
      %v3594 = vld [vmem:[%s3582 + $0x2c] sm:$0xf]
      %v3595 = vld [vmem:[%s3582 + $0x30] sm:$0xf]
      %v3596 = vld [vmem:[%s3582 + $0x34] sm:$0xf]
      %v3597 = vld [vmem:[%s3582 + $0x38] sm:$0xf]
      %v3598 = vld [vmem:[%s3582 + $0x3c] sm:$0xf]
      %v3615 = vunpack.c.l.b16 %v3583
      %v3616 = vunpack.c.l.b16 %v3584
      %v3617 = vunpack.c.l.b16 %v3585
      %v3618 = vunpack.c.l.b16 %v3586
      %v3619 = vunpack.c.l.b16 %v3587
      %v3620 = vunpack.c.l.b16 %v3588
      %v3621 = vunpack.c.l.b16 %v3589
      %v3622 = vunpack.c.l.b16 %v3590
      %v3623 = vunpack.c.l.b16 %v3591
      %v3624 = vunpack.c.l.b16 %v3592
      %v3625 = vunpack.c.l.b16 %v3593
      %v3626 = vunpack.c.l.b16 %v3594
      %v3627 = vunpack.c.l.b16 %v3595
      %v3628 = vunpack.c.l.b16 %v3596
      %v3629 = vunpack.c.l.b16 %v3597
      %v3630 = vunpack.c.l.b16 %v3598
      %v3631 = vpack.c.b16 %v3616, %v3615
      %v3632 = vpack.c.b16 %v3618, %v3617
      %v3633 = vpack.c.b16 %v3620, %v3619
      %v3634 = vpack.c.b16 %v3622, %v3621
      %v3635 = vpack.c.b16 %v3624, %v3623
      %v3636 = vpack.c.b16 %v3626, %v3625
      %v3637 = vpack.c.b16 %v3628, %v3627
      %v3638 = vpack.c.b16 %v3630, %v3629
      %3647 = vmatprep.subr.bf16.mxu0 0
      %3648 = vmatpush1.bf16.msra.mxu0 %v3631
      %3649 = vmatprep.subr.bf16.mxu0 0
      %3650 = vmatpush1.bf16.msra.mxu0 %v3632
      %3651 = vmatprep.subr.bf16.mxu0 0
      %3652 = vmatpush1.bf16.msra.mxu0 %v3633
      %3653 = vmatprep.subr.bf16.mxu0 0
      %3654 = vmatpush1.bf16.msra.mxu0 %v3634
      %3655 = vmatprep.subr.bf16.mxu0 0
      %3656 = vmatpush1.bf16.msra.mxu0 %v3635
      %3657 = vmatprep.subr.bf16.mxu0 0
      %3658 = vmatpush1.bf16.msra.mxu0 %v3636
      %3659 = vmatprep.subr.bf16.mxu0 0
      %3660 = vmatpush1.bf16.msra.mxu0 %v3637
      %3661 = vmatprep.subr.bf16.mxu0 0
      %3662 = vmatpush1.bf16.msra.mxu0 %v3638
      %3663 = vmatprep.subr.bf16.mxu0 0
      %3664 = vmatpush1.bf16.msra.mxu0 0
      %3665 = vmatprep.subr.bf16.mxu0 0
      %3666 = vmatpush1.bf16.msra.mxu0 0
      %3667 = vmatprep.subr.bf16.mxu0 0
      %3668 = vmatpush1.bf16.msra.mxu0 0
      %3669 = vmatprep.subr.bf16.mxu0 0
      %3670 = vmatpush1.bf16.msra.mxu0 0
      %3671 = vmatprep.subr.bf16.mxu0 0
      %3672 = vmatpush1.bf16.msra.mxu0 0
      %3673 = vmatprep.subr.bf16.mxu0 0
      %3674 = vmatpush1.bf16.msra.mxu0 0
      %3675 = vmatprep.subr.bf16.mxu0 0
      %3676 = vmatpush1.bf16.msra.mxu0 0
      %3677 = vmatprep.subr.bf16.mxu0 0
      %3678 = vmatpush1.bf16.msra.mxu0 0
      %3679 = vmatprep.mubr.bf16.mxu0 0
      %3680 = vmatmul.mubr.bf16.gmra.mrb[0].mxu0 %v3566
      %v3681 = vpop.f32.mrb[0].mxu0
      %v3682 = vadd.f32 0.0, %v3681
      %v3683 = vpop.f32.mrb[0].mxu0
      %v3684 = vpop.f32.mrb[0].mxu0
      %v3685 = vadd.f32 0.0, %v3684
      %v3686 = vpop.f32.mrb[0].mxu0
      %3687 = vmatprep.mubr.bf16.mxu0 0
      %3688 = vmatmul.mubr.bf16.gmra.mrb[0].mxu0 %v3567
      %v3689 = vpop.f32.mrb[0].mxu0
      %v3690 = vadd.f32 0.0, %v3689
      %v3691 = vpop.f32.mrb[0].mxu0
      %v3692 = vpop.f32.mrb[0].mxu0
      %v3693 = vadd.f32 0.0, %v3692
      %v3694 = vpop.f32.mrb[0].mxu0
      %3695 = vmatprep.mubr.bf16.mxu0 0
      %3696 = vmatmul.mubr.bf16.gmra.mrb[0].mxu0 %v3568
      %v3697 = vpop.f32.mrb[0].mxu0
      %v3698 = vadd.f32 0.0, %v3697
      %v3699 = vpop.f32.mrb[0].mxu0
      %v3700 = vpop.f32.mrb[0].mxu0
      %v3701 = vadd.f32 0.0, %v3700
      %v3702 = vpop.f32.mrb[0].mxu0
      %3703 = vmatprep.mubr.bf16.mxu0 0
      %3704 = vmatmul.mubr.bf16.gmra.mrb[0].mxu0 %v3569
      %v3705 = vpop.f32.mrb[0].mxu0
      %v3706 = vadd.f32 0.0, %v3705
      %v3707 = vpop.f32.mrb[0].mxu0
      %v3708 = vpop.f32.mrb[0].mxu0
      %v3709 = vadd.f32 0.0, %v3708
      %v3710 = vpop.f32.mrb[0].mxu0
      %3711 = vmatprep.mubr.bf16.mxu0 0
      %3712 = vmatmul.mubr.bf16.gmra.mrb[0].mxu0 %v3570
      %v3713 = vpop.f32.mrb[0].mxu0
      %v3714 = vadd.f32 0.0, %v3713
      %v3715 = vpop.f32.mrb[0].mxu0
      %v3716 = vpop.f32.mrb[0].mxu0
      %v3717 = vadd.f32 0.0, %v3716
      %v3718 = vpop.f32.mrb[0].mxu0
      %3719 = vmatprep.mubr.bf16.mxu0 0
      %3720 = vmatmul.mubr.bf16.gmra.mrb[0].mxu0 %v3571
      %v3721 = vpop.f32.mrb[0].mxu0
      %v3722 = vadd.f32 0.0, %v3721
      %v3723 = vpop.f32.mrb[0].mxu0
      %v3724 = vpop.f32.mrb[0].mxu0
      %v3725 = vadd.f32 0.0, %v3724
      %v3726 = vpop.f32.mrb[0].mxu0
      %3727 = vmatprep.mubr.bf16.mxu0 0
      %3728 = vmatmul.mubr.bf16.gmra.mrb[0].mxu0 %v3572
      %v3729 = vpop.f32.mrb[0].mxu0
      %v3730 = vadd.f32 0.0, %v3729
      %v3731 = vpop.f32.mrb[0].mxu0
      %v3732 = vpop.f32.mrb[0].mxu0
      %v3733 = vadd.f32 0.0, %v3732
      %v3734 = vpop.f32.mrb[0].mxu0
      %3735 = vmatprep.mubr.bf16.mxu0 0
      %3736 = vmatmul.mubr.bf16.gmra.mrb[0].mxu0 %v3573
      %v3737 = vpop.f32.mrb[0].mxu0
      %v3738 = vadd.f32 0.0, %v3737
      %v3739 = vpop.f32.mrb[0].mxu0
      %v3740 = vpop.f32.mrb[0].mxu0
      %v3741 = vadd.f32 0.0, %v3740
      %v3742 = vpop.f32.mrb[0].mxu0
      %3743 = vmatprep.mubr.bf16.mxu0 0
      %3744 = vmatmul.mubr.bf16.gmra.mrb[0].mxu0 %v3574
      %v3745 = vpop.f32.mrb[0].mxu0
      %v3746 = vadd.f32 0.0, %v3745
      %v3747 = vpop.f32.mrb[0].mxu0
      %v3748 = vpop.f32.mrb[0].mxu0
      %v3749 = vadd.f32 0.0, %v3748
      %v3750 = vpop.f32.mrb[0].mxu0
      %3751 = vmatprep.mubr.bf16.mxu0 0
      %3752 = vmatmul.mubr.bf16.gmra.mrb[0].mxu0 %v3575
      %v3753 = vpop.f32.mrb[0].mxu0
      %v3754 = vadd.f32 0.0, %v3753
      %v3755 = vpop.f32.mrb[0].mxu0
      %v3756 = vpop.f32.mrb[0].mxu0
      %v3757 = vadd.f32 0.0, %v3756
      %v3758 = vpop.f32.mrb[0].mxu0
      %3759 = vmatprep.mubr.bf16.mxu0 0
      %3760 = vmatmul.mubr.bf16.gmra.mrb[0].mxu0 %v3576
      %v3761 = vpop.f32.mrb[0].mxu0
      %v3762 = vadd.f32 0.0, %v3761
      %v3763 = vpop.f32.mrb[0].mxu0
      %v3764 = vpop.f32.mrb[0].mxu0
      %v3765 = vadd.f32 0.0, %v3764
      %v3766 = vpop.f32.mrb[0].mxu0
      %3767 = vmatprep.mubr.bf16.mxu0 0
      %3768 = vmatmul.mubr.bf16.gmra.mrb[0].mxu0 %v3577
      %v3769 = vpop.f32.mrb[0].mxu0
      %v3770 = vadd.f32 0.0, %v3769
      %v3771 = vpop.f32.mrb[0].mxu0
      %v3772 = vpop.f32.mrb[0].mxu0
      %v3773 = vadd.f32 0.0, %v3772
      %v3774 = vpop.f32.mrb[0].mxu0
      %3775 = vmatprep.mubr.bf16.mxu0 0
      %3776 = vmatmul.mubr.bf16.gmra.mrb[0].mxu0 %v3578
      %v3777 = vpop.f32.mrb[0].mxu0
      %v3778 = vadd.f32 0.0, %v3777
      %v3779 = vpop.f32.mrb[0].mxu0
      %v3780 = vpop.f32.mrb[0].mxu0
      %v3781 = vadd.f32 0.0, %v3780
      %v3782 = vpop.f32.mrb[0].mxu0
      %3783 = vmatprep.mubr.bf16.mxu0 0
      %3784 = vmatmul.mubr.bf16.gmra.mrb[0].mxu0 %v3579
      %v3785 = vpop.f32.mrb[0].mxu0
      %v3786 = vadd.f32 0.0, %v3785
      %v3787 = vpop.f32.mrb[0].mxu0
      %v3788 = vpop.f32.mrb[0].mxu0
      %v3789 = vadd.f32 0.0, %v3788
      %v3790 = vpop.f32.mrb[0].mxu0
      %3791 = vmatprep.mubr.bf16.mxu0 0
      %3792 = vmatmul.mubr.bf16.gmra.mrb[0].mxu0 %v3580
      %v3793 = vpop.f32.mrb[0].mxu0
      %v3794 = vadd.f32 0.0, %v3793
      %v3795 = vpop.f32.mrb[0].mxu0
      %v3796 = vpop.f32.mrb[0].mxu0
      %v3797 = vadd.f32 0.0, %v3796
      %v3798 = vpop.f32.mrb[0].mxu0
      %3799 = vmatprep.mubr.bf16.mxu0 0
      %3800 = vmatmul.mubr.bf16.gmra.mrb[0].mxu0 %v3581
      %v3801 = vpop.f32.mrb[0].mxu0
      %v3802 = vadd.f32 0.0, %v3801
      %v3803 = vpop.f32.mrb[0].mxu0
      %v3804 = vpop.f32.mrb[0].mxu0
      %v3805 = vadd.f32 0.0, %v3804
      %v3806 = vpop.f32.mrb[0].mxu0
      %3807 = vdwg.mxu0
      %v3808 = vadd.f32 %v3502, %v3682
      %v3809 = vadd.f32 %v3503, %v3685
      %v3810 = vadd.f32 %v3504, %v3690
      %v3811 = vadd.f32 %v3505, %v3693
      %v3812 = vadd.f32 %v3506, %v3698
      %v3813 = vadd.f32 %v3507, %v3701
      %v3814 = vadd.f32 %v3508, %v3706
      %v3815 = vadd.f32 %v3509, %v3709
      %v3816 = vadd.f32 %v3510, %v3714
      %v3817 = vadd.f32 %v3511, %v3717
      %v3818 = vadd.f32 %v3512, %v3722
      %v3819 = vadd.f32 %v3513, %v3725
      %v3820 = vadd.f32 %v3514, %v3730
      %v3821 = vadd.f32 %v3515, %v3733
      %v3822 = vadd.f32 %v3516, %v3738
      %v3823 = vadd.f32 %v3517, %v3741
      %v3824 = vadd.f32 %v3518, %v3746
      %v3825 = vadd.f32 %v3519, %v3749
      %v3826 = vadd.f32 %v3520, %v3754
      %v3827 = vadd.f32 %v3521, %v3757
      %v3828 = vadd.f32 %v3522, %v3762
      %v3829 = vadd.f32 %v3523, %v3765
      %v3830 = vadd.f32 %v3524, %v3770
      %v3831 = vadd.f32 %v3525, %v3773
      %v3832 = vadd.f32 %v3526, %v3778
      %v3833 = vadd.f32 %v3527, %v3781
      %v3834 = vadd.f32 %v3528, %v3786
      %v3835 = vadd.f32 %v3529, %v3789
      %v3836 = vadd.f32 %v3530, %v3794
      %v3837 = vadd.f32 %v3531, %v3797
      %v3838 = vadd.f32 %v3532, %v3802
      %v3839 = vadd.f32 %v3533, %v3805
      %s3840 = scalar_lea.vmem %s210, 176
      %v3841 = vld [vmem:[%s3840] sm:$0xff]
      %v3842 = vld [vmem:[%s3840 + $0x10] sm:$0xff]
      %v3843 = vld [vmem:[%s3840 + $0x20] sm:$0xff]
      %v3844 = vld [vmem:[%s3840 + $0x30] sm:$0xff]
      %v3845 = vld [vmem:[%s3840 + $0x40] sm:$0xff]
      %v3846 = vld [vmem:[%s3840 + $0x50] sm:$0xff]
      %v3847 = vld [vmem:[%s3840 + $0x60] sm:$0xff]
      %v3848 = vld [vmem:[%s3840 + $0x70] sm:$0xff]
      %v3849 = vld [vmem:[%s3840 + $0xa0] sm:$0xff]
      %v3850 = vld [vmem:[%s3840 + $0xb0] sm:$0xff]
      %v3851 = vld [vmem:[%s3840 + $0xc0] sm:$0xff]
      %v3852 = vld [vmem:[%s3840 + $0xd0] sm:$0xff]
      %v3853 = vld [vmem:[%s3840 + $0xe0] sm:$0xff]
      %v3854 = vld [vmem:[%s3840 + $0xf0] sm:$0xff]
      %v3855 = vld [vmem:[%s3840 + $0x100] sm:$0xff]
      %v3856 = vld [vmem:[%s3840 + $0x110] sm:$0xff]
      %v3857 = vld [vmem:[%s3840 + $0x140] sm:$0xff]
      %v3858 = vld [vmem:[%s3840 + $0x150] sm:$0xff]
      %v3859 = vld [vmem:[%s3840 + $0x160] sm:$0xff]
      %v3860 = vld [vmem:[%s3840 + $0x170] sm:$0xff]
      %v3861 = vld [vmem:[%s3840 + $0x180] sm:$0xff]
      %v3862 = vld [vmem:[%s3840 + $0x190] sm:$0xff]
      %v3863 = vld [vmem:[%s3840 + $0x1a0] sm:$0xff]
      %v3864 = vld [vmem:[%s3840 + $0x1b0] sm:$0xff]
      %v3865 = vld [vmem:[%s3840 + $0x1e0] sm:$0xff]
      %v3866 = vld [vmem:[%s3840 + $0x1f0] sm:$0xff]
      %v3867 = vld [vmem:[%s3840 + $0x200] sm:$0xff]
      %v3868 = vld [vmem:[%s3840 + $0x210] sm:$0xff]
      %v3869 = vld [vmem:[%s3840 + $0x220] sm:$0xff]
      %v3870 = vld [vmem:[%s3840 + $0x230] sm:$0xff]
      %v3871 = vld [vmem:[%s3840 + $0x240] sm:$0xff]
      %v3872 = vld [vmem:[%s3840 + $0x250] sm:$0xff]
      %v3873 = vpack.c.bf16 %v3842, %v3841
      %v3874 = vpack.c.bf16 %v3844, %v3843
      %v3875 = vpack.c.bf16 %v3846, %v3845
      %v3876 = vpack.c.bf16 %v3848, %v3847
      %v3877 = vpack.c.bf16 %v3850, %v3849
      %v3878 = vpack.c.bf16 %v3852, %v3851
      %v3879 = vpack.c.bf16 %v3854, %v3853
      %v3880 = vpack.c.bf16 %v3856, %v3855
      %v3881 = vpack.c.bf16 %v3858, %v3857
      %v3882 = vpack.c.bf16 %v3860, %v3859
      %v3883 = vpack.c.bf16 %v3862, %v3861
      %v3884 = vpack.c.bf16 %v3864, %v3863
      %v3885 = vpack.c.bf16 %v3866, %v3865
      %v3886 = vpack.c.bf16 %v3868, %v3867
      %v3887 = vpack.c.bf16 %v3870, %v3869
      %v3888 = vpack.c.bf16 %v3872, %v3871
      %s3889 = scalar_lea.vmem %s1, 768
      %v3890 = vld [vmem:[%s3889] sm:$0xf]
      %v3891 = vld [vmem:[%s3889 + $0x4] sm:$0xf]
      %v3892 = vld [vmem:[%s3889 + $0x8] sm:$0xf]
      %v3893 = vld [vmem:[%s3889 + $0xc] sm:$0xf]
      %v3894 = vld [vmem:[%s3889 + $0x10] sm:$0xf]
      %v3895 = vld [vmem:[%s3889 + $0x14] sm:$0xf]
      %v3896 = vld [vmem:[%s3889 + $0x18] sm:$0xf]
      %v3897 = vld [vmem:[%s3889 + $0x1c] sm:$0xf]
      %v3898 = vld [vmem:[%s3889 + $0x20] sm:$0xf]
      %v3899 = vld [vmem:[%s3889 + $0x24] sm:$0xf]
      %v3900 = vld [vmem:[%s3889 + $0x28] sm:$0xf]
      %v3901 = vld [vmem:[%s3889 + $0x2c] sm:$0xf]
      %v3902 = vld [vmem:[%s3889 + $0x30] sm:$0xf]
      %v3903 = vld [vmem:[%s3889 + $0x34] sm:$0xf]
      %v3904 = vld [vmem:[%s3889 + $0x38] sm:$0xf]
      %v3905 = vld [vmem:[%s3889 + $0x3c] sm:$0xf]
      %v3922 = vunpack.c.l.b16 %v3890
      %v3923 = vunpack.c.l.b16 %v3891
      %v3924 = vunpack.c.l.b16 %v3892
      %v3925 = vunpack.c.l.b16 %v3893
      %v3926 = vunpack.c.l.b16 %v3894
      %v3927 = vunpack.c.l.b16 %v3895
      %v3928 = vunpack.c.l.b16 %v3896
      %v3929 = vunpack.c.l.b16 %v3897
      %v3930 = vunpack.c.l.b16 %v3898
      %v3931 = vunpack.c.l.b16 %v3899
      %v3932 = vunpack.c.l.b16 %v3900
      %v3933 = vunpack.c.l.b16 %v3901
      %v3934 = vunpack.c.l.b16 %v3902
      %v3935 = vunpack.c.l.b16 %v3903
      %v3936 = vunpack.c.l.b16 %v3904
      %v3937 = vunpack.c.l.b16 %v3905
      %v3938 = vpack.c.b16 %v3923, %v3922
      %v3939 = vpack.c.b16 %v3925, %v3924
      %v3940 = vpack.c.b16 %v3927, %v3926
      %v3941 = vpack.c.b16 %v3929, %v3928
      %v3942 = vpack.c.b16 %v3931, %v3930
      %v3943 = vpack.c.b16 %v3933, %v3932
      %v3944 = vpack.c.b16 %v3935, %v3934
      %v3945 = vpack.c.b16 %v3937, %v3936
      %3954 = vmatprep.subr.bf16.mxu0 0
      %3955 = vmatpush1.bf16.msra.mxu0 %v3938
      %3956 = vmatprep.subr.bf16.mxu0 0
      %3957 = vmatpush1.bf16.msra.mxu0 %v3939
      %3958 = vmatprep.subr.bf16.mxu0 0
      %3959 = vmatpush1.bf16.msra.mxu0 %v3940
      %3960 = vmatprep.subr.bf16.mxu0 0
      %3961 = vmatpush1.bf16.msra.mxu0 %v3941
      %3962 = vmatprep.subr.bf16.mxu0 0
      %3963 = vmatpush1.bf16.msra.mxu0 %v3942
      %3964 = vmatprep.subr.bf16.mxu0 0
      %3965 = vmatpush1.bf16.msra.mxu0 %v3943
      %3966 = vmatprep.subr.bf16.mxu0 0
      %3967 = vmatpush1.bf16.msra.mxu0 %v3944
      %3968 = vmatprep.subr.bf16.mxu0 0
      %3969 = vmatpush1.bf16.msra.mxu0 %v3945
      %3970 = vmatprep.subr.bf16.mxu0 0
      %3971 = vmatpush1.bf16.msra.mxu0 0
      %3972 = vmatprep.subr.bf16.mxu0 0
      %3973 = vmatpush1.bf16.msra.mxu0 0
      %3974 = vmatprep.subr.bf16.mxu0 0
      %3975 = vmatpush1.bf16.msra.mxu0 0
      %3976 = vmatprep.subr.bf16.mxu0 0
      %3977 = vmatpush1.bf16.msra.mxu0 0
      %3978 = vmatprep.subr.bf16.mxu0 0
      %3979 = vmatpush1.bf16.msra.mxu0 0
      %3980 = vmatprep.subr.bf16.mxu0 0
      %3981 = vmatpush1.bf16.msra.mxu0 0
      %3982 = vmatprep.subr.bf16.mxu0 0
      %3983 = vmatpush1.bf16.msra.mxu0 0
      %3984 = vmatprep.subr.bf16.mxu0 0
      %3985 = vmatpush1.bf16.msra.mxu0 0
      %3986 = vmatprep.mubr.bf16.mxu0 0
      %3987 = vmatmul.mubr.bf16.gmra.mrb[0].mxu0 %v3873
      %v3988 = vpop.f32.mrb[0].mxu0
      %v3989 = vadd.f32 0.0, %v3988
      %v3990 = vpop.f32.mrb[0].mxu0
      %v3991 = vpop.f32.mrb[0].mxu0
      %v3992 = vadd.f32 0.0, %v3991
      %v3993 = vpop.f32.mrb[0].mxu0
      %3994 = vmatprep.mubr.bf16.mxu0 0
      %3995 = vmatmul.mubr.bf16.gmra.mrb[0].mxu0 %v3874
      %v3996 = vpop.f32.mrb[0].mxu0
      %v3997 = vadd.f32 0.0, %v3996
      %v3998 = vpop.f32.mrb[0].mxu0
      %v3999 = vpop.f32.mrb[0].mxu0
      %v4000 = vadd.f32 0.0, %v3999
      %v4001 = vpop.f32.mrb[0].mxu0
      %4002 = vmatprep.mubr.bf16.mxu0 0
      %4003 = vmatmul.mubr.bf16.gmra.mrb[0].mxu0 %v3875
      %v4004 = vpop.f32.mrb[0].mxu0
      %v4005 = vadd.f32 0.0, %v4004
      %v4006 = vpop.f32.mrb[0].mxu0
      %v4007 = vpop.f32.mrb[0].mxu0
      %v4008 = vadd.f32 0.0, %v4007
      %v4009 = vpop.f32.mrb[0].mxu0
      %4010 = vmatprep.mubr.bf16.mxu0 0
      %4011 = vmatmul.mubr.bf16.gmra.mrb[0].mxu0 %v3876
      %v4012 = vpop.f32.mrb[0].mxu0
      %v4013 = vadd.f32 0.0, %v4012
      %v4014 = vpop.f32.mrb[0].mxu0
      %v4015 = vpop.f32.mrb[0].mxu0
      %v4016 = vadd.f32 0.0, %v4015
      %v4017 = vpop.f32.mrb[0].mxu0
      %4018 = vmatprep.mubr.bf16.mxu0 0
      %4019 = vmatmul.mubr.bf16.gmra.mrb[0].mxu0 %v3877
      %v4020 = vpop.f32.mrb[0].mxu0
      %v4021 = vadd.f32 0.0, %v4020
      %v4022 = vpop.f32.mrb[0].mxu0
      %v4023 = vpop.f32.mrb[0].mxu0
      %v4024 = vadd.f32 0.0, %v4023
      %v4025 = vpop.f32.mrb[0].mxu0
      %4026 = vmatprep.mubr.bf16.mxu0 0
      %4027 = vmatmul.mubr.bf16.gmra.mrb[0].mxu0 %v3878
      %v4028 = vpop.f32.mrb[0].mxu0
      %v4029 = vadd.f32 0.0, %v4028
      %v4030 = vpop.f32.mrb[0].mxu0
      %v4031 = vpop.f32.mrb[0].mxu0
      %v4032 = vadd.f32 0.0, %v4031
      %v4033 = vpop.f32.mrb[0].mxu0
      %4034 = vmatprep.mubr.bf16.mxu0 0
      %4035 = vmatmul.mubr.bf16.gmra.mrb[0].mxu0 %v3879
      %v4036 = vpop.f32.mrb[0].mxu0
      %v4037 = vadd.f32 0.0, %v4036
      %v4038 = vpop.f32.mrb[0].mxu0
      %v4039 = vpop.f32.mrb[0].mxu0
      %v4040 = vadd.f32 0.0, %v4039
      %v4041 = vpop.f32.mrb[0].mxu0
      %4042 = vmatprep.mubr.bf16.mxu0 0
      %4043 = vmatmul.mubr.bf16.gmra.mrb[0].mxu0 %v3880
      %v4044 = vpop.f32.mrb[0].mxu0
      %v4045 = vadd.f32 0.0, %v4044
      %v4046 = vpop.f32.mrb[0].mxu0
      %v4047 = vpop.f32.mrb[0].mxu0
      %v4048 = vadd.f32 0.0, %v4047
      %v4049 = vpop.f32.mrb[0].mxu0
      %4050 = vmatprep.mubr.bf16.mxu0 0
      %4051 = vmatmul.mubr.bf16.gmra.mrb[0].mxu0 %v3881
      %v4052 = vpop.f32.mrb[0].mxu0
      %v4053 = vadd.f32 0.0, %v4052
      %v4054 = vpop.f32.mrb[0].mxu0
      %v4055 = vpop.f32.mrb[0].mxu0
      %v4056 = vadd.f32 0.0, %v4055
      %v4057 = vpop.f32.mrb[0].mxu0
      %4058 = vmatprep.mubr.bf16.mxu0 0
      %4059 = vmatmul.mubr.bf16.gmra.mrb[0].mxu0 %v3882
      %v4060 = vpop.f32.mrb[0].mxu0
      %v4061 = vadd.f32 0.0, %v4060
      %v4062 = vpop.f32.mrb[0].mxu0
      %v4063 = vpop.f32.mrb[0].mxu0
      %v4064 = vadd.f32 0.0, %v4063
      %v4065 = vpop.f32.mrb[0].mxu0
      %4066 = vmatprep.mubr.bf16.mxu0 0
      %4067 = vmatmul.mubr.bf16.gmra.mrb[0].mxu0 %v3883
      %v4068 = vpop.f32.mrb[0].mxu0
      %v4069 = vadd.f32 0.0, %v4068
      %v4070 = vpop.f32.mrb[0].mxu0
      %v4071 = vpop.f32.mrb[0].mxu0
      %v4072 = vadd.f32 0.0, %v4071
      %v4073 = vpop.f32.mrb[0].mxu0
      %4074 = vmatprep.mubr.bf16.mxu0 0
      %4075 = vmatmul.mubr.bf16.gmra.mrb[0].mxu0 %v3884
      %v4076 = vpop.f32.mrb[0].mxu0
      %v4077 = vadd.f32 0.0, %v4076
      %v4078 = vpop.f32.mrb[0].mxu0
      %v4079 = vpop.f32.mrb[0].mxu0
      %v4080 = vadd.f32 0.0, %v4079
      %v4081 = vpop.f32.mrb[0].mxu0
      %4082 = vmatprep.mubr.bf16.mxu0 0
      %4083 = vmatmul.mubr.bf16.gmra.mrb[0].mxu0 %v3885
      %v4084 = vpop.f32.mrb[0].mxu0
      %v4085 = vadd.f32 0.0, %v4084
      %v4086 = vpop.f32.mrb[0].mxu0
      %v4087 = vpop.f32.mrb[0].mxu0
      %v4088 = vadd.f32 0.0, %v4087
      %v4089 = vpop.f32.mrb[0].mxu0
      %4090 = vmatprep.mubr.bf16.mxu0 0
      %4091 = vmatmul.mubr.bf16.gmra.mrb[0].mxu0 %v3886
      %v4092 = vpop.f32.mrb[0].mxu0
      %v4093 = vadd.f32 0.0, %v4092
      %v4094 = vpop.f32.mrb[0].mxu0
      %v4095 = vpop.f32.mrb[0].mxu0
      %v4096 = vadd.f32 0.0, %v4095
      %v4097 = vpop.f32.mrb[0].mxu0
      %4098 = vmatprep.mubr.bf16.mxu0 0
      %4099 = vmatmul.mubr.bf16.gmra.mrb[0].mxu0 %v3887
      %v4100 = vpop.f32.mrb[0].mxu0
      %v4101 = vadd.f32 0.0, %v4100
      %v4102 = vpop.f32.mrb[0].mxu0
      %v4103 = vpop.f32.mrb[0].mxu0
      %v4104 = vadd.f32 0.0, %v4103
      %v4105 = vpop.f32.mrb[0].mxu0
      %4106 = vmatprep.mubr.bf16.mxu0 0
      %4107 = vmatmul.mubr.bf16.gmra.mrb[0].mxu0 %v3888
      %v4108 = vpop.f32.mrb[0].mxu0
      %v4109 = vadd.f32 0.0, %v4108
      %v4110 = vpop.f32.mrb[0].mxu0
      %v4111 = vpop.f32.mrb[0].mxu0
      %v4112 = vadd.f32 0.0, %v4111
      %v4113 = vpop.f32.mrb[0].mxu0
      %4114 = vdwg.mxu0
      %v4115 = vadd.f32 %v3808, %v3989
      %v4116 = vadd.f32 %v3809, %v3992
      %v4117 = vadd.f32 %v3810, %v3997
      %v4118 = vadd.f32 %v3811, %v4000
      %v4119 = vadd.f32 %v3812, %v4005
      %v4120 = vadd.f32 %v3813, %v4008
      %v4121 = vadd.f32 %v3814, %v4013
      %v4122 = vadd.f32 %v3815, %v4016
      %v4123 = vadd.f32 %v3816, %v4021
      %v4124 = vadd.f32 %v3817, %v4024
      %v4125 = vadd.f32 %v3818, %v4029
      %v4126 = vadd.f32 %v3819, %v4032
      %v4127 = vadd.f32 %v3820, %v4037
      %v4128 = vadd.f32 %v3821, %v4040
      %v4129 = vadd.f32 %v3822, %v4045
      %v4130 = vadd.f32 %v3823, %v4048
      %v4131 = vadd.f32 %v3824, %v4053
      %v4132 = vadd.f32 %v3825, %v4056
      %v4133 = vadd.f32 %v3826, %v4061
      %v4134 = vadd.f32 %v3827, %v4064
      %v4135 = vadd.f32 %v3828, %v4069
      %v4136 = vadd.f32 %v3829, %v4072
      %v4137 = vadd.f32 %v3830, %v4077
      %v4138 = vadd.f32 %v3831, %v4080
      %v4139 = vadd.f32 %v3832, %v4085
      %v4140 = vadd.f32 %v3833, %v4088
      %v4141 = vadd.f32 %v3834, %v4093
      %v4142 = vadd.f32 %v3835, %v4096
      %v4143 = vadd.f32 %v3836, %v4101
      %v4144 = vadd.f32 %v3837, %v4104
      %v4145 = vadd.f32 %v3838, %v4109
      %v4146 = vadd.f32 %v3839, %v4112
      %v4147 = vld [vmem:[%s3840 + $0x1] sm:$0xff]
      %v4148 = vld [vmem:[%s3840 + $0x11] sm:$0xff]
      %v4149 = vld [vmem:[%s3840 + $0x21] sm:$0xff]
      %v4150 = vld [vmem:[%s3840 + $0x31] sm:$0xff]
      %v4151 = vld [vmem:[%s3840 + $0x41] sm:$0xff]
      %v4152 = vld [vmem:[%s3840 + $0x51] sm:$0xff]
      %v4153 = vld [vmem:[%s3840 + $0x61] sm:$0xff]
      %v4154 = vld [vmem:[%s3840 + $0x71] sm:$0xff]
      %v4155 = vld [vmem:[%s3840 + $0xa1] sm:$0xff]
      %v4156 = vld [vmem:[%s3840 + $0xb1] sm:$0xff]
      %v4157 = vld [vmem:[%s3840 + $0xc1] sm:$0xff]
      %v4158 = vld [vmem:[%s3840 + $0xd1] sm:$0xff]
      %v4159 = vld [vmem:[%s3840 + $0xe1] sm:$0xff]
      %v4160 = vld [vmem:[%s3840 + $0xf1] sm:$0xff]
      %v4161 = vld [vmem:[%s3840 + $0x101] sm:$0xff]
      %v4162 = vld [vmem:[%s3840 + $0x111] sm:$0xff]
      %v4163 = vld [vmem:[%s3840 + $0x141] sm:$0xff]
      %v4164 = vld [vmem:[%s3840 + $0x151] sm:$0xff]
      %v4165 = vld [vmem:[%s3840 + $0x161] sm:$0xff]
      %v4166 = vld [vmem:[%s3840 + $0x171] sm:$0xff]
      %v4167 = vld [vmem:[%s3840 + $0x181] sm:$0xff]
      %v4168 = vld [vmem:[%s3840 + $0x191] sm:$0xff]
      %v4169 = vld [vmem:[%s3840 + $0x1a1] sm:$0xff]
      %v4170 = vld [vmem:[%s3840 + $0x1b1] sm:$0xff]
      %v4171 = vld [vmem:[%s3840 + $0x1e1] sm:$0xff]
      %v4172 = vld [vmem:[%s3840 + $0x1f1] sm:$0xff]
      %v4173 = vld [vmem:[%s3840 + $0x201] sm:$0xff]
      %v4174 = vld [vmem:[%s3840 + $0x211] sm:$0xff]
      %v4175 = vld [vmem:[%s3840 + $0x221] sm:$0xff]
      %v4176 = vld [vmem:[%s3840 + $0x231] sm:$0xff]
      %v4177 = vld [vmem:[%s3840 + $0x241] sm:$0xff]
      %v4178 = vld [vmem:[%s3840 + $0x251] sm:$0xff]
      %v4179 = vpack.c.bf16 %v4148, %v4147
      %v4180 = vpack.c.bf16 %v4150, %v4149
      %v4181 = vpack.c.bf16 %v4152, %v4151
      %v4182 = vpack.c.bf16 %v4154, %v4153
      %v4183 = vpack.c.bf16 %v4156, %v4155
      %v4184 = vpack.c.bf16 %v4158, %v4157
      %v4185 = vpack.c.bf16 %v4160, %v4159
      %v4186 = vpack.c.bf16 %v4162, %v4161
      %v4187 = vpack.c.bf16 %v4164, %v4163
      %v4188 = vpack.c.bf16 %v4166, %v4165
      %v4189 = vpack.c.bf16 %v4168, %v4167
      %v4190 = vpack.c.bf16 %v4170, %v4169
      %v4191 = vpack.c.bf16 %v4172, %v4171
      %v4192 = vpack.c.bf16 %v4174, %v4173
      %v4193 = vpack.c.bf16 %v4176, %v4175
      %v4194 = vpack.c.bf16 %v4178, %v4177
      %s4195 = scalar_lea.vmem %s1, 832
      %v4196 = vld [vmem:[%s4195] sm:$0xf]
      %v4197 = vld [vmem:[%s4195 + $0x4] sm:$0xf]
      %v4198 = vld [vmem:[%s4195 + $0x8] sm:$0xf]
      %v4199 = vld [vmem:[%s4195 + $0xc] sm:$0xf]
      %v4200 = vld [vmem:[%s4195 + $0x10] sm:$0xf]
      %v4201 = vld [vmem:[%s4195 + $0x14] sm:$0xf]
      %v4202 = vld [vmem:[%s4195 + $0x18] sm:$0xf]
      %v4203 = vld [vmem:[%s4195 + $0x1c] sm:$0xf]
      %v4204 = vld [vmem:[%s4195 + $0x20] sm:$0xf]
      %v4205 = vld [vmem:[%s4195 + $0x24] sm:$0xf]
      %v4206 = vld [vmem:[%s4195 + $0x28] sm:$0xf]
      %v4207 = vld [vmem:[%s4195 + $0x2c] sm:$0xf]
      %v4208 = vld [vmem:[%s4195 + $0x30] sm:$0xf]
      %v4209 = vld [vmem:[%s4195 + $0x34] sm:$0xf]
      %v4210 = vld [vmem:[%s4195 + $0x38] sm:$0xf]
      %v4211 = vld [vmem:[%s4195 + $0x3c] sm:$0xf]
      %v4228 = vunpack.c.l.b16 %v4196
      %v4229 = vunpack.c.l.b16 %v4197
      %v4230 = vunpack.c.l.b16 %v4198
      %v4231 = vunpack.c.l.b16 %v4199
      %v4232 = vunpack.c.l.b16 %v4200
      %v4233 = vunpack.c.l.b16 %v4201
      %v4234 = vunpack.c.l.b16 %v4202
      %v4235 = vunpack.c.l.b16 %v4203
      %v4236 = vunpack.c.l.b16 %v4204
      %v4237 = vunpack.c.l.b16 %v4205
      %v4238 = vunpack.c.l.b16 %v4206
      %v4239 = vunpack.c.l.b16 %v4207
      %v4240 = vunpack.c.l.b16 %v4208
      %v4241 = vunpack.c.l.b16 %v4209
      %v4242 = vunpack.c.l.b16 %v4210
      %v4243 = vunpack.c.l.b16 %v4211
      %v4244 = vpack.c.b16 %v4229, %v4228
      %v4245 = vpack.c.b16 %v4231, %v4230
      %v4246 = vpack.c.b16 %v4233, %v4232
      %v4247 = vpack.c.b16 %v4235, %v4234
      %v4248 = vpack.c.b16 %v4237, %v4236
      %v4249 = vpack.c.b16 %v4239, %v4238
      %v4250 = vpack.c.b16 %v4241, %v4240
      %v4251 = vpack.c.b16 %v4243, %v4242
      %4260 = vmatprep.subr.bf16.mxu0 0
      %4261 = vmatpush1.bf16.msra.mxu0 %v4244
      %4262 = vmatprep.subr.bf16.mxu0 0
      %4263 = vmatpush1.bf16.msra.mxu0 %v4245
      %4264 = vmatprep.subr.bf16.mxu0 0
      %4265 = vmatpush1.bf16.msra.mxu0 %v4246
      %4266 = vmatprep.subr.bf16.mxu0 0
      %4267 = vmatpush1.bf16.msra.mxu0 %v4247
      %4268 = vmatprep.subr.bf16.mxu0 0
      %4269 = vmatpush1.bf16.msra.mxu0 %v4248
      %4270 = vmatprep.subr.bf16.mxu0 0
      %4271 = vmatpush1.bf16.msra.mxu0 %v4249
      %4272 = vmatprep.subr.bf16.mxu0 0
      %4273 = vmatpush1.bf16.msra.mxu0 %v4250
      %4274 = vmatprep.subr.bf16.mxu0 0
      %4275 = vmatpush1.bf16.msra.mxu0 %v4251
      %4276 = vmatprep.subr.bf16.mxu0 0
      %4277 = vmatpush1.bf16.msra.mxu0 0
      %4278 = vmatprep.subr.bf16.mxu0 0
      %4279 = vmatpush1.bf16.msra.mxu0 0
      %4280 = vmatprep.subr.bf16.mxu0 0
      %4281 = vmatpush1.bf16.msra.mxu0 0
      %4282 = vmatprep.subr.bf16.mxu0 0
      %4283 = vmatpush1.bf16.msra.mxu0 0
      %4284 = vmatprep.subr.bf16.mxu0 0
      %4285 = vmatpush1.bf16.msra.mxu0 0
      %4286 = vmatprep.subr.bf16.mxu0 0
      %4287 = vmatpush1.bf16.msra.mxu0 0
      %4288 = vmatprep.subr.bf16.mxu0 0
      %4289 = vmatpush1.bf16.msra.mxu0 0
      %4290 = vmatprep.subr.bf16.mxu0 0
      %4291 = vmatpush1.bf16.msra.mxu0 0
      %4292 = vmatprep.mubr.bf16.mxu0 0
      %4293 = vmatmul.mubr.bf16.gmra.mrb[0].mxu0 %v4179
      %v4294 = vpop.f32.mrb[0].mxu0
      %v4295 = vadd.f32 0.0, %v4294
      %v4296 = vpop.f32.mrb[0].mxu0
      %v4297 = vpop.f32.mrb[0].mxu0
      %v4298 = vadd.f32 0.0, %v4297
      %v4299 = vpop.f32.mrb[0].mxu0
      %4300 = vmatprep.mubr.bf16.mxu0 0
      %4301 = vmatmul.mubr.bf16.gmra.mrb[0].mxu0 %v4180
      %v4302 = vpop.f32.mrb[0].mxu0
      %v4303 = vadd.f32 0.0, %v4302
      %v4304 = vpop.f32.mrb[0].mxu0
      %v4305 = vpop.f32.mrb[0].mxu0
      %v4306 = vadd.f32 0.0, %v4305
      %v4307 = vpop.f32.mrb[0].mxu0
      %4308 = vmatprep.mubr.bf16.mxu0 0
      %4309 = vmatmul.mubr.bf16.gmra.mrb[0].mxu0 %v4181
      %v4310 = vpop.f32.mrb[0].mxu0
      %v4311 = vadd.f32 0.0, %v4310
      %v4312 = vpop.f32.mrb[0].mxu0
      %v4313 = vpop.f32.mrb[0].mxu0
      %v4314 = vadd.f32 0.0, %v4313
      %v4315 = vpop.f32.mrb[0].mxu0
      %4316 = vmatprep.mubr.bf16.mxu0 0
      %4317 = vmatmul.mubr.bf16.gmra.mrb[0].mxu0 %v4182
      %v4318 = vpop.f32.mrb[0].mxu0
      %v4319 = vadd.f32 0.0, %v4318
      %v4320 = vpop.f32.mrb[0].mxu0
      %v4321 = vpop.f32.mrb[0].mxu0
      %v4322 = vadd.f32 0.0, %v4321
      %v4323 = vpop.f32.mrb[0].mxu0
      %4324 = vmatprep.mubr.bf16.mxu0 0
      %4325 = vmatmul.mubr.bf16.gmra.mrb[0].mxu0 %v4183
      %v4326 = vpop.f32.mrb[0].mxu0
      %v4327 = vadd.f32 0.0, %v4326
      %v4328 = vpop.f32.mrb[0].mxu0
      %v4329 = vpop.f32.mrb[0].mxu0
      %v4330 = vadd.f32 0.0, %v4329
      %v4331 = vpop.f32.mrb[0].mxu0
      %4332 = vmatprep.mubr.bf16.mxu0 0
      %4333 = vmatmul.mubr.bf16.gmra.mrb[0].mxu0 %v4184
      %v4334 = vpop.f32.mrb[0].mxu0
      %v4335 = vadd.f32 0.0, %v4334
      %v4336 = vpop.f32.mrb[0].mxu0
      %v4337 = vpop.f32.mrb[0].mxu0
      %v4338 = vadd.f32 0.0, %v4337
      %v4339 = vpop.f32.mrb[0].mxu0
      %4340 = vmatprep.mubr.bf16.mxu0 0
      %4341 = vmatmul.mubr.bf16.gmra.mrb[0].mxu0 %v4185
      %v4342 = vpop.f32.mrb[0].mxu0
      %v4343 = vadd.f32 0.0, %v4342
      %v4344 = vpop.f32.mrb[0].mxu0
      %v4345 = vpop.f32.mrb[0].mxu0
      %v4346 = vadd.f32 0.0, %v4345
      %v4347 = vpop.f32.mrb[0].mxu0
      %4348 = vmatprep.mubr.bf16.mxu0 0
      %4349 = vmatmul.mubr.bf16.gmra.mrb[0].mxu0 %v4186
      %v4350 = vpop.f32.mrb[0].mxu0
      %v4351 = vadd.f32 0.0, %v4350
      %v4352 = vpop.f32.mrb[0].mxu0
      %v4353 = vpop.f32.mrb[0].mxu0
      %v4354 = vadd.f32 0.0, %v4353
      %v4355 = vpop.f32.mrb[0].mxu0
      %4356 = vmatprep.mubr.bf16.mxu0 0
      %4357 = vmatmul.mubr.bf16.gmra.mrb[0].mxu0 %v4187
      %v4358 = vpop.f32.mrb[0].mxu0
      %v4359 = vadd.f32 0.0, %v4358
      %v4360 = vpop.f32.mrb[0].mxu0
      %v4361 = vpop.f32.mrb[0].mxu0
      %v4362 = vadd.f32 0.0, %v4361
      %v4363 = vpop.f32.mrb[0].mxu0
      %4364 = vmatprep.mubr.bf16.mxu0 0
      %4365 = vmatmul.mubr.bf16.gmra.mrb[0].mxu0 %v4188
      %v4366 = vpop.f32.mrb[0].mxu0
      %v4367 = vadd.f32 0.0, %v4366
      %v4368 = vpop.f32.mrb[0].mxu0
      %v4369 = vpop.f32.mrb[0].mxu0
      %v4370 = vadd.f32 0.0, %v4369
      %v4371 = vpop.f32.mrb[0].mxu0
      %4372 = vmatprep.mubr.bf16.mxu0 0
      %4373 = vmatmul.mubr.bf16.gmra.mrb[0].mxu0 %v4189
      %v4374 = vpop.f32.mrb[0].mxu0
      %v4375 = vadd.f32 0.0, %v4374
      %v4376 = vpop.f32.mrb[0].mxu0
      %v4377 = vpop.f32.mrb[0].mxu0
      %v4378 = vadd.f32 0.0, %v4377
      %v4379 = vpop.f32.mrb[0].mxu0
      %4380 = vmatprep.mubr.bf16.mxu0 0
      %4381 = vmatmul.mubr.bf16.gmra.mrb[0].mxu0 %v4190
      %v4382 = vpop.f32.mrb[0].mxu0
      %v4383 = vadd.f32 0.0, %v4382
      %v4384 = vpop.f32.mrb[0].mxu0
      %v4385 = vpop.f32.mrb[0].mxu0
      %v4386 = vadd.f32 0.0, %v4385
      %v4387 = vpop.f32.mrb[0].mxu0
      %4388 = vmatprep.mubr.bf16.mxu0 0
      %4389 = vmatmul.mubr.bf16.gmra.mrb[0].mxu0 %v4191
      %v4390 = vpop.f32.mrb[0].mxu0
      %v4391 = vadd.f32 0.0, %v4390
      %v4392 = vpop.f32.mrb[0].mxu0
      %v4393 = vpop.f32.mrb[0].mxu0
      %v4394 = vadd.f32 0.0, %v4393
      %v4395 = vpop.f32.mrb[0].mxu0
      %4396 = vmatprep.mubr.bf16.mxu0 0
      %4397 = vmatmul.mubr.bf16.gmra.mrb[0].mxu0 %v4192
      %v4398 = vpop.f32.mrb[0].mxu0
      %v4399 = vadd.f32 0.0, %v4398
      %v4400 = vpop.f32.mrb[0].mxu0
      %v4401 = vpop.f32.mrb[0].mxu0
      %v4402 = vadd.f32 0.0, %v4401
      %v4403 = vpop.f32.mrb[0].mxu0
      %4404 = vmatprep.mubr.bf16.mxu0 0
      %4405 = vmatmul.mubr.bf16.gmra.mrb[0].mxu0 %v4193
      %v4406 = vpop.f32.mrb[0].mxu0
      %v4407 = vadd.f32 0.0, %v4406
      %v4408 = vpop.f32.mrb[0].mxu0
      %v4409 = vpop.f32.mrb[0].mxu0
      %v4410 = vadd.f32 0.0, %v4409
      %v4411 = vpop.f32.mrb[0].mxu0
      %4412 = vmatprep.mubr.bf16.mxu0 0
      %4413 = vmatmul.mubr.bf16.gmra.mrb[0].mxu0 %v4194
      %v4414 = vpop.f32.mrb[0].mxu0
      %v4415 = vadd.f32 0.0, %v4414
      %v4416 = vpop.f32.mrb[0].mxu0
      %v4417 = vpop.f32.mrb[0].mxu0
      %v4418 = vadd.f32 0.0, %v4417
      %v4419 = vpop.f32.mrb[0].mxu0
      %4420 = vdwg.mxu0
      %v4421 = vadd.f32 %v4115, %v4295
      %v4422 = vadd.f32 %v4116, %v4298
      %v4423 = vadd.f32 %v4117, %v4303
      %v4424 = vadd.f32 %v4118, %v4306
      %v4425 = vadd.f32 %v4119, %v4311
      %v4426 = vadd.f32 %v4120, %v4314
      %v4427 = vadd.f32 %v4121, %v4319
      %v4428 = vadd.f32 %v4122, %v4322
      %v4429 = vadd.f32 %v4123, %v4327
      %v4430 = vadd.f32 %v4124, %v4330
      %v4431 = vadd.f32 %v4125, %v4335
      %v4432 = vadd.f32 %v4126, %v4338
      %v4433 = vadd.f32 %v4127, %v4343
      %v4434 = vadd.f32 %v4128, %v4346
      %v4435 = vadd.f32 %v4129, %v4351
      %v4436 = vadd.f32 %v4130, %v4354
      %v4437 = vadd.f32 %v4131, %v4359
      %v4438 = vadd.f32 %v4132, %v4362
      %v4439 = vadd.f32 %v4133, %v4367
      %v4440 = vadd.f32 %v4134, %v4370
      %v4441 = vadd.f32 %v4135, %v4375
      %v4442 = vadd.f32 %v4136, %v4378
      %v4443 = vadd.f32 %v4137, %v4383
      %v4444 = vadd.f32 %v4138, %v4386
      %v4445 = vadd.f32 %v4139, %v4391
      %v4446 = vadd.f32 %v4140, %v4394
      %v4447 = vadd.f32 %v4141, %v4399
      %v4448 = vadd.f32 %v4142, %v4402
      %v4449 = vadd.f32 %v4143, %v4407
      %v4450 = vadd.f32 %v4144, %v4410
      %v4451 = vadd.f32 %v4145, %v4415
      %v4452 = vadd.f32 %v4146, %v4418
      %v4453 = vld [vmem:[%s3840 + $0x2] sm:$0xff]
      %v4454 = vld [vmem:[%s3840 + $0x12] sm:$0xff]
      %v4455 = vld [vmem:[%s3840 + $0x22] sm:$0xff]
      %v4456 = vld [vmem:[%s3840 + $0x32] sm:$0xff]
      %v4457 = vld [vmem:[%s3840 + $0x42] sm:$0xff]
      %v4458 = vld [vmem:[%s3840 + $0x52] sm:$0xff]
      %v4459 = vld [vmem:[%s3840 + $0x62] sm:$0xff]
      %v4460 = vld [vmem:[%s3840 + $0x72] sm:$0xff]
      %v4461 = vld [vmem:[%s3840 + $0xa2] sm:$0xff]
      %v4462 = vld [vmem:[%s3840 + $0xb2] sm:$0xff]
      %v4463 = vld [vmem:[%s3840 + $0xc2] sm:$0xff]
      %v4464 = vld [vmem:[%s3840 + $0xd2] sm:$0xff]
      %v4465 = vld [vmem:[%s3840 + $0xe2] sm:$0xff]
      %v4466 = vld [vmem:[%s3840 + $0xf2] sm:$0xff]
      %v4467 = vld [vmem:[%s3840 + $0x102] sm:$0xff]
      %v4468 = vld [vmem:[%s3840 + $0x112] sm:$0xff]
      %v4469 = vld [vmem:[%s3840 + $0x142] sm:$0xff]
      %v4470 = vld [vmem:[%s3840 + $0x152] sm:$0xff]
      %v4471 = vld [vmem:[%s3840 + $0x162] sm:$0xff]
      %v4472 = vld [vmem:[%s3840 + $0x172] sm:$0xff]
      %v4473 = vld [vmem:[%s3840 + $0x182] sm:$0xff]
      %v4474 = vld [vmem:[%s3840 + $0x192] sm:$0xff]
      %v4475 = vld [vmem:[%s3840 + $0x1a2] sm:$0xff]
      %v4476 = vld [vmem:[%s3840 + $0x1b2] sm:$0xff]
      %v4477 = vld [vmem:[%s3840 + $0x1e2] sm:$0xff]
      %v4478 = vld [vmem:[%s3840 + $0x1f2] sm:$0xff]
      %v4479 = vld [vmem:[%s3840 + $0x202] sm:$0xff]
      %v4480 = vld [vmem:[%s3840 + $0x212] sm:$0xff]
      %v4481 = vld [vmem:[%s3840 + $0x222] sm:$0xff]
      %v4482 = vld [vmem:[%s3840 + $0x232] sm:$0xff]
      %v4483 = vld [vmem:[%s3840 + $0x242] sm:$0xff]
      %v4484 = vld [vmem:[%s3840 + $0x252] sm:$0xff]
      %v4485 = vpack.c.bf16 %v4454, %v4453
      %v4486 = vpack.c.bf16 %v4456, %v4455
      %v4487 = vpack.c.bf16 %v4458, %v4457
      %v4488 = vpack.c.bf16 %v4460, %v4459
      %v4489 = vpack.c.bf16 %v4462, %v4461
      %v4490 = vpack.c.bf16 %v4464, %v4463
      %v4491 = vpack.c.bf16 %v4466, %v4465
      %v4492 = vpack.c.bf16 %v4468, %v4467
      %v4493 = vpack.c.bf16 %v4470, %v4469
      %v4494 = vpack.c.bf16 %v4472, %v4471
      %v4495 = vpack.c.bf16 %v4474, %v4473
      %v4496 = vpack.c.bf16 %v4476, %v4475
      %v4497 = vpack.c.bf16 %v4478, %v4477
      %v4498 = vpack.c.bf16 %v4480, %v4479
      %v4499 = vpack.c.bf16 %v4482, %v4481
      %v4500 = vpack.c.bf16 %v4484, %v4483
      %s4501 = scalar_lea.vmem %s1, 896
      %v4502 = vld [vmem:[%s4501] sm:$0xf]
      %v4503 = vld [vmem:[%s4501 + $0x4] sm:$0xf]
      %v4504 = vld [vmem:[%s4501 + $0x8] sm:$0xf]
      %v4505 = vld [vmem:[%s4501 + $0xc] sm:$0xf]
      %v4506 = vld [vmem:[%s4501 + $0x10] sm:$0xf]
      %v4507 = vld [vmem:[%s4501 + $0x14] sm:$0xf]
      %v4508 = vld [vmem:[%s4501 + $0x18] sm:$0xf]
      %v4509 = vld [vmem:[%s4501 + $0x1c] sm:$0xf]
      %v4510 = vld [vmem:[%s4501 + $0x20] sm:$0xf]
      %v4511 = vld [vmem:[%s4501 + $0x24] sm:$0xf]
      %v4512 = vld [vmem:[%s4501 + $0x28] sm:$0xf]
      %v4513 = vld [vmem:[%s4501 + $0x2c] sm:$0xf]
      %v4514 = vld [vmem:[%s4501 + $0x30] sm:$0xf]
      %v4515 = vld [vmem:[%s4501 + $0x34] sm:$0xf]
      %v4516 = vld [vmem:[%s4501 + $0x38] sm:$0xf]
      %v4517 = vld [vmem:[%s4501 + $0x3c] sm:$0xf]
      %v4534 = vunpack.c.l.b16 %v4502
      %v4535 = vunpack.c.l.b16 %v4503
      %v4536 = vunpack.c.l.b16 %v4504
      %v4537 = vunpack.c.l.b16 %v4505
      %v4538 = vunpack.c.l.b16 %v4506
      %v4539 = vunpack.c.l.b16 %v4507
      %v4540 = vunpack.c.l.b16 %v4508
      %v4541 = vunpack.c.l.b16 %v4509
      %v4542 = vunpack.c.l.b16 %v4510
      %v4543 = vunpack.c.l.b16 %v4511
      %v4544 = vunpack.c.l.b16 %v4512
      %v4545 = vunpack.c.l.b16 %v4513
      %v4546 = vunpack.c.l.b16 %v4514
      %v4547 = vunpack.c.l.b16 %v4515
      %v4548 = vunpack.c.l.b16 %v4516
      %v4549 = vunpack.c.l.b16 %v4517
      %v4550 = vpack.c.b16 %v4535, %v4534
      %v4551 = vpack.c.b16 %v4537, %v4536
      %v4552 = vpack.c.b16 %v4539, %v4538
      %v4553 = vpack.c.b16 %v4541, %v4540
      %v4554 = vpack.c.b16 %v4543, %v4542
      %v4555 = vpack.c.b16 %v4545, %v4544
      %v4556 = vpack.c.b16 %v4547, %v4546
      %v4557 = vpack.c.b16 %v4549, %v4548
      %4566 = vmatprep.subr.bf16.mxu0 0
      %4567 = vmatpush1.bf16.msra.mxu0 %v4550
      %4568 = vmatprep.subr.bf16.mxu0 0
      %4569 = vmatpush1.bf16.msra.mxu0 %v4551
      %4570 = vmatprep.subr.bf16.mxu0 0
      %4571 = vmatpush1.bf16.msra.mxu0 %v4552
      %4572 = vmatprep.subr.bf16.mxu0 0
      %4573 = vmatpush1.bf16.msra.mxu0 %v4553
      %4574 = vmatprep.subr.bf16.mxu0 0
      %4575 = vmatpush1.bf16.msra.mxu0 %v4554
      %4576 = vmatprep.subr.bf16.mxu0 0
      %4577 = vmatpush1.bf16.msra.mxu0 %v4555
      %4578 = vmatprep.subr.bf16.mxu0 0
      %4579 = vmatpush1.bf16.msra.mxu0 %v4556
      %4580 = vmatprep.subr.bf16.mxu0 0
      %4581 = vmatpush1.bf16.msra.mxu0 %v4557
      %4582 = vmatprep.subr.bf16.mxu0 0
      %4583 = vmatpush1.bf16.msra.mxu0 0
      %4584 = vmatprep.subr.bf16.mxu0 0
      %4585 = vmatpush1.bf16.msra.mxu0 0
      %4586 = vmatprep.subr.bf16.mxu0 0
      %4587 = vmatpush1.bf16.msra.mxu0 0
      %4588 = vmatprep.subr.bf16.mxu0 0
      %4589 = vmatpush1.bf16.msra.mxu0 0
      %4590 = vmatprep.subr.bf16.mxu0 0
      %4591 = vmatpush1.bf16.msra.mxu0 0
      %4592 = vmatprep.subr.bf16.mxu0 0
      %4593 = vmatpush1.bf16.msra.mxu0 0
      %4594 = vmatprep.subr.bf16.mxu0 0
      %4595 = vmatpush1.bf16.msra.mxu0 0
      %4596 = vmatprep.subr.bf16.mxu0 0
      %4597 = vmatpush1.bf16.msra.mxu0 0
      %4598 = vmatprep.mubr.bf16.mxu0 0
      %4599 = vmatmul.mubr.bf16.gmra.mrb[0].mxu0 %v4485
      %v4600 = vpop.f32.mrb[0].mxu0
      %v4601 = vadd.f32 0.0, %v4600
      %v4602 = vpop.f32.mrb[0].mxu0
      %v4603 = vpop.f32.mrb[0].mxu0
      %v4604 = vadd.f32 0.0, %v4603
      %v4605 = vpop.f32.mrb[0].mxu0
      %4606 = vmatprep.mubr.bf16.mxu0 0
      %4607 = vmatmul.mubr.bf16.gmra.mrb[0].mxu0 %v4486
      %v4608 = vpop.f32.mrb[0].mxu0
      %v4609 = vadd.f32 0.0, %v4608
      %v4610 = vpop.f32.mrb[0].mxu0
      %v4611 = vpop.f32.mrb[0].mxu0
      %v4612 = vadd.f32 0.0, %v4611
      %v4613 = vpop.f32.mrb[0].mxu0
      %4614 = vmatprep.mubr.bf16.mxu0 0
      %4615 = vmatmul.mubr.bf16.gmra.mrb[0].mxu0 %v4487
      %v4616 = vpop.f32.mrb[0].mxu0
      %v4617 = vadd.f32 0.0, %v4616
      %v4618 = vpop.f32.mrb[0].mxu0
      %v4619 = vpop.f32.mrb[0].mxu0
      %v4620 = vadd.f32 0.0, %v4619
      %v4621 = vpop.f32.mrb[0].mxu0
      %4622 = vmatprep.mubr.bf16.mxu0 0
      %4623 = vmatmul.mubr.bf16.gmra.mrb[0].mxu0 %v4488
      %v4624 = vpop.f32.mrb[0].mxu0
      %v4625 = vadd.f32 0.0, %v4624
      %v4626 = vpop.f32.mrb[0].mxu0
      %v4627 = vpop.f32.mrb[0].mxu0
      %v4628 = vadd.f32 0.0, %v4627
      %v4629 = vpop.f32.mrb[0].mxu0
      %4630 = vmatprep.mubr.bf16.mxu0 0
      %4631 = vmatmul.mubr.bf16.gmra.mrb[0].mxu0 %v4489
      %v4632 = vpop.f32.mrb[0].mxu0
      %v4633 = vadd.f32 0.0, %v4632
      %v4634 = vpop.f32.mrb[0].mxu0
      %v4635 = vpop.f32.mrb[0].mxu0
      %v4636 = vadd.f32 0.0, %v4635
      %v4637 = vpop.f32.mrb[0].mxu0
      %4638 = vmatprep.mubr.bf16.mxu0 0
      %4639 = vmatmul.mubr.bf16.gmra.mrb[0].mxu0 %v4490
      %v4640 = vpop.f32.mrb[0].mxu0
      %v4641 = vadd.f32 0.0, %v4640
      %v4642 = vpop.f32.mrb[0].mxu0
      %v4643 = vpop.f32.mrb[0].mxu0
      %v4644 = vadd.f32 0.0, %v4643
      %v4645 = vpop.f32.mrb[0].mxu0
      %4646 = vmatprep.mubr.bf16.mxu0 0
      %4647 = vmatmul.mubr.bf16.gmra.mrb[0].mxu0 %v4491
      %v4648 = vpop.f32.mrb[0].mxu0
      %v4649 = vadd.f32 0.0, %v4648
      %v4650 = vpop.f32.mrb[0].mxu0
      %v4651 = vpop.f32.mrb[0].mxu0
      %v4652 = vadd.f32 0.0, %v4651
      %v4653 = vpop.f32.mrb[0].mxu0
      %4654 = vmatprep.mubr.bf16.mxu0 0
      %4655 = vmatmul.mubr.bf16.gmra.mrb[0].mxu0 %v4492
      %v4656 = vpop.f32.mrb[0].mxu0
      %v4657 = vadd.f32 0.0, %v4656
      %v4658 = vpop.f32.mrb[0].mxu0
      %v4659 = vpop.f32.mrb[0].mxu0
      %v4660 = vadd.f32 0.0, %v4659
      %v4661 = vpop.f32.mrb[0].mxu0
      %4662 = vmatprep.mubr.bf16.mxu0 0
      %4663 = vmatmul.mubr.bf16.gmra.mrb[0].mxu0 %v4493
      %v4664 = vpop.f32.mrb[0].mxu0
      %v4665 = vadd.f32 0.0, %v4664
      %v4666 = vpop.f32.mrb[0].mxu0
      %v4667 = vpop.f32.mrb[0].mxu0
      %v4668 = vadd.f32 0.0, %v4667
      %v4669 = vpop.f32.mrb[0].mxu0
      %4670 = vmatprep.mubr.bf16.mxu0 0
      %4671 = vmatmul.mubr.bf16.gmra.mrb[0].mxu0 %v4494
      %v4672 = vpop.f32.mrb[0].mxu0
      %v4673 = vadd.f32 0.0, %v4672
      %v4674 = vpop.f32.mrb[0].mxu0
      %v4675 = vpop.f32.mrb[0].mxu0
      %v4676 = vadd.f32 0.0, %v4675
      %v4677 = vpop.f32.mrb[0].mxu0
      %4678 = vmatprep.mubr.bf16.mxu0 0
      %4679 = vmatmul.mubr.bf16.gmra.mrb[0].mxu0 %v4495
      %v4680 = vpop.f32.mrb[0].mxu0
      %v4681 = vadd.f32 0.0, %v4680
      %v4682 = vpop.f32.mrb[0].mxu0
      %v4683 = vpop.f32.mrb[0].mxu0
      %v4684 = vadd.f32 0.0, %v4683
      %v4685 = vpop.f32.mrb[0].mxu0
      %4686 = vmatprep.mubr.bf16.mxu0 0
      %4687 = vmatmul.mubr.bf16.gmra.mrb[0].mxu0 %v4496
      %v4688 = vpop.f32.mrb[0].mxu0
      %v4689 = vadd.f32 0.0, %v4688
      %v4690 = vpop.f32.mrb[0].mxu0
      %v4691 = vpop.f32.mrb[0].mxu0
      %v4692 = vadd.f32 0.0, %v4691
      %v4693 = vpop.f32.mrb[0].mxu0
      %4694 = vmatprep.mubr.bf16.mxu0 0
      %4695 = vmatmul.mubr.bf16.gmra.mrb[0].mxu0 %v4497
      %v4696 = vpop.f32.mrb[0].mxu0
      %v4697 = vadd.f32 0.0, %v4696
      %v4698 = vpop.f32.mrb[0].mxu0
      %v4699 = vpop.f32.mrb[0].mxu0
      %v4700 = vadd.f32 0.0, %v4699
      %v4701 = vpop.f32.mrb[0].mxu0
      %4702 = vmatprep.mubr.bf16.mxu0 0
      %4703 = vmatmul.mubr.bf16.gmra.mrb[0].mxu0 %v4498
      %v4704 = vpop.f32.mrb[0].mxu0
      %v4705 = vadd.f32 0.0, %v4704
      %v4706 = vpop.f32.mrb[0].mxu0
      %v4707 = vpop.f32.mrb[0].mxu0
      %v4708 = vadd.f32 0.0, %v4707
      %v4709 = vpop.f32.mrb[0].mxu0
      %4710 = vmatprep.mubr.bf16.mxu0 0
      %4711 = vmatmul.mubr.bf16.gmra.mrb[0].mxu0 %v4499
      %v4712 = vpop.f32.mrb[0].mxu0
      %v4713 = vadd.f32 0.0, %v4712
      %v4714 = vpop.f32.mrb[0].mxu0
      %v4715 = vpop.f32.mrb[0].mxu0
      %v4716 = vadd.f32 0.0, %v4715
      %v4717 = vpop.f32.mrb[0].mxu0
      %4718 = vmatprep.mubr.bf16.mxu0 0
      %4719 = vmatmul.mubr.bf16.gmra.mrb[0].mxu0 %v4500
      %v4720 = vpop.f32.mrb[0].mxu0
      %v4721 = vadd.f32 0.0, %v4720
      %v4722 = vpop.f32.mrb[0].mxu0
      %v4723 = vpop.f32.mrb[0].mxu0
      %v4724 = vadd.f32 0.0, %v4723
      %v4725 = vpop.f32.mrb[0].mxu0
      %4726 = vdwg.mxu0
      %v4727 = vadd.f32 %v4421, %v4601
      %v4728 = vadd.f32 %v4422, %v4604
      %v4729 = vadd.f32 %v4423, %v4609
      %v4730 = vadd.f32 %v4424, %v4612
      %v4731 = vadd.f32 %v4425, %v4617
      %v4732 = vadd.f32 %v4426, %v4620
      %v4733 = vadd.f32 %v4427, %v4625
      %v4734 = vadd.f32 %v4428, %v4628
      %v4735 = vadd.f32 %v4429, %v4633
      %v4736 = vadd.f32 %v4430, %v4636
      %v4737 = vadd.f32 %v4431, %v4641
      %v4738 = vadd.f32 %v4432, %v4644
      %v4739 = vadd.f32 %v4433, %v4649
      %v4740 = vadd.f32 %v4434, %v4652
      %v4741 = vadd.f32 %v4435, %v4657
      %v4742 = vadd.f32 %v4436, %v4660
      %v4743 = vadd.f32 %v4437, %v4665
      %v4744 = vadd.f32 %v4438, %v4668
      %v4745 = vadd.f32 %v4439, %v4673
      %v4746 = vadd.f32 %v4440, %v4676
      %v4747 = vadd.f32 %v4441, %v4681
      %v4748 = vadd.f32 %v4442, %v4684
      %v4749 = vadd.f32 %v4443, %v4689
      %v4750 = vadd.f32 %v4444, %v4692
      %v4751 = vadd.f32 %v4445, %v4697
      %v4752 = vadd.f32 %v4446, %v4700
      %v4753 = vadd.f32 %v4447, %v4705
      %v4754 = vadd.f32 %v4448, %v4708
      %v4755 = vadd.f32 %v4449, %v4713
      %v4756 = vadd.f32 %v4450, %v4716
      %v4757 = vadd.f32 %v4451, %v4721
      %v4758 = vadd.f32 %v4452, %v4724
      %s4759 = scalar_lea.vmem %s210, 192
      %v4760 = vld [vmem:[%s4759] sm:$0xff]
      %v4761 = vld [vmem:[%s4759 + $0x10] sm:$0xff]
      %v4762 = vld [vmem:[%s4759 + $0x20] sm:$0xff]
      %v4763 = vld [vmem:[%s4759 + $0x30] sm:$0xff]
      %v4764 = vld [vmem:[%s4759 + $0x40] sm:$0xff]
      %v4765 = vld [vmem:[%s4759 + $0x50] sm:$0xff]
      %v4766 = vld [vmem:[%s4759 + $0x60] sm:$0xff]
      %v4767 = vld [vmem:[%s4759 + $0x70] sm:$0xff]
      %v4768 = vld [vmem:[%s4759 + $0xa0] sm:$0xff]
      %v4769 = vld [vmem:[%s4759 + $0xb0] sm:$0xff]
      %v4770 = vld [vmem:[%s4759 + $0xc0] sm:$0xff]
      %v4771 = vld [vmem:[%s4759 + $0xd0] sm:$0xff]
      %v4772 = vld [vmem:[%s4759 + $0xe0] sm:$0xff]
      %v4773 = vld [vmem:[%s4759 + $0xf0] sm:$0xff]
      %v4774 = vld [vmem:[%s4759 + $0x100] sm:$0xff]
      %v4775 = vld [vmem:[%s4759 + $0x110] sm:$0xff]
      %v4776 = vld [vmem:[%s4759 + $0x140] sm:$0xff]
      %v4777 = vld [vmem:[%s4759 + $0x150] sm:$0xff]
      %v4778 = vld [vmem:[%s4759 + $0x160] sm:$0xff]
      %v4779 = vld [vmem:[%s4759 + $0x170] sm:$0xff]
      %v4780 = vld [vmem:[%s4759 + $0x180] sm:$0xff]
      %v4781 = vld [vmem:[%s4759 + $0x190] sm:$0xff]
      %v4782 = vld [vmem:[%s4759 + $0x1a0] sm:$0xff]
      %v4783 = vld [vmem:[%s4759 + $0x1b0] sm:$0xff]
      %v4784 = vld [vmem:[%s4759 + $0x1e0] sm:$0xff]
      %v4785 = vld [vmem:[%s4759 + $0x1f0] sm:$0xff]
      %v4786 = vld [vmem:[%s4759 + $0x200] sm:$0xff]
      %v4787 = vld [vmem:[%s4759 + $0x210] sm:$0xff]
      %v4788 = vld [vmem:[%s4759 + $0x220] sm:$0xff]
      %v4789 = vld [vmem:[%s4759 + $0x230] sm:$0xff]
      %v4790 = vld [vmem:[%s4759 + $0x240] sm:$0xff]
      %v4791 = vld [vmem:[%s4759 + $0x250] sm:$0xff]
      %v4792 = vpack.c.bf16 %v4761, %v4760
      %v4793 = vpack.c.bf16 %v4763, %v4762
      %v4794 = vpack.c.bf16 %v4765, %v4764
      %v4795 = vpack.c.bf16 %v4767, %v4766
      %v4796 = vpack.c.bf16 %v4769, %v4768
      %v4797 = vpack.c.bf16 %v4771, %v4770
      %v4798 = vpack.c.bf16 %v4773, %v4772
      %v4799 = vpack.c.bf16 %v4775, %v4774
      %v4800 = vpack.c.bf16 %v4777, %v4776
      %v4801 = vpack.c.bf16 %v4779, %v4778
      %v4802 = vpack.c.bf16 %v4781, %v4780
      %v4803 = vpack.c.bf16 %v4783, %v4782
      %v4804 = vpack.c.bf16 %v4785, %v4784
      %v4805 = vpack.c.bf16 %v4787, %v4786
      %v4806 = vpack.c.bf16 %v4789, %v4788
      %v4807 = vpack.c.bf16 %v4791, %v4790
      %s4808 = scalar_lea.vmem %s1, 960
      %v4809 = vld [vmem:[%s4808] sm:$0xf]
      %v4810 = vld [vmem:[%s4808 + $0x4] sm:$0xf]
      %v4811 = vld [vmem:[%s4808 + $0x8] sm:$0xf]
      %v4812 = vld [vmem:[%s4808 + $0xc] sm:$0xf]
      %v4813 = vld [vmem:[%s4808 + $0x10] sm:$0xf]
      %v4814 = vld [vmem:[%s4808 + $0x14] sm:$0xf]
      %v4815 = vld [vmem:[%s4808 + $0x18] sm:$0xf]
      %v4816 = vld [vmem:[%s4808 + $0x1c] sm:$0xf]
      %v4817 = vld [vmem:[%s4808 + $0x20] sm:$0xf]
      %v4818 = vld [vmem:[%s4808 + $0x24] sm:$0xf]
      %v4819 = vld [vmem:[%s4808 + $0x28] sm:$0xf]
      %v4820 = vld [vmem:[%s4808 + $0x2c] sm:$0xf]
      %v4821 = vld [vmem:[%s4808 + $0x30] sm:$0xf]
      %v4822 = vld [vmem:[%s4808 + $0x34] sm:$0xf]
      %v4823 = vld [vmem:[%s4808 + $0x38] sm:$0xf]
      %v4824 = vld [vmem:[%s4808 + $0x3c] sm:$0xf]
      %v4841 = vunpack.c.l.b16 %v4809
      %v4842 = vunpack.c.l.b16 %v4810
      %v4843 = vunpack.c.l.b16 %v4811
      %v4844 = vunpack.c.l.b16 %v4812
      %v4845 = vunpack.c.l.b16 %v4813
      %v4846 = vunpack.c.l.b16 %v4814
      %v4847 = vunpack.c.l.b16 %v4815
      %v4848 = vunpack.c.l.b16 %v4816
      %v4849 = vunpack.c.l.b16 %v4817
      %v4850 = vunpack.c.l.b16 %v4818
      %v4851 = vunpack.c.l.b16 %v4819
      %v4852 = vunpack.c.l.b16 %v4820
      %v4853 = vunpack.c.l.b16 %v4821
      %v4854 = vunpack.c.l.b16 %v4822
      %v4855 = vunpack.c.l.b16 %v4823
      %v4856 = vunpack.c.l.b16 %v4824
      %v4857 = vpack.c.b16 %v4842, %v4841
      %v4858 = vpack.c.b16 %v4844, %v4843
      %v4859 = vpack.c.b16 %v4846, %v4845
      %v4860 = vpack.c.b16 %v4848, %v4847
      %v4861 = vpack.c.b16 %v4850, %v4849
      %v4862 = vpack.c.b16 %v4852, %v4851
      %v4863 = vpack.c.b16 %v4854, %v4853
      %v4864 = vpack.c.b16 %v4856, %v4855
      %4873 = vmatprep.subr.bf16.mxu0 0
      %4874 = vmatpush1.bf16.msra.mxu0 %v4857
      %4875 = vmatprep.subr.bf16.mxu0 0
      %4876 = vmatpush1.bf16.msra.mxu0 %v4858
      %4877 = vmatprep.subr.bf16.mxu0 0
      %4878 = vmatpush1.bf16.msra.mxu0 %v4859
      %4879 = vmatprep.subr.bf16.mxu0 0
      %4880 = vmatpush1.bf16.msra.mxu0 %v4860
      %4881 = vmatprep.subr.bf16.mxu0 0
      %4882 = vmatpush1.bf16.msra.mxu0 %v4861
      %4883 = vmatprep.subr.bf16.mxu0 0
      %4884 = vmatpush1.bf16.msra.mxu0 %v4862
      %4885 = vmatprep.subr.bf16.mxu0 0
      %4886 = vmatpush1.bf16.msra.mxu0 %v4863
      %4887 = vmatprep.subr.bf16.mxu0 0
      %4888 = vmatpush1.bf16.msra.mxu0 %v4864
      %4889 = vmatprep.subr.bf16.mxu0 0
      %4890 = vmatpush1.bf16.msra.mxu0 0
      %4891 = vmatprep.subr.bf16.mxu0 0
      %4892 = vmatpush1.bf16.msra.mxu0 0
      %4893 = vmatprep.subr.bf16.mxu0 0
      %4894 = vmatpush1.bf16.msra.mxu0 0
      %4895 = vmatprep.subr.bf16.mxu0 0
      %4896 = vmatpush1.bf16.msra.mxu0 0
      %4897 = vmatprep.subr.bf16.mxu0 0
      %4898 = vmatpush1.bf16.msra.mxu0 0
      %4899 = vmatprep.subr.bf16.mxu0 0
      %4900 = vmatpush1.bf16.msra.mxu0 0
      %4901 = vmatprep.subr.bf16.mxu0 0
      %4902 = vmatpush1.bf16.msra.mxu0 0
      %4903 = vmatprep.subr.bf16.mxu0 0
      %4904 = vmatpush1.bf16.msra.mxu0 0
      %4905 = vmatprep.mubr.bf16.mxu0 0
      %4906 = vmatmul.mubr.bf16.gmra.mrb[0].mxu0 %v4792
      %v4907 = vpop.f32.mrb[0].mxu0
      %v4908 = vadd.f32 0.0, %v4907
      %v4909 = vpop.f32.mrb[0].mxu0
      %v4910 = vpop.f32.mrb[0].mxu0
      %v4911 = vadd.f32 0.0, %v4910
      %v4912 = vpop.f32.mrb[0].mxu0
      %4913 = vmatprep.mubr.bf16.mxu0 0
      %4914 = vmatmul.mubr.bf16.gmra.mrb[0].mxu0 %v4793
      %v4915 = vpop.f32.mrb[0].mxu0
      %v4916 = vadd.f32 0.0, %v4915
      %v4917 = vpop.f32.mrb[0].mxu0
      %v4918 = vpop.f32.mrb[0].mxu0
      %v4919 = vadd.f32 0.0, %v4918
      %v4920 = vpop.f32.mrb[0].mxu0
      %4921 = vmatprep.mubr.bf16.mxu0 0
      %4922 = vmatmul.mubr.bf16.gmra.mrb[0].mxu0 %v4794
      %v4923 = vpop.f32.mrb[0].mxu0
      %v4924 = vadd.f32 0.0, %v4923
      %v4925 = vpop.f32.mrb[0].mxu0
      %v4926 = vpop.f32.mrb[0].mxu0
      %v4927 = vadd.f32 0.0, %v4926
      %v4928 = vpop.f32.mrb[0].mxu0
      %4929 = vmatprep.mubr.bf16.mxu0 0
      %4930 = vmatmul.mubr.bf16.gmra.mrb[0].mxu0 %v4795
      %v4931 = vpop.f32.mrb[0].mxu0
      %v4932 = vadd.f32 0.0, %v4931
      %v4933 = vpop.f32.mrb[0].mxu0
      %v4934 = vpop.f32.mrb[0].mxu0
      %v4935 = vadd.f32 0.0, %v4934
      %v4936 = vpop.f32.mrb[0].mxu0
      %4937 = vmatprep.mubr.bf16.mxu0 0
      %4938 = vmatmul.mubr.bf16.gmra.mrb[0].mxu0 %v4796
      %v4939 = vpop.f32.mrb[0].mxu0
      %v4940 = vadd.f32 0.0, %v4939
      %v4941 = vpop.f32.mrb[0].mxu0
      %v4942 = vpop.f32.mrb[0].mxu0
      %v4943 = vadd.f32 0.0, %v4942
      %v4944 = vpop.f32.mrb[0].mxu0
      %4945 = vmatprep.mubr.bf16.mxu0 0
      %4946 = vmatmul.mubr.bf16.gmra.mrb[0].mxu0 %v4797
      %v4947 = vpop.f32.mrb[0].mxu0
      %v4948 = vadd.f32 0.0, %v4947
      %v4949 = vpop.f32.mrb[0].mxu0
      %v4950 = vpop.f32.mrb[0].mxu0
      %v4951 = vadd.f32 0.0, %v4950
      %v4952 = vpop.f32.mrb[0].mxu0
      %4953 = vmatprep.mubr.bf16.mxu0 0
      %4954 = vmatmul.mubr.bf16.gmra.mrb[0].mxu0 %v4798
      %v4955 = vpop.f32.mrb[0].mxu0
      %v4956 = vadd.f32 0.0, %v4955
      %v4957 = vpop.f32.mrb[0].mxu0
      %v4958 = vpop.f32.mrb[0].mxu0
      %v4959 = vadd.f32 0.0, %v4958
      %v4960 = vpop.f32.mrb[0].mxu0
      %4961 = vmatprep.mubr.bf16.mxu0 0
      %4962 = vmatmul.mubr.bf16.gmra.mrb[0].mxu0 %v4799
      %v4963 = vpop.f32.mrb[0].mxu0
      %v4964 = vadd.f32 0.0, %v4963
      %v4965 = vpop.f32.mrb[0].mxu0
      %v4966 = vpop.f32.mrb[0].mxu0
      %v4967 = vadd.f32 0.0, %v4966
      %v4968 = vpop.f32.mrb[0].mxu0
      %4969 = vmatprep.mubr.bf16.mxu0 0
      %4970 = vmatmul.mubr.bf16.gmra.mrb[0].mxu0 %v4800
      %v4971 = vpop.f32.mrb[0].mxu0
      %v4972 = vadd.f32 0.0, %v4971
      %v4973 = vpop.f32.mrb[0].mxu0
      %v4974 = vpop.f32.mrb[0].mxu0
      %v4975 = vadd.f32 0.0, %v4974
      %v4976 = vpop.f32.mrb[0].mxu0
      %4977 = vmatprep.mubr.bf16.mxu0 0
      %4978 = vmatmul.mubr.bf16.gmra.mrb[0].mxu0 %v4801
      %v4979 = vpop.f32.mrb[0].mxu0
      %v4980 = vadd.f32 0.0, %v4979
      %v4981 = vpop.f32.mrb[0].mxu0
      %v4982 = vpop.f32.mrb[0].mxu0
      %v4983 = vadd.f32 0.0, %v4982
      %v4984 = vpop.f32.mrb[0].mxu0
      %4985 = vmatprep.mubr.bf16.mxu0 0
      %4986 = vmatmul.mubr.bf16.gmra.mrb[0].mxu0 %v4802
      %v4987 = vpop.f32.mrb[0].mxu0
      %v4988 = vadd.f32 0.0, %v4987
      %v4989 = vpop.f32.mrb[0].mxu0
      %v4990 = vpop.f32.mrb[0].mxu0
      %v4991 = vadd.f32 0.0, %v4990
      %v4992 = vpop.f32.mrb[0].mxu0
      %4993 = vmatprep.mubr.bf16.mxu0 0
      %4994 = vmatmul.mubr.bf16.gmra.mrb[0].mxu0 %v4803
      %v4995 = vpop.f32.mrb[0].mxu0
      %v4996 = vadd.f32 0.0, %v4995
      %v4997 = vpop.f32.mrb[0].mxu0
      %v4998 = vpop.f32.mrb[0].mxu0
      %v4999 = vadd.f32 0.0, %v4998
      %v5000 = vpop.f32.mrb[0].mxu0
      %5001 = vmatprep.mubr.bf16.mxu0 0
      %5002 = vmatmul.mubr.bf16.gmra.mrb[0].mxu0 %v4804
      %v5003 = vpop.f32.mrb[0].mxu0
      %v5004 = vadd.f32 0.0, %v5003
      %v5005 = vpop.f32.mrb[0].mxu0
      %v5006 = vpop.f32.mrb[0].mxu0
      %v5007 = vadd.f32 0.0, %v5006
      %v5008 = vpop.f32.mrb[0].mxu0
      %5009 = vmatprep.mubr.bf16.mxu0 0
      %5010 = vmatmul.mubr.bf16.gmra.mrb[0].mxu0 %v4805
      %v5011 = vpop.f32.mrb[0].mxu0
      %v5012 = vadd.f32 0.0, %v5011
      %v5013 = vpop.f32.mrb[0].mxu0
      %v5014 = vpop.f32.mrb[0].mxu0
      %v5015 = vadd.f32 0.0, %v5014
      %v5016 = vpop.f32.mrb[0].mxu0
      %5017 = vmatprep.mubr.bf16.mxu0 0
      %5018 = vmatmul.mubr.bf16.gmra.mrb[0].mxu0 %v4806
      %v5019 = vpop.f32.mrb[0].mxu0
      %v5020 = vadd.f32 0.0, %v5019
      %v5021 = vpop.f32.mrb[0].mxu0
      %v5022 = vpop.f32.mrb[0].mxu0
      %v5023 = vadd.f32 0.0, %v5022
      %v5024 = vpop.f32.mrb[0].mxu0
      %5025 = vmatprep.mubr.bf16.mxu0 0
      %5026 = vmatmul.mubr.bf16.gmra.mrb[0].mxu0 %v4807
      %v5027 = vpop.f32.mrb[0].mxu0
      %v5028 = vadd.f32 0.0, %v5027
      %v5029 = vpop.f32.mrb[0].mxu0
      %v5030 = vpop.f32.mrb[0].mxu0
      %v5031 = vadd.f32 0.0, %v5030
      %v5032 = vpop.f32.mrb[0].mxu0
      %5033 = vdwg.mxu0
      %v5034 = vadd.f32 %v4727, %v4908
      %v5035 = vadd.f32 %v4728, %v4911
      %v5036 = vadd.f32 %v4729, %v4916
      %v5037 = vadd.f32 %v4730, %v4919
      %v5038 = vadd.f32 %v4731, %v4924
      %v5039 = vadd.f32 %v4732, %v4927
      %v5040 = vadd.f32 %v4733, %v4932
      %v5041 = vadd.f32 %v4734, %v4935
      %v5042 = vadd.f32 %v4735, %v4940
      %v5043 = vadd.f32 %v4736, %v4943
      %v5044 = vadd.f32 %v4737, %v4948
      %v5045 = vadd.f32 %v4738, %v4951
      %v5046 = vadd.f32 %v4739, %v4956
      %v5047 = vadd.f32 %v4740, %v4959
      %v5048 = vadd.f32 %v4741, %v4964
      %v5049 = vadd.f32 %v4742, %v4967
      %v5050 = vadd.f32 %v4743, %v4972
      %v5051 = vadd.f32 %v4744, %v4975
      %v5052 = vadd.f32 %v4745, %v4980
      %v5053 = vadd.f32 %v4746, %v4983
      %v5054 = vadd.f32 %v4747, %v4988
      %v5055 = vadd.f32 %v4748, %v4991
      %v5056 = vadd.f32 %v4749, %v4996
      %v5057 = vadd.f32 %v4750, %v4999
      %v5058 = vadd.f32 %v4751, %v5004
      %v5059 = vadd.f32 %v4752, %v5007
      %v5060 = vadd.f32 %v4753, %v5012
      %v5061 = vadd.f32 %v4754, %v5015
      %v5062 = vadd.f32 %v4755, %v5020
      %v5063 = vadd.f32 %v4756, %v5023
      %v5064 = vadd.f32 %v4757, %v5028
      %v5065 = vadd.f32 %v4758, %v5031
      %v5066 = vld [vmem:[%s4759 + $0x1] sm:$0xff]
      %v5067 = vld [vmem:[%s4759 + $0x11] sm:$0xff]
      %v5068 = vld [vmem:[%s4759 + $0x21] sm:$0xff]
      %v5069 = vld [vmem:[%s4759 + $0x31] sm:$0xff]
      %v5070 = vld [vmem:[%s4759 + $0x41] sm:$0xff]
      %v5071 = vld [vmem:[%s4759 + $0x51] sm:$0xff]
      %v5072 = vld [vmem:[%s4759 + $0x61] sm:$0xff]
      %v5073 = vld [vmem:[%s4759 + $0x71] sm:$0xff]
      %v5074 = vld [vmem:[%s4759 + $0xa1] sm:$0xff]
      %v5075 = vld [vmem:[%s4759 + $0xb1] sm:$0xff]
      %v5076 = vld [vmem:[%s4759 + $0xc1] sm:$0xff]
      %v5077 = vld [vmem:[%s4759 + $0xd1] sm:$0xff]
      %v5078 = vld [vmem:[%s4759 + $0xe1] sm:$0xff]
      %v5079 = vld [vmem:[%s4759 + $0xf1] sm:$0xff]
      %v5080 = vld [vmem:[%s4759 + $0x101] sm:$0xff]
      %v5081 = vld [vmem:[%s4759 + $0x111] sm:$0xff]
      %v5082 = vld [vmem:[%s4759 + $0x141] sm:$0xff]
      %v5083 = vld [vmem:[%s4759 + $0x151] sm:$0xff]
      %v5084 = vld [vmem:[%s4759 + $0x161] sm:$0xff]
      %v5085 = vld [vmem:[%s4759 + $0x171] sm:$0xff]
      %v5086 = vld [vmem:[%s4759 + $0x181] sm:$0xff]
      %v5087 = vld [vmem:[%s4759 + $0x191] sm:$0xff]
      %v5088 = vld [vmem:[%s4759 + $0x1a1] sm:$0xff]
      %v5089 = vld [vmem:[%s4759 + $0x1b1] sm:$0xff]
      %v5090 = vld [vmem:[%s4759 + $0x1e1] sm:$0xff]
      %v5091 = vld [vmem:[%s4759 + $0x1f1] sm:$0xff]
      %v5092 = vld [vmem:[%s4759 + $0x201] sm:$0xff]
      %v5093 = vld [vmem:[%s4759 + $0x211] sm:$0xff]
      %v5094 = vld [vmem:[%s4759 + $0x221] sm:$0xff]
      %v5095 = vld [vmem:[%s4759 + $0x231] sm:$0xff]
      %v5096 = vld [vmem:[%s4759 + $0x241] sm:$0xff]
      %v5097 = vld [vmem:[%s4759 + $0x251] sm:$0xff]
      %v5098 = vpack.c.bf16 %v5067, %v5066
      %v5099 = vpack.c.bf16 %v5069, %v5068
      %v5100 = vpack.c.bf16 %v5071, %v5070
      %v5101 = vpack.c.bf16 %v5073, %v5072
      %v5102 = vpack.c.bf16 %v5075, %v5074
      %v5103 = vpack.c.bf16 %v5077, %v5076
      %v5104 = vpack.c.bf16 %v5079, %v5078
      %v5105 = vpack.c.bf16 %v5081, %v5080
      %v5106 = vpack.c.bf16 %v5083, %v5082
      %v5107 = vpack.c.bf16 %v5085, %v5084
      %v5108 = vpack.c.bf16 %v5087, %v5086
      %v5109 = vpack.c.bf16 %v5089, %v5088
      %v5110 = vpack.c.bf16 %v5091, %v5090
      %v5111 = vpack.c.bf16 %v5093, %v5092
      %v5112 = vpack.c.bf16 %v5095, %v5094
      %v5113 = vpack.c.bf16 %v5097, %v5096
      %s5114 = scalar_lea.vmem %s1, 1024
      %v5115 = vld [vmem:[%s5114] sm:$0xf]
      %v5116 = vld [vmem:[%s5114 + $0x4] sm:$0xf]
      %v5117 = vld [vmem:[%s5114 + $0x8] sm:$0xf]
      %v5118 = vld [vmem:[%s5114 + $0xc] sm:$0xf]
      %v5119 = vld [vmem:[%s5114 + $0x10] sm:$0xf]
      %v5120 = vld [vmem:[%s5114 + $0x14] sm:$0xf]
      %v5121 = vld [vmem:[%s5114 + $0x18] sm:$0xf]
      %v5122 = vld [vmem:[%s5114 + $0x1c] sm:$0xf]
      %v5123 = vld [vmem:[%s5114 + $0x20] sm:$0xf]
      %v5124 = vld [vmem:[%s5114 + $0x24] sm:$0xf]
      %v5125 = vld [vmem:[%s5114 + $0x28] sm:$0xf]
      %v5126 = vld [vmem:[%s5114 + $0x2c] sm:$0xf]
      %v5127 = vld [vmem:[%s5114 + $0x30] sm:$0xf]
      %v5128 = vld [vmem:[%s5114 + $0x34] sm:$0xf]
      %v5129 = vld [vmem:[%s5114 + $0x38] sm:$0xf]
      %v5130 = vld [vmem:[%s5114 + $0x3c] sm:$0xf]
      %v5147 = vunpack.c.l.b16 %v5115
      %v5148 = vunpack.c.l.b16 %v5116
      %v5149 = vunpack.c.l.b16 %v5117
      %v5150 = vunpack.c.l.b16 %v5118
      %v5151 = vunpack.c.l.b16 %v5119
      %v5152 = vunpack.c.l.b16 %v5120
      %v5153 = vunpack.c.l.b16 %v5121
      %v5154 = vunpack.c.l.b16 %v5122
      %v5155 = vunpack.c.l.b16 %v5123
      %v5156 = vunpack.c.l.b16 %v5124
      %v5157 = vunpack.c.l.b16 %v5125
      %v5158 = vunpack.c.l.b16 %v5126
      %v5159 = vunpack.c.l.b16 %v5127
      %v5160 = vunpack.c.l.b16 %v5128
      %v5161 = vunpack.c.l.b16 %v5129
      %v5162 = vunpack.c.l.b16 %v5130
      %v5163 = vpack.c.b16 %v5148, %v5147
      %v5164 = vpack.c.b16 %v5150, %v5149
      %v5165 = vpack.c.b16 %v5152, %v5151
      %v5166 = vpack.c.b16 %v5154, %v5153
      %v5167 = vpack.c.b16 %v5156, %v5155
      %v5168 = vpack.c.b16 %v5158, %v5157
      %v5169 = vpack.c.b16 %v5160, %v5159
      %v5170 = vpack.c.b16 %v5162, %v5161
      %5179 = vmatprep.subr.bf16.mxu0 0
      %5180 = vmatpush1.bf16.msra.mxu0 %v5163
      %5181 = vmatprep.subr.bf16.mxu0 0
      %5182 = vmatpush1.bf16.msra.mxu0 %v5164
      %5183 = vmatprep.subr.bf16.mxu0 0
      %5184 = vmatpush1.bf16.msra.mxu0 %v5165
      %5185 = vmatprep.subr.bf16.mxu0 0
      %5186 = vmatpush1.bf16.msra.mxu0 %v5166
      %5187 = vmatprep.subr.bf16.mxu0 0
      %5188 = vmatpush1.bf16.msra.mxu0 %v5167
      %5189 = vmatprep.subr.bf16.mxu0 0
      %5190 = vmatpush1.bf16.msra.mxu0 %v5168
      %5191 = vmatprep.subr.bf16.mxu0 0
      %5192 = vmatpush1.bf16.msra.mxu0 %v5169
      %5193 = vmatprep.subr.bf16.mxu0 0
      %5194 = vmatpush1.bf16.msra.mxu0 %v5170
      %5195 = vmatprep.subr.bf16.mxu0 0
      %5196 = vmatpush1.bf16.msra.mxu0 0
      %5197 = vmatprep.subr.bf16.mxu0 0
      %5198 = vmatpush1.bf16.msra.mxu0 0
      %5199 = vmatprep.subr.bf16.mxu0 0
      %5200 = vmatpush1.bf16.msra.mxu0 0
      %5201 = vmatprep.subr.bf16.mxu0 0
      %5202 = vmatpush1.bf16.msra.mxu0 0
      %5203 = vmatprep.subr.bf16.mxu0 0
      %5204 = vmatpush1.bf16.msra.mxu0 0
      %5205 = vmatprep.subr.bf16.mxu0 0
      %5206 = vmatpush1.bf16.msra.mxu0 0
      %5207 = vmatprep.subr.bf16.mxu0 0
      %5208 = vmatpush1.bf16.msra.mxu0 0
      %5209 = vmatprep.subr.bf16.mxu0 0
      %5210 = vmatpush1.bf16.msra.mxu0 0
      %5211 = vmatprep.mubr.bf16.mxu0 0
      %5212 = vmatmul.mubr.bf16.gmra.mrb[0].mxu0 %v5098
      %v5213 = vpop.f32.mrb[0].mxu0
      %v5214 = vadd.f32 0.0, %v5213
      %v5215 = vpop.f32.mrb[0].mxu0
      %v5216 = vpop.f32.mrb[0].mxu0
      %v5217 = vadd.f32 0.0, %v5216
      %v5218 = vpop.f32.mrb[0].mxu0
      %5219 = vmatprep.mubr.bf16.mxu0 0
      %5220 = vmatmul.mubr.bf16.gmra.mrb[0].mxu0 %v5099
      %v5221 = vpop.f32.mrb[0].mxu0
      %v5222 = vadd.f32 0.0, %v5221
      %v5223 = vpop.f32.mrb[0].mxu0
      %v5224 = vpop.f32.mrb[0].mxu0
      %v5225 = vadd.f32 0.0, %v5224
      %v5226 = vpop.f32.mrb[0].mxu0
      %5227 = vmatprep.mubr.bf16.mxu0 0
      %5228 = vmatmul.mubr.bf16.gmra.mrb[0].mxu0 %v5100
      %v5229 = vpop.f32.mrb[0].mxu0
      %v5230 = vadd.f32 0.0, %v5229
      %v5231 = vpop.f32.mrb[0].mxu0
      %v5232 = vpop.f32.mrb[0].mxu0
      %v5233 = vadd.f32 0.0, %v5232
      %v5234 = vpop.f32.mrb[0].mxu0
      %5235 = vmatprep.mubr.bf16.mxu0 0
      %5236 = vmatmul.mubr.bf16.gmra.mrb[0].mxu0 %v5101
      %v5237 = vpop.f32.mrb[0].mxu0
      %v5238 = vadd.f32 0.0, %v5237
      %v5239 = vpop.f32.mrb[0].mxu0
      %v5240 = vpop.f32.mrb[0].mxu0
      %v5241 = vadd.f32 0.0, %v5240
      %v5242 = vpop.f32.mrb[0].mxu0
      %5243 = vmatprep.mubr.bf16.mxu0 0
      %5244 = vmatmul.mubr.bf16.gmra.mrb[0].mxu0 %v5102
      %v5245 = vpop.f32.mrb[0].mxu0
      %v5246 = vadd.f32 0.0, %v5245
      %v5247 = vpop.f32.mrb[0].mxu0
      %v5248 = vpop.f32.mrb[0].mxu0
      %v5249 = vadd.f32 0.0, %v5248
      %v5250 = vpop.f32.mrb[0].mxu0
      %5251 = vmatprep.mubr.bf16.mxu0 0
      %5252 = vmatmul.mubr.bf16.gmra.mrb[0].mxu0 %v5103
      %v5253 = vpop.f32.mrb[0].mxu0
      %v5254 = vadd.f32 0.0, %v5253
      %v5255 = vpop.f32.mrb[0].mxu0
      %v5256 = vpop.f32.mrb[0].mxu0
      %v5257 = vadd.f32 0.0, %v5256
      %v5258 = vpop.f32.mrb[0].mxu0
      %5259 = vmatprep.mubr.bf16.mxu0 0
      %5260 = vmatmul.mubr.bf16.gmra.mrb[0].mxu0 %v5104
      %v5261 = vpop.f32.mrb[0].mxu0
      %v5262 = vadd.f32 0.0, %v5261
      %v5263 = vpop.f32.mrb[0].mxu0
      %v5264 = vpop.f32.mrb[0].mxu0
      %v5265 = vadd.f32 0.0, %v5264
      %v5266 = vpop.f32.mrb[0].mxu0
      %5267 = vmatprep.mubr.bf16.mxu0 0
      %5268 = vmatmul.mubr.bf16.gmra.mrb[0].mxu0 %v5105
      %v5269 = vpop.f32.mrb[0].mxu0
      %v5270 = vadd.f32 0.0, %v5269
      %v5271 = vpop.f32.mrb[0].mxu0
      %v5272 = vpop.f32.mrb[0].mxu0
      %v5273 = vadd.f32 0.0, %v5272
      %v5274 = vpop.f32.mrb[0].mxu0
      %5275 = vmatprep.mubr.bf16.mxu0 0
      %5276 = vmatmul.mubr.bf16.gmra.mrb[0].mxu0 %v5106
      %v5277 = vpop.f32.mrb[0].mxu0
      %v5278 = vadd.f32 0.0, %v5277
      %v5279 = vpop.f32.mrb[0].mxu0
      %v5280 = vpop.f32.mrb[0].mxu0
      %v5281 = vadd.f32 0.0, %v5280
      %v5282 = vpop.f32.mrb[0].mxu0
      %5283 = vmatprep.mubr.bf16.mxu0 0
      %5284 = vmatmul.mubr.bf16.gmra.mrb[0].mxu0 %v5107
      %v5285 = vpop.f32.mrb[0].mxu0
      %v5286 = vadd.f32 0.0, %v5285
      %v5287 = vpop.f32.mrb[0].mxu0
      %v5288 = vpop.f32.mrb[0].mxu0
      %v5289 = vadd.f32 0.0, %v5288
      %v5290 = vpop.f32.mrb[0].mxu0
      %5291 = vmatprep.mubr.bf16.mxu0 0
      %5292 = vmatmul.mubr.bf16.gmra.mrb[0].mxu0 %v5108
      %v5293 = vpop.f32.mrb[0].mxu0
      %v5294 = vadd.f32 0.0, %v5293
      %v5295 = vpop.f32.mrb[0].mxu0
      %v5296 = vpop.f32.mrb[0].mxu0
      %v5297 = vadd.f32 0.0, %v5296
      %v5298 = vpop.f32.mrb[0].mxu0
      %5299 = vmatprep.mubr.bf16.mxu0 0
      %5300 = vmatmul.mubr.bf16.gmra.mrb[0].mxu0 %v5109
      %v5301 = vpop.f32.mrb[0].mxu0
      %v5302 = vadd.f32 0.0, %v5301
      %v5303 = vpop.f32.mrb[0].mxu0
      %v5304 = vpop.f32.mrb[0].mxu0
      %v5305 = vadd.f32 0.0, %v5304
      %v5306 = vpop.f32.mrb[0].mxu0
      %5307 = vmatprep.mubr.bf16.mxu0 0
      %5308 = vmatmul.mubr.bf16.gmra.mrb[0].mxu0 %v5110
      %v5309 = vpop.f32.mrb[0].mxu0
      %v5310 = vadd.f32 0.0, %v5309
      %v5311 = vpop.f32.mrb[0].mxu0
      %v5312 = vpop.f32.mrb[0].mxu0
      %v5313 = vadd.f32 0.0, %v5312
      %v5314 = vpop.f32.mrb[0].mxu0
      %5315 = vmatprep.mubr.bf16.mxu0 0
      %5316 = vmatmul.mubr.bf16.gmra.mrb[0].mxu0 %v5111
      %v5317 = vpop.f32.mrb[0].mxu0
      %v5318 = vadd.f32 0.0, %v5317
      %v5319 = vpop.f32.mrb[0].mxu0
      %v5320 = vpop.f32.mrb[0].mxu0
      %v5321 = vadd.f32 0.0, %v5320
      %v5322 = vpop.f32.mrb[0].mxu0
      %5323 = vmatprep.mubr.bf16.mxu0 0
      %5324 = vmatmul.mubr.bf16.gmra.mrb[0].mxu0 %v5112
      %v5325 = vpop.f32.mrb[0].mxu0
      %v5326 = vadd.f32 0.0, %v5325
      %v5327 = vpop.f32.mrb[0].mxu0
      %v5328 = vpop.f32.mrb[0].mxu0
      %v5329 = vadd.f32 0.0, %v5328
      %v5330 = vpop.f32.mrb[0].mxu0
      %5331 = vmatprep.mubr.bf16.mxu0 0
      %5332 = vmatmul.mubr.bf16.gmra.mrb[0].mxu0 %v5113
      %v5333 = vpop.f32.mrb[0].mxu0
      %v5334 = vadd.f32 0.0, %v5333
      %v5335 = vpop.f32.mrb[0].mxu0
      %v5336 = vpop.f32.mrb[0].mxu0
      %v5337 = vadd.f32 0.0, %v5336
      %v5338 = vpop.f32.mrb[0].mxu0
      %5339 = vdwg.mxu0
      %v5340 = vadd.f32 %v5034, %v5214
      %v5341 = vadd.f32 %v5035, %v5217
      %v5342 = vadd.f32 %v5036, %v5222
      %v5343 = vadd.f32 %v5037, %v5225
      %v5344 = vadd.f32 %v5038, %v5230
      %v5345 = vadd.f32 %v5039, %v5233
      %v5346 = vadd.f32 %v5040, %v5238
      %v5347 = vadd.f32 %v5041, %v5241
      %v5348 = vadd.f32 %v5042, %v5246
      %v5349 = vadd.f32 %v5043, %v5249
      %v5350 = vadd.f32 %v5044, %v5254
      %v5351 = vadd.f32 %v5045, %v5257
      %v5352 = vadd.f32 %v5046, %v5262
      %v5353 = vadd.f32 %v5047, %v5265
      %v5354 = vadd.f32 %v5048, %v5270
      %v5355 = vadd.f32 %v5049, %v5273
      %v5356 = vadd.f32 %v5050, %v5278
      %v5357 = vadd.f32 %v5051, %v5281
      %v5358 = vadd.f32 %v5052, %v5286
      %v5359 = vadd.f32 %v5053, %v5289
      %v5360 = vadd.f32 %v5054, %v5294
      %v5361 = vadd.f32 %v5055, %v5297
      %v5362 = vadd.f32 %v5056, %v5302
      %v5363 = vadd.f32 %v5057, %v5305
      %v5364 = vadd.f32 %v5058, %v5310
      %v5365 = vadd.f32 %v5059, %v5313
      %v5366 = vadd.f32 %v5060, %v5318
      %v5367 = vadd.f32 %v5061, %v5321
      %v5368 = vadd.f32 %v5062, %v5326
      %v5369 = vadd.f32 %v5063, %v5329
      %v5370 = vadd.f32 %v5064, %v5334
      %v5371 = vadd.f32 %v5065, %v5337
      %v5372 = vld [vmem:[%s4759 + $0x2] sm:$0xff]
      %v5373 = vld [vmem:[%s4759 + $0x12] sm:$0xff]
      %v5374 = vld [vmem:[%s4759 + $0x22] sm:$0xff]
      %v5375 = vld [vmem:[%s4759 + $0x32] sm:$0xff]
      %v5376 = vld [vmem:[%s4759 + $0x42] sm:$0xff]
      %v5377 = vld [vmem:[%s4759 + $0x52] sm:$0xff]
      %v5378 = vld [vmem:[%s4759 + $0x62] sm:$0xff]
      %v5379 = vld [vmem:[%s4759 + $0x72] sm:$0xff]
      %v5380 = vld [vmem:[%s4759 + $0xa2] sm:$0xff]
      %v5381 = vld [vmem:[%s4759 + $0xb2] sm:$0xff]
      %v5382 = vld [vmem:[%s4759 + $0xc2] sm:$0xff]
      %v5383 = vld [vmem:[%s4759 + $0xd2] sm:$0xff]
      %v5384 = vld [vmem:[%s4759 + $0xe2] sm:$0xff]
      %v5385 = vld [vmem:[%s4759 + $0xf2] sm:$0xff]
      %v5386 = vld [vmem:[%s4759 + $0x102] sm:$0xff]
      %v5387 = vld [vmem:[%s4759 + $0x112] sm:$0xff]
      %v5388 = vld [vmem:[%s4759 + $0x142] sm:$0xff]
      %v5389 = vld [vmem:[%s4759 + $0x152] sm:$0xff]
      %v5390 = vld [vmem:[%s4759 + $0x162] sm:$0xff]
      %v5391 = vld [vmem:[%s4759 + $0x172] sm:$0xff]
      %v5392 = vld [vmem:[%s4759 + $0x182] sm:$0xff]
      %v5393 = vld [vmem:[%s4759 + $0x192] sm:$0xff]
      %v5394 = vld [vmem:[%s4759 + $0x1a2] sm:$0xff]
      %v5395 = vld [vmem:[%s4759 + $0x1b2] sm:$0xff]
      %v5396 = vld [vmem:[%s4759 + $0x1e2] sm:$0xff]
      %v5397 = vld [vmem:[%s4759 + $0x1f2] sm:$0xff]
      %v5398 = vld [vmem:[%s4759 + $0x202] sm:$0xff]
      %v5399 = vld [vmem:[%s4759 + $0x212] sm:$0xff]
      %v5400 = vld [vmem:[%s4759 + $0x222] sm:$0xff]
      %v5401 = vld [vmem:[%s4759 + $0x232] sm:$0xff]
      %v5402 = vld [vmem:[%s4759 + $0x242] sm:$0xff]
      %v5403 = vld [vmem:[%s4759 + $0x252] sm:$0xff]
      %v5404 = vpack.c.bf16 %v5373, %v5372
      %v5405 = vpack.c.bf16 %v5375, %v5374
      %v5406 = vpack.c.bf16 %v5377, %v5376
      %v5407 = vpack.c.bf16 %v5379, %v5378
      %v5408 = vpack.c.bf16 %v5381, %v5380
      %v5409 = vpack.c.bf16 %v5383, %v5382
      %v5410 = vpack.c.bf16 %v5385, %v5384
      %v5411 = vpack.c.bf16 %v5387, %v5386
      %v5412 = vpack.c.bf16 %v5389, %v5388
      %v5413 = vpack.c.bf16 %v5391, %v5390
      %v5414 = vpack.c.bf16 %v5393, %v5392
      %v5415 = vpack.c.bf16 %v5395, %v5394
      %v5416 = vpack.c.bf16 %v5397, %v5396
      %v5417 = vpack.c.bf16 %v5399, %v5398
      %v5418 = vpack.c.bf16 %v5401, %v5400
      %v5419 = vpack.c.bf16 %v5403, %v5402
      %s5420 = scalar_lea.vmem %s1, 1088
      %v5421 = vld [vmem:[%s5420] sm:$0xf]
      %v5422 = vld [vmem:[%s5420 + $0x4] sm:$0xf]
      %v5423 = vld [vmem:[%s5420 + $0x8] sm:$0xf]
      %v5424 = vld [vmem:[%s5420 + $0xc] sm:$0xf]
      %v5425 = vld [vmem:[%s5420 + $0x10] sm:$0xf]
      %v5426 = vld [vmem:[%s5420 + $0x14] sm:$0xf]
      %v5427 = vld [vmem:[%s5420 + $0x18] sm:$0xf]
      %v5428 = vld [vmem:[%s5420 + $0x1c] sm:$0xf]
      %v5429 = vld [vmem:[%s5420 + $0x20] sm:$0xf]
      %v5430 = vld [vmem:[%s5420 + $0x24] sm:$0xf]
      %v5431 = vld [vmem:[%s5420 + $0x28] sm:$0xf]
      %v5432 = vld [vmem:[%s5420 + $0x2c] sm:$0xf]
      %v5433 = vld [vmem:[%s5420 + $0x30] sm:$0xf]
      %v5434 = vld [vmem:[%s5420 + $0x34] sm:$0xf]
      %v5435 = vld [vmem:[%s5420 + $0x38] sm:$0xf]
      %v5436 = vld [vmem:[%s5420 + $0x3c] sm:$0xf]
      %v5453 = vunpack.c.l.b16 %v5421
      %v5454 = vunpack.c.l.b16 %v5422
      %v5455 = vunpack.c.l.b16 %v5423
      %v5456 = vunpack.c.l.b16 %v5424
      %v5457 = vunpack.c.l.b16 %v5425
      %v5458 = vunpack.c.l.b16 %v5426
      %v5459 = vunpack.c.l.b16 %v5427
      %v5460 = vunpack.c.l.b16 %v5428
      %v5461 = vunpack.c.l.b16 %v5429
      %v5462 = vunpack.c.l.b16 %v5430
      %v5463 = vunpack.c.l.b16 %v5431
      %v5464 = vunpack.c.l.b16 %v5432
      %v5465 = vunpack.c.l.b16 %v5433
      %v5466 = vunpack.c.l.b16 %v5434
      %v5467 = vunpack.c.l.b16 %v5435
      %v5468 = vunpack.c.l.b16 %v5436
      %v5469 = vpack.c.b16 %v5454, %v5453
      %v5470 = vpack.c.b16 %v5456, %v5455
      %v5471 = vpack.c.b16 %v5458, %v5457
      %v5472 = vpack.c.b16 %v5460, %v5459
      %v5473 = vpack.c.b16 %v5462, %v5461
      %v5474 = vpack.c.b16 %v5464, %v5463
      %v5475 = vpack.c.b16 %v5466, %v5465
      %v5476 = vpack.c.b16 %v5468, %v5467
      %5485 = vmatprep.subr.bf16.mxu0 0
      %5486 = vmatpush1.bf16.msra.mxu0 %v5469
      %5487 = vmatprep.subr.bf16.mxu0 0
      %5488 = vmatpush1.bf16.msra.mxu0 %v5470
      %5489 = vmatprep.subr.bf16.mxu0 0
      %5490 = vmatpush1.bf16.msra.mxu0 %v5471
      %5491 = vmatprep.subr.bf16.mxu0 0
      %5492 = vmatpush1.bf16.msra.mxu0 %v5472
      %5493 = vmatprep.subr.bf16.mxu0 0
      %5494 = vmatpush1.bf16.msra.mxu0 %v5473
      %5495 = vmatprep.subr.bf16.mxu0 0
      %5496 = vmatpush1.bf16.msra.mxu0 %v5474
      %5497 = vmatprep.subr.bf16.mxu0 0
      %5498 = vmatpush1.bf16.msra.mxu0 %v5475
      %5499 = vmatprep.subr.bf16.mxu0 0
      %5500 = vmatpush1.bf16.msra.mxu0 %v5476
      %5501 = vmatprep.subr.bf16.mxu0 0
      %5502 = vmatpush1.bf16.msra.mxu0 0
      %5503 = vmatprep.subr.bf16.mxu0 0
      %5504 = vmatpush1.bf16.msra.mxu0 0
      %5505 = vmatprep.subr.bf16.mxu0 0
      %5506 = vmatpush1.bf16.msra.mxu0 0
      %5507 = vmatprep.subr.bf16.mxu0 0
      %5508 = vmatpush1.bf16.msra.mxu0 0
      %5509 = vmatprep.subr.bf16.mxu0 0
      %5510 = vmatpush1.bf16.msra.mxu0 0
      %5511 = vmatprep.subr.bf16.mxu0 0
      %5512 = vmatpush1.bf16.msra.mxu0 0
      %5513 = vmatprep.subr.bf16.mxu0 0
      %5514 = vmatpush1.bf16.msra.mxu0 0
      %5515 = vmatprep.subr.bf16.mxu0 0
      %5516 = vmatpush1.bf16.msra.mxu0 0
      %5517 = vmatprep.mubr.bf16.mxu0 0
      %5518 = vmatmul.mubr.bf16.gmra.mrb[0].mxu0 %v5404
      %v5519 = vpop.f32.mrb[0].mxu0
      %v5520 = vadd.f32 0.0, %v5519
      %v5521 = vpop.f32.mrb[0].mxu0
      %v5522 = vpop.f32.mrb[0].mxu0
      %v5523 = vadd.f32 0.0, %v5522
      %v5524 = vpop.f32.mrb[0].mxu0
      %5525 = vmatprep.mubr.bf16.mxu0 0
      %5526 = vmatmul.mubr.bf16.gmra.mrb[0].mxu0 %v5405
      %v5527 = vpop.f32.mrb[0].mxu0
      %v5528 = vadd.f32 0.0, %v5527
      %v5529 = vpop.f32.mrb[0].mxu0
      %v5530 = vpop.f32.mrb[0].mxu0
      %v5531 = vadd.f32 0.0, %v5530
      %v5532 = vpop.f32.mrb[0].mxu0
      %5533 = vmatprep.mubr.bf16.mxu0 0
      %5534 = vmatmul.mubr.bf16.gmra.mrb[0].mxu0 %v5406
      %v5535 = vpop.f32.mrb[0].mxu0
      %v5536 = vadd.f32 0.0, %v5535
      %v5537 = vpop.f32.mrb[0].mxu0
      %v5538 = vpop.f32.mrb[0].mxu0
      %v5539 = vadd.f32 0.0, %v5538
      %v5540 = vpop.f32.mrb[0].mxu0
      %5541 = vmatprep.mubr.bf16.mxu0 0
      %5542 = vmatmul.mubr.bf16.gmra.mrb[0].mxu0 %v5407
      %v5543 = vpop.f32.mrb[0].mxu0
      %v5544 = vadd.f32 0.0, %v5543
      %v5545 = vpop.f32.mrb[0].mxu0
      %v5546 = vpop.f32.mrb[0].mxu0
      %v5547 = vadd.f32 0.0, %v5546
      %v5548 = vpop.f32.mrb[0].mxu0
      %5549 = vmatprep.mubr.bf16.mxu0 0
      %5550 = vmatmul.mubr.bf16.gmra.mrb[0].mxu0 %v5408
      %v5551 = vpop.f32.mrb[0].mxu0
      %v5552 = vadd.f32 0.0, %v5551
      %v5553 = vpop.f32.mrb[0].mxu0
      %v5554 = vpop.f32.mrb[0].mxu0
      %v5555 = vadd.f32 0.0, %v5554
      %v5556 = vpop.f32.mrb[0].mxu0
      %5557 = vmatprep.mubr.bf16.mxu0 0
      %5558 = vmatmul.mubr.bf16.gmra.mrb[0].mxu0 %v5409
      %v5559 = vpop.f32.mrb[0].mxu0
      %v5560 = vadd.f32 0.0, %v5559
      %v5561 = vpop.f32.mrb[0].mxu0
      %v5562 = vpop.f32.mrb[0].mxu0
      %v5563 = vadd.f32 0.0, %v5562
      %v5564 = vpop.f32.mrb[0].mxu0
      %5565 = vmatprep.mubr.bf16.mxu0 0
      %5566 = vmatmul.mubr.bf16.gmra.mrb[0].mxu0 %v5410
      %v5567 = vpop.f32.mrb[0].mxu0
      %v5568 = vadd.f32 0.0, %v5567
      %v5569 = vpop.f32.mrb[0].mxu0
      %v5570 = vpop.f32.mrb[0].mxu0
      %v5571 = vadd.f32 0.0, %v5570
      %v5572 = vpop.f32.mrb[0].mxu0
      %5573 = vmatprep.mubr.bf16.mxu0 0
      %5574 = vmatmul.mubr.bf16.gmra.mrb[0].mxu0 %v5411
      %v5575 = vpop.f32.mrb[0].mxu0
      %v5576 = vadd.f32 0.0, %v5575
      %v5577 = vpop.f32.mrb[0].mxu0
      %v5578 = vpop.f32.mrb[0].mxu0
      %v5579 = vadd.f32 0.0, %v5578
      %v5580 = vpop.f32.mrb[0].mxu0
      %5581 = vmatprep.mubr.bf16.mxu0 0
      %5582 = vmatmul.mubr.bf16.gmra.mrb[0].mxu0 %v5412
      %v5583 = vpop.f32.mrb[0].mxu0
      %v5584 = vadd.f32 0.0, %v5583
      %v5585 = vpop.f32.mrb[0].mxu0
      %v5586 = vpop.f32.mrb[0].mxu0
      %v5587 = vadd.f32 0.0, %v5586
      %v5588 = vpop.f32.mrb[0].mxu0
      %5589 = vmatprep.mubr.bf16.mxu0 0
      %5590 = vmatmul.mubr.bf16.gmra.mrb[0].mxu0 %v5413
      %v5591 = vpop.f32.mrb[0].mxu0
      %v5592 = vadd.f32 0.0, %v5591
      %v5593 = vpop.f32.mrb[0].mxu0
      %v5594 = vpop.f32.mrb[0].mxu0
      %v5595 = vadd.f32 0.0, %v5594
      %v5596 = vpop.f32.mrb[0].mxu0
      %5597 = vmatprep.mubr.bf16.mxu0 0
      %5598 = vmatmul.mubr.bf16.gmra.mrb[0].mxu0 %v5414
      %v5599 = vpop.f32.mrb[0].mxu0
      %v5600 = vadd.f32 0.0, %v5599
      %v5601 = vpop.f32.mrb[0].mxu0
      %v5602 = vpop.f32.mrb[0].mxu0
      %v5603 = vadd.f32 0.0, %v5602
      %v5604 = vpop.f32.mrb[0].mxu0
      %5605 = vmatprep.mubr.bf16.mxu0 0
      %5606 = vmatmul.mubr.bf16.gmra.mrb[0].mxu0 %v5415
      %v5607 = vpop.f32.mrb[0].mxu0
      %v5608 = vadd.f32 0.0, %v5607
      %v5609 = vpop.f32.mrb[0].mxu0
      %v5610 = vpop.f32.mrb[0].mxu0
      %v5611 = vadd.f32 0.0, %v5610
      %v5612 = vpop.f32.mrb[0].mxu0
      %5613 = vmatprep.mubr.bf16.mxu0 0
      %5614 = vmatmul.mubr.bf16.gmra.mrb[0].mxu0 %v5416
      %v5615 = vpop.f32.mrb[0].mxu0
      %v5616 = vadd.f32 0.0, %v5615
      %v5617 = vpop.f32.mrb[0].mxu0
      %v5618 = vpop.f32.mrb[0].mxu0
      %v5619 = vadd.f32 0.0, %v5618
      %v5620 = vpop.f32.mrb[0].mxu0
      %5621 = vmatprep.mubr.bf16.mxu0 0
      %5622 = vmatmul.mubr.bf16.gmra.mrb[0].mxu0 %v5417
      %v5623 = vpop.f32.mrb[0].mxu0
      %v5624 = vadd.f32 0.0, %v5623
      %v5625 = vpop.f32.mrb[0].mxu0
      %v5626 = vpop.f32.mrb[0].mxu0
      %v5627 = vadd.f32 0.0, %v5626
      %v5628 = vpop.f32.mrb[0].mxu0
      %5629 = vmatprep.mubr.bf16.mxu0 0
      %5630 = vmatmul.mubr.bf16.gmra.mrb[0].mxu0 %v5418
      %v5631 = vpop.f32.mrb[0].mxu0
      %v5632 = vadd.f32 0.0, %v5631
      %v5633 = vpop.f32.mrb[0].mxu0
      %v5634 = vpop.f32.mrb[0].mxu0
      %v5635 = vadd.f32 0.0, %v5634
      %v5636 = vpop.f32.mrb[0].mxu0
      %5637 = vmatprep.mubr.bf16.mxu0 0
      %5638 = vmatmul.mubr.bf16.gmra.mrb[0].mxu0 %v5419
      %v5639 = vpop.f32.mrb[0].mxu0
      %v5640 = vadd.f32 0.0, %v5639
      %v5641 = vpop.f32.mrb[0].mxu0
      %v5642 = vpop.f32.mrb[0].mxu0
      %v5643 = vadd.f32 0.0, %v5642
      %v5644 = vpop.f32.mrb[0].mxu0
      %5645 = vdwg.mxu0
      %v5646 = vadd.f32 %v5340, %v5520
      %v5647 = vadd.f32 %v5341, %v5523
      %v5648 = vadd.f32 %v5342, %v5528
      %v5649 = vadd.f32 %v5343, %v5531
      %v5650 = vadd.f32 %v5344, %v5536
      %v5651 = vadd.f32 %v5345, %v5539
      %v5652 = vadd.f32 %v5346, %v5544
      %v5653 = vadd.f32 %v5347, %v5547
      %v5654 = vadd.f32 %v5348, %v5552
      %v5655 = vadd.f32 %v5349, %v5555
      %v5656 = vadd.f32 %v5350, %v5560
      %v5657 = vadd.f32 %v5351, %v5563
      %v5658 = vadd.f32 %v5352, %v5568
      %v5659 = vadd.f32 %v5353, %v5571
      %v5660 = vadd.f32 %v5354, %v5576
      %v5661 = vadd.f32 %v5355, %v5579
      %v5662 = vadd.f32 %v5356, %v5584
      %v5663 = vadd.f32 %v5357, %v5587
      %v5664 = vadd.f32 %v5358, %v5592
      %v5665 = vadd.f32 %v5359, %v5595
      %v5666 = vadd.f32 %v5360, %v5600
      %v5667 = vadd.f32 %v5361, %v5603
      %v5668 = vadd.f32 %v5362, %v5608
      %v5669 = vadd.f32 %v5363, %v5611
      %v5670 = vadd.f32 %v5364, %v5616
      %v5671 = vadd.f32 %v5365, %v5619
      %v5672 = vadd.f32 %v5366, %v5624
      %v5673 = vadd.f32 %v5367, %v5627
      %v5674 = vadd.f32 %v5368, %v5632
      %v5675 = vadd.f32 %v5369, %v5635
      %v5676 = vadd.f32 %v5370, %v5640
      %v5677 = vadd.f32 %v5371, %v5643
      %s5678 = scalar_lea.vmem %s210, 320
      %v5679 = vld [vmem:[%s5678] sm:$0xff]
      %v5680 = vld [vmem:[%s5678 + $0x10] sm:$0xff]
      %v5681 = vld [vmem:[%s5678 + $0x20] sm:$0xff]
      %v5682 = vld [vmem:[%s5678 + $0x30] sm:$0xff]
      %v5683 = vld [vmem:[%s5678 + $0x40] sm:$0xff]
      %v5684 = vld [vmem:[%s5678 + $0x50] sm:$0xff]
      %v5685 = vld [vmem:[%s5678 + $0x60] sm:$0xff]
      %v5686 = vld [vmem:[%s5678 + $0x70] sm:$0xff]
      %v5687 = vld [vmem:[%s5678 + $0xa0] sm:$0xff]
      %v5688 = vld [vmem:[%s5678 + $0xb0] sm:$0xff]
      %v5689 = vld [vmem:[%s5678 + $0xc0] sm:$0xff]
      %v5690 = vld [vmem:[%s5678 + $0xd0] sm:$0xff]
      %v5691 = vld [vmem:[%s5678 + $0xe0] sm:$0xff]
      %v5692 = vld [vmem:[%s5678 + $0xf0] sm:$0xff]
      %v5693 = vld [vmem:[%s5678 + $0x100] sm:$0xff]
      %v5694 = vld [vmem:[%s5678 + $0x110] sm:$0xff]
      %v5695 = vld [vmem:[%s5678 + $0x140] sm:$0xff]
      %v5696 = vld [vmem:[%s5678 + $0x150] sm:$0xff]
      %v5697 = vld [vmem:[%s5678 + $0x160] sm:$0xff]
      %v5698 = vld [vmem:[%s5678 + $0x170] sm:$0xff]
      %v5699 = vld [vmem:[%s5678 + $0x180] sm:$0xff]
      %v5700 = vld [vmem:[%s5678 + $0x190] sm:$0xff]
      %v5701 = vld [vmem:[%s5678 + $0x1a0] sm:$0xff]
      %v5702 = vld [vmem:[%s5678 + $0x1b0] sm:$0xff]
      %v5703 = vld [vmem:[%s5678 + $0x1e0] sm:$0xff]
      %v5704 = vld [vmem:[%s5678 + $0x1f0] sm:$0xff]
      %v5705 = vld [vmem:[%s5678 + $0x200] sm:$0xff]
      %v5706 = vld [vmem:[%s5678 + $0x210] sm:$0xff]
      %v5707 = vld [vmem:[%s5678 + $0x220] sm:$0xff]
      %v5708 = vld [vmem:[%s5678 + $0x230] sm:$0xff]
      %v5709 = vld [vmem:[%s5678 + $0x240] sm:$0xff]
      %v5710 = vld [vmem:[%s5678 + $0x250] sm:$0xff]
      %v5711 = vpack.c.bf16 %v5680, %v5679
      %v5712 = vpack.c.bf16 %v5682, %v5681
      %v5713 = vpack.c.bf16 %v5684, %v5683
      %v5714 = vpack.c.bf16 %v5686, %v5685
      %v5715 = vpack.c.bf16 %v5688, %v5687
      %v5716 = vpack.c.bf16 %v5690, %v5689
      %v5717 = vpack.c.bf16 %v5692, %v5691
      %v5718 = vpack.c.bf16 %v5694, %v5693
      %v5719 = vpack.c.bf16 %v5696, %v5695
      %v5720 = vpack.c.bf16 %v5698, %v5697
      %v5721 = vpack.c.bf16 %v5700, %v5699
      %v5722 = vpack.c.bf16 %v5702, %v5701
      %v5723 = vpack.c.bf16 %v5704, %v5703
      %v5724 = vpack.c.bf16 %v5706, %v5705
      %v5725 = vpack.c.bf16 %v5708, %v5707
      %v5726 = vpack.c.bf16 %v5710, %v5709
      %s5727 = scalar_lea.vmem %s1, 1152
      %v5728 = vld [vmem:[%s5727] sm:$0xf]
      %v5729 = vld [vmem:[%s5727 + $0x4] sm:$0xf]
      %v5730 = vld [vmem:[%s5727 + $0x8] sm:$0xf]
      %v5731 = vld [vmem:[%s5727 + $0xc] sm:$0xf]
      %v5732 = vld [vmem:[%s5727 + $0x10] sm:$0xf]
      %v5733 = vld [vmem:[%s5727 + $0x14] sm:$0xf]
      %v5734 = vld [vmem:[%s5727 + $0x18] sm:$0xf]
      %v5735 = vld [vmem:[%s5727 + $0x1c] sm:$0xf]
      %v5736 = vld [vmem:[%s5727 + $0x20] sm:$0xf]
      %v5737 = vld [vmem:[%s5727 + $0x24] sm:$0xf]
      %v5738 = vld [vmem:[%s5727 + $0x28] sm:$0xf]
      %v5739 = vld [vmem:[%s5727 + $0x2c] sm:$0xf]
      %v5740 = vld [vmem:[%s5727 + $0x30] sm:$0xf]
      %v5741 = vld [vmem:[%s5727 + $0x34] sm:$0xf]
      %v5742 = vld [vmem:[%s5727 + $0x38] sm:$0xf]
      %v5743 = vld [vmem:[%s5727 + $0x3c] sm:$0xf]
      %v5760 = vunpack.c.l.b16 %v5728
      %v5761 = vunpack.c.l.b16 %v5729
      %v5762 = vunpack.c.l.b16 %v5730
      %v5763 = vunpack.c.l.b16 %v5731
      %v5764 = vunpack.c.l.b16 %v5732
      %v5765 = vunpack.c.l.b16 %v5733
      %v5766 = vunpack.c.l.b16 %v5734
      %v5767 = vunpack.c.l.b16 %v5735
      %v5768 = vunpack.c.l.b16 %v5736
      %v5769 = vunpack.c.l.b16 %v5737
      %v5770 = vunpack.c.l.b16 %v5738
      %v5771 = vunpack.c.l.b16 %v5739
      %v5772 = vunpack.c.l.b16 %v5740
      %v5773 = vunpack.c.l.b16 %v5741
      %v5774 = vunpack.c.l.b16 %v5742
      %v5775 = vunpack.c.l.b16 %v5743
      %v5776 = vpack.c.b16 %v5761, %v5760
      %v5777 = vpack.c.b16 %v5763, %v5762
      %v5778 = vpack.c.b16 %v5765, %v5764
      %v5779 = vpack.c.b16 %v5767, %v5766
      %v5780 = vpack.c.b16 %v5769, %v5768
      %v5781 = vpack.c.b16 %v5771, %v5770
      %v5782 = vpack.c.b16 %v5773, %v5772
      %v5783 = vpack.c.b16 %v5775, %v5774
      %5792 = vmatprep.subr.bf16.mxu0 0
      %5793 = vmatpush1.bf16.msra.mxu0 %v5776
      %5794 = vmatprep.subr.bf16.mxu0 0
      %5795 = vmatpush1.bf16.msra.mxu0 %v5777
      %5796 = vmatprep.subr.bf16.mxu0 0
      %5797 = vmatpush1.bf16.msra.mxu0 %v5778
      %5798 = vmatprep.subr.bf16.mxu0 0
      %5799 = vmatpush1.bf16.msra.mxu0 %v5779
      %5800 = vmatprep.subr.bf16.mxu0 0
      %5801 = vmatpush1.bf16.msra.mxu0 %v5780
      %5802 = vmatprep.subr.bf16.mxu0 0
      %5803 = vmatpush1.bf16.msra.mxu0 %v5781
      %5804 = vmatprep.subr.bf16.mxu0 0
      %5805 = vmatpush1.bf16.msra.mxu0 %v5782
      %5806 = vmatprep.subr.bf16.mxu0 0
      %5807 = vmatpush1.bf16.msra.mxu0 %v5783
      %5808 = vmatprep.subr.bf16.mxu0 0
      %5809 = vmatpush1.bf16.msra.mxu0 0
      %5810 = vmatprep.subr.bf16.mxu0 0
      %5811 = vmatpush1.bf16.msra.mxu0 0
      %5812 = vmatprep.subr.bf16.mxu0 0
      %5813 = vmatpush1.bf16.msra.mxu0 0
      %5814 = vmatprep.subr.bf16.mxu0 0
      %5815 = vmatpush1.bf16.msra.mxu0 0
      %5816 = vmatprep.subr.bf16.mxu0 0
      %5817 = vmatpush1.bf16.msra.mxu0 0
      %5818 = vmatprep.subr.bf16.mxu0 0
      %5819 = vmatpush1.bf16.msra.mxu0 0
      %5820 = vmatprep.subr.bf16.mxu0 0
      %5821 = vmatpush1.bf16.msra.mxu0 0
      %5822 = vmatprep.subr.bf16.mxu0 0
      %5823 = vmatpush1.bf16.msra.mxu0 0
      %5824 = vmatprep.mubr.bf16.mxu0 0
      %5825 = vmatmul.mubr.bf16.gmra.mrb[0].mxu0 %v5711
      %v5826 = vpop.f32.mrb[0].mxu0
      %v5827 = vadd.f32 0.0, %v5826
      %v5828 = vpop.f32.mrb[0].mxu0
      %v5829 = vpop.f32.mrb[0].mxu0
      %v5830 = vadd.f32 0.0, %v5829
      %v5831 = vpop.f32.mrb[0].mxu0
      %5832 = vmatprep.mubr.bf16.mxu0 0
      %5833 = vmatmul.mubr.bf16.gmra.mrb[0].mxu0 %v5712
      %v5834 = vpop.f32.mrb[0].mxu0
      %v5835 = vadd.f32 0.0, %v5834
      %v5836 = vpop.f32.mrb[0].mxu0
      %v5837 = vpop.f32.mrb[0].mxu0
      %v5838 = vadd.f32 0.0, %v5837
      %v5839 = vpop.f32.mrb[0].mxu0
      %5840 = vmatprep.mubr.bf16.mxu0 0
      %5841 = vmatmul.mubr.bf16.gmra.mrb[0].mxu0 %v5713
      %v5842 = vpop.f32.mrb[0].mxu0
      %v5843 = vadd.f32 0.0, %v5842
      %v5844 = vpop.f32.mrb[0].mxu0
      %v5845 = vpop.f32.mrb[0].mxu0
      %v5846 = vadd.f32 0.0, %v5845
      %v5847 = vpop.f32.mrb[0].mxu0
      %5848 = vmatprep.mubr.bf16.mxu0 0
      %5849 = vmatmul.mubr.bf16.gmra.mrb[0].mxu0 %v5714
      %v5850 = vpop.f32.mrb[0].mxu0
      %v5851 = vadd.f32 0.0, %v5850
      %v5852 = vpop.f32.mrb[0].mxu0
      %v5853 = vpop.f32.mrb[0].mxu0
      %v5854 = vadd.f32 0.0, %v5853
      %v5855 = vpop.f32.mrb[0].mxu0
      %5856 = vmatprep.mubr.bf16.mxu0 0
      %5857 = vmatmul.mubr.bf16.gmra.mrb[0].mxu0 %v5715
      %v5858 = vpop.f32.mrb[0].mxu0
      %v5859 = vadd.f32 0.0, %v5858
      %v5860 = vpop.f32.mrb[0].mxu0
      %v5861 = vpop.f32.mrb[0].mxu0
      %v5862 = vadd.f32 0.0, %v5861
      %v5863 = vpop.f32.mrb[0].mxu0
      %5864 = vmatprep.mubr.bf16.mxu0 0
      %5865 = vmatmul.mubr.bf16.gmra.mrb[0].mxu0 %v5716
      %v5866 = vpop.f32.mrb[0].mxu0
      %v5867 = vadd.f32 0.0, %v5866
      %v5868 = vpop.f32.mrb[0].mxu0
      %v5869 = vpop.f32.mrb[0].mxu0
      %v5870 = vadd.f32 0.0, %v5869
      %v5871 = vpop.f32.mrb[0].mxu0
      %5872 = vmatprep.mubr.bf16.mxu0 0
      %5873 = vmatmul.mubr.bf16.gmra.mrb[0].mxu0 %v5717
      %v5874 = vpop.f32.mrb[0].mxu0
      %v5875 = vadd.f32 0.0, %v5874
      %v5876 = vpop.f32.mrb[0].mxu0
      %v5877 = vpop.f32.mrb[0].mxu0
      %v5878 = vadd.f32 0.0, %v5877
      %v5879 = vpop.f32.mrb[0].mxu0
      %5880 = vmatprep.mubr.bf16.mxu0 0
      %5881 = vmatmul.mubr.bf16.gmra.mrb[0].mxu0 %v5718
      %v5882 = vpop.f32.mrb[0].mxu0
      %v5883 = vadd.f32 0.0, %v5882
      %v5884 = vpop.f32.mrb[0].mxu0
      %v5885 = vpop.f32.mrb[0].mxu0
      %v5886 = vadd.f32 0.0, %v5885
      %v5887 = vpop.f32.mrb[0].mxu0
      %5888 = vmatprep.mubr.bf16.mxu0 0
      %5889 = vmatmul.mubr.bf16.gmra.mrb[0].mxu0 %v5719
      %v5890 = vpop.f32.mrb[0].mxu0
      %v5891 = vadd.f32 0.0, %v5890
      %v5892 = vpop.f32.mrb[0].mxu0
      %v5893 = vpop.f32.mrb[0].mxu0
      %v5894 = vadd.f32 0.0, %v5893
      %v5895 = vpop.f32.mrb[0].mxu0
      %5896 = vmatprep.mubr.bf16.mxu0 0
      %5897 = vmatmul.mubr.bf16.gmra.mrb[0].mxu0 %v5720
      %v5898 = vpop.f32.mrb[0].mxu0
      %v5899 = vadd.f32 0.0, %v5898
      %v5900 = vpop.f32.mrb[0].mxu0
      %v5901 = vpop.f32.mrb[0].mxu0
      %v5902 = vadd.f32 0.0, %v5901
      %v5903 = vpop.f32.mrb[0].mxu0
      %5904 = vmatprep.mubr.bf16.mxu0 0
      %5905 = vmatmul.mubr.bf16.gmra.mrb[0].mxu0 %v5721
      %v5906 = vpop.f32.mrb[0].mxu0
      %v5907 = vadd.f32 0.0, %v5906
      %v5908 = vpop.f32.mrb[0].mxu0
      %v5909 = vpop.f32.mrb[0].mxu0
      %v5910 = vadd.f32 0.0, %v5909
      %v5911 = vpop.f32.mrb[0].mxu0
      %5912 = vmatprep.mubr.bf16.mxu0 0
      %5913 = vmatmul.mubr.bf16.gmra.mrb[0].mxu0 %v5722
      %v5914 = vpop.f32.mrb[0].mxu0
      %v5915 = vadd.f32 0.0, %v5914
      %v5916 = vpop.f32.mrb[0].mxu0
      %v5917 = vpop.f32.mrb[0].mxu0
      %v5918 = vadd.f32 0.0, %v5917
      %v5919 = vpop.f32.mrb[0].mxu0
      %5920 = vmatprep.mubr.bf16.mxu0 0
      %5921 = vmatmul.mubr.bf16.gmra.mrb[0].mxu0 %v5723
      %v5922 = vpop.f32.mrb[0].mxu0
      %v5923 = vadd.f32 0.0, %v5922
      %v5924 = vpop.f32.mrb[0].mxu0
      %v5925 = vpop.f32.mrb[0].mxu0
      %v5926 = vadd.f32 0.0, %v5925
      %v5927 = vpop.f32.mrb[0].mxu0
      %5928 = vmatprep.mubr.bf16.mxu0 0
      %5929 = vmatmul.mubr.bf16.gmra.mrb[0].mxu0 %v5724
      %v5930 = vpop.f32.mrb[0].mxu0
      %v5931 = vadd.f32 0.0, %v5930
      %v5932 = vpop.f32.mrb[0].mxu0
      %v5933 = vpop.f32.mrb[0].mxu0
      %v5934 = vadd.f32 0.0, %v5933
      %v5935 = vpop.f32.mrb[0].mxu0
      %5936 = vmatprep.mubr.bf16.mxu0 0
      %5937 = vmatmul.mubr.bf16.gmra.mrb[0].mxu0 %v5725
      %v5938 = vpop.f32.mrb[0].mxu0
      %v5939 = vadd.f32 0.0, %v5938
      %v5940 = vpop.f32.mrb[0].mxu0
      %v5941 = vpop.f32.mrb[0].mxu0
      %v5942 = vadd.f32 0.0, %v5941
      %v5943 = vpop.f32.mrb[0].mxu0
      %5944 = vmatprep.mubr.bf16.mxu0 0
      %5945 = vmatmul.mubr.bf16.gmra.mrb[0].mxu0 %v5726
      %v5946 = vpop.f32.mrb[0].mxu0
      %v5947 = vadd.f32 0.0, %v5946
      %v5948 = vpop.f32.mrb[0].mxu0
      %v5949 = vpop.f32.mrb[0].mxu0
      %v5950 = vadd.f32 0.0, %v5949
      %v5951 = vpop.f32.mrb[0].mxu0
      %5952 = vdwg.mxu0
      %v5953 = vadd.f32 %v5646, %v5827
      %v5954 = vadd.f32 %v5647, %v5830
      %v5955 = vadd.f32 %v5648, %v5835
      %v5956 = vadd.f32 %v5649, %v5838
      %v5957 = vadd.f32 %v5650, %v5843
      %v5958 = vadd.f32 %v5651, %v5846
      %v5959 = vadd.f32 %v5652, %v5851
      %v5960 = vadd.f32 %v5653, %v5854
      %v5961 = vadd.f32 %v5654, %v5859
      %v5962 = vadd.f32 %v5655, %v5862
      %v5963 = vadd.f32 %v5656, %v5867
      %v5964 = vadd.f32 %v5657, %v5870
      %v5965 = vadd.f32 %v5658, %v5875
      %v5966 = vadd.f32 %v5659, %v5878
      %v5967 = vadd.f32 %v5660, %v5883
      %v5968 = vadd.f32 %v5661, %v5886
      %v5969 = vadd.f32 %v5662, %v5891
      %v5970 = vadd.f32 %v5663, %v5894
      %v5971 = vadd.f32 %v5664, %v5899
      %v5972 = vadd.f32 %v5665, %v5902
      %v5973 = vadd.f32 %v5666, %v5907
      %v5974 = vadd.f32 %v5667, %v5910
      %v5975 = vadd.f32 %v5668, %v5915
      %v5976 = vadd.f32 %v5669, %v5918
      %v5977 = vadd.f32 %v5670, %v5923
      %v5978 = vadd.f32 %v5671, %v5926
      %v5979 = vadd.f32 %v5672, %v5931
      %v5980 = vadd.f32 %v5673, %v5934
      %v5981 = vadd.f32 %v5674, %v5939
      %v5982 = vadd.f32 %v5675, %v5942
      %v5983 = vadd.f32 %v5676, %v5947
      %v5984 = vadd.f32 %v5677, %v5950
      %v5985 = vld [vmem:[%s5678 + $0x1] sm:$0xff]
      %v5986 = vld [vmem:[%s5678 + $0x11] sm:$0xff]
      %v5987 = vld [vmem:[%s5678 + $0x21] sm:$0xff]
      %v5988 = vld [vmem:[%s5678 + $0x31] sm:$0xff]
      %v5989 = vld [vmem:[%s5678 + $0x41] sm:$0xff]
      %v5990 = vld [vmem:[%s5678 + $0x51] sm:$0xff]
      %v5991 = vld [vmem:[%s5678 + $0x61] sm:$0xff]
      %v5992 = vld [vmem:[%s5678 + $0x71] sm:$0xff]
      %v5993 = vld [vmem:[%s5678 + $0xa1] sm:$0xff]
      %v5994 = vld [vmem:[%s5678 + $0xb1] sm:$0xff]
      %v5995 = vld [vmem:[%s5678 + $0xc1] sm:$0xff]
      %v5996 = vld [vmem:[%s5678 + $0xd1] sm:$0xff]
      %v5997 = vld [vmem:[%s5678 + $0xe1] sm:$0xff]
      %v5998 = vld [vmem:[%s5678 + $0xf1] sm:$0xff]
      %v5999 = vld [vmem:[%s5678 + $0x101] sm:$0xff]
      %v6000 = vld [vmem:[%s5678 + $0x111] sm:$0xff]
      %v6001 = vld [vmem:[%s5678 + $0x141] sm:$0xff]
      %v6002 = vld [vmem:[%s5678 + $0x151] sm:$0xff]
      %v6003 = vld [vmem:[%s5678 + $0x161] sm:$0xff]
      %v6004 = vld [vmem:[%s5678 + $0x171] sm:$0xff]
      %v6005 = vld [vmem:[%s5678 + $0x181] sm:$0xff]
      %v6006 = vld [vmem:[%s5678 + $0x191] sm:$0xff]
      %v6007 = vld [vmem:[%s5678 + $0x1a1] sm:$0xff]
      %v6008 = vld [vmem:[%s5678 + $0x1b1] sm:$0xff]
      %v6009 = vld [vmem:[%s5678 + $0x1e1] sm:$0xff]
      %v6010 = vld [vmem:[%s5678 + $0x1f1] sm:$0xff]
      %v6011 = vld [vmem:[%s5678 + $0x201] sm:$0xff]
      %v6012 = vld [vmem:[%s5678 + $0x211] sm:$0xff]
      %v6013 = vld [vmem:[%s5678 + $0x221] sm:$0xff]
      %v6014 = vld [vmem:[%s5678 + $0x231] sm:$0xff]
      %v6015 = vld [vmem:[%s5678 + $0x241] sm:$0xff]
      %v6016 = vld [vmem:[%s5678 + $0x251] sm:$0xff]
      %v6017 = vpack.c.bf16 %v5986, %v5985
      %v6018 = vpack.c.bf16 %v5988, %v5987
      %v6019 = vpack.c.bf16 %v5990, %v5989
      %v6020 = vpack.c.bf16 %v5992, %v5991
      %v6021 = vpack.c.bf16 %v5994, %v5993
      %v6022 = vpack.c.bf16 %v5996, %v5995
      %v6023 = vpack.c.bf16 %v5998, %v5997
      %v6024 = vpack.c.bf16 %v6000, %v5999
      %v6025 = vpack.c.bf16 %v6002, %v6001
      %v6026 = vpack.c.bf16 %v6004, %v6003
      %v6027 = vpack.c.bf16 %v6006, %v6005
      %v6028 = vpack.c.bf16 %v6008, %v6007
      %v6029 = vpack.c.bf16 %v6010, %v6009
      %v6030 = vpack.c.bf16 %v6012, %v6011
      %v6031 = vpack.c.bf16 %v6014, %v6013
      %v6032 = vpack.c.bf16 %v6016, %v6015
      %s6033 = scalar_lea.vmem %s1, 1216
      %v6034 = vld [vmem:[%s6033] sm:$0xf]
      %v6035 = vld [vmem:[%s6033 + $0x4] sm:$0xf]
      %v6036 = vld [vmem:[%s6033 + $0x8] sm:$0xf]
      %v6037 = vld [vmem:[%s6033 + $0xc] sm:$0xf]
      %v6038 = vld [vmem:[%s6033 + $0x10] sm:$0xf]
      %v6039 = vld [vmem:[%s6033 + $0x14] sm:$0xf]
      %v6040 = vld [vmem:[%s6033 + $0x18] sm:$0xf]
      %v6041 = vld [vmem:[%s6033 + $0x1c] sm:$0xf]
      %v6042 = vld [vmem:[%s6033 + $0x20] sm:$0xf]
      %v6043 = vld [vmem:[%s6033 + $0x24] sm:$0xf]
      %v6044 = vld [vmem:[%s6033 + $0x28] sm:$0xf]
      %v6045 = vld [vmem:[%s6033 + $0x2c] sm:$0xf]
      %v6046 = vld [vmem:[%s6033 + $0x30] sm:$0xf]
      %v6047 = vld [vmem:[%s6033 + $0x34] sm:$0xf]
      %v6048 = vld [vmem:[%s6033 + $0x38] sm:$0xf]
      %v6049 = vld [vmem:[%s6033 + $0x3c] sm:$0xf]
      %v6066 = vunpack.c.l.b16 %v6034
      %v6067 = vunpack.c.l.b16 %v6035
      %v6068 = vunpack.c.l.b16 %v6036
      %v6069 = vunpack.c.l.b16 %v6037
      %v6070 = vunpack.c.l.b16 %v6038
      %v6071 = vunpack.c.l.b16 %v6039
      %v6072 = vunpack.c.l.b16 %v6040
      %v6073 = vunpack.c.l.b16 %v6041
      %v6074 = vunpack.c.l.b16 %v6042
      %v6075 = vunpack.c.l.b16 %v6043
      %v6076 = vunpack.c.l.b16 %v6044
      %v6077 = vunpack.c.l.b16 %v6045
      %v6078 = vunpack.c.l.b16 %v6046
      %v6079 = vunpack.c.l.b16 %v6047
      %v6080 = vunpack.c.l.b16 %v6048
      %v6081 = vunpack.c.l.b16 %v6049
      %v6082 = vpack.c.b16 %v6067, %v6066
      %v6083 = vpack.c.b16 %v6069, %v6068
      %v6084 = vpack.c.b16 %v6071, %v6070
      %v6085 = vpack.c.b16 %v6073, %v6072
      %v6086 = vpack.c.b16 %v6075, %v6074
      %v6087 = vpack.c.b16 %v6077, %v6076
      %v6088 = vpack.c.b16 %v6079, %v6078
      %v6089 = vpack.c.b16 %v6081, %v6080
      %6098 = vmatprep.subr.bf16.mxu0 0
      %6099 = vmatpush1.bf16.msra.mxu0 %v6082
      %6100 = vmatprep.subr.bf16.mxu0 0
      %6101 = vmatpush1.bf16.msra.mxu0 %v6083
      %6102 = vmatprep.subr.bf16.mxu0 0
      %6103 = vmatpush1.bf16.msra.mxu0 %v6084
      %6104 = vmatprep.subr.bf16.mxu0 0
      %6105 = vmatpush1.bf16.msra.mxu0 %v6085
      %6106 = vmatprep.subr.bf16.mxu0 0
      %6107 = vmatpush1.bf16.msra.mxu0 %v6086
      %6108 = vmatprep.subr.bf16.mxu0 0
      %6109 = vmatpush1.bf16.msra.mxu0 %v6087
      %6110 = vmatprep.subr.bf16.mxu0 0
      %6111 = vmatpush1.bf16.msra.mxu0 %v6088
      %6112 = vmatprep.subr.bf16.mxu0 0
      %6113 = vmatpush1.bf16.msra.mxu0 %v6089
      %6114 = vmatprep.subr.bf16.mxu0 0
      %6115 = vmatpush1.bf16.msra.mxu0 0
      %6116 = vmatprep.subr.bf16.mxu0 0
      %6117 = vmatpush1.bf16.msra.mxu0 0
      %6118 = vmatprep.subr.bf16.mxu0 0
      %6119 = vmatpush1.bf16.msra.mxu0 0
      %6120 = vmatprep.subr.bf16.mxu0 0
      %6121 = vmatpush1.bf16.msra.mxu0 0
      %6122 = vmatprep.subr.bf16.mxu0 0
      %6123 = vmatpush1.bf16.msra.mxu0 0
      %6124 = vmatprep.subr.bf16.mxu0 0
      %6125 = vmatpush1.bf16.msra.mxu0 0
      %6126 = vmatprep.subr.bf16.mxu0 0
      %6127 = vmatpush1.bf16.msra.mxu0 0
      %6128 = vmatprep.subr.bf16.mxu0 0
      %6129 = vmatpush1.bf16.msra.mxu0 0
      %6130 = vmatprep.mubr.bf16.mxu0 0
      %6131 = vmatmul.mubr.bf16.gmra.mrb[0].mxu0 %v6017
      %v6132 = vpop.f32.mrb[0].mxu0
      %v6133 = vadd.f32 0.0, %v6132
      %v6134 = vpop.f32.mrb[0].mxu0
      %v6135 = vpop.f32.mrb[0].mxu0
      %v6136 = vadd.f32 0.0, %v6135
      %v6137 = vpop.f32.mrb[0].mxu0
      %6138 = vmatprep.mubr.bf16.mxu0 0
      %6139 = vmatmul.mubr.bf16.gmra.mrb[0].mxu0 %v6018
      %v6140 = vpop.f32.mrb[0].mxu0
      %v6141 = vadd.f32 0.0, %v6140
      %v6142 = vpop.f32.mrb[0].mxu0
      %v6143 = vpop.f32.mrb[0].mxu0
      %v6144 = vadd.f32 0.0, %v6143
      %v6145 = vpop.f32.mrb[0].mxu0
      %6146 = vmatprep.mubr.bf16.mxu0 0
      %6147 = vmatmul.mubr.bf16.gmra.mrb[0].mxu0 %v6019
      %v6148 = vpop.f32.mrb[0].mxu0
      %v6149 = vadd.f32 0.0, %v6148
      %v6150 = vpop.f32.mrb[0].mxu0
      %v6151 = vpop.f32.mrb[0].mxu0
      %v6152 = vadd.f32 0.0, %v6151
      %v6153 = vpop.f32.mrb[0].mxu0
      %6154 = vmatprep.mubr.bf16.mxu0 0
      %6155 = vmatmul.mubr.bf16.gmra.mrb[0].mxu0 %v6020
      %v6156 = vpop.f32.mrb[0].mxu0
      %v6157 = vadd.f32 0.0, %v6156
      %v6158 = vpop.f32.mrb[0].mxu0
      %v6159 = vpop.f32.mrb[0].mxu0
      %v6160 = vadd.f32 0.0, %v6159
      %v6161 = vpop.f32.mrb[0].mxu0
      %6162 = vmatprep.mubr.bf16.mxu0 0
      %6163 = vmatmul.mubr.bf16.gmra.mrb[0].mxu0 %v6021
      %v6164 = vpop.f32.mrb[0].mxu0
      %v6165 = vadd.f32 0.0, %v6164
      %v6166 = vpop.f32.mrb[0].mxu0
      %v6167 = vpop.f32.mrb[0].mxu0
      %v6168 = vadd.f32 0.0, %v6167
      %v6169 = vpop.f32.mrb[0].mxu0
      %6170 = vmatprep.mubr.bf16.mxu0 0
      %6171 = vmatmul.mubr.bf16.gmra.mrb[0].mxu0 %v6022
      %v6172 = vpop.f32.mrb[0].mxu0
      %v6173 = vadd.f32 0.0, %v6172
      %v6174 = vpop.f32.mrb[0].mxu0
      %v6175 = vpop.f32.mrb[0].mxu0
      %v6176 = vadd.f32 0.0, %v6175
      %v6177 = vpop.f32.mrb[0].mxu0
      %6178 = vmatprep.mubr.bf16.mxu0 0
      %6179 = vmatmul.mubr.bf16.gmra.mrb[0].mxu0 %v6023
      %v6180 = vpop.f32.mrb[0].mxu0
      %v6181 = vadd.f32 0.0, %v6180
      %v6182 = vpop.f32.mrb[0].mxu0
      %v6183 = vpop.f32.mrb[0].mxu0
      %v6184 = vadd.f32 0.0, %v6183
      %v6185 = vpop.f32.mrb[0].mxu0
      %6186 = vmatprep.mubr.bf16.mxu0 0
      %6187 = vmatmul.mubr.bf16.gmra.mrb[0].mxu0 %v6024
      %v6188 = vpop.f32.mrb[0].mxu0
      %v6189 = vadd.f32 0.0, %v6188
      %v6190 = vpop.f32.mrb[0].mxu0
      %v6191 = vpop.f32.mrb[0].mxu0
      %v6192 = vadd.f32 0.0, %v6191
      %v6193 = vpop.f32.mrb[0].mxu0
      %6194 = vmatprep.mubr.bf16.mxu0 0
      %6195 = vmatmul.mubr.bf16.gmra.mrb[0].mxu0 %v6025
      %v6196 = vpop.f32.mrb[0].mxu0
      %v6197 = vadd.f32 0.0, %v6196
      %v6198 = vpop.f32.mrb[0].mxu0
      %v6199 = vpop.f32.mrb[0].mxu0
      %v6200 = vadd.f32 0.0, %v6199
      %v6201 = vpop.f32.mrb[0].mxu0
      %6202 = vmatprep.mubr.bf16.mxu0 0
      %6203 = vmatmul.mubr.bf16.gmra.mrb[0].mxu0 %v6026
      %v6204 = vpop.f32.mrb[0].mxu0
      %v6205 = vadd.f32 0.0, %v6204
      %v6206 = vpop.f32.mrb[0].mxu0
      %v6207 = vpop.f32.mrb[0].mxu0
      %v6208 = vadd.f32 0.0, %v6207
      %v6209 = vpop.f32.mrb[0].mxu0
      %6210 = vmatprep.mubr.bf16.mxu0 0
      %6211 = vmatmul.mubr.bf16.gmra.mrb[0].mxu0 %v6027
      %v6212 = vpop.f32.mrb[0].mxu0
      %v6213 = vadd.f32 0.0, %v6212
      %v6214 = vpop.f32.mrb[0].mxu0
      %v6215 = vpop.f32.mrb[0].mxu0
      %v6216 = vadd.f32 0.0, %v6215
      %v6217 = vpop.f32.mrb[0].mxu0
      %6218 = vmatprep.mubr.bf16.mxu0 0
      %6219 = vmatmul.mubr.bf16.gmra.mrb[0].mxu0 %v6028
      %v6220 = vpop.f32.mrb[0].mxu0
      %v6221 = vadd.f32 0.0, %v6220
      %v6222 = vpop.f32.mrb[0].mxu0
      %v6223 = vpop.f32.mrb[0].mxu0
      %v6224 = vadd.f32 0.0, %v6223
      %v6225 = vpop.f32.mrb[0].mxu0
      %6226 = vmatprep.mubr.bf16.mxu0 0
      %6227 = vmatmul.mubr.bf16.gmra.mrb[0].mxu0 %v6029
      %v6228 = vpop.f32.mrb[0].mxu0
      %v6229 = vadd.f32 0.0, %v6228
      %v6230 = vpop.f32.mrb[0].mxu0
      %v6231 = vpop.f32.mrb[0].mxu0
      %v6232 = vadd.f32 0.0, %v6231
      %v6233 = vpop.f32.mrb[0].mxu0
      %6234 = vmatprep.mubr.bf16.mxu0 0
      %6235 = vmatmul.mubr.bf16.gmra.mrb[0].mxu0 %v6030
      %v6236 = vpop.f32.mrb[0].mxu0
      %v6237 = vadd.f32 0.0, %v6236
      %v6238 = vpop.f32.mrb[0].mxu0
      %v6239 = vpop.f32.mrb[0].mxu0
      %v6240 = vadd.f32 0.0, %v6239
      %v6241 = vpop.f32.mrb[0].mxu0
      %6242 = vmatprep.mubr.bf16.mxu0 0
      %6243 = vmatmul.mubr.bf16.gmra.mrb[0].mxu0 %v6031
      %v6244 = vpop.f32.mrb[0].mxu0
      %v6245 = vadd.f32 0.0, %v6244
      %v6246 = vpop.f32.mrb[0].mxu0
      %v6247 = vpop.f32.mrb[0].mxu0
      %v6248 = vadd.f32 0.0, %v6247
      %v6249 = vpop.f32.mrb[0].mxu0
      %6250 = vmatprep.mubr.bf16.mxu0 0
      %6251 = vmatmul.mubr.bf16.gmra.mrb[0].mxu0 %v6032
      %v6252 = vpop.f32.mrb[0].mxu0
      %v6253 = vadd.f32 0.0, %v6252
      %v6254 = vpop.f32.mrb[0].mxu0
      %v6255 = vpop.f32.mrb[0].mxu0
      %v6256 = vadd.f32 0.0, %v6255
      %v6257 = vpop.f32.mrb[0].mxu0
      %6258 = vdwg.mxu0
      %v6259 = vadd.f32 %v5953, %v6133
      %v6260 = vadd.f32 %v5954, %v6136
      %v6261 = vadd.f32 %v5955, %v6141
      %v6262 = vadd.f32 %v5956, %v6144
      %v6263 = vadd.f32 %v5957, %v6149
      %v6264 = vadd.f32 %v5958, %v6152
      %v6265 = vadd.f32 %v5959, %v6157
      %v6266 = vadd.f32 %v5960, %v6160
      %v6267 = vadd.f32 %v5961, %v6165
      %v6268 = vadd.f32 %v5962, %v6168
      %v6269 = vadd.f32 %v5963, %v6173
      %v6270 = vadd.f32 %v5964, %v6176
      %v6271 = vadd.f32 %v5965, %v6181
      %v6272 = vadd.f32 %v5966, %v6184
      %v6273 = vadd.f32 %v5967, %v6189
      %v6274 = vadd.f32 %v5968, %v6192
      %v6275 = vadd.f32 %v5969, %v6197
      %v6276 = vadd.f32 %v5970, %v6200
      %v6277 = vadd.f32 %v5971, %v6205
      %v6278 = vadd.f32 %v5972, %v6208
      %v6279 = vadd.f32 %v5973, %v6213
      %v6280 = vadd.f32 %v5974, %v6216
      %v6281 = vadd.f32 %v5975, %v6221
      %v6282 = vadd.f32 %v5976, %v6224
      %v6283 = vadd.f32 %v5977, %v6229
      %v6284 = vadd.f32 %v5978, %v6232
      %v6285 = vadd.f32 %v5979, %v6237
      %v6286 = vadd.f32 %v5980, %v6240
      %v6287 = vadd.f32 %v5981, %v6245
      %v6288 = vadd.f32 %v5982, %v6248
      %v6289 = vadd.f32 %v5983, %v6253
      %v6290 = vadd.f32 %v5984, %v6256
      %v6291 = vld [vmem:[%s5678 + $0x2] sm:$0xff]
      %v6292 = vld [vmem:[%s5678 + $0x12] sm:$0xff]
      %v6293 = vld [vmem:[%s5678 + $0x22] sm:$0xff]
      %v6294 = vld [vmem:[%s5678 + $0x32] sm:$0xff]
      %v6295 = vld [vmem:[%s5678 + $0x42] sm:$0xff]
      %v6296 = vld [vmem:[%s5678 + $0x52] sm:$0xff]
      %v6297 = vld [vmem:[%s5678 + $0x62] sm:$0xff]
      %v6298 = vld [vmem:[%s5678 + $0x72] sm:$0xff]
      %v6299 = vld [vmem:[%s5678 + $0xa2] sm:$0xff]
      %v6300 = vld [vmem:[%s5678 + $0xb2] sm:$0xff]
      %v6301 = vld [vmem:[%s5678 + $0xc2] sm:$0xff]
      %v6302 = vld [vmem:[%s5678 + $0xd2] sm:$0xff]
      %v6303 = vld [vmem:[%s5678 + $0xe2] sm:$0xff]
      %v6304 = vld [vmem:[%s5678 + $0xf2] sm:$0xff]
      %v6305 = vld [vmem:[%s5678 + $0x102] sm:$0xff]
      %v6306 = vld [vmem:[%s5678 + $0x112] sm:$0xff]
      %v6307 = vld [vmem:[%s5678 + $0x142] sm:$0xff]
      %v6308 = vld [vmem:[%s5678 + $0x152] sm:$0xff]
      %v6309 = vld [vmem:[%s5678 + $0x162] sm:$0xff]
      %v6310 = vld [vmem:[%s5678 + $0x172] sm:$0xff]
      %v6311 = vld [vmem:[%s5678 + $0x182] sm:$0xff]
      %v6312 = vld [vmem:[%s5678 + $0x192] sm:$0xff]
      %v6313 = vld [vmem:[%s5678 + $0x1a2] sm:$0xff]
      %v6314 = vld [vmem:[%s5678 + $0x1b2] sm:$0xff]
      %v6315 = vld [vmem:[%s5678 + $0x1e2] sm:$0xff]
      %v6316 = vld [vmem:[%s5678 + $0x1f2] sm:$0xff]
      %v6317 = vld [vmem:[%s5678 + $0x202] sm:$0xff]
      %v6318 = vld [vmem:[%s5678 + $0x212] sm:$0xff]
      %v6319 = vld [vmem:[%s5678 + $0x222] sm:$0xff]
      %v6320 = vld [vmem:[%s5678 + $0x232] sm:$0xff]
      %v6321 = vld [vmem:[%s5678 + $0x242] sm:$0xff]
      %v6322 = vld [vmem:[%s5678 + $0x252] sm:$0xff]
      %v6323 = vpack.c.bf16 %v6292, %v6291
      %v6324 = vpack.c.bf16 %v6294, %v6293
      %v6325 = vpack.c.bf16 %v6296, %v6295
      %v6326 = vpack.c.bf16 %v6298, %v6297
      %v6327 = vpack.c.bf16 %v6300, %v6299
      %v6328 = vpack.c.bf16 %v6302, %v6301
      %v6329 = vpack.c.bf16 %v6304, %v6303
      %v6330 = vpack.c.bf16 %v6306, %v6305
      %v6331 = vpack.c.bf16 %v6308, %v6307
      %v6332 = vpack.c.bf16 %v6310, %v6309
      %v6333 = vpack.c.bf16 %v6312, %v6311
      %v6334 = vpack.c.bf16 %v6314, %v6313
      %v6335 = vpack.c.bf16 %v6316, %v6315
      %v6336 = vpack.c.bf16 %v6318, %v6317
      %v6337 = vpack.c.bf16 %v6320, %v6319
      %v6338 = vpack.c.bf16 %v6322, %v6321
      %s6339 = scalar_lea.vmem %s1, 1280
      %v6340 = vld [vmem:[%s6339] sm:$0xf]
      %v6341 = vld [vmem:[%s6339 + $0x4] sm:$0xf]
      %v6342 = vld [vmem:[%s6339 + $0x8] sm:$0xf]
      %v6343 = vld [vmem:[%s6339 + $0xc] sm:$0xf]
      %v6344 = vld [vmem:[%s6339 + $0x10] sm:$0xf]
      %v6345 = vld [vmem:[%s6339 + $0x14] sm:$0xf]
      %v6346 = vld [vmem:[%s6339 + $0x18] sm:$0xf]
      %v6347 = vld [vmem:[%s6339 + $0x1c] sm:$0xf]
      %v6348 = vld [vmem:[%s6339 + $0x20] sm:$0xf]
      %v6349 = vld [vmem:[%s6339 + $0x24] sm:$0xf]
      %v6350 = vld [vmem:[%s6339 + $0x28] sm:$0xf]
      %v6351 = vld [vmem:[%s6339 + $0x2c] sm:$0xf]
      %v6352 = vld [vmem:[%s6339 + $0x30] sm:$0xf]
      %v6353 = vld [vmem:[%s6339 + $0x34] sm:$0xf]
      %v6354 = vld [vmem:[%s6339 + $0x38] sm:$0xf]
      %v6355 = vld [vmem:[%s6339 + $0x3c] sm:$0xf]
      %v6372 = vunpack.c.l.b16 %v6340
      %v6373 = vunpack.c.l.b16 %v6341
      %v6374 = vunpack.c.l.b16 %v6342
      %v6375 = vunpack.c.l.b16 %v6343
      %v6376 = vunpack.c.l.b16 %v6344
      %v6377 = vunpack.c.l.b16 %v6345
      %v6378 = vunpack.c.l.b16 %v6346
      %v6379 = vunpack.c.l.b16 %v6347
      %v6380 = vunpack.c.l.b16 %v6348
      %v6381 = vunpack.c.l.b16 %v6349
      %v6382 = vunpack.c.l.b16 %v6350
      %v6383 = vunpack.c.l.b16 %v6351
      %v6384 = vunpack.c.l.b16 %v6352
      %v6385 = vunpack.c.l.b16 %v6353
      %v6386 = vunpack.c.l.b16 %v6354
      %v6387 = vunpack.c.l.b16 %v6355
      %v6388 = vpack.c.b16 %v6373, %v6372
      %v6389 = vpack.c.b16 %v6375, %v6374
      %v6390 = vpack.c.b16 %v6377, %v6376
      %v6391 = vpack.c.b16 %v6379, %v6378
      %v6392 = vpack.c.b16 %v6381, %v6380
      %v6393 = vpack.c.b16 %v6383, %v6382
      %v6394 = vpack.c.b16 %v6385, %v6384
      %v6395 = vpack.c.b16 %v6387, %v6386
      %6404 = vmatprep.subr.bf16.mxu0 0
      %6405 = vmatpush1.bf16.msra.mxu0 %v6388
      %6406 = vmatprep.subr.bf16.mxu0 0
      %6407 = vmatpush1.bf16.msra.mxu0 %v6389
      %6408 = vmatprep.subr.bf16.mxu0 0
      %6409 = vmatpush1.bf16.msra.mxu0 %v6390
      %6410 = vmatprep.subr.bf16.mxu0 0
      %6411 = vmatpush1.bf16.msra.mxu0 %v6391
      %6412 = vmatprep.subr.bf16.mxu0 0
      %6413 = vmatpush1.bf16.msra.mxu0 %v6392
      %6414 = vmatprep.subr.bf16.mxu0 0
      %6415 = vmatpush1.bf16.msra.mxu0 %v6393
      %6416 = vmatprep.subr.bf16.mxu0 0
      %6417 = vmatpush1.bf16.msra.mxu0 %v6394
      %6418 = vmatprep.subr.bf16.mxu0 0
      %6419 = vmatpush1.bf16.msra.mxu0 %v6395
      %6420 = vmatprep.subr.bf16.mxu0 0
      %6421 = vmatpush1.bf16.msra.mxu0 0
      %6422 = vmatprep.subr.bf16.mxu0 0
      %6423 = vmatpush1.bf16.msra.mxu0 0
      %6424 = vmatprep.subr.bf16.mxu0 0
      %6425 = vmatpush1.bf16.msra.mxu0 0
      %6426 = vmatprep.subr.bf16.mxu0 0
      %6427 = vmatpush1.bf16.msra.mxu0 0
      %6428 = vmatprep.subr.bf16.mxu0 0
      %6429 = vmatpush1.bf16.msra.mxu0 0
      %6430 = vmatprep.subr.bf16.mxu0 0
      %6431 = vmatpush1.bf16.msra.mxu0 0
      %6432 = vmatprep.subr.bf16.mxu0 0
      %6433 = vmatpush1.bf16.msra.mxu0 0
      %6434 = vmatprep.subr.bf16.mxu0 0
      %6435 = vmatpush1.bf16.msra.mxu0 0
      %6436 = vmatprep.mubr.bf16.mxu0 0
      %6437 = vmatmul.mubr.bf16.gmra.mrb[0].mxu0 %v6323
      %v6438 = vpop.f32.mrb[0].mxu0
      %v6439 = vadd.f32 0.0, %v6438
      %v6440 = vpop.f32.mrb[0].mxu0
      %v6441 = vpop.f32.mrb[0].mxu0
      %v6442 = vadd.f32 0.0, %v6441
      %v6443 = vpop.f32.mrb[0].mxu0
      %6444 = vmatprep.mubr.bf16.mxu0 0
      %6445 = vmatmul.mubr.bf16.gmra.mrb[0].mxu0 %v6324
      %v6446 = vpop.f32.mrb[0].mxu0
      %v6447 = vadd.f32 0.0, %v6446
      %v6448 = vpop.f32.mrb[0].mxu0
      %v6449 = vpop.f32.mrb[0].mxu0
      %v6450 = vadd.f32 0.0, %v6449
      %v6451 = vpop.f32.mrb[0].mxu0
      %6452 = vmatprep.mubr.bf16.mxu0 0
      %6453 = vmatmul.mubr.bf16.gmra.mrb[0].mxu0 %v6325
      %v6454 = vpop.f32.mrb[0].mxu0
      %v6455 = vadd.f32 0.0, %v6454
      %v6456 = vpop.f32.mrb[0].mxu0
      %v6457 = vpop.f32.mrb[0].mxu0
      %v6458 = vadd.f32 0.0, %v6457
      %v6459 = vpop.f32.mrb[0].mxu0
      %6460 = vmatprep.mubr.bf16.mxu0 0
      %6461 = vmatmul.mubr.bf16.gmra.mrb[0].mxu0 %v6326
      %v6462 = vpop.f32.mrb[0].mxu0
      %v6463 = vadd.f32 0.0, %v6462
      %v6464 = vpop.f32.mrb[0].mxu0
      %v6465 = vpop.f32.mrb[0].mxu0
      %v6466 = vadd.f32 0.0, %v6465
      %v6467 = vpop.f32.mrb[0].mxu0
      %6468 = vmatprep.mubr.bf16.mxu0 0
      %6469 = vmatmul.mubr.bf16.gmra.mrb[0].mxu0 %v6327
      %v6470 = vpop.f32.mrb[0].mxu0
      %v6471 = vadd.f32 0.0, %v6470
      %v6472 = vpop.f32.mrb[0].mxu0
      %v6473 = vpop.f32.mrb[0].mxu0
      %v6474 = vadd.f32 0.0, %v6473
      %v6475 = vpop.f32.mrb[0].mxu0
      %6476 = vmatprep.mubr.bf16.mxu0 0
      %6477 = vmatmul.mubr.bf16.gmra.mrb[0].mxu0 %v6328
      %v6478 = vpop.f32.mrb[0].mxu0
      %v6479 = vadd.f32 0.0, %v6478
      %v6480 = vpop.f32.mrb[0].mxu0
      %v6481 = vpop.f32.mrb[0].mxu0
      %v6482 = vadd.f32 0.0, %v6481
      %v6483 = vpop.f32.mrb[0].mxu0
      %6484 = vmatprep.mubr.bf16.mxu0 0
      %6485 = vmatmul.mubr.bf16.gmra.mrb[0].mxu0 %v6329
      %v6486 = vpop.f32.mrb[0].mxu0
      %v6487 = vadd.f32 0.0, %v6486
      %v6488 = vpop.f32.mrb[0].mxu0
      %v6489 = vpop.f32.mrb[0].mxu0
      %v6490 = vadd.f32 0.0, %v6489
      %v6491 = vpop.f32.mrb[0].mxu0
      %6492 = vmatprep.mubr.bf16.mxu0 0
      %6493 = vmatmul.mubr.bf16.gmra.mrb[0].mxu0 %v6330
      %v6494 = vpop.f32.mrb[0].mxu0
      %v6495 = vadd.f32 0.0, %v6494
      %v6496 = vpop.f32.mrb[0].mxu0
      %v6497 = vpop.f32.mrb[0].mxu0
      %v6498 = vadd.f32 0.0, %v6497
      %v6499 = vpop.f32.mrb[0].mxu0
      %6500 = vmatprep.mubr.bf16.mxu0 0
      %6501 = vmatmul.mubr.bf16.gmra.mrb[0].mxu0 %v6331
      %v6502 = vpop.f32.mrb[0].mxu0
      %v6503 = vadd.f32 0.0, %v6502
      %v6504 = vpop.f32.mrb[0].mxu0
      %v6505 = vpop.f32.mrb[0].mxu0
      %v6506 = vadd.f32 0.0, %v6505
      %v6507 = vpop.f32.mrb[0].mxu0
      %6508 = vmatprep.mubr.bf16.mxu0 0
      %6509 = vmatmul.mubr.bf16.gmra.mrb[0].mxu0 %v6332
      %v6510 = vpop.f32.mrb[0].mxu0
      %v6511 = vadd.f32 0.0, %v6510
      %v6512 = vpop.f32.mrb[0].mxu0
      %v6513 = vpop.f32.mrb[0].mxu0
      %v6514 = vadd.f32 0.0, %v6513
      %v6515 = vpop.f32.mrb[0].mxu0
      %6516 = vmatprep.mubr.bf16.mxu0 0
      %6517 = vmatmul.mubr.bf16.gmra.mrb[0].mxu0 %v6333
      %v6518 = vpop.f32.mrb[0].mxu0
      %v6519 = vadd.f32 0.0, %v6518
      %v6520 = vpop.f32.mrb[0].mxu0
      %v6521 = vpop.f32.mrb[0].mxu0
      %v6522 = vadd.f32 0.0, %v6521
      %v6523 = vpop.f32.mrb[0].mxu0
      %6524 = vmatprep.mubr.bf16.mxu0 0
      %6525 = vmatmul.mubr.bf16.gmra.mrb[0].mxu0 %v6334
      %v6526 = vpop.f32.mrb[0].mxu0
      %v6527 = vadd.f32 0.0, %v6526
      %v6528 = vpop.f32.mrb[0].mxu0
      %v6529 = vpop.f32.mrb[0].mxu0
      %v6530 = vadd.f32 0.0, %v6529
      %v6531 = vpop.f32.mrb[0].mxu0
      %6532 = vmatprep.mubr.bf16.mxu0 0
      %6533 = vmatmul.mubr.bf16.gmra.mrb[0].mxu0 %v6335
      %v6534 = vpop.f32.mrb[0].mxu0
      %v6535 = vadd.f32 0.0, %v6534
      %v6536 = vpop.f32.mrb[0].mxu0
      %v6537 = vpop.f32.mrb[0].mxu0
      %v6538 = vadd.f32 0.0, %v6537
      %v6539 = vpop.f32.mrb[0].mxu0
      %6540 = vmatprep.mubr.bf16.mxu0 0
      %6541 = vmatmul.mubr.bf16.gmra.mrb[0].mxu0 %v6336
      %v6542 = vpop.f32.mrb[0].mxu0
      %v6543 = vadd.f32 0.0, %v6542
      %v6544 = vpop.f32.mrb[0].mxu0
      %v6545 = vpop.f32.mrb[0].mxu0
      %v6546 = vadd.f32 0.0, %v6545
      %v6547 = vpop.f32.mrb[0].mxu0
      %6548 = vmatprep.mubr.bf16.mxu0 0
      %6549 = vmatmul.mubr.bf16.gmra.mrb[0].mxu0 %v6337
      %v6550 = vpop.f32.mrb[0].mxu0
      %v6551 = vadd.f32 0.0, %v6550
      %v6552 = vpop.f32.mrb[0].mxu0
      %v6553 = vpop.f32.mrb[0].mxu0
      %v6554 = vadd.f32 0.0, %v6553
      %v6555 = vpop.f32.mrb[0].mxu0
      %6556 = vmatprep.mubr.bf16.mxu0 0
      %6557 = vmatmul.mubr.bf16.gmra.mrb[0].mxu0 %v6338
      %v6558 = vpop.f32.mrb[0].mxu0
      %v6559 = vadd.f32 0.0, %v6558
      %v6560 = vpop.f32.mrb[0].mxu0
      %v6561 = vpop.f32.mrb[0].mxu0
      %v6562 = vadd.f32 0.0, %v6561
      %v6563 = vpop.f32.mrb[0].mxu0
      %6564 = vdwg.mxu0
      %v6565 = vadd.f32 %v6259, %v6439
      %v6566 = vadd.f32 %v6260, %v6442
      %v6567 = vadd.f32 %v6261, %v6447
      %v6568 = vadd.f32 %v6262, %v6450
      %v6569 = vadd.f32 %v6263, %v6455
      %v6570 = vadd.f32 %v6264, %v6458
      %v6571 = vadd.f32 %v6265, %v6463
      %v6572 = vadd.f32 %v6266, %v6466
      %v6573 = vadd.f32 %v6267, %v6471
      %v6574 = vadd.f32 %v6268, %v6474
      %v6575 = vadd.f32 %v6269, %v6479
      %v6576 = vadd.f32 %v6270, %v6482
      %v6577 = vadd.f32 %v6271, %v6487
      %v6578 = vadd.f32 %v6272, %v6490
      %v6579 = vadd.f32 %v6273, %v6495
      %v6580 = vadd.f32 %v6274, %v6498
      %v6581 = vadd.f32 %v6275, %v6503
      %v6582 = vadd.f32 %v6276, %v6506
      %v6583 = vadd.f32 %v6277, %v6511
      %v6584 = vadd.f32 %v6278, %v6514
      %v6585 = vadd.f32 %v6279, %v6519
      %v6586 = vadd.f32 %v6280, %v6522
      %v6587 = vadd.f32 %v6281, %v6527
      %v6588 = vadd.f32 %v6282, %v6530
      %v6589 = vadd.f32 %v6283, %v6535
      %v6590 = vadd.f32 %v6284, %v6538
      %v6591 = vadd.f32 %v6285, %v6543
      %v6592 = vadd.f32 %v6286, %v6546
      %v6593 = vadd.f32 %v6287, %v6551
      %v6594 = vadd.f32 %v6288, %v6554
      %v6595 = vadd.f32 %v6289, %v6559
      %v6596 = vadd.f32 %v6290, %v6562
      %s6597 = scalar_lea.vmem %s210, 336
      %v6598 = vld [vmem:[%s6597] sm:$0xff]
      %v6599 = vld [vmem:[%s6597 + $0x10] sm:$0xff]
      %v6600 = vld [vmem:[%s6597 + $0x20] sm:$0xff]
      %v6601 = vld [vmem:[%s6597 + $0x30] sm:$0xff]
      %v6602 = vld [vmem:[%s6597 + $0x40] sm:$0xff]
      %v6603 = vld [vmem:[%s6597 + $0x50] sm:$0xff]
      %v6604 = vld [vmem:[%s6597 + $0x60] sm:$0xff]
      %v6605 = vld [vmem:[%s6597 + $0x70] sm:$0xff]
      %v6606 = vld [vmem:[%s6597 + $0xa0] sm:$0xff]
      %v6607 = vld [vmem:[%s6597 + $0xb0] sm:$0xff]
      %v6608 = vld [vmem:[%s6597 + $0xc0] sm:$0xff]
      %v6609 = vld [vmem:[%s6597 + $0xd0] sm:$0xff]
      %v6610 = vld [vmem:[%s6597 + $0xe0] sm:$0xff]
      %v6611 = vld [vmem:[%s6597 + $0xf0] sm:$0xff]
      %v6612 = vld [vmem:[%s6597 + $0x100] sm:$0xff]
      %v6613 = vld [vmem:[%s6597 + $0x110] sm:$0xff]
      %v6614 = vld [vmem:[%s6597 + $0x140] sm:$0xff]
      %v6615 = vld [vmem:[%s6597 + $0x150] sm:$0xff]
      %v6616 = vld [vmem:[%s6597 + $0x160] sm:$0xff]
      %v6617 = vld [vmem:[%s6597 + $0x170] sm:$0xff]
      %v6618 = vld [vmem:[%s6597 + $0x180] sm:$0xff]
      %v6619 = vld [vmem:[%s6597 + $0x190] sm:$0xff]
      %v6620 = vld [vmem:[%s6597 + $0x1a0] sm:$0xff]
      %v6621 = vld [vmem:[%s6597 + $0x1b0] sm:$0xff]
      %v6622 = vld [vmem:[%s6597 + $0x1e0] sm:$0xff]
      %v6623 = vld [vmem:[%s6597 + $0x1f0] sm:$0xff]
      %v6624 = vld [vmem:[%s6597 + $0x200] sm:$0xff]
      %v6625 = vld [vmem:[%s6597 + $0x210] sm:$0xff]
      %v6626 = vld [vmem:[%s6597 + $0x220] sm:$0xff]
      %v6627 = vld [vmem:[%s6597 + $0x230] sm:$0xff]
      %v6628 = vld [vmem:[%s6597 + $0x240] sm:$0xff]
      %v6629 = vld [vmem:[%s6597 + $0x250] sm:$0xff]
      %v6630 = vpack.c.bf16 %v6599, %v6598
      %v6631 = vpack.c.bf16 %v6601, %v6600
      %v6632 = vpack.c.bf16 %v6603, %v6602
      %v6633 = vpack.c.bf16 %v6605, %v6604
      %v6634 = vpack.c.bf16 %v6607, %v6606
      %v6635 = vpack.c.bf16 %v6609, %v6608
      %v6636 = vpack.c.bf16 %v6611, %v6610
      %v6637 = vpack.c.bf16 %v6613, %v6612
      %v6638 = vpack.c.bf16 %v6615, %v6614
      %v6639 = vpack.c.bf16 %v6617, %v6616
      %v6640 = vpack.c.bf16 %v6619, %v6618
      %v6641 = vpack.c.bf16 %v6621, %v6620
      %v6642 = vpack.c.bf16 %v6623, %v6622
      %v6643 = vpack.c.bf16 %v6625, %v6624
      %v6644 = vpack.c.bf16 %v6627, %v6626
      %v6645 = vpack.c.bf16 %v6629, %v6628
      %s6646 = scalar_lea.vmem %s1, 1344
      %v6647 = vld [vmem:[%s6646] sm:$0xf]
      %v6648 = vld [vmem:[%s6646 + $0x4] sm:$0xf]
      %v6649 = vld [vmem:[%s6646 + $0x8] sm:$0xf]
      %v6650 = vld [vmem:[%s6646 + $0xc] sm:$0xf]
      %v6651 = vld [vmem:[%s6646 + $0x10] sm:$0xf]
      %v6652 = vld [vmem:[%s6646 + $0x14] sm:$0xf]
      %v6653 = vld [vmem:[%s6646 + $0x18] sm:$0xf]
      %v6654 = vld [vmem:[%s6646 + $0x1c] sm:$0xf]
      %v6655 = vld [vmem:[%s6646 + $0x20] sm:$0xf]
      %v6656 = vld [vmem:[%s6646 + $0x24] sm:$0xf]
      %v6657 = vld [vmem:[%s6646 + $0x28] sm:$0xf]
      %v6658 = vld [vmem:[%s6646 + $0x2c] sm:$0xf]
      %v6659 = vld [vmem:[%s6646 + $0x30] sm:$0xf]
      %v6660 = vld [vmem:[%s6646 + $0x34] sm:$0xf]
      %v6661 = vld [vmem:[%s6646 + $0x38] sm:$0xf]
      %v6662 = vld [vmem:[%s6646 + $0x3c] sm:$0xf]
      %v6679 = vunpack.c.l.b16 %v6647
      %v6680 = vunpack.c.l.b16 %v6648
      %v6681 = vunpack.c.l.b16 %v6649
      %v6682 = vunpack.c.l.b16 %v6650
      %v6683 = vunpack.c.l.b16 %v6651
      %v6684 = vunpack.c.l.b16 %v6652
      %v6685 = vunpack.c.l.b16 %v6653
      %v6686 = vunpack.c.l.b16 %v6654
      %v6687 = vunpack.c.l.b16 %v6655
      %v6688 = vunpack.c.l.b16 %v6656
      %v6689 = vunpack.c.l.b16 %v6657
      %v6690 = vunpack.c.l.b16 %v6658
      %v6691 = vunpack.c.l.b16 %v6659
      %v6692 = vunpack.c.l.b16 %v6660
      %v6693 = vunpack.c.l.b16 %v6661
      %v6694 = vunpack.c.l.b16 %v6662
      %v6695 = vpack.c.b16 %v6680, %v6679
      %v6696 = vpack.c.b16 %v6682, %v6681
      %v6697 = vpack.c.b16 %v6684, %v6683
      %v6698 = vpack.c.b16 %v6686, %v6685
      %v6699 = vpack.c.b16 %v6688, %v6687
      %v6700 = vpack.c.b16 %v6690, %v6689
      %v6701 = vpack.c.b16 %v6692, %v6691
      %v6702 = vpack.c.b16 %v6694, %v6693
      %6711 = vmatprep.subr.bf16.mxu0 0
      %6712 = vmatpush1.bf16.msra.mxu0 %v6695
      %6713 = vmatprep.subr.bf16.mxu0 0
      %6714 = vmatpush1.bf16.msra.mxu0 %v6696
      %6715 = vmatprep.subr.bf16.mxu0 0
      %6716 = vmatpush1.bf16.msra.mxu0 %v6697
      %6717 = vmatprep.subr.bf16.mxu0 0
      %6718 = vmatpush1.bf16.msra.mxu0 %v6698
      %6719 = vmatprep.subr.bf16.mxu0 0
      %6720 = vmatpush1.bf16.msra.mxu0 %v6699
      %6721 = vmatprep.subr.bf16.mxu0 0
      %6722 = vmatpush1.bf16.msra.mxu0 %v6700
      %6723 = vmatprep.subr.bf16.mxu0 0
      %6724 = vmatpush1.bf16.msra.mxu0 %v6701
      %6725 = vmatprep.subr.bf16.mxu0 0
      %6726 = vmatpush1.bf16.msra.mxu0 %v6702
      %6727 = vmatprep.subr.bf16.mxu0 0
      %6728 = vmatpush1.bf16.msra.mxu0 0
      %6729 = vmatprep.subr.bf16.mxu0 0
      %6730 = vmatpush1.bf16.msra.mxu0 0
      %6731 = vmatprep.subr.bf16.mxu0 0
      %6732 = vmatpush1.bf16.msra.mxu0 0
      %6733 = vmatprep.subr.bf16.mxu0 0
      %6734 = vmatpush1.bf16.msra.mxu0 0
      %6735 = vmatprep.subr.bf16.mxu0 0
      %6736 = vmatpush1.bf16.msra.mxu0 0
      %6737 = vmatprep.subr.bf16.mxu0 0
      %6738 = vmatpush1.bf16.msra.mxu0 0
      %6739 = vmatprep.subr.bf16.mxu0 0
      %6740 = vmatpush1.bf16.msra.mxu0 0
      %6741 = vmatprep.subr.bf16.mxu0 0
      %6742 = vmatpush1.bf16.msra.mxu0 0
      %6743 = vmatprep.mubr.bf16.mxu0 0
      %6744 = vmatmul.mubr.bf16.gmra.mrb[0].mxu0 %v6630
      %v6745 = vpop.f32.mrb[0].mxu0
      %v6746 = vadd.f32 0.0, %v6745
      %v6747 = vpop.f32.mrb[0].mxu0
      %v6748 = vpop.f32.mrb[0].mxu0
      %v6749 = vadd.f32 0.0, %v6748
      %v6750 = vpop.f32.mrb[0].mxu0
      %6751 = vmatprep.mubr.bf16.mxu0 0
      %6752 = vmatmul.mubr.bf16.gmra.mrb[0].mxu0 %v6631
      %v6753 = vpop.f32.mrb[0].mxu0
      %v6754 = vadd.f32 0.0, %v6753
      %v6755 = vpop.f32.mrb[0].mxu0
      %v6756 = vpop.f32.mrb[0].mxu0
      %v6757 = vadd.f32 0.0, %v6756
      %v6758 = vpop.f32.mrb[0].mxu0
      %6759 = vmatprep.mubr.bf16.mxu0 0
      %6760 = vmatmul.mubr.bf16.gmra.mrb[0].mxu0 %v6632
      %v6761 = vpop.f32.mrb[0].mxu0
      %v6762 = vadd.f32 0.0, %v6761
      %v6763 = vpop.f32.mrb[0].mxu0
      %v6764 = vpop.f32.mrb[0].mxu0
      %v6765 = vadd.f32 0.0, %v6764
      %v6766 = vpop.f32.mrb[0].mxu0
      %6767 = vmatprep.mubr.bf16.mxu0 0
      %6768 = vmatmul.mubr.bf16.gmra.mrb[0].mxu0 %v6633
      %v6769 = vpop.f32.mrb[0].mxu0
      %v6770 = vadd.f32 0.0, %v6769
      %v6771 = vpop.f32.mrb[0].mxu0
      %v6772 = vpop.f32.mrb[0].mxu0
      %v6773 = vadd.f32 0.0, %v6772
      %v6774 = vpop.f32.mrb[0].mxu0
      %6775 = vmatprep.mubr.bf16.mxu0 0
      %6776 = vmatmul.mubr.bf16.gmra.mrb[0].mxu0 %v6634
      %v6777 = vpop.f32.mrb[0].mxu0
      %v6778 = vadd.f32 0.0, %v6777
      %v6779 = vpop.f32.mrb[0].mxu0
      %v6780 = vpop.f32.mrb[0].mxu0
      %v6781 = vadd.f32 0.0, %v6780
      %v6782 = vpop.f32.mrb[0].mxu0
      %6783 = vmatprep.mubr.bf16.mxu0 0
      %6784 = vmatmul.mubr.bf16.gmra.mrb[0].mxu0 %v6635
      %v6785 = vpop.f32.mrb[0].mxu0
      %v6786 = vadd.f32 0.0, %v6785
      %v6787 = vpop.f32.mrb[0].mxu0
      %v6788 = vpop.f32.mrb[0].mxu0
      %v6789 = vadd.f32 0.0, %v6788
      %v6790 = vpop.f32.mrb[0].mxu0
      %6791 = vmatprep.mubr.bf16.mxu0 0
      %6792 = vmatmul.mubr.bf16.gmra.mrb[0].mxu0 %v6636
      %v6793 = vpop.f32.mrb[0].mxu0
      %v6794 = vadd.f32 0.0, %v6793
      %v6795 = vpop.f32.mrb[0].mxu0
      %v6796 = vpop.f32.mrb[0].mxu0
      %v6797 = vadd.f32 0.0, %v6796
      %v6798 = vpop.f32.mrb[0].mxu0
      %6799 = vmatprep.mubr.bf16.mxu0 0
      %6800 = vmatmul.mubr.bf16.gmra.mrb[0].mxu0 %v6637
      %v6801 = vpop.f32.mrb[0].mxu0
      %v6802 = vadd.f32 0.0, %v6801
      %v6803 = vpop.f32.mrb[0].mxu0
      %v6804 = vpop.f32.mrb[0].mxu0
      %v6805 = vadd.f32 0.0, %v6804
      %v6806 = vpop.f32.mrb[0].mxu0
      %6807 = vmatprep.mubr.bf16.mxu0 0
      %6808 = vmatmul.mubr.bf16.gmra.mrb[0].mxu0 %v6638
      %v6809 = vpop.f32.mrb[0].mxu0
      %v6810 = vadd.f32 0.0, %v6809
      %v6811 = vpop.f32.mrb[0].mxu0
      %v6812 = vpop.f32.mrb[0].mxu0
      %v6813 = vadd.f32 0.0, %v6812
      %v6814 = vpop.f32.mrb[0].mxu0
      %6815 = vmatprep.mubr.bf16.mxu0 0
      %6816 = vmatmul.mubr.bf16.gmra.mrb[0].mxu0 %v6639
      %v6817 = vpop.f32.mrb[0].mxu0
      %v6818 = vadd.f32 0.0, %v6817
      %v6819 = vpop.f32.mrb[0].mxu0
      %v6820 = vpop.f32.mrb[0].mxu0
      %v6821 = vadd.f32 0.0, %v6820
      %v6822 = vpop.f32.mrb[0].mxu0
      %6823 = vmatprep.mubr.bf16.mxu0 0
      %6824 = vmatmul.mubr.bf16.gmra.mrb[0].mxu0 %v6640
      %v6825 = vpop.f32.mrb[0].mxu0
      %v6826 = vadd.f32 0.0, %v6825
      %v6827 = vpop.f32.mrb[0].mxu0
      %v6828 = vpop.f32.mrb[0].mxu0
      %v6829 = vadd.f32 0.0, %v6828
      %v6830 = vpop.f32.mrb[0].mxu0
      %6831 = vmatprep.mubr.bf16.mxu0 0
      %6832 = vmatmul.mubr.bf16.gmra.mrb[0].mxu0 %v6641
      %v6833 = vpop.f32.mrb[0].mxu0
      %v6834 = vadd.f32 0.0, %v6833
      %v6835 = vpop.f32.mrb[0].mxu0
      %v6836 = vpop.f32.mrb[0].mxu0
      %v6837 = vadd.f32 0.0, %v6836
      %v6838 = vpop.f32.mrb[0].mxu0
      %6839 = vmatprep.mubr.bf16.mxu0 0
      %6840 = vmatmul.mubr.bf16.gmra.mrb[0].mxu0 %v6642
      %v6841 = vpop.f32.mrb[0].mxu0
      %v6842 = vadd.f32 0.0, %v6841
      %v6843 = vpop.f32.mrb[0].mxu0
      %v6844 = vpop.f32.mrb[0].mxu0
      %v6845 = vadd.f32 0.0, %v6844
      %v6846 = vpop.f32.mrb[0].mxu0
      %6847 = vmatprep.mubr.bf16.mxu0 0
      %6848 = vmatmul.mubr.bf16.gmra.mrb[0].mxu0 %v6643
      %v6849 = vpop.f32.mrb[0].mxu0
      %v6850 = vadd.f32 0.0, %v6849
      %v6851 = vpop.f32.mrb[0].mxu0
      %v6852 = vpop.f32.mrb[0].mxu0
      %v6853 = vadd.f32 0.0, %v6852
      %v6854 = vpop.f32.mrb[0].mxu0
      %6855 = vmatprep.mubr.bf16.mxu0 0
      %6856 = vmatmul.mubr.bf16.gmra.mrb[0].mxu0 %v6644
      %v6857 = vpop.f32.mrb[0].mxu0
      %v6858 = vadd.f32 0.0, %v6857
      %v6859 = vpop.f32.mrb[0].mxu0
      %v6860 = vpop.f32.mrb[0].mxu0
      %v6861 = vadd.f32 0.0, %v6860
      %v6862 = vpop.f32.mrb[0].mxu0
      %6863 = vmatprep.mubr.bf16.mxu0 0
      %6864 = vmatmul.mubr.bf16.gmra.mrb[0].mxu0 %v6645
      %v6865 = vpop.f32.mrb[0].mxu0
      %v6866 = vadd.f32 0.0, %v6865
      %v6867 = vpop.f32.mrb[0].mxu0
      %v6868 = vpop.f32.mrb[0].mxu0
      %v6869 = vadd.f32 0.0, %v6868
      %v6870 = vpop.f32.mrb[0].mxu0
      %6871 = vdwg.mxu0
      %v6872 = vadd.f32 %v6565, %v6746
      %v6873 = vadd.f32 %v6566, %v6749
      %v6874 = vadd.f32 %v6567, %v6754
      %v6875 = vadd.f32 %v6568, %v6757
      %v6876 = vadd.f32 %v6569, %v6762
      %v6877 = vadd.f32 %v6570, %v6765
      %v6878 = vadd.f32 %v6571, %v6770
      %v6879 = vadd.f32 %v6572, %v6773
      %v6880 = vadd.f32 %v6573, %v6778
      %v6881 = vadd.f32 %v6574, %v6781
      %v6882 = vadd.f32 %v6575, %v6786
      %v6883 = vadd.f32 %v6576, %v6789
      %v6884 = vadd.f32 %v6577, %v6794
      %v6885 = vadd.f32 %v6578, %v6797
      %v6886 = vadd.f32 %v6579, %v6802
      %v6887 = vadd.f32 %v6580, %v6805
      %v6888 = vadd.f32 %v6581, %v6810
      %v6889 = vadd.f32 %v6582, %v6813
      %v6890 = vadd.f32 %v6583, %v6818
      %v6891 = vadd.f32 %v6584, %v6821
      %v6892 = vadd.f32 %v6585, %v6826
      %v6893 = vadd.f32 %v6586, %v6829
      %v6894 = vadd.f32 %v6587, %v6834
      %v6895 = vadd.f32 %v6588, %v6837
      %v6896 = vadd.f32 %v6589, %v6842
      %v6897 = vadd.f32 %v6590, %v6845
      %v6898 = vadd.f32 %v6591, %v6850
      %v6899 = vadd.f32 %v6592, %v6853
      %v6900 = vadd.f32 %v6593, %v6858
      %v6901 = vadd.f32 %v6594, %v6861
      %v6902 = vadd.f32 %v6595, %v6866
      %v6903 = vadd.f32 %v6596, %v6869
      %v6904 = vld [vmem:[%s6597 + $0x1] sm:$0xff]
      %v6905 = vld [vmem:[%s6597 + $0x11] sm:$0xff]
      %v6906 = vld [vmem:[%s6597 + $0x21] sm:$0xff]
      %v6907 = vld [vmem:[%s6597 + $0x31] sm:$0xff]
      %v6908 = vld [vmem:[%s6597 + $0x41] sm:$0xff]
      %v6909 = vld [vmem:[%s6597 + $0x51] sm:$0xff]
      %v6910 = vld [vmem:[%s6597 + $0x61] sm:$0xff]
      %v6911 = vld [vmem:[%s6597 + $0x71] sm:$0xff]
      %v6912 = vld [vmem:[%s6597 + $0xa1] sm:$0xff]
      %v6913 = vld [vmem:[%s6597 + $0xb1] sm:$0xff]
      %v6914 = vld [vmem:[%s6597 + $0xc1] sm:$0xff]
      %v6915 = vld [vmem:[%s6597 + $0xd1] sm:$0xff]
      %v6916 = vld [vmem:[%s6597 + $0xe1] sm:$0xff]
      %v6917 = vld [vmem:[%s6597 + $0xf1] sm:$0xff]
      %v6918 = vld [vmem:[%s6597 + $0x101] sm:$0xff]
      %v6919 = vld [vmem:[%s6597 + $0x111] sm:$0xff]
      %v6920 = vld [vmem:[%s6597 + $0x141] sm:$0xff]
      %v6921 = vld [vmem:[%s6597 + $0x151] sm:$0xff]
      %v6922 = vld [vmem:[%s6597 + $0x161] sm:$0xff]
      %v6923 = vld [vmem:[%s6597 + $0x171] sm:$0xff]
      %v6924 = vld [vmem:[%s6597 + $0x181] sm:$0xff]
      %v6925 = vld [vmem:[%s6597 + $0x191] sm:$0xff]
      %v6926 = vld [vmem:[%s6597 + $0x1a1] sm:$0xff]
      %v6927 = vld [vmem:[%s6597 + $0x1b1] sm:$0xff]
      %v6928 = vld [vmem:[%s6597 + $0x1e1] sm:$0xff]
      %v6929 = vld [vmem:[%s6597 + $0x1f1] sm:$0xff]
      %v6930 = vld [vmem:[%s6597 + $0x201] sm:$0xff]
      %v6931 = vld [vmem:[%s6597 + $0x211] sm:$0xff]
      %v6932 = vld [vmem:[%s6597 + $0x221] sm:$0xff]
      %v6933 = vld [vmem:[%s6597 + $0x231] sm:$0xff]
      %v6934 = vld [vmem:[%s6597 + $0x241] sm:$0xff]
      %v6935 = vld [vmem:[%s6597 + $0x251] sm:$0xff]
      %v6936 = vpack.c.bf16 %v6905, %v6904
      %v6937 = vpack.c.bf16 %v6907, %v6906
      %v6938 = vpack.c.bf16 %v6909, %v6908
      %v6939 = vpack.c.bf16 %v6911, %v6910
      %v6940 = vpack.c.bf16 %v6913, %v6912
      %v6941 = vpack.c.bf16 %v6915, %v6914
      %v6942 = vpack.c.bf16 %v6917, %v6916
      %v6943 = vpack.c.bf16 %v6919, %v6918
      %v6944 = vpack.c.bf16 %v6921, %v6920
      %v6945 = vpack.c.bf16 %v6923, %v6922
      %v6946 = vpack.c.bf16 %v6925, %v6924
      %v6947 = vpack.c.bf16 %v6927, %v6926
      %v6948 = vpack.c.bf16 %v6929, %v6928
      %v6949 = vpack.c.bf16 %v6931, %v6930
      %v6950 = vpack.c.bf16 %v6933, %v6932
      %v6951 = vpack.c.bf16 %v6935, %v6934
      %s6952 = scalar_lea.vmem %s1, 1408
      %v6953 = vld [vmem:[%s6952] sm:$0xf]
      %v6954 = vld [vmem:[%s6952 + $0x4] sm:$0xf]
      %v6955 = vld [vmem:[%s6952 + $0x8] sm:$0xf]
      %v6956 = vld [vmem:[%s6952 + $0xc] sm:$0xf]
      %v6957 = vld [vmem:[%s6952 + $0x10] sm:$0xf]
      %v6958 = vld [vmem:[%s6952 + $0x14] sm:$0xf]
      %v6959 = vld [vmem:[%s6952 + $0x18] sm:$0xf]
      %v6960 = vld [vmem:[%s6952 + $0x1c] sm:$0xf]
      %v6961 = vld [vmem:[%s6952 + $0x20] sm:$0xf]
      %v6962 = vld [vmem:[%s6952 + $0x24] sm:$0xf]
      %v6963 = vld [vmem:[%s6952 + $0x28] sm:$0xf]
      %v6964 = vld [vmem:[%s6952 + $0x2c] sm:$0xf]
      %v6965 = vld [vmem:[%s6952 + $0x30] sm:$0xf]
      %v6966 = vld [vmem:[%s6952 + $0x34] sm:$0xf]
      %v6967 = vld [vmem:[%s6952 + $0x38] sm:$0xf]
      %v6968 = vld [vmem:[%s6952 + $0x3c] sm:$0xf]
      %v6985 = vunpack.c.l.b16 %v6953
      %v6986 = vunpack.c.l.b16 %v6954
      %v6987 = vunpack.c.l.b16 %v6955
      %v6988 = vunpack.c.l.b16 %v6956
      %v6989 = vunpack.c.l.b16 %v6957
      %v6990 = vunpack.c.l.b16 %v6958
      %v6991 = vunpack.c.l.b16 %v6959
      %v6992 = vunpack.c.l.b16 %v6960
      %v6993 = vunpack.c.l.b16 %v6961
      %v6994 = vunpack.c.l.b16 %v6962
      %v6995 = vunpack.c.l.b16 %v6963
      %v6996 = vunpack.c.l.b16 %v6964
      %v6997 = vunpack.c.l.b16 %v6965
      %v6998 = vunpack.c.l.b16 %v6966
      %v6999 = vunpack.c.l.b16 %v6967
      %v7000 = vunpack.c.l.b16 %v6968
      %v7001 = vpack.c.b16 %v6986, %v6985
      %v7002 = vpack.c.b16 %v6988, %v6987
      %v7003 = vpack.c.b16 %v6990, %v6989
      %v7004 = vpack.c.b16 %v6992, %v6991
      %v7005 = vpack.c.b16 %v6994, %v6993
      %v7006 = vpack.c.b16 %v6996, %v6995
      %v7007 = vpack.c.b16 %v6998, %v6997
      %v7008 = vpack.c.b16 %v7000, %v6999
      %7017 = vmatprep.subr.bf16.mxu0 0
      %7018 = vmatpush1.bf16.msra.mxu0 %v7001
      %7019 = vmatprep.subr.bf16.mxu0 0
      %7020 = vmatpush1.bf16.msra.mxu0 %v7002
      %7021 = vmatprep.subr.bf16.mxu0 0
      %7022 = vmatpush1.bf16.msra.mxu0 %v7003
      %7023 = vmatprep.subr.bf16.mxu0 0
      %7024 = vmatpush1.bf16.msra.mxu0 %v7004
      %7025 = vmatprep.subr.bf16.mxu0 0
      %7026 = vmatpush1.bf16.msra.mxu0 %v7005
      %7027 = vmatprep.subr.bf16.mxu0 0
      %7028 = vmatpush1.bf16.msra.mxu0 %v7006
      %7029 = vmatprep.subr.bf16.mxu0 0
      %7030 = vmatpush1.bf16.msra.mxu0 %v7007
      %7031 = vmatprep.subr.bf16.mxu0 0
      %7032 = vmatpush1.bf16.msra.mxu0 %v7008
      %7033 = vmatprep.subr.bf16.mxu0 0
      %7034 = vmatpush1.bf16.msra.mxu0 0
      %7035 = vmatprep.subr.bf16.mxu0 0
      %7036 = vmatpush1.bf16.msra.mxu0 0
      %7037 = vmatprep.subr.bf16.mxu0 0
      %7038 = vmatpush1.bf16.msra.mxu0 0
      %7039 = vmatprep.subr.bf16.mxu0 0
      %7040 = vmatpush1.bf16.msra.mxu0 0
      %7041 = vmatprep.subr.bf16.mxu0 0
      %7042 = vmatpush1.bf16.msra.mxu0 0
      %7043 = vmatprep.subr.bf16.mxu0 0
      %7044 = vmatpush1.bf16.msra.mxu0 0
      %7045 = vmatprep.subr.bf16.mxu0 0
      %7046 = vmatpush1.bf16.msra.mxu0 0
      %7047 = vmatprep.subr.bf16.mxu0 0
      %7048 = vmatpush1.bf16.msra.mxu0 0
      %7049 = vmatprep.mubr.bf16.mxu0 0
      %7050 = vmatmul.mubr.bf16.gmra.mrb[0].mxu0 %v6936
      %v7051 = vpop.f32.mrb[0].mxu0
      %v7052 = vadd.f32 0.0, %v7051
      %v7053 = vpop.f32.mrb[0].mxu0
      %v7054 = vpop.f32.mrb[0].mxu0
      %v7055 = vadd.f32 0.0, %v7054
      %v7056 = vpop.f32.mrb[0].mxu0
      %7057 = vmatprep.mubr.bf16.mxu0 0
      %7058 = vmatmul.mubr.bf16.gmra.mrb[0].mxu0 %v6937
      %v7059 = vpop.f32.mrb[0].mxu0
      %v7060 = vadd.f32 0.0, %v7059
      %v7061 = vpop.f32.mrb[0].mxu0
      %v7062 = vpop.f32.mrb[0].mxu0
      %v7063 = vadd.f32 0.0, %v7062
      %v7064 = vpop.f32.mrb[0].mxu0
      %7065 = vmatprep.mubr.bf16.mxu0 0
      %7066 = vmatmul.mubr.bf16.gmra.mrb[0].mxu0 %v6938
      %v7067 = vpop.f32.mrb[0].mxu0
      %v7068 = vadd.f32 0.0, %v7067
      %v7069 = vpop.f32.mrb[0].mxu0
      %v7070 = vpop.f32.mrb[0].mxu0
      %v7071 = vadd.f32 0.0, %v7070
      %v7072 = vpop.f32.mrb[0].mxu0
      %7073 = vmatprep.mubr.bf16.mxu0 0
      %7074 = vmatmul.mubr.bf16.gmra.mrb[0].mxu0 %v6939
      %v7075 = vpop.f32.mrb[0].mxu0
      %v7076 = vadd.f32 0.0, %v7075
      %v7077 = vpop.f32.mrb[0].mxu0
      %v7078 = vpop.f32.mrb[0].mxu0
      %v7079 = vadd.f32 0.0, %v7078
      %v7080 = vpop.f32.mrb[0].mxu0
      %7081 = vmatprep.mubr.bf16.mxu0 0
      %7082 = vmatmul.mubr.bf16.gmra.mrb[0].mxu0 %v6940
      %v7083 = vpop.f32.mrb[0].mxu0
      %v7084 = vadd.f32 0.0, %v7083
      %v7085 = vpop.f32.mrb[0].mxu0
      %v7086 = vpop.f32.mrb[0].mxu0
      %v7087 = vadd.f32 0.0, %v7086
      %v7088 = vpop.f32.mrb[0].mxu0
      %7089 = vmatprep.mubr.bf16.mxu0 0
      %7090 = vmatmul.mubr.bf16.gmra.mrb[0].mxu0 %v6941
      %v7091 = vpop.f32.mrb[0].mxu0
      %v7092 = vadd.f32 0.0, %v7091
      %v7093 = vpop.f32.mrb[0].mxu0
      %v7094 = vpop.f32.mrb[0].mxu0
      %v7095 = vadd.f32 0.0, %v7094
      %v7096 = vpop.f32.mrb[0].mxu0
      %7097 = vmatprep.mubr.bf16.mxu0 0
      %7098 = vmatmul.mubr.bf16.gmra.mrb[0].mxu0 %v6942
      %v7099 = vpop.f32.mrb[0].mxu0
      %v7100 = vadd.f32 0.0, %v7099
      %v7101 = vpop.f32.mrb[0].mxu0
      %v7102 = vpop.f32.mrb[0].mxu0
      %v7103 = vadd.f32 0.0, %v7102
      %v7104 = vpop.f32.mrb[0].mxu0
      %7105 = vmatprep.mubr.bf16.mxu0 0
      %7106 = vmatmul.mubr.bf16.gmra.mrb[0].mxu0 %v6943
      %v7107 = vpop.f32.mrb[0].mxu0
      %v7108 = vadd.f32 0.0, %v7107
      %v7109 = vpop.f32.mrb[0].mxu0
      %v7110 = vpop.f32.mrb[0].mxu0
      %v7111 = vadd.f32 0.0, %v7110
      %v7112 = vpop.f32.mrb[0].mxu0
      %7113 = vmatprep.mubr.bf16.mxu0 0
      %7114 = vmatmul.mubr.bf16.gmra.mrb[0].mxu0 %v6944
      %v7115 = vpop.f32.mrb[0].mxu0
      %v7116 = vadd.f32 0.0, %v7115
      %v7117 = vpop.f32.mrb[0].mxu0
      %v7118 = vpop.f32.mrb[0].mxu0
      %v7119 = vadd.f32 0.0, %v7118
      %v7120 = vpop.f32.mrb[0].mxu0
      %7121 = vmatprep.mubr.bf16.mxu0 0
      %7122 = vmatmul.mubr.bf16.gmra.mrb[0].mxu0 %v6945
      %v7123 = vpop.f32.mrb[0].mxu0
      %v7124 = vadd.f32 0.0, %v7123
      %v7125 = vpop.f32.mrb[0].mxu0
      %v7126 = vpop.f32.mrb[0].mxu0
      %v7127 = vadd.f32 0.0, %v7126
      %v7128 = vpop.f32.mrb[0].mxu0
      %7129 = vmatprep.mubr.bf16.mxu0 0
      %7130 = vmatmul.mubr.bf16.gmra.mrb[0].mxu0 %v6946
      %v7131 = vpop.f32.mrb[0].mxu0
      %v7132 = vadd.f32 0.0, %v7131
      %v7133 = vpop.f32.mrb[0].mxu0
      %v7134 = vpop.f32.mrb[0].mxu0
      %v7135 = vadd.f32 0.0, %v7134
      %v7136 = vpop.f32.mrb[0].mxu0
      %7137 = vmatprep.mubr.bf16.mxu0 0
      %7138 = vmatmul.mubr.bf16.gmra.mrb[0].mxu0 %v6947
      %v7139 = vpop.f32.mrb[0].mxu0
      %v7140 = vadd.f32 0.0, %v7139
      %v7141 = vpop.f32.mrb[0].mxu0
      %v7142 = vpop.f32.mrb[0].mxu0
      %v7143 = vadd.f32 0.0, %v7142
      %v7144 = vpop.f32.mrb[0].mxu0
      %7145 = vmatprep.mubr.bf16.mxu0 0
      %7146 = vmatmul.mubr.bf16.gmra.mrb[0].mxu0 %v6948
      %v7147 = vpop.f32.mrb[0].mxu0
      %v7148 = vadd.f32 0.0, %v7147
      %v7149 = vpop.f32.mrb[0].mxu0
      %v7150 = vpop.f32.mrb[0].mxu0
      %v7151 = vadd.f32 0.0, %v7150
      %v7152 = vpop.f32.mrb[0].mxu0
      %7153 = vmatprep.mubr.bf16.mxu0 0
      %7154 = vmatmul.mubr.bf16.gmra.mrb[0].mxu0 %v6949
      %v7155 = vpop.f32.mrb[0].mxu0
      %v7156 = vadd.f32 0.0, %v7155
      %v7157 = vpop.f32.mrb[0].mxu0
      %v7158 = vpop.f32.mrb[0].mxu0
      %v7159 = vadd.f32 0.0, %v7158
      %v7160 = vpop.f32.mrb[0].mxu0
      %7161 = vmatprep.mubr.bf16.mxu0 0
      %7162 = vmatmul.mubr.bf16.gmra.mrb[0].mxu0 %v6950
      %v7163 = vpop.f32.mrb[0].mxu0
      %v7164 = vadd.f32 0.0, %v7163
      %v7165 = vpop.f32.mrb[0].mxu0
      %v7166 = vpop.f32.mrb[0].mxu0
      %v7167 = vadd.f32 0.0, %v7166
      %v7168 = vpop.f32.mrb[0].mxu0
      %7169 = vmatprep.mubr.bf16.mxu0 0
      %7170 = vmatmul.mubr.bf16.gmra.mrb[0].mxu0 %v6951
      %v7171 = vpop.f32.mrb[0].mxu0
      %v7172 = vadd.f32 0.0, %v7171
      %v7173 = vpop.f32.mrb[0].mxu0
      %v7174 = vpop.f32.mrb[0].mxu0
      %v7175 = vadd.f32 0.0, %v7174
      %v7176 = vpop.f32.mrb[0].mxu0
      %7177 = vdwg.mxu0
      %v7178 = vadd.f32 %v6872, %v7052
      %v7179 = vadd.f32 %v6873, %v7055
      %v7180 = vadd.f32 %v6874, %v7060
      %v7181 = vadd.f32 %v6875, %v7063
      %v7182 = vadd.f32 %v6876, %v7068
      %v7183 = vadd.f32 %v6877, %v7071
      %v7184 = vadd.f32 %v6878, %v7076
      %v7185 = vadd.f32 %v6879, %v7079
      %v7186 = vadd.f32 %v6880, %v7084
      %v7187 = vadd.f32 %v6881, %v7087
      %v7188 = vadd.f32 %v6882, %v7092
      %v7189 = vadd.f32 %v6883, %v7095
      %v7190 = vadd.f32 %v6884, %v7100
      %v7191 = vadd.f32 %v6885, %v7103
      %v7192 = vadd.f32 %v6886, %v7108
      %v7193 = vadd.f32 %v6887, %v7111
      %v7194 = vadd.f32 %v6888, %v7116
      %v7195 = vadd.f32 %v6889, %v7119
      %v7196 = vadd.f32 %v6890, %v7124
      %v7197 = vadd.f32 %v6891, %v7127
      %v7198 = vadd.f32 %v6892, %v7132
      %v7199 = vadd.f32 %v6893, %v7135
      %v7200 = vadd.f32 %v6894, %v7140
      %v7201 = vadd.f32 %v6895, %v7143
      %v7202 = vadd.f32 %v6896, %v7148
      %v7203 = vadd.f32 %v6897, %v7151
      %v7204 = vadd.f32 %v6898, %v7156
      %v7205 = vadd.f32 %v6899, %v7159
      %v7206 = vadd.f32 %v6900, %v7164
      %v7207 = vadd.f32 %v6901, %v7167
      %v7208 = vadd.f32 %v6902, %v7172
      %v7209 = vadd.f32 %v6903, %v7175
      %v7210 = vld [vmem:[%s6597 + $0x2] sm:$0xff]
      %v7211 = vld [vmem:[%s6597 + $0x12] sm:$0xff]
      %v7212 = vld [vmem:[%s6597 + $0x22] sm:$0xff]
      %v7213 = vld [vmem:[%s6597 + $0x32] sm:$0xff]
      %v7214 = vld [vmem:[%s6597 + $0x42] sm:$0xff]
      %v7215 = vld [vmem:[%s6597 + $0x52] sm:$0xff]
      %v7216 = vld [vmem:[%s6597 + $0x62] sm:$0xff]
      %v7217 = vld [vmem:[%s6597 + $0x72] sm:$0xff]
      %v7218 = vld [vmem:[%s6597 + $0xa2] sm:$0xff]
      %v7219 = vld [vmem:[%s6597 + $0xb2] sm:$0xff]
      %v7220 = vld [vmem:[%s6597 + $0xc2] sm:$0xff]
      %v7221 = vld [vmem:[%s6597 + $0xd2] sm:$0xff]
      %v7222 = vld [vmem:[%s6597 + $0xe2] sm:$0xff]
      %v7223 = vld [vmem:[%s6597 + $0xf2] sm:$0xff]
      %v7224 = vld [vmem:[%s6597 + $0x102] sm:$0xff]
      %v7225 = vld [vmem:[%s6597 + $0x112] sm:$0xff]
      %v7226 = vld [vmem:[%s6597 + $0x142] sm:$0xff]
      %v7227 = vld [vmem:[%s6597 + $0x152] sm:$0xff]
      %v7228 = vld [vmem:[%s6597 + $0x162] sm:$0xff]
      %v7229 = vld [vmem:[%s6597 + $0x172] sm:$0xff]
      %v7230 = vld [vmem:[%s6597 + $0x182] sm:$0xff]
      %v7231 = vld [vmem:[%s6597 + $0x192] sm:$0xff]
      %v7232 = vld [vmem:[%s6597 + $0x1a2] sm:$0xff]
      %v7233 = vld [vmem:[%s6597 + $0x1b2] sm:$0xff]
      %v7234 = vld [vmem:[%s6597 + $0x1e2] sm:$0xff]
      %v7235 = vld [vmem:[%s6597 + $0x1f2] sm:$0xff]
      %v7236 = vld [vmem:[%s6597 + $0x202] sm:$0xff]
      %v7237 = vld [vmem:[%s6597 + $0x212] sm:$0xff]
      %v7238 = vld [vmem:[%s6597 + $0x222] sm:$0xff]
      %v7239 = vld [vmem:[%s6597 + $0x232] sm:$0xff]
      %v7240 = vld [vmem:[%s6597 + $0x242] sm:$0xff]
      %v7241 = vld [vmem:[%s6597 + $0x252] sm:$0xff]
      %v7242 = vpack.c.bf16 %v7211, %v7210
      %v7243 = vpack.c.bf16 %v7213, %v7212
      %v7244 = vpack.c.bf16 %v7215, %v7214
      %v7245 = vpack.c.bf16 %v7217, %v7216
      %v7246 = vpack.c.bf16 %v7219, %v7218
      %v7247 = vpack.c.bf16 %v7221, %v7220
      %v7248 = vpack.c.bf16 %v7223, %v7222
      %v7249 = vpack.c.bf16 %v7225, %v7224
      %v7250 = vpack.c.bf16 %v7227, %v7226
      %v7251 = vpack.c.bf16 %v7229, %v7228
      %v7252 = vpack.c.bf16 %v7231, %v7230
      %v7253 = vpack.c.bf16 %v7233, %v7232
      %v7254 = vpack.c.bf16 %v7235, %v7234
      %v7255 = vpack.c.bf16 %v7237, %v7236
      %v7256 = vpack.c.bf16 %v7239, %v7238
      %v7257 = vpack.c.bf16 %v7241, %v7240
      %s7258 = scalar_lea.vmem %s1, 1472
      %v7259 = vld [vmem:[%s7258] sm:$0xf]
      %v7260 = vld [vmem:[%s7258 + $0x4] sm:$0xf]
      %v7261 = vld [vmem:[%s7258 + $0x8] sm:$0xf]
      %v7262 = vld [vmem:[%s7258 + $0xc] sm:$0xf]
      %v7263 = vld [vmem:[%s7258 + $0x10] sm:$0xf]
      %v7264 = vld [vmem:[%s7258 + $0x14] sm:$0xf]
      %v7265 = vld [vmem:[%s7258 + $0x18] sm:$0xf]
      %v7266 = vld [vmem:[%s7258 + $0x1c] sm:$0xf]
      %v7267 = vld [vmem:[%s7258 + $0x20] sm:$0xf]
      %v7268 = vld [vmem:[%s7258 + $0x24] sm:$0xf]
      %v7269 = vld [vmem:[%s7258 + $0x28] sm:$0xf]
      %v7270 = vld [vmem:[%s7258 + $0x2c] sm:$0xf]
      %v7271 = vld [vmem:[%s7258 + $0x30] sm:$0xf]
      %v7272 = vld [vmem:[%s7258 + $0x34] sm:$0xf]
      %v7273 = vld [vmem:[%s7258 + $0x38] sm:$0xf]
      %v7274 = vld [vmem:[%s7258 + $0x3c] sm:$0xf]
      %v7291 = vunpack.c.l.b16 %v7259
      %v7292 = vunpack.c.l.b16 %v7260
      %v7293 = vunpack.c.l.b16 %v7261
      %v7294 = vunpack.c.l.b16 %v7262
      %v7295 = vunpack.c.l.b16 %v7263
      %v7296 = vunpack.c.l.b16 %v7264
      %v7297 = vunpack.c.l.b16 %v7265
      %v7298 = vunpack.c.l.b16 %v7266
      %v7299 = vunpack.c.l.b16 %v7267
      %v7300 = vunpack.c.l.b16 %v7268
      %v7301 = vunpack.c.l.b16 %v7269
      %v7302 = vunpack.c.l.b16 %v7270
      %v7303 = vunpack.c.l.b16 %v7271
      %v7304 = vunpack.c.l.b16 %v7272
      %v7305 = vunpack.c.l.b16 %v7273
      %v7306 = vunpack.c.l.b16 %v7274
      %v7307 = vpack.c.b16 %v7292, %v7291
      %v7308 = vpack.c.b16 %v7294, %v7293
      %v7309 = vpack.c.b16 %v7296, %v7295
      %v7310 = vpack.c.b16 %v7298, %v7297
      %v7311 = vpack.c.b16 %v7300, %v7299
      %v7312 = vpack.c.b16 %v7302, %v7301
      %v7313 = vpack.c.b16 %v7304, %v7303
      %v7314 = vpack.c.b16 %v7306, %v7305
      %7323 = vmatprep.subr.bf16.mxu0 0
      %7324 = vmatpush1.bf16.msra.mxu0 %v7307
      %7325 = vmatprep.subr.bf16.mxu0 0
      %7326 = vmatpush1.bf16.msra.mxu0 %v7308
      %7327 = vmatprep.subr.bf16.mxu0 0
      %7328 = vmatpush1.bf16.msra.mxu0 %v7309
      %7329 = vmatprep.subr.bf16.mxu0 0
      %7330 = vmatpush1.bf16.msra.mxu0 %v7310
      %7331 = vmatprep.subr.bf16.mxu0 0
      %7332 = vmatpush1.bf16.msra.mxu0 %v7311
      %7333 = vmatprep.subr.bf16.mxu0 0
      %7334 = vmatpush1.bf16.msra.mxu0 %v7312
      %7335 = vmatprep.subr.bf16.mxu0 0
      %7336 = vmatpush1.bf16.msra.mxu0 %v7313
      %7337 = vmatprep.subr.bf16.mxu0 0
      %7338 = vmatpush1.bf16.msra.mxu0 %v7314
      %7339 = vmatprep.subr.bf16.mxu0 0
      %7340 = vmatpush1.bf16.msra.mxu0 0
      %7341 = vmatprep.subr.bf16.mxu0 0
      %7342 = vmatpush1.bf16.msra.mxu0 0
      %7343 = vmatprep.subr.bf16.mxu0 0
      %7344 = vmatpush1.bf16.msra.mxu0 0
      %7345 = vmatprep.subr.bf16.mxu0 0
      %7346 = vmatpush1.bf16.msra.mxu0 0
      %7347 = vmatprep.subr.bf16.mxu0 0
      %7348 = vmatpush1.bf16.msra.mxu0 0
      %7349 = vmatprep.subr.bf16.mxu0 0
      %7350 = vmatpush1.bf16.msra.mxu0 0
      %7351 = vmatprep.subr.bf16.mxu0 0
      %7352 = vmatpush1.bf16.msra.mxu0 0
      %7353 = vmatprep.subr.bf16.mxu0 0
      %7354 = vmatpush1.bf16.msra.mxu0 0
      %7355 = vmatprep.mubr.bf16.mxu0 0
      %7356 = vmatmul.mubr.bf16.gmra.mrb[0].mxu0 %v7242
      %v7357 = vpop.f32.mrb[0].mxu0
      %v7358 = vadd.f32 0.0, %v7357
      %v7359 = vpop.f32.mrb[0].mxu0
      %v7360 = vpop.f32.mrb[0].mxu0
      %v7361 = vadd.f32 0.0, %v7360
      %v7362 = vpop.f32.mrb[0].mxu0
      %7363 = vmatprep.mubr.bf16.mxu0 0
      %7364 = vmatmul.mubr.bf16.gmra.mrb[0].mxu0 %v7243
      %v7365 = vpop.f32.mrb[0].mxu0
      %v7366 = vadd.f32 0.0, %v7365
      %v7367 = vpop.f32.mrb[0].mxu0
      %v7368 = vpop.f32.mrb[0].mxu0
      %v7369 = vadd.f32 0.0, %v7368
      %v7370 = vpop.f32.mrb[0].mxu0
      %7371 = vmatprep.mubr.bf16.mxu0 0
      %7372 = vmatmul.mubr.bf16.gmra.mrb[0].mxu0 %v7244
      %v7373 = vpop.f32.mrb[0].mxu0
      %v7374 = vadd.f32 0.0, %v7373
      %v7375 = vpop.f32.mrb[0].mxu0
      %v7376 = vpop.f32.mrb[0].mxu0
      %v7377 = vadd.f32 0.0, %v7376
      %v7378 = vpop.f32.mrb[0].mxu0
      %7379 = vmatprep.mubr.bf16.mxu0 0
      %7380 = vmatmul.mubr.bf16.gmra.mrb[0].mxu0 %v7245
      %v7381 = vpop.f32.mrb[0].mxu0
      %v7382 = vadd.f32 0.0, %v7381
      %v7383 = vpop.f32.mrb[0].mxu0
      %v7384 = vpop.f32.mrb[0].mxu0
      %v7385 = vadd.f32 0.0, %v7384
      %v7386 = vpop.f32.mrb[0].mxu0
      %7387 = vmatprep.mubr.bf16.mxu0 0
      %7388 = vmatmul.mubr.bf16.gmra.mrb[0].mxu0 %v7246
      %v7389 = vpop.f32.mrb[0].mxu0
      %v7390 = vadd.f32 0.0, %v7389
      %v7391 = vpop.f32.mrb[0].mxu0
      %v7392 = vpop.f32.mrb[0].mxu0
      %v7393 = vadd.f32 0.0, %v7392
      %v7394 = vpop.f32.mrb[0].mxu0
      %7395 = vmatprep.mubr.bf16.mxu0 0
      %7396 = vmatmul.mubr.bf16.gmra.mrb[0].mxu0 %v7247
      %v7397 = vpop.f32.mrb[0].mxu0
      %v7398 = vadd.f32 0.0, %v7397
      %v7399 = vpop.f32.mrb[0].mxu0
      %v7400 = vpop.f32.mrb[0].mxu0
      %v7401 = vadd.f32 0.0, %v7400
      %v7402 = vpop.f32.mrb[0].mxu0
      %7403 = vmatprep.mubr.bf16.mxu0 0
      %7404 = vmatmul.mubr.bf16.gmra.mrb[0].mxu0 %v7248
      %v7405 = vpop.f32.mrb[0].mxu0
      %v7406 = vadd.f32 0.0, %v7405
      %v7407 = vpop.f32.mrb[0].mxu0
      %v7408 = vpop.f32.mrb[0].mxu0
      %v7409 = vadd.f32 0.0, %v7408
      %v7410 = vpop.f32.mrb[0].mxu0
      %7411 = vmatprep.mubr.bf16.mxu0 0
      %7412 = vmatmul.mubr.bf16.gmra.mrb[0].mxu0 %v7249
      %v7413 = vpop.f32.mrb[0].mxu0
      %v7414 = vadd.f32 0.0, %v7413
      %v7415 = vpop.f32.mrb[0].mxu0
      %v7416 = vpop.f32.mrb[0].mxu0
      %v7417 = vadd.f32 0.0, %v7416
      %v7418 = vpop.f32.mrb[0].mxu0
      %7419 = vmatprep.mubr.bf16.mxu0 0
      %7420 = vmatmul.mubr.bf16.gmra.mrb[0].mxu0 %v7250
      %v7421 = vpop.f32.mrb[0].mxu0
      %v7422 = vadd.f32 0.0, %v7421
      %v7423 = vpop.f32.mrb[0].mxu0
      %v7424 = vpop.f32.mrb[0].mxu0
      %v7425 = vadd.f32 0.0, %v7424
      %v7426 = vpop.f32.mrb[0].mxu0
      %7427 = vmatprep.mubr.bf16.mxu0 0
      %7428 = vmatmul.mubr.bf16.gmra.mrb[0].mxu0 %v7251
      %v7429 = vpop.f32.mrb[0].mxu0
      %v7430 = vadd.f32 0.0, %v7429
      %v7431 = vpop.f32.mrb[0].mxu0
      %v7432 = vpop.f32.mrb[0].mxu0
      %v7433 = vadd.f32 0.0, %v7432
      %v7434 = vpop.f32.mrb[0].mxu0
      %7435 = vmatprep.mubr.bf16.mxu0 0
      %7436 = vmatmul.mubr.bf16.gmra.mrb[0].mxu0 %v7252
      %v7437 = vpop.f32.mrb[0].mxu0
      %v7438 = vadd.f32 0.0, %v7437
      %v7439 = vpop.f32.mrb[0].mxu0
      %v7440 = vpop.f32.mrb[0].mxu0
      %v7441 = vadd.f32 0.0, %v7440
      %v7442 = vpop.f32.mrb[0].mxu0
      %7443 = vmatprep.mubr.bf16.mxu0 0
      %7444 = vmatmul.mubr.bf16.gmra.mrb[0].mxu0 %v7253
      %v7445 = vpop.f32.mrb[0].mxu0
      %v7446 = vadd.f32 0.0, %v7445
      %v7447 = vpop.f32.mrb[0].mxu0
      %v7448 = vpop.f32.mrb[0].mxu0
      %v7449 = vadd.f32 0.0, %v7448
      %v7450 = vpop.f32.mrb[0].mxu0
      %7451 = vmatprep.mubr.bf16.mxu0 0
      %7452 = vmatmul.mubr.bf16.gmra.mrb[0].mxu0 %v7254
      %v7453 = vpop.f32.mrb[0].mxu0
      %v7454 = vadd.f32 0.0, %v7453
      %v7455 = vpop.f32.mrb[0].mxu0
      %v7456 = vpop.f32.mrb[0].mxu0
      %v7457 = vadd.f32 0.0, %v7456
      %v7458 = vpop.f32.mrb[0].mxu0
      %7459 = vmatprep.mubr.bf16.mxu0 0
      %7460 = vmatmul.mubr.bf16.gmra.mrb[0].mxu0 %v7255
      %v7461 = vpop.f32.mrb[0].mxu0
      %v7462 = vadd.f32 0.0, %v7461
      %v7463 = vpop.f32.mrb[0].mxu0
      %v7464 = vpop.f32.mrb[0].mxu0
      %v7465 = vadd.f32 0.0, %v7464
      %v7466 = vpop.f32.mrb[0].mxu0
      %7467 = vmatprep.mubr.bf16.mxu0 0
      %7468 = vmatmul.mubr.bf16.gmra.mrb[0].mxu0 %v7256
      %v7469 = vpop.f32.mrb[0].mxu0
      %v7470 = vadd.f32 0.0, %v7469
      %v7471 = vpop.f32.mrb[0].mxu0
      %v7472 = vpop.f32.mrb[0].mxu0
      %v7473 = vadd.f32 0.0, %v7472
      %v7474 = vpop.f32.mrb[0].mxu0
      %7475 = vmatprep.mubr.bf16.mxu0 0
      %7476 = vmatmul.mubr.bf16.gmra.mrb[0].mxu0 %v7257
      %v7477 = vpop.f32.mrb[0].mxu0
      %v7478 = vadd.f32 0.0, %v7477
      %v7479 = vpop.f32.mrb[0].mxu0
      %v7480 = vpop.f32.mrb[0].mxu0
      %v7481 = vadd.f32 0.0, %v7480
      %v7482 = vpop.f32.mrb[0].mxu0
      %7483 = vdwg.mxu0
      %v7484 = vadd.f32 %v7178, %v7358
      %v7485 = vadd.f32 %v7179, %v7361
      %v7486 = vadd.f32 %v7180, %v7366
      %v7487 = vadd.f32 %v7181, %v7369
      %v7488 = vadd.f32 %v7182, %v7374
      %v7489 = vadd.f32 %v7183, %v7377
      %v7490 = vadd.f32 %v7184, %v7382
      %v7491 = vadd.f32 %v7185, %v7385
      %v7492 = vadd.f32 %v7186, %v7390
      %v7493 = vadd.f32 %v7187, %v7393
      %v7494 = vadd.f32 %v7188, %v7398
      %v7495 = vadd.f32 %v7189, %v7401
      %v7496 = vadd.f32 %v7190, %v7406
      %v7497 = vadd.f32 %v7191, %v7409
      %v7498 = vadd.f32 %v7192, %v7414
      %v7499 = vadd.f32 %v7193, %v7417
      %v7500 = vadd.f32 %v7194, %v7422
      %v7501 = vadd.f32 %v7195, %v7425
      %v7502 = vadd.f32 %v7196, %v7430
      %v7503 = vadd.f32 %v7197, %v7433
      %v7504 = vadd.f32 %v7198, %v7438
      %v7505 = vadd.f32 %v7199, %v7441
      %v7506 = vadd.f32 %v7200, %v7446
      %v7507 = vadd.f32 %v7201, %v7449
      %v7508 = vadd.f32 %v7202, %v7454
      %v7509 = vadd.f32 %v7203, %v7457
      %v7510 = vadd.f32 %v7204, %v7462
      %v7511 = vadd.f32 %v7205, %v7465
      %v7512 = vadd.f32 %v7206, %v7470
      %v7513 = vadd.f32 %v7207, %v7473
      %v7514 = vadd.f32 %v7208, %v7478
      %v7515 = vadd.f32 %v7209, %v7481
      %s7516 = scalar_lea.vmem %s210, 352
      %v7517 = vld [vmem:[%s7516] sm:$0xff]
      %v7518 = vld [vmem:[%s7516 + $0x10] sm:$0xff]
      %v7519 = vld [vmem:[%s7516 + $0x20] sm:$0xff]
      %v7520 = vld [vmem:[%s7516 + $0x30] sm:$0xff]
      %v7521 = vld [vmem:[%s7516 + $0x40] sm:$0xff]
      %v7522 = vld [vmem:[%s7516 + $0x50] sm:$0xff]
      %v7523 = vld [vmem:[%s7516 + $0x60] sm:$0xff]
      %v7524 = vld [vmem:[%s7516 + $0x70] sm:$0xff]
      %v7525 = vld [vmem:[%s7516 + $0xa0] sm:$0xff]
      %v7526 = vld [vmem:[%s7516 + $0xb0] sm:$0xff]
      %v7527 = vld [vmem:[%s7516 + $0xc0] sm:$0xff]
      %v7528 = vld [vmem:[%s7516 + $0xd0] sm:$0xff]
      %v7529 = vld [vmem:[%s7516 + $0xe0] sm:$0xff]
      %v7530 = vld [vmem:[%s7516 + $0xf0] sm:$0xff]
      %v7531 = vld [vmem:[%s7516 + $0x100] sm:$0xff]
      %v7532 = vld [vmem:[%s7516 + $0x110] sm:$0xff]
      %v7533 = vld [vmem:[%s7516 + $0x140] sm:$0xff]
      %v7534 = vld [vmem:[%s7516 + $0x150] sm:$0xff]
      %v7535 = vld [vmem:[%s7516 + $0x160] sm:$0xff]
      %v7536 = vld [vmem:[%s7516 + $0x170] sm:$0xff]
      %v7537 = vld [vmem:[%s7516 + $0x180] sm:$0xff]
      %v7538 = vld [vmem:[%s7516 + $0x190] sm:$0xff]
      %v7539 = vld [vmem:[%s7516 + $0x1a0] sm:$0xff]
      %v7540 = vld [vmem:[%s7516 + $0x1b0] sm:$0xff]
      %v7541 = vld [vmem:[%s7516 + $0x1e0] sm:$0xff]
      %v7542 = vld [vmem:[%s7516 + $0x1f0] sm:$0xff]
      %v7543 = vld [vmem:[%s7516 + $0x200] sm:$0xff]
      %v7544 = vld [vmem:[%s7516 + $0x210] sm:$0xff]
      %v7545 = vld [vmem:[%s7516 + $0x220] sm:$0xff]
      %v7546 = vld [vmem:[%s7516 + $0x230] sm:$0xff]
      %v7547 = vld [vmem:[%s7516 + $0x240] sm:$0xff]
      %v7548 = vld [vmem:[%s7516 + $0x250] sm:$0xff]
      %v7549 = vpack.c.bf16 %v7518, %v7517
      %v7550 = vpack.c.bf16 %v7520, %v7519
      %v7551 = vpack.c.bf16 %v7522, %v7521
      %v7552 = vpack.c.bf16 %v7524, %v7523
      %v7553 = vpack.c.bf16 %v7526, %v7525
      %v7554 = vpack.c.bf16 %v7528, %v7527
      %v7555 = vpack.c.bf16 %v7530, %v7529
      %v7556 = vpack.c.bf16 %v7532, %v7531
      %v7557 = vpack.c.bf16 %v7534, %v7533
      %v7558 = vpack.c.bf16 %v7536, %v7535
      %v7559 = vpack.c.bf16 %v7538, %v7537
      %v7560 = vpack.c.bf16 %v7540, %v7539
      %v7561 = vpack.c.bf16 %v7542, %v7541
      %v7562 = vpack.c.bf16 %v7544, %v7543
      %v7563 = vpack.c.bf16 %v7546, %v7545
      %v7564 = vpack.c.bf16 %v7548, %v7547
      %s7565 = scalar_lea.vmem %s1, 1536
      %v7566 = vld [vmem:[%s7565] sm:$0xf]
      %v7567 = vld [vmem:[%s7565 + $0x4] sm:$0xf]
      %v7568 = vld [vmem:[%s7565 + $0x8] sm:$0xf]
      %v7569 = vld [vmem:[%s7565 + $0xc] sm:$0xf]
      %v7570 = vld [vmem:[%s7565 + $0x10] sm:$0xf]
      %v7571 = vld [vmem:[%s7565 + $0x14] sm:$0xf]
      %v7572 = vld [vmem:[%s7565 + $0x18] sm:$0xf]
      %v7573 = vld [vmem:[%s7565 + $0x1c] sm:$0xf]
      %v7574 = vld [vmem:[%s7565 + $0x20] sm:$0xf]
      %v7575 = vld [vmem:[%s7565 + $0x24] sm:$0xf]
      %v7576 = vld [vmem:[%s7565 + $0x28] sm:$0xf]
      %v7577 = vld [vmem:[%s7565 + $0x2c] sm:$0xf]
      %v7578 = vld [vmem:[%s7565 + $0x30] sm:$0xf]
      %v7579 = vld [vmem:[%s7565 + $0x34] sm:$0xf]
      %v7580 = vld [vmem:[%s7565 + $0x38] sm:$0xf]
      %v7581 = vld [vmem:[%s7565 + $0x3c] sm:$0xf]
      %v7598 = vunpack.c.l.b16 %v7566
      %v7599 = vunpack.c.l.b16 %v7567
      %v7600 = vunpack.c.l.b16 %v7568
      %v7601 = vunpack.c.l.b16 %v7569
      %v7602 = vunpack.c.l.b16 %v7570
      %v7603 = vunpack.c.l.b16 %v7571
      %v7604 = vunpack.c.l.b16 %v7572
      %v7605 = vunpack.c.l.b16 %v7573
      %v7606 = vunpack.c.l.b16 %v7574
      %v7607 = vunpack.c.l.b16 %v7575
      %v7608 = vunpack.c.l.b16 %v7576
      %v7609 = vunpack.c.l.b16 %v7577
      %v7610 = vunpack.c.l.b16 %v7578
      %v7611 = vunpack.c.l.b16 %v7579
      %v7612 = vunpack.c.l.b16 %v7580
      %v7613 = vunpack.c.l.b16 %v7581
      %v7614 = vpack.c.b16 %v7599, %v7598
      %v7615 = vpack.c.b16 %v7601, %v7600
      %v7616 = vpack.c.b16 %v7603, %v7602
      %v7617 = vpack.c.b16 %v7605, %v7604
      %v7618 = vpack.c.b16 %v7607, %v7606
      %v7619 = vpack.c.b16 %v7609, %v7608
      %v7620 = vpack.c.b16 %v7611, %v7610
      %v7621 = vpack.c.b16 %v7613, %v7612
      %7630 = vmatprep.subr.bf16.mxu0 0
      %7631 = vmatpush1.bf16.msra.mxu0 %v7614
      %7632 = vmatprep.subr.bf16.mxu0 0
      %7633 = vmatpush1.bf16.msra.mxu0 %v7615
      %7634 = vmatprep.subr.bf16.mxu0 0
      %7635 = vmatpush1.bf16.msra.mxu0 %v7616
      %7636 = vmatprep.subr.bf16.mxu0 0
      %7637 = vmatpush1.bf16.msra.mxu0 %v7617
      %7638 = vmatprep.subr.bf16.mxu0 0
      %7639 = vmatpush1.bf16.msra.mxu0 %v7618
      %7640 = vmatprep.subr.bf16.mxu0 0
      %7641 = vmatpush1.bf16.msra.mxu0 %v7619
      %7642 = vmatprep.subr.bf16.mxu0 0
      %7643 = vmatpush1.bf16.msra.mxu0 %v7620
      %7644 = vmatprep.subr.bf16.mxu0 0
      %7645 = vmatpush1.bf16.msra.mxu0 %v7621
      %7646 = vmatprep.subr.bf16.mxu0 0
      %7647 = vmatpush1.bf16.msra.mxu0 0
      %7648 = vmatprep.subr.bf16.mxu0 0
      %7649 = vmatpush1.bf16.msra.mxu0 0
      %7650 = vmatprep.subr.bf16.mxu0 0
      %7651 = vmatpush1.bf16.msra.mxu0 0
      %7652 = vmatprep.subr.bf16.mxu0 0
      %7653 = vmatpush1.bf16.msra.mxu0 0
      %7654 = vmatprep.subr.bf16.mxu0 0
      %7655 = vmatpush1.bf16.msra.mxu0 0
      %7656 = vmatprep.subr.bf16.mxu0 0
      %7657 = vmatpush1.bf16.msra.mxu0 0
      %7658 = vmatprep.subr.bf16.mxu0 0
      %7659 = vmatpush1.bf16.msra.mxu0 0
      %7660 = vmatprep.subr.bf16.mxu0 0
      %7661 = vmatpush1.bf16.msra.mxu0 0
      %7662 = vmatprep.mubr.bf16.mxu0 0
      %7663 = vmatmul.mubr.bf16.gmra.mrb[0].mxu0 %v7549
      %v7664 = vpop.f32.mrb[0].mxu0
      %v7665 = vadd.f32 0.0, %v7664
      %v7666 = vpop.f32.mrb[0].mxu0
      %v7667 = vpop.f32.mrb[0].mxu0
      %v7668 = vadd.f32 0.0, %v7667
      %v7669 = vpop.f32.mrb[0].mxu0
      %7670 = vmatprep.mubr.bf16.mxu0 0
      %7671 = vmatmul.mubr.bf16.gmra.mrb[0].mxu0 %v7550
      %v7672 = vpop.f32.mrb[0].mxu0
      %v7673 = vadd.f32 0.0, %v7672
      %v7674 = vpop.f32.mrb[0].mxu0
      %v7675 = vpop.f32.mrb[0].mxu0
      %v7676 = vadd.f32 0.0, %v7675
      %v7677 = vpop.f32.mrb[0].mxu0
      %7678 = vmatprep.mubr.bf16.mxu0 0
      %7679 = vmatmul.mubr.bf16.gmra.mrb[0].mxu0 %v7551
      %v7680 = vpop.f32.mrb[0].mxu0
      %v7681 = vadd.f32 0.0, %v7680
      %v7682 = vpop.f32.mrb[0].mxu0
      %v7683 = vpop.f32.mrb[0].mxu0
      %v7684 = vadd.f32 0.0, %v7683
      %v7685 = vpop.f32.mrb[0].mxu0
      %7686 = vmatprep.mubr.bf16.mxu0 0
      %7687 = vmatmul.mubr.bf16.gmra.mrb[0].mxu0 %v7552
      %v7688 = vpop.f32.mrb[0].mxu0
      %v7689 = vadd.f32 0.0, %v7688
      %v7690 = vpop.f32.mrb[0].mxu0
      %v7691 = vpop.f32.mrb[0].mxu0
      %v7692 = vadd.f32 0.0, %v7691
      %v7693 = vpop.f32.mrb[0].mxu0
      %7694 = vmatprep.mubr.bf16.mxu0 0
      %7695 = vmatmul.mubr.bf16.gmra.mrb[0].mxu0 %v7553
      %v7696 = vpop.f32.mrb[0].mxu0
      %v7697 = vadd.f32 0.0, %v7696
      %v7698 = vpop.f32.mrb[0].mxu0
      %v7699 = vpop.f32.mrb[0].mxu0
      %v7700 = vadd.f32 0.0, %v7699
      %v7701 = vpop.f32.mrb[0].mxu0
      %7702 = vmatprep.mubr.bf16.mxu0 0
      %7703 = vmatmul.mubr.bf16.gmra.mrb[0].mxu0 %v7554
      %v7704 = vpop.f32.mrb[0].mxu0
      %v7705 = vadd.f32 0.0, %v7704
      %v7706 = vpop.f32.mrb[0].mxu0
      %v7707 = vpop.f32.mrb[0].mxu0
      %v7708 = vadd.f32 0.0, %v7707
      %v7709 = vpop.f32.mrb[0].mxu0
      %7710 = vmatprep.mubr.bf16.mxu0 0
      %7711 = vmatmul.mubr.bf16.gmra.mrb[0].mxu0 %v7555
      %v7712 = vpop.f32.mrb[0].mxu0
      %v7713 = vadd.f32 0.0, %v7712
      %v7714 = vpop.f32.mrb[0].mxu0
      %v7715 = vpop.f32.mrb[0].mxu0
      %v7716 = vadd.f32 0.0, %v7715
      %v7717 = vpop.f32.mrb[0].mxu0
      %7718 = vmatprep.mubr.bf16.mxu0 0
      %7719 = vmatmul.mubr.bf16.gmra.mrb[0].mxu0 %v7556
      %v7720 = vpop.f32.mrb[0].mxu0
      %v7721 = vadd.f32 0.0, %v7720
      %v7722 = vpop.f32.mrb[0].mxu0
      %v7723 = vpop.f32.mrb[0].mxu0
      %v7724 = vadd.f32 0.0, %v7723
      %v7725 = vpop.f32.mrb[0].mxu0
      %7726 = vmatprep.mubr.bf16.mxu0 0
      %7727 = vmatmul.mubr.bf16.gmra.mrb[0].mxu0 %v7557
      %v7728 = vpop.f32.mrb[0].mxu0
      %v7729 = vadd.f32 0.0, %v7728
      %v7730 = vpop.f32.mrb[0].mxu0
      %v7731 = vpop.f32.mrb[0].mxu0
      %v7732 = vadd.f32 0.0, %v7731
      %v7733 = vpop.f32.mrb[0].mxu0
      %7734 = vmatprep.mubr.bf16.mxu0 0
      %7735 = vmatmul.mubr.bf16.gmra.mrb[0].mxu0 %v7558
      %v7736 = vpop.f32.mrb[0].mxu0
      %v7737 = vadd.f32 0.0, %v7736
      %v7738 = vpop.f32.mrb[0].mxu0
      %v7739 = vpop.f32.mrb[0].mxu0
      %v7740 = vadd.f32 0.0, %v7739
      %v7741 = vpop.f32.mrb[0].mxu0
      %7742 = vmatprep.mubr.bf16.mxu0 0
      %7743 = vmatmul.mubr.bf16.gmra.mrb[0].mxu0 %v7559
      %v7744 = vpop.f32.mrb[0].mxu0
      %v7745 = vadd.f32 0.0, %v7744
      %v7746 = vpop.f32.mrb[0].mxu0
      %v7747 = vpop.f32.mrb[0].mxu0
      %v7748 = vadd.f32 0.0, %v7747
      %v7749 = vpop.f32.mrb[0].mxu0
      %7750 = vmatprep.mubr.bf16.mxu0 0
      %7751 = vmatmul.mubr.bf16.gmra.mrb[0].mxu0 %v7560
      %v7752 = vpop.f32.mrb[0].mxu0
      %v7753 = vadd.f32 0.0, %v7752
      %v7754 = vpop.f32.mrb[0].mxu0
      %v7755 = vpop.f32.mrb[0].mxu0
      %v7756 = vadd.f32 0.0, %v7755
      %v7757 = vpop.f32.mrb[0].mxu0
      %7758 = vmatprep.mubr.bf16.mxu0 0
      %7759 = vmatmul.mubr.bf16.gmra.mrb[0].mxu0 %v7561
      %v7760 = vpop.f32.mrb[0].mxu0
      %v7761 = vadd.f32 0.0, %v7760
      %v7762 = vpop.f32.mrb[0].mxu0
      %v7763 = vpop.f32.mrb[0].mxu0
      %v7764 = vadd.f32 0.0, %v7763
      %v7765 = vpop.f32.mrb[0].mxu0
      %7766 = vmatprep.mubr.bf16.mxu0 0
      %7767 = vmatmul.mubr.bf16.gmra.mrb[0].mxu0 %v7562
      %v7768 = vpop.f32.mrb[0].mxu0
      %v7769 = vadd.f32 0.0, %v7768
      %v7770 = vpop.f32.mrb[0].mxu0
      %v7771 = vpop.f32.mrb[0].mxu0
      %v7772 = vadd.f32 0.0, %v7771
      %v7773 = vpop.f32.mrb[0].mxu0
      %7774 = vmatprep.mubr.bf16.mxu0 0
      %7775 = vmatmul.mubr.bf16.gmra.mrb[0].mxu0 %v7563
      %v7776 = vpop.f32.mrb[0].mxu0
      %v7777 = vadd.f32 0.0, %v7776
      %v7778 = vpop.f32.mrb[0].mxu0
      %v7779 = vpop.f32.mrb[0].mxu0
      %v7780 = vadd.f32 0.0, %v7779
      %v7781 = vpop.f32.mrb[0].mxu0
      %7782 = vmatprep.mubr.bf16.mxu0 0
      %7783 = vmatmul.mubr.bf16.gmra.mrb[0].mxu0 %v7564
      %v7784 = vpop.f32.mrb[0].mxu0
      %v7785 = vadd.f32 0.0, %v7784
      %v7786 = vpop.f32.mrb[0].mxu0
      %v7787 = vpop.f32.mrb[0].mxu0
      %v7788 = vadd.f32 0.0, %v7787
      %v7789 = vpop.f32.mrb[0].mxu0
      %7790 = vdwg.mxu0
      %v7791 = vadd.f32 %v7484, %v7665
      %v7792 = vadd.f32 %v7485, %v7668
      %v7793 = vadd.f32 %v7486, %v7673
      %v7794 = vadd.f32 %v7487, %v7676
      %v7795 = vadd.f32 %v7488, %v7681
      %v7796 = vadd.f32 %v7489, %v7684
      %v7797 = vadd.f32 %v7490, %v7689
      %v7798 = vadd.f32 %v7491, %v7692
      %v7799 = vadd.f32 %v7492, %v7697
      %v7800 = vadd.f32 %v7493, %v7700
      %v7801 = vadd.f32 %v7494, %v7705
      %v7802 = vadd.f32 %v7495, %v7708
      %v7803 = vadd.f32 %v7496, %v7713
      %v7804 = vadd.f32 %v7497, %v7716
      %v7805 = vadd.f32 %v7498, %v7721
      %v7806 = vadd.f32 %v7499, %v7724
      %v7807 = vadd.f32 %v7500, %v7729
      %v7808 = vadd.f32 %v7501, %v7732
      %v7809 = vadd.f32 %v7502, %v7737
      %v7810 = vadd.f32 %v7503, %v7740
      %v7811 = vadd.f32 %v7504, %v7745
      %v7812 = vadd.f32 %v7505, %v7748
      %v7813 = vadd.f32 %v7506, %v7753
      %v7814 = vadd.f32 %v7507, %v7756
      %v7815 = vadd.f32 %v7508, %v7761
      %v7816 = vadd.f32 %v7509, %v7764
      %v7817 = vadd.f32 %v7510, %v7769
      %v7818 = vadd.f32 %v7511, %v7772
      %v7819 = vadd.f32 %v7512, %v7777
      %v7820 = vadd.f32 %v7513, %v7780
      %v7821 = vadd.f32 %v7514, %v7785
      %v7822 = vadd.f32 %v7515, %v7788
      %v7823 = vld [vmem:[%s7516 + $0x1] sm:$0xff]
      %v7824 = vld [vmem:[%s7516 + $0x11] sm:$0xff]
      %v7825 = vld [vmem:[%s7516 + $0x21] sm:$0xff]
      %v7826 = vld [vmem:[%s7516 + $0x31] sm:$0xff]
      %v7827 = vld [vmem:[%s7516 + $0x41] sm:$0xff]
      %v7828 = vld [vmem:[%s7516 + $0x51] sm:$0xff]
      %v7829 = vld [vmem:[%s7516 + $0x61] sm:$0xff]
      %v7830 = vld [vmem:[%s7516 + $0x71] sm:$0xff]
      %v7831 = vld [vmem:[%s7516 + $0xa1] sm:$0xff]
      %v7832 = vld [vmem:[%s7516 + $0xb1] sm:$0xff]
      %v7833 = vld [vmem:[%s7516 + $0xc1] sm:$0xff]
      %v7834 = vld [vmem:[%s7516 + $0xd1] sm:$0xff]
      %v7835 = vld [vmem:[%s7516 + $0xe1] sm:$0xff]
      %v7836 = vld [vmem:[%s7516 + $0xf1] sm:$0xff]
      %v7837 = vld [vmem:[%s7516 + $0x101] sm:$0xff]
      %v7838 = vld [vmem:[%s7516 + $0x111] sm:$0xff]
      %v7839 = vld [vmem:[%s7516 + $0x141] sm:$0xff]
      %v7840 = vld [vmem:[%s7516 + $0x151] sm:$0xff]
      %v7841 = vld [vmem:[%s7516 + $0x161] sm:$0xff]
      %v7842 = vld [vmem:[%s7516 + $0x171] sm:$0xff]
      %v7843 = vld [vmem:[%s7516 + $0x181] sm:$0xff]
      %v7844 = vld [vmem:[%s7516 + $0x191] sm:$0xff]
      %v7845 = vld [vmem:[%s7516 + $0x1a1] sm:$0xff]
      %v7846 = vld [vmem:[%s7516 + $0x1b1] sm:$0xff]
      %v7847 = vld [vmem:[%s7516 + $0x1e1] sm:$0xff]
      %v7848 = vld [vmem:[%s7516 + $0x1f1] sm:$0xff]
      %v7849 = vld [vmem:[%s7516 + $0x201] sm:$0xff]
      %v7850 = vld [vmem:[%s7516 + $0x211] sm:$0xff]
      %v7851 = vld [vmem:[%s7516 + $0x221] sm:$0xff]
      %v7852 = vld [vmem:[%s7516 + $0x231] sm:$0xff]
      %v7853 = vld [vmem:[%s7516 + $0x241] sm:$0xff]
      %v7854 = vld [vmem:[%s7516 + $0x251] sm:$0xff]
      %v7855 = vpack.c.bf16 %v7824, %v7823
      %v7856 = vpack.c.bf16 %v7826, %v7825
      %v7857 = vpack.c.bf16 %v7828, %v7827
      %v7858 = vpack.c.bf16 %v7830, %v7829
      %v7859 = vpack.c.bf16 %v7832, %v7831
      %v7860 = vpack.c.bf16 %v7834, %v7833
      %v7861 = vpack.c.bf16 %v7836, %v7835
      %v7862 = vpack.c.bf16 %v7838, %v7837
      %v7863 = vpack.c.bf16 %v7840, %v7839
      %v7864 = vpack.c.bf16 %v7842, %v7841
      %v7865 = vpack.c.bf16 %v7844, %v7843
      %v7866 = vpack.c.bf16 %v7846, %v7845
      %v7867 = vpack.c.bf16 %v7848, %v7847
      %v7868 = vpack.c.bf16 %v7850, %v7849
      %v7869 = vpack.c.bf16 %v7852, %v7851
      %v7870 = vpack.c.bf16 %v7854, %v7853
      %s7871 = scalar_lea.vmem %s1, 1600
      %v7872 = vld [vmem:[%s7871] sm:$0xf]
      %v7873 = vld [vmem:[%s7871 + $0x4] sm:$0xf]
      %v7874 = vld [vmem:[%s7871 + $0x8] sm:$0xf]
      %v7875 = vld [vmem:[%s7871 + $0xc] sm:$0xf]
      %v7876 = vld [vmem:[%s7871 + $0x10] sm:$0xf]
      %v7877 = vld [vmem:[%s7871 + $0x14] sm:$0xf]
      %v7878 = vld [vmem:[%s7871 + $0x18] sm:$0xf]
      %v7879 = vld [vmem:[%s7871 + $0x1c] sm:$0xf]
      %v7880 = vld [vmem:[%s7871 + $0x20] sm:$0xf]
      %v7881 = vld [vmem:[%s7871 + $0x24] sm:$0xf]
      %v7882 = vld [vmem:[%s7871 + $0x28] sm:$0xf]
      %v7883 = vld [vmem:[%s7871 + $0x2c] sm:$0xf]
      %v7884 = vld [vmem:[%s7871 + $0x30] sm:$0xf]
      %v7885 = vld [vmem:[%s7871 + $0x34] sm:$0xf]
      %v7886 = vld [vmem:[%s7871 + $0x38] sm:$0xf]
      %v7887 = vld [vmem:[%s7871 + $0x3c] sm:$0xf]
      %v7904 = vunpack.c.l.b16 %v7872
      %v7905 = vunpack.c.l.b16 %v7873
      %v7906 = vunpack.c.l.b16 %v7874
      %v7907 = vunpack.c.l.b16 %v7875
      %v7908 = vunpack.c.l.b16 %v7876
      %v7909 = vunpack.c.l.b16 %v7877
      %v7910 = vunpack.c.l.b16 %v7878
      %v7911 = vunpack.c.l.b16 %v7879
      %v7912 = vunpack.c.l.b16 %v7880
      %v7913 = vunpack.c.l.b16 %v7881
      %v7914 = vunpack.c.l.b16 %v7882
      %v7915 = vunpack.c.l.b16 %v7883
      %v7916 = vunpack.c.l.b16 %v7884
      %v7917 = vunpack.c.l.b16 %v7885
      %v7918 = vunpack.c.l.b16 %v7886
      %v7919 = vunpack.c.l.b16 %v7887
      %v7920 = vpack.c.b16 %v7905, %v7904
      %v7921 = vpack.c.b16 %v7907, %v7906
      %v7922 = vpack.c.b16 %v7909, %v7908
      %v7923 = vpack.c.b16 %v7911, %v7910
      %v7924 = vpack.c.b16 %v7913, %v7912
      %v7925 = vpack.c.b16 %v7915, %v7914
      %v7926 = vpack.c.b16 %v7917, %v7916
      %v7927 = vpack.c.b16 %v7919, %v7918
      %7936 = vmatprep.subr.bf16.mxu0 0
      %7937 = vmatpush1.bf16.msra.mxu0 %v7920
      %7938 = vmatprep.subr.bf16.mxu0 0
      %7939 = vmatpush1.bf16.msra.mxu0 %v7921
      %7940 = vmatprep.subr.bf16.mxu0 0
      %7941 = vmatpush1.bf16.msra.mxu0 %v7922
      %7942 = vmatprep.subr.bf16.mxu0 0
      %7943 = vmatpush1.bf16.msra.mxu0 %v7923
      %7944 = vmatprep.subr.bf16.mxu0 0
      %7945 = vmatpush1.bf16.msra.mxu0 %v7924
      %7946 = vmatprep.subr.bf16.mxu0 0
      %7947 = vmatpush1.bf16.msra.mxu0 %v7925
      %7948 = vmatprep.subr.bf16.mxu0 0
      %7949 = vmatpush1.bf16.msra.mxu0 %v7926
      %7950 = vmatprep.subr.bf16.mxu0 0
      %7951 = vmatpush1.bf16.msra.mxu0 %v7927
      %7952 = vmatprep.subr.bf16.mxu0 0
      %7953 = vmatpush1.bf16.msra.mxu0 0
      %7954 = vmatprep.subr.bf16.mxu0 0
      %7955 = vmatpush1.bf16.msra.mxu0 0
      %7956 = vmatprep.subr.bf16.mxu0 0
      %7957 = vmatpush1.bf16.msra.mxu0 0
      %7958 = vmatprep.subr.bf16.mxu0 0
      %7959 = vmatpush1.bf16.msra.mxu0 0
      %7960 = vmatprep.subr.bf16.mxu0 0
      %7961 = vmatpush1.bf16.msra.mxu0 0
      %7962 = vmatprep.subr.bf16.mxu0 0
      %7963 = vmatpush1.bf16.msra.mxu0 0
      %7964 = vmatprep.subr.bf16.mxu0 0
      %7965 = vmatpush1.bf16.msra.mxu0 0
      %7966 = vmatprep.subr.bf16.mxu0 0
      %7967 = vmatpush1.bf16.msra.mxu0 0
      %7968 = vmatprep.mubr.bf16.mxu0 0
      %7969 = vmatmul.mubr.bf16.gmra.mrb[0].mxu0 %v7855
      %v7970 = vpop.f32.mrb[0].mxu0
      %v7971 = vadd.f32 0.0, %v7970
      %v7972 = vpop.f32.mrb[0].mxu0
      %v7973 = vpop.f32.mrb[0].mxu0
      %v7974 = vadd.f32 0.0, %v7973
      %v7975 = vpop.f32.mrb[0].mxu0
      %7976 = vmatprep.mubr.bf16.mxu0 0
      %7977 = vmatmul.mubr.bf16.gmra.mrb[0].mxu0 %v7856
      %v7978 = vpop.f32.mrb[0].mxu0
      %v7979 = vadd.f32 0.0, %v7978
      %v7980 = vpop.f32.mrb[0].mxu0
      %v7981 = vpop.f32.mrb[0].mxu0
      %v7982 = vadd.f32 0.0, %v7981
      %v7983 = vpop.f32.mrb[0].mxu0
      %7984 = vmatprep.mubr.bf16.mxu0 0
      %7985 = vmatmul.mubr.bf16.gmra.mrb[0].mxu0 %v7857
      %v7986 = vpop.f32.mrb[0].mxu0
      %v7987 = vadd.f32 0.0, %v7986
      %v7988 = vpop.f32.mrb[0].mxu0
      %v7989 = vpop.f32.mrb[0].mxu0
      %v7990 = vadd.f32 0.0, %v7989
      %v7991 = vpop.f32.mrb[0].mxu0
      %7992 = vmatprep.mubr.bf16.mxu0 0
      %7993 = vmatmul.mubr.bf16.gmra.mrb[0].mxu0 %v7858
      %v7994 = vpop.f32.mrb[0].mxu0
      %v7995 = vadd.f32 0.0, %v7994
      %v7996 = vpop.f32.mrb[0].mxu0
      %v7997 = vpop.f32.mrb[0].mxu0
      %v7998 = vadd.f32 0.0, %v7997
      %v7999 = vpop.f32.mrb[0].mxu0
      %8000 = vmatprep.mubr.bf16.mxu0 0
      %8001 = vmatmul.mubr.bf16.gmra.mrb[0].mxu0 %v7859
      %v8002 = vpop.f32.mrb[0].mxu0
      %v8003 = vadd.f32 0.0, %v8002
      %v8004 = vpop.f32.mrb[0].mxu0
      %v8005 = vpop.f32.mrb[0].mxu0
      %v8006 = vadd.f32 0.0, %v8005
      %v8007 = vpop.f32.mrb[0].mxu0
      %8008 = vmatprep.mubr.bf16.mxu0 0
      %8009 = vmatmul.mubr.bf16.gmra.mrb[0].mxu0 %v7860
      %v8010 = vpop.f32.mrb[0].mxu0
      %v8011 = vadd.f32 0.0, %v8010
      %v8012 = vpop.f32.mrb[0].mxu0
      %v8013 = vpop.f32.mrb[0].mxu0
      %v8014 = vadd.f32 0.0, %v8013
      %v8015 = vpop.f32.mrb[0].mxu0
      %8016 = vmatprep.mubr.bf16.mxu0 0
      %8017 = vmatmul.mubr.bf16.gmra.mrb[0].mxu0 %v7861
      %v8018 = vpop.f32.mrb[0].mxu0
      %v8019 = vadd.f32 0.0, %v8018
      %v8020 = vpop.f32.mrb[0].mxu0
      %v8021 = vpop.f32.mrb[0].mxu0
      %v8022 = vadd.f32 0.0, %v8021
      %v8023 = vpop.f32.mrb[0].mxu0
      %8024 = vmatprep.mubr.bf16.mxu0 0
      %8025 = vmatmul.mubr.bf16.gmra.mrb[0].mxu0 %v7862
      %v8026 = vpop.f32.mrb[0].mxu0
      %v8027 = vadd.f32 0.0, %v8026
      %v8028 = vpop.f32.mrb[0].mxu0
      %v8029 = vpop.f32.mrb[0].mxu0
      %v8030 = vadd.f32 0.0, %v8029
      %v8031 = vpop.f32.mrb[0].mxu0
      %8032 = vmatprep.mubr.bf16.mxu0 0
      %8033 = vmatmul.mubr.bf16.gmra.mrb[0].mxu0 %v7863
      %v8034 = vpop.f32.mrb[0].mxu0
      %v8035 = vadd.f32 0.0, %v8034
      %v8036 = vpop.f32.mrb[0].mxu0
      %v8037 = vpop.f32.mrb[0].mxu0
      %v8038 = vadd.f32 0.0, %v8037
      %v8039 = vpop.f32.mrb[0].mxu0
      %8040 = vmatprep.mubr.bf16.mxu0 0
      %8041 = vmatmul.mubr.bf16.gmra.mrb[0].mxu0 %v7864
      %v8042 = vpop.f32.mrb[0].mxu0
      %v8043 = vadd.f32 0.0, %v8042
      %v8044 = vpop.f32.mrb[0].mxu0
      %v8045 = vpop.f32.mrb[0].mxu0
      %v8046 = vadd.f32 0.0, %v8045
      %v8047 = vpop.f32.mrb[0].mxu0
      %8048 = vmatprep.mubr.bf16.mxu0 0
      %8049 = vmatmul.mubr.bf16.gmra.mrb[0].mxu0 %v7865
      %v8050 = vpop.f32.mrb[0].mxu0
      %v8051 = vadd.f32 0.0, %v8050
      %v8052 = vpop.f32.mrb[0].mxu0
      %v8053 = vpop.f32.mrb[0].mxu0
      %v8054 = vadd.f32 0.0, %v8053
      %v8055 = vpop.f32.mrb[0].mxu0
      %8056 = vmatprep.mubr.bf16.mxu0 0
      %8057 = vmatmul.mubr.bf16.gmra.mrb[0].mxu0 %v7866
      %v8058 = vpop.f32.mrb[0].mxu0
      %v8059 = vadd.f32 0.0, %v8058
      %v8060 = vpop.f32.mrb[0].mxu0
      %v8061 = vpop.f32.mrb[0].mxu0
      %v8062 = vadd.f32 0.0, %v8061
      %v8063 = vpop.f32.mrb[0].mxu0
      %8064 = vmatprep.mubr.bf16.mxu0 0
      %8065 = vmatmul.mubr.bf16.gmra.mrb[0].mxu0 %v7867
      %v8066 = vpop.f32.mrb[0].mxu0
      %v8067 = vadd.f32 0.0, %v8066
      %v8068 = vpop.f32.mrb[0].mxu0
      %v8069 = vpop.f32.mrb[0].mxu0
      %v8070 = vadd.f32 0.0, %v8069
      %v8071 = vpop.f32.mrb[0].mxu0
      %8072 = vmatprep.mubr.bf16.mxu0 0
      %8073 = vmatmul.mubr.bf16.gmra.mrb[0].mxu0 %v7868
      %v8074 = vpop.f32.mrb[0].mxu0
      %v8075 = vadd.f32 0.0, %v8074
      %v8076 = vpop.f32.mrb[0].mxu0
      %v8077 = vpop.f32.mrb[0].mxu0
      %v8078 = vadd.f32 0.0, %v8077
      %v8079 = vpop.f32.mrb[0].mxu0
      %8080 = vmatprep.mubr.bf16.mxu0 0
      %8081 = vmatmul.mubr.bf16.gmra.mrb[0].mxu0 %v7869
      %v8082 = vpop.f32.mrb[0].mxu0
      %v8083 = vadd.f32 0.0, %v8082
      %v8084 = vpop.f32.mrb[0].mxu0
      %v8085 = vpop.f32.mrb[0].mxu0
      %v8086 = vadd.f32 0.0, %v8085
      %v8087 = vpop.f32.mrb[0].mxu0
      %8088 = vmatprep.mubr.bf16.mxu0 0
      %8089 = vmatmul.mubr.bf16.gmra.mrb[0].mxu0 %v7870
      %v8090 = vpop.f32.mrb[0].mxu0
      %v8091 = vadd.f32 0.0, %v8090
      %v8092 = vpop.f32.mrb[0].mxu0
      %v8093 = vpop.f32.mrb[0].mxu0
      %v8094 = vadd.f32 0.0, %v8093
      %v8095 = vpop.f32.mrb[0].mxu0
      %8096 = vdwg.mxu0
      %v8097 = vadd.f32 %v7791, %v7971
      %v8098 = vadd.f32 %v7792, %v7974
      %v8099 = vadd.f32 %v7793, %v7979
      %v8100 = vadd.f32 %v7794, %v7982
      %v8101 = vadd.f32 %v7795, %v7987
      %v8102 = vadd.f32 %v7796, %v7990
      %v8103 = vadd.f32 %v7797, %v7995
      %v8104 = vadd.f32 %v7798, %v7998
      %v8105 = vadd.f32 %v7799, %v8003
      %v8106 = vadd.f32 %v7800, %v8006
      %v8107 = vadd.f32 %v7801, %v8011
      %v8108 = vadd.f32 %v7802, %v8014
      %v8109 = vadd.f32 %v7803, %v8019
      %v8110 = vadd.f32 %v7804, %v8022
      %v8111 = vadd.f32 %v7805, %v8027
      %v8112 = vadd.f32 %v7806, %v8030
      %v8113 = vadd.f32 %v7807, %v8035
      %v8114 = vadd.f32 %v7808, %v8038
      %v8115 = vadd.f32 %v7809, %v8043
      %v8116 = vadd.f32 %v7810, %v8046
      %v8117 = vadd.f32 %v7811, %v8051
      %v8118 = vadd.f32 %v7812, %v8054
      %v8119 = vadd.f32 %v7813, %v8059
      %v8120 = vadd.f32 %v7814, %v8062
      %v8121 = vadd.f32 %v7815, %v8067
      %v8122 = vadd.f32 %v7816, %v8070
      %v8123 = vadd.f32 %v7817, %v8075
      %v8124 = vadd.f32 %v7818, %v8078
      %v8125 = vadd.f32 %v7819, %v8083
      %v8126 = vadd.f32 %v7820, %v8086
      %v8127 = vadd.f32 %v7821, %v8091
      %v8128 = vadd.f32 %v7822, %v8094
      %v8129 = vld [vmem:[%s7516 + $0x2] sm:$0xff]
      %v8130 = vld [vmem:[%s7516 + $0x12] sm:$0xff]
      %v8131 = vld [vmem:[%s7516 + $0x22] sm:$0xff]
      %v8132 = vld [vmem:[%s7516 + $0x32] sm:$0xff]
      %v8133 = vld [vmem:[%s7516 + $0x42] sm:$0xff]
      %v8134 = vld [vmem:[%s7516 + $0x52] sm:$0xff]
      %v8135 = vld [vmem:[%s7516 + $0x62] sm:$0xff]
      %v8136 = vld [vmem:[%s7516 + $0x72] sm:$0xff]
      %v8137 = vld [vmem:[%s7516 + $0xa2] sm:$0xff]
      %v8138 = vld [vmem:[%s7516 + $0xb2] sm:$0xff]
      %v8139 = vld [vmem:[%s7516 + $0xc2] sm:$0xff]
      %v8140 = vld [vmem:[%s7516 + $0xd2] sm:$0xff]
      %v8141 = vld [vmem:[%s7516 + $0xe2] sm:$0xff]
      %v8142 = vld [vmem:[%s7516 + $0xf2] sm:$0xff]
      %v8143 = vld [vmem:[%s7516 + $0x102] sm:$0xff]
      %v8144 = vld [vmem:[%s7516 + $0x112] sm:$0xff]
      %v8145 = vld [vmem:[%s7516 + $0x142] sm:$0xff]
      %v8146 = vld [vmem:[%s7516 + $0x152] sm:$0xff]
      %v8147 = vld [vmem:[%s7516 + $0x162] sm:$0xff]
      %v8148 = vld [vmem:[%s7516 + $0x172] sm:$0xff]
      %v8149 = vld [vmem:[%s7516 + $0x182] sm:$0xff]
      %v8150 = vld [vmem:[%s7516 + $0x192] sm:$0xff]
      %v8151 = vld [vmem:[%s7516 + $0x1a2] sm:$0xff]
      %v8152 = vld [vmem:[%s7516 + $0x1b2] sm:$0xff]
      %v8153 = vld [vmem:[%s7516 + $0x1e2] sm:$0xff]
      %v8154 = vld [vmem:[%s7516 + $0x1f2] sm:$0xff]
      %v8155 = vld [vmem:[%s7516 + $0x202] sm:$0xff]
      %v8156 = vld [vmem:[%s7516 + $0x212] sm:$0xff]
      %v8157 = vld [vmem:[%s7516 + $0x222] sm:$0xff]
      %v8158 = vld [vmem:[%s7516 + $0x232] sm:$0xff]
      %v8159 = vld [vmem:[%s7516 + $0x242] sm:$0xff]
      %v8160 = vld [vmem:[%s7516 + $0x252] sm:$0xff]
      %v8161 = vpack.c.bf16 %v8130, %v8129
      %v8162 = vpack.c.bf16 %v8132, %v8131
      %v8163 = vpack.c.bf16 %v8134, %v8133
      %v8164 = vpack.c.bf16 %v8136, %v8135
      %v8165 = vpack.c.bf16 %v8138, %v8137
      %v8166 = vpack.c.bf16 %v8140, %v8139
      %v8167 = vpack.c.bf16 %v8142, %v8141
      %v8168 = vpack.c.bf16 %v8144, %v8143
      %v8169 = vpack.c.bf16 %v8146, %v8145
      %v8170 = vpack.c.bf16 %v8148, %v8147
      %v8171 = vpack.c.bf16 %v8150, %v8149
      %v8172 = vpack.c.bf16 %v8152, %v8151
      %v8173 = vpack.c.bf16 %v8154, %v8153
      %v8174 = vpack.c.bf16 %v8156, %v8155
      %v8175 = vpack.c.bf16 %v8158, %v8157
      %v8176 = vpack.c.bf16 %v8160, %v8159
      %s8177 = scalar_lea.vmem %s1, 1664
      %v8178 = vld [vmem:[%s8177] sm:$0xf]
      %v8179 = vld [vmem:[%s8177 + $0x4] sm:$0xf]
      %v8180 = vld [vmem:[%s8177 + $0x8] sm:$0xf]
      %v8181 = vld [vmem:[%s8177 + $0xc] sm:$0xf]
      %v8182 = vld [vmem:[%s8177 + $0x10] sm:$0xf]
      %v8183 = vld [vmem:[%s8177 + $0x14] sm:$0xf]
      %v8184 = vld [vmem:[%s8177 + $0x18] sm:$0xf]
      %v8185 = vld [vmem:[%s8177 + $0x1c] sm:$0xf]
      %v8186 = vld [vmem:[%s8177 + $0x20] sm:$0xf]
      %v8187 = vld [vmem:[%s8177 + $0x24] sm:$0xf]
      %v8188 = vld [vmem:[%s8177 + $0x28] sm:$0xf]
      %v8189 = vld [vmem:[%s8177 + $0x2c] sm:$0xf]
      %v8190 = vld [vmem:[%s8177 + $0x30] sm:$0xf]
      %v8191 = vld [vmem:[%s8177 + $0x34] sm:$0xf]
      %v8192 = vld [vmem:[%s8177 + $0x38] sm:$0xf]
      %v8193 = vld [vmem:[%s8177 + $0x3c] sm:$0xf]
      %v8210 = vunpack.c.l.b16 %v8178
      %v8211 = vunpack.c.l.b16 %v8179
      %v8212 = vunpack.c.l.b16 %v8180
      %v8213 = vunpack.c.l.b16 %v8181
      %v8214 = vunpack.c.l.b16 %v8182
      %v8215 = vunpack.c.l.b16 %v8183
      %v8216 = vunpack.c.l.b16 %v8184
      %v8217 = vunpack.c.l.b16 %v8185
      %v8218 = vunpack.c.l.b16 %v8186
      %v8219 = vunpack.c.l.b16 %v8187
      %v8220 = vunpack.c.l.b16 %v8188
      %v8221 = vunpack.c.l.b16 %v8189
      %v8222 = vunpack.c.l.b16 %v8190
      %v8223 = vunpack.c.l.b16 %v8191
      %v8224 = vunpack.c.l.b16 %v8192
      %v8225 = vunpack.c.l.b16 %v8193
      %v8226 = vpack.c.b16 %v8211, %v8210
      %v8227 = vpack.c.b16 %v8213, %v8212
      %v8228 = vpack.c.b16 %v8215, %v8214
      %v8229 = vpack.c.b16 %v8217, %v8216
      %v8230 = vpack.c.b16 %v8219, %v8218
      %v8231 = vpack.c.b16 %v8221, %v8220
      %v8232 = vpack.c.b16 %v8223, %v8222
      %v8233 = vpack.c.b16 %v8225, %v8224
      %8242 = vmatprep.subr.bf16.mxu0 0
      %8243 = vmatpush1.bf16.msra.mxu0 %v8226
      %8244 = vmatprep.subr.bf16.mxu0 0
      %8245 = vmatpush1.bf16.msra.mxu0 %v8227
      %8246 = vmatprep.subr.bf16.mxu0 0
      %8247 = vmatpush1.bf16.msra.mxu0 %v8228
      %8248 = vmatprep.subr.bf16.mxu0 0
      %8249 = vmatpush1.bf16.msra.mxu0 %v8229
      %8250 = vmatprep.subr.bf16.mxu0 0
      %8251 = vmatpush1.bf16.msra.mxu0 %v8230
      %8252 = vmatprep.subr.bf16.mxu0 0
      %8253 = vmatpush1.bf16.msra.mxu0 %v8231
      %8254 = vmatprep.subr.bf16.mxu0 0
      %8255 = vmatpush1.bf16.msra.mxu0 %v8232
      %8256 = vmatprep.subr.bf16.mxu0 0
      %8257 = vmatpush1.bf16.msra.mxu0 %v8233
      %8258 = vmatprep.subr.bf16.mxu0 0
      %8259 = vmatpush1.bf16.msra.mxu0 0
      %8260 = vmatprep.subr.bf16.mxu0 0
      %8261 = vmatpush1.bf16.msra.mxu0 0
      %8262 = vmatprep.subr.bf16.mxu0 0
      %8263 = vmatpush1.bf16.msra.mxu0 0
      %8264 = vmatprep.subr.bf16.mxu0 0
      %8265 = vmatpush1.bf16.msra.mxu0 0
      %8266 = vmatprep.subr.bf16.mxu0 0
      %8267 = vmatpush1.bf16.msra.mxu0 0
      %8268 = vmatprep.subr.bf16.mxu0 0
      %8269 = vmatpush1.bf16.msra.mxu0 0
      %8270 = vmatprep.subr.bf16.mxu0 0
      %8271 = vmatpush1.bf16.msra.mxu0 0
      %8272 = vmatprep.subr.bf16.mxu0 0
      %8273 = vmatpush1.bf16.msra.mxu0 0
      %8274 = vmatprep.mubr.bf16.mxu0 0
      %8275 = vmatmul.mubr.bf16.gmra.mrb[0].mxu0 %v8161
      %v8276 = vpop.f32.mrb[0].mxu0
      %v8277 = vadd.f32 0.0, %v8276
      %v8278 = vpop.f32.mrb[0].mxu0
      %v8279 = vpop.f32.mrb[0].mxu0
      %v8280 = vadd.f32 0.0, %v8279
      %v8281 = vpop.f32.mrb[0].mxu0
      %8282 = vmatprep.mubr.bf16.mxu0 0
      %8283 = vmatmul.mubr.bf16.gmra.mrb[0].mxu0 %v8162
      %v8284 = vpop.f32.mrb[0].mxu0
      %v8285 = vadd.f32 0.0, %v8284
      %v8286 = vpop.f32.mrb[0].mxu0
      %v8287 = vpop.f32.mrb[0].mxu0
      %v8288 = vadd.f32 0.0, %v8287
      %v8289 = vpop.f32.mrb[0].mxu0
      %8290 = vmatprep.mubr.bf16.mxu0 0
      %8291 = vmatmul.mubr.bf16.gmra.mrb[0].mxu0 %v8163
      %v8292 = vpop.f32.mrb[0].mxu0
      %v8293 = vadd.f32 0.0, %v8292
      %v8294 = vpop.f32.mrb[0].mxu0
      %v8295 = vpop.f32.mrb[0].mxu0
      %v8296 = vadd.f32 0.0, %v8295
      %v8297 = vpop.f32.mrb[0].mxu0
      %8298 = vmatprep.mubr.bf16.mxu0 0
      %8299 = vmatmul.mubr.bf16.gmra.mrb[0].mxu0 %v8164
      %v8300 = vpop.f32.mrb[0].mxu0
      %v8301 = vadd.f32 0.0, %v8300
      %v8302 = vpop.f32.mrb[0].mxu0
      %v8303 = vpop.f32.mrb[0].mxu0
      %v8304 = vadd.f32 0.0, %v8303
      %v8305 = vpop.f32.mrb[0].mxu0
      %8306 = vmatprep.mubr.bf16.mxu0 0
      %8307 = vmatmul.mubr.bf16.gmra.mrb[0].mxu0 %v8165
      %v8308 = vpop.f32.mrb[0].mxu0
      %v8309 = vadd.f32 0.0, %v8308
      %v8310 = vpop.f32.mrb[0].mxu0
      %v8311 = vpop.f32.mrb[0].mxu0
      %v8312 = vadd.f32 0.0, %v8311
      %v8313 = vpop.f32.mrb[0].mxu0
      %8314 = vmatprep.mubr.bf16.mxu0 0
      %8315 = vmatmul.mubr.bf16.gmra.mrb[0].mxu0 %v8166
      %v8316 = vpop.f32.mrb[0].mxu0
      %v8317 = vadd.f32 0.0, %v8316
      %v8318 = vpop.f32.mrb[0].mxu0
      %v8319 = vpop.f32.mrb[0].mxu0
      %v8320 = vadd.f32 0.0, %v8319
      %v8321 = vpop.f32.mrb[0].mxu0
      %8322 = vmatprep.mubr.bf16.mxu0 0
      %8323 = vmatmul.mubr.bf16.gmra.mrb[0].mxu0 %v8167
      %v8324 = vpop.f32.mrb[0].mxu0
      %v8325 = vadd.f32 0.0, %v8324
      %v8326 = vpop.f32.mrb[0].mxu0
      %v8327 = vpop.f32.mrb[0].mxu0
      %v8328 = vadd.f32 0.0, %v8327
      %v8329 = vpop.f32.mrb[0].mxu0
      %8330 = vmatprep.mubr.bf16.mxu0 0
      %8331 = vmatmul.mubr.bf16.gmra.mrb[0].mxu0 %v8168
      %v8332 = vpop.f32.mrb[0].mxu0
      %v8333 = vadd.f32 0.0, %v8332
      %v8334 = vpop.f32.mrb[0].mxu0
      %v8335 = vpop.f32.mrb[0].mxu0
      %v8336 = vadd.f32 0.0, %v8335
      %v8337 = vpop.f32.mrb[0].mxu0
      %8338 = vmatprep.mubr.bf16.mxu0 0
      %8339 = vmatmul.mubr.bf16.gmra.mrb[0].mxu0 %v8169
      %v8340 = vpop.f32.mrb[0].mxu0
      %v8341 = vadd.f32 0.0, %v8340
      %v8342 = vpop.f32.mrb[0].mxu0
      %v8343 = vpop.f32.mrb[0].mxu0
      %v8344 = vadd.f32 0.0, %v8343
      %v8345 = vpop.f32.mrb[0].mxu0
      %8346 = vmatprep.mubr.bf16.mxu0 0
      %8347 = vmatmul.mubr.bf16.gmra.mrb[0].mxu0 %v8170
      %v8348 = vpop.f32.mrb[0].mxu0
      %v8349 = vadd.f32 0.0, %v8348
      %v8350 = vpop.f32.mrb[0].mxu0
      %v8351 = vpop.f32.mrb[0].mxu0
      %v8352 = vadd.f32 0.0, %v8351
      %v8353 = vpop.f32.mrb[0].mxu0
      %8354 = vmatprep.mubr.bf16.mxu0 0
      %8355 = vmatmul.mubr.bf16.gmra.mrb[0].mxu0 %v8171
      %v8356 = vpop.f32.mrb[0].mxu0
      %v8357 = vadd.f32 0.0, %v8356
      %v8358 = vpop.f32.mrb[0].mxu0
      %v8359 = vpop.f32.mrb[0].mxu0
      %v8360 = vadd.f32 0.0, %v8359
      %v8361 = vpop.f32.mrb[0].mxu0
      %8362 = vmatprep.mubr.bf16.mxu0 0
      %8363 = vmatmul.mubr.bf16.gmra.mrb[0].mxu0 %v8172
      %v8364 = vpop.f32.mrb[0].mxu0
      %v8365 = vadd.f32 0.0, %v8364
      %v8366 = vpop.f32.mrb[0].mxu0
      %v8367 = vpop.f32.mrb[0].mxu0
      %v8368 = vadd.f32 0.0, %v8367
      %v8369 = vpop.f32.mrb[0].mxu0
      %8370 = vmatprep.mubr.bf16.mxu0 0
      %8371 = vmatmul.mubr.bf16.gmra.mrb[0].mxu0 %v8173
      %v8372 = vpop.f32.mrb[0].mxu0
      %v8373 = vadd.f32 0.0, %v8372
      %v8374 = vpop.f32.mrb[0].mxu0
      %v8375 = vpop.f32.mrb[0].mxu0
      %v8376 = vadd.f32 0.0, %v8375
      %v8377 = vpop.f32.mrb[0].mxu0
      %8378 = vmatprep.mubr.bf16.mxu0 0
      %8379 = vmatmul.mubr.bf16.gmra.mrb[0].mxu0 %v8174
      %v8380 = vpop.f32.mrb[0].mxu0
      %v8381 = vadd.f32 0.0, %v8380
      %v8382 = vpop.f32.mrb[0].mxu0
      %v8383 = vpop.f32.mrb[0].mxu0
      %v8384 = vadd.f32 0.0, %v8383
      %v8385 = vpop.f32.mrb[0].mxu0
      %8386 = vmatprep.mubr.bf16.mxu0 0
      %8387 = vmatmul.mubr.bf16.gmra.mrb[0].mxu0 %v8175
      %v8388 = vpop.f32.mrb[0].mxu0
      %v8389 = vadd.f32 0.0, %v8388
      %v8390 = vpop.f32.mrb[0].mxu0
      %v8391 = vpop.f32.mrb[0].mxu0
      %v8392 = vadd.f32 0.0, %v8391
      %v8393 = vpop.f32.mrb[0].mxu0
      %8394 = vmatprep.mubr.bf16.mxu0 0
      %8395 = vmatmul.mubr.bf16.gmra.mrb[0].mxu0 %v8176
      %v8396 = vpop.f32.mrb[0].mxu0
      %v8397 = vadd.f32 0.0, %v8396
      %v8398 = vpop.f32.mrb[0].mxu0
      %v8399 = vpop.f32.mrb[0].mxu0
      %v8400 = vadd.f32 0.0, %v8399
      %v8401 = vpop.f32.mrb[0].mxu0
      %8402 = vdwg.mxu0
      %v8403 = vadd.f32 %v8097, %v8277
      %v8404 = vadd.f32 %v8098, %v8280
      %v8405 = vadd.f32 %v8099, %v8285
      %v8406 = vadd.f32 %v8100, %v8288
      %v8407 = vadd.f32 %v8101, %v8293
      %v8408 = vadd.f32 %v8102, %v8296
      %v8409 = vadd.f32 %v8103, %v8301
      %v8410 = vadd.f32 %v8104, %v8304
      %v8411 = vadd.f32 %v8105, %v8309
      %v8412 = vadd.f32 %v8106, %v8312
      %v8413 = vadd.f32 %v8107, %v8317
      %v8414 = vadd.f32 %v8108, %v8320
      %v8415 = vadd.f32 %v8109, %v8325
      %v8416 = vadd.f32 %v8110, %v8328
      %v8417 = vadd.f32 %v8111, %v8333
      %v8418 = vadd.f32 %v8112, %v8336
      %v8419 = vadd.f32 %v8113, %v8341
      %v8420 = vadd.f32 %v8114, %v8344
      %v8421 = vadd.f32 %v8115, %v8349
      %v8422 = vadd.f32 %v8116, %v8352
      %v8423 = vadd.f32 %v8117, %v8357
      %v8424 = vadd.f32 %v8118, %v8360
      %v8425 = vadd.f32 %v8119, %v8365
      %v8426 = vadd.f32 %v8120, %v8368
      %v8427 = vadd.f32 %v8121, %v8373
      %v8428 = vadd.f32 %v8122, %v8376
      %v8429 = vadd.f32 %v8123, %v8381
      %v8430 = vadd.f32 %v8124, %v8384
      %v8431 = vadd.f32 %v8125, %v8389
      %v8432 = vadd.f32 %v8126, %v8392
      %v8433 = vadd.f32 %v8127, %v8397
      %v8434 = vadd.f32 %v8128, %v8400
      %8435 = vst [vmem:[%s220] sm:$0xff] %v8403
      %8436 = vst [vmem:[%s220 + $0x8] sm:$0xff] %v8404
      %8437 = vst [vmem:[%s220 + $0x10] sm:$0xff] %v8405
      %8438 = vst [vmem:[%s220 + $0x18] sm:$0xff] %v8406
      %8439 = vst [vmem:[%s220 + $0x20] sm:$0xff] %v8407
      %8440 = vst [vmem:[%s220 + $0x28] sm:$0xff] %v8408
      %8441 = vst [vmem:[%s220 + $0x30] sm:$0xff] %v8409
      %8442 = vst [vmem:[%s220 + $0x38] sm:$0xff] %v8410
      %8443 = vst [vmem:[%s220 + $0x40] sm:$0xff] %v8411
      %8444 = vst [vmem:[%s220 + $0x48] sm:$0xff] %v8412
      %8445 = vst [vmem:[%s220 + $0x50] sm:$0xff] %v8413
      %8446 = vst [vmem:[%s220 + $0x58] sm:$0xff] %v8414
      %8447 = vst [vmem:[%s220 + $0x60] sm:$0xff] %v8415
      %8448 = vst [vmem:[%s220 + $0x68] sm:$0xff] %v8416
      %8449 = vst [vmem:[%s220 + $0x70] sm:$0xff] %v8417
      %8450 = vst [vmem:[%s220 + $0x78] sm:$0xff] %v8418
      %8451 = vst [vmem:[%s220 + $0x80] sm:$0xff] %v8419
      %8452 = vst [vmem:[%s220 + $0x88] sm:$0xff] %v8420
      %8453 = vst [vmem:[%s220 + $0x90] sm:$0xff] %v8421
      %8454 = vst [vmem:[%s220 + $0x98] sm:$0xff] %v8422
      %8455 = vst [vmem:[%s220 + $0xa0] sm:$0xff] %v8423
      %8456 = vst [vmem:[%s220 + $0xa8] sm:$0xff] %v8424
      %8457 = vst [vmem:[%s220 + $0xb0] sm:$0xff] %v8425
      %8458 = vst [vmem:[%s220 + $0xb8] sm:$0xff] %v8426
      %8459 = vst [vmem:[%s220 + $0xc0] sm:$0xff] %v8427
      %8460 = vst [vmem:[%s220 + $0xc8] sm:$0xff] %v8428
      %8461 = vst [vmem:[%s220 + $0xd0] sm:$0xff] %v8429
      %8462 = vst [vmem:[%s220 + $0xd8] sm:$0xff] %v8430
      %8463 = vst [vmem:[%s220 + $0xe0] sm:$0xff] %v8431
      %8464 = vst [vmem:[%s220 + $0xe8] sm:$0xff] %v8432
      %8465 = vst [vmem:[%s220 + $0xf0] sm:$0xff] %v8433
      %8466 = vst [vmem:[%s220 + $0xf8] sm:$0xff] %v8434
      %v8467 = vadd.f32 %v8403, %v8404
      %v8468 = vadd.f32 %v8467, %v8405
      %v8469 = vadd.f32 %v8468, %v8406
      %v8470 = vadd.f32 %v8469, %v8407
      %v8471 = vadd.f32 %v8470, %v8408
      %v8472 = vadd.f32 %v8471, %v8409
      %v8473 = vadd.f32 %v8472, %v8410
      %v8474 = vadd.f32 %v8473, %v8411
      %v8475 = vadd.f32 %v8474, %v8412
      %v8476 = vadd.f32 %v8475, %v8413
      %v8477 = vadd.f32 %v8476, %v8414
      %v8478 = vadd.f32 %v8477, %v8415
      %v8479 = vadd.f32 %v8478, %v8416
      %v8480 = vadd.f32 %v8479, %v8417
      %v8481 = vadd.f32 %v8480, %v8418
      %v8482 = vadd.f32 %v8481, %v8419
      %v8483 = vadd.f32 %v8482, %v8420
      %v8484 = vadd.f32 %v8483, %v8421
      %v8485 = vadd.f32 %v8484, %v8422
      %v8486 = vadd.f32 %v8485, %v8423
      %v8487 = vadd.f32 %v8486, %v8424
      %v8488 = vadd.f32 %v8487, %v8425
      %v8489 = vadd.f32 %v8488, %v8426
      %v8490 = vadd.f32 %v8489, %v8427
      %v8491 = vadd.f32 %v8490, %v8428
      %v8492 = vadd.f32 %v8491, %v8429
      %v8493 = vadd.f32 %v8492, %v8430
      %v8494 = vadd.f32 %v8493, %v8431
      %v8495 = vadd.f32 %v8494, %v8432
      %v8496 = vadd.f32 %v8495, %v8433
      %v8497 = vadd.f32 %v8496, %v8434
      %v8498 = vrot.slane %v8497, 4
      %v8499 = vadd.f32 %v8497, %v8498
      %v8500 = vrot.slane %v8499, 2
      %v8501 = vadd.f32 %v8499, %v8500
      %v8502 = vrot.slane %v8501, 1
      %v8503 = vadd.f32 %v8501, %v8502
      %8504 = vst [vmem:[%s228] sm:$0x1] %v8503
      %v8505 = vmul.f32 %v8403, %v8403
      %v8506 = vmul.f32 %v8404, %v8404
      %v8507 = vmul.f32 %v8405, %v8405
      %v8508 = vmul.f32 %v8406, %v8406
      %v8509 = vmul.f32 %v8407, %v8407
      %v8510 = vmul.f32 %v8408, %v8408
      %v8511 = vmul.f32 %v8409, %v8409
      %v8512 = vmul.f32 %v8410, %v8410
      %v8513 = vmul.f32 %v8411, %v8411
      %v8514 = vmul.f32 %v8412, %v8412
      %v8515 = vmul.f32 %v8413, %v8413
      %v8516 = vmul.f32 %v8414, %v8414
      %v8517 = vmul.f32 %v8415, %v8415
      %v8518 = vmul.f32 %v8416, %v8416
      %v8519 = vmul.f32 %v8417, %v8417
      %v8520 = vmul.f32 %v8418, %v8418
      %v8521 = vmul.f32 %v8419, %v8419
      %v8522 = vmul.f32 %v8420, %v8420
      %v8523 = vmul.f32 %v8421, %v8421
      %v8524 = vmul.f32 %v8422, %v8422
      %v8525 = vmul.f32 %v8423, %v8423
      %v8526 = vmul.f32 %v8424, %v8424
      %v8527 = vmul.f32 %v8425, %v8425
      %v8528 = vmul.f32 %v8426, %v8426
      %v8529 = vmul.f32 %v8427, %v8427
      %v8530 = vmul.f32 %v8428, %v8428
      %v8531 = vmul.f32 %v8429, %v8429
      %v8532 = vmul.f32 %v8430, %v8430
      %v8533 = vmul.f32 %v8431, %v8431
      %v8534 = vmul.f32 %v8432, %v8432
      %v8535 = vmul.f32 %v8433, %v8433
      %v8536 = vmul.f32 %v8434, %v8434
      %v8537 = vadd.f32 %v8505, %v8506
      %v8538 = vadd.f32 %v8537, %v8507
      %v8539 = vadd.f32 %v8538, %v8508
      %v8540 = vadd.f32 %v8539, %v8509
      %v8541 = vadd.f32 %v8540, %v8510
      %v8542 = vadd.f32 %v8541, %v8511
      %v8543 = vadd.f32 %v8542, %v8512
      %v8544 = vadd.f32 %v8543, %v8513
      %v8545 = vadd.f32 %v8544, %v8514
      %v8546 = vadd.f32 %v8545, %v8515
      %v8547 = vadd.f32 %v8546, %v8516
      %v8548 = vadd.f32 %v8547, %v8517
      %v8549 = vadd.f32 %v8548, %v8518
      %v8550 = vadd.f32 %v8549, %v8519
      %v8551 = vadd.f32 %v8550, %v8520
      %v8552 = vadd.f32 %v8551, %v8521
      %v8553 = vadd.f32 %v8552, %v8522
      %v8554 = vadd.f32 %v8553, %v8523
      %v8555 = vadd.f32 %v8554, %v8524
      %v8556 = vadd.f32 %v8555, %v8525
      %v8557 = vadd.f32 %v8556, %v8526
      %v8558 = vadd.f32 %v8557, %v8527
      %v8559 = vadd.f32 %v8558, %v8528
      %v8560 = vadd.f32 %v8559, %v8529
      %v8561 = vadd.f32 %v8560, %v8530
      %v8562 = vadd.f32 %v8561, %v8531
      %v8563 = vadd.f32 %v8562, %v8532
      %v8564 = vadd.f32 %v8563, %v8533
      %v8565 = vadd.f32 %v8564, %v8534
      %v8566 = vadd.f32 %v8565, %v8535
      %v8567 = vadd.f32 %v8566, %v8536
      %v8568 = vrot.slane %v8567, 4
      %v8569 = vadd.f32 %v8567, %v8568
      %v8570 = vrot.slane %v8569, 2
      %v8571 = vadd.f32 %v8569, %v8570
      %v8572 = vrot.slane %v8571, 1
      %v8573 = vadd.f32 %v8571, %v8572
      %8574 = vst [vmem:[%s228 + $0x1] sm:$0x1] %v8573
      %s8575 = smul.u32 4, %s20
      %p8576 = scmp.lt.s32.totalorder %s19, 1
      %s8577 = scalar_select %p8576, %s19, 1
      %p8578 = scmp.lt.s32.totalorder %s8575, 3
      %s8579 = scalar_select %p8578, %s8575, 3
      %s8580 = smul.addr %s8579, 8
      %s8581 = smul.addr %s8577, 32
      %s8582 = sadd.s32 %s8580, %s8581
      %s8583 = smul.addr %s8582, 8
      %s8584 = scalar_lea.vmem %s2, %s8583
      %p8585 = scmp.lt.s32.totalorder %s19, 1
      %s8586 = scalar_select %p8585, %s19, 1
      %p8587 = scmp.lt.s32.totalorder %s20, 0
      %s8588 = scalar_select %p8587, %s20, 0
      %s8589 = sadd.s32 %s8588, %s8586
      %s8590 = smul.addr %s8589, 2
      %s8591 = scalar_lea.vmem %s3, %s8590
      // Predicated region
      $region29: #{residual_block.4} parent=27 // pred_check
        %p8592 = pneg %p96
      $region30: #{residual_block.4} parent=27 // pred_check_branch
        %8594 = sbr.rel (%p8592) target = $region32
      $region31: #{residual_block.4} parent=27 // pred_region
        %s8595 = smul.u32 4, %s20
      $region32: #{residual_block.4} parent=27 // pred_fallthru
        _
      // Predicated region
      $region33: #{residual_block.4} parent=27 // pred_check
        %p8596 = pneg %p124
      $region34: #{residual_block.4} parent=27 // pred_check_branch
        %8598 = sbr.rel (%p8596) target = $region36
      $region35: #{residual_block.4} parent=27 // pred_region
        _
      $region36: #{residual_block.4} parent=27 // pred_fallthru
        _
    $region28: #{residual_block.4} parent=5 // pred_fallthru
      _
    %p8599 = scmp.le.s32.totalorder 2, %s10
    // Predicated region
    $region37: #{residual_block.4} parent=5 // pred_check
      %p8600 = pneg %p8599
    $region38: #{residual_block.4} parent=5 // pred_check_branch
      %8602 = sbr.rel (%p8600) target = $region40
    $region39: #{residual_block.4} parent=5 // pred_region
      %s8603 = ssub.s32 %s10, 2
      // Predicated region
      $region41: #{residual_block.4} parent=39 // pred_check
        %p8604 = pneg %p102
      $region42: #{residual_block.4} parent=39 // pred_check_branch
        %8606 = sbr.rel (%p8604) target = $region44
      $region43: #{residual_block.4} parent=39 // pred_region
        %s8607 = smul.u32 4, %s22
        %p8608 = scmp.lt.s32.totalorder %s21, 1
        %s8609 = scalar_select %p8608, %s21, 1
        %p8610 = scmp.lt.s32.totalorder %s8607, 3
        %s8611 = scalar_select %p8610, %s8607, 3
        %s8612 = smul.addr %s8611, 8
        %s8613 = smul.addr %s8609, 32
        %s8614 = sadd.s32 %s8612, %s8613
        %s8615 = smul.addr %s8614, 8
        %s8616 = scalar_lea.vmem %s2, %s8615
      $region44: #{residual_block.4} parent=39 // pred_fallthru
        _
      // Predicated region
      $region45: #{residual_block.4} parent=39 // pred_check
        %p8617 = pneg %p130
      $region46: #{residual_block.4} parent=39 // pred_check_branch
        %8619 = sbr.rel (%p8617) target = $region48
      $region47: #{residual_block.4} parent=39 // pred_region
        %p8620 = scmp.lt.s32.totalorder %s21, 1
        %s8621 = scalar_select %p8620, %s21, 1
        %p8622 = scmp.lt.s32.totalorder %s22, 0
        %s8623 = scalar_select %p8622, %s22, 0
        %s8624 = sadd.s32 %s8623, %s8621
        %s8625 = smul.addr %s8624, 2
        %s8626 = scalar_lea.vmem %s3, %s8625
      $region48: #{residual_block.4} parent=39 // pred_fallthru
        _
    $region40: #{residual_block.4} parent=5 // pred_fallthru
      _
  $region6: #{residual_block.4} parent=0 // loop_footer
    %s14 = sadd.s32 1, %s10
  $region7: #{residual_block.4} parent=0 // loop_footer_branch
    %9 = sbr.rel target = $region3
  $region8: #{residual_block.4} parent=0 // loop_exit
    _

</llo_original>
